<compile_context>
chip_gen: v7x
topology: tpu7x:2x2x1
jax: 0.10.0
libtpu: 0.0.40
codegen_flags: <defaults>
</compile_context>

<pallas_src>
import jax
import jax.numpy as jnp
from jax.experimental import pallas as pl
from jax.experimental.pallas import tpu as pltpu

EPS = 1e-5
VMEM_LIMIT = 32 * 1024 * 1024

_COMPILER_PARAMS = pltpu.CompilerParams(
    dimension_semantics=("parallel",),
    vmem_limit_bytes=VMEM_LIMIT,
)


# --------------------------------------------------------------------------
# Conv kernel factory.
#   apply_pre: fuse previous layer's BN affine + per-channel PReLU + border
#              re-mask into the input transform (conv2).  conv1 skips it.
#   pad_out:   write the conv result in spatially padded layout with an
#              exact-zero 1-pixel border (conv1), so the next conv reads it
#              directly with no XLA re-pad.
# The kernel also emits per-block BatchNorm partials (sum, sum_sq) in f32.
# --------------------------------------------------------------------------
def _make_conv_kernel(apply_pre, pad_out):
    def kernel(*refs):
        if apply_pre:
            x_ref, sc_ref, sh_ref, a_ref, w_ref, b_ref, y_ref, s_ref = refs
        else:
            x_ref, w_ref, b_ref, y_ref, s_ref = refs

        Bt, Hp2, Wp2, Cp = x_ref.shape
        H, W = Hp2 - 2, Wp2 - 2
        M = Bt * H * W

        if apply_pre:
            # BN1 affine + PReLU on the padded bf16 input, in f32.
            z = x_ref[...].astype(jnp.float32) * sc_ref[...] + sh_ref[...]
            z = jnp.where(z >= 0.0, z, a_ref[...] * z)
            # The conv's zero padding must be exact zeros of the ACTIVATION,
            # so re-mask the 1-pixel border with a per-pixel 2-D mask.
            r = jax.lax.broadcasted_iota(jnp.int32, (Hp2, Wp2, 1), 0)
            c = jax.lax.broadcasted_iota(jnp.int32, (Hp2, Wp2, 1), 1)
            interior = (r >= 1) & (r <= H) & (c >= 1) & (c <= W)
            z = jnp.where(interior, z, 0.0).astype(jnp.bfloat16)
        else:
            z = x_ref[...]  # bf16, border already exact zeros

        # 3x3 conv as 9 per-tap MXU matmuls accumulated in f32 (no 9x im2col
        # scratch; each tap operand is a lane-dense (M, Cp) bf16 slab).
        acc = jnp.zeros((M, Cp), jnp.float32)
        for ky in range(3):
            for kx in range(3):
                t = ky * 3 + kx
                a = z[:, ky:ky + H, kx:kx + W, :].reshape(M, Cp)
                acc = acc + jnp.dot(a, w_ref[t],
                                    preferred_element_type=jnp.float32)
        acc = acc + b_ref[...]

        # Per-block BatchNorm partials (f32, computed before the bf16 store).
        ssum = jnp.sum(acc, axis=0, keepdims=True)
        ssq = jnp.sum(acc * acc, axis=0, keepdims=True)
        s_ref[...] = jnp.concatenate([ssum, ssq], axis=0).reshape(1, 2, Cp)

        yb = acc.reshape(Bt, H, W, Cp).astype(y_ref.dtype)
        if pad_out:
            # Write border strips (zeros) + interior exactly once each.
            zrow = jnp.zeros((Bt, 1, Wp2, Cp), y_ref.dtype)
            zcol = jnp.zeros((Bt, H, 1, Cp), y_ref.dtype)
            y_ref[:, 0:1, :, :] = zrow
            y_ref[:, H + 1:H + 2, :, :] = zrow
            y_ref[:, 1:H + 1, 0:1, :] = zcol
            y_ref[:, 1:H + 1, W + 1:W + 2, :] = zcol
            y_ref[:, 1:H + 1, 1:W + 1, :] = yb
        else:
            y_ref[...] = yb

    return kernel


# --------------------------------------------------------------------------
# Kernel 3: BN2 affine + residual add (memory bound; y2 arrives as bf16).
# --------------------------------------------------------------------------
def bn_residual_kernel(y_ref, x_ref, sc_ref, sh_ref, o_ref):
    o_ref[...] = (y_ref[...].astype(jnp.float32) * sc_ref[...]
                  + sh_ref[...] + x_ref[...])


# --------------------------------------------------------------------------
# Wrappers
# --------------------------------------------------------------------------
def _pick_bt(n, h, w, target_m=512):
    """Largest divisor of n with bt*h*w close to target_m rows of matmul M."""
    want = max(1, target_m // (h * w))
    bt = 1
    for d in range(1, n + 1):
        if n % d == 0 and d <= want:
            bt = d
    return bt


def _conv_call(inp_pad, w, b, pre, pad_out, bt):
    N, Hp2, Wp2, Cp = inp_pad.shape
    H, W = Hp2 - 2, Wp2 - 2
    G = N // bt
    apply_pre = pre is not None

    in_specs = [pl.BlockSpec((bt, Hp2, Wp2, Cp), lambda n: (n, 0, 0, 0))]
    args = [inp_pad]
    if apply_pre:
        for t in pre:  # scale, shift, prelu alpha
            in_specs.append(pl.BlockSpec((1, Cp), lambda n: (0, 0)))
            args.append(t)
    in_specs += [pl.BlockSpec((9, Cp, Cp), lambda n: (0, 0, 0)),
                 pl.BlockSpec((1, Cp), lambda n: (0, 0))]
    args += [w, b]

    if pad_out:
        y_shape = (N, Hp2, Wp2, Cp)
        y_spec = pl.BlockSpec((bt, Hp2, Wp2, Cp), lambda n: (n, 0, 0, 0))
    else:
        y_shape = (N, H, W, Cp)
        y_spec = pl.BlockSpec((bt, H, W, Cp), lambda n: (n, 0, 0, 0))

    y_elems = 1
    for d in y_shape:
        y_elems *= d
    flops = 2 * N * H * W * 9 * Cp * Cp
    bytes_accessed = (inp_pad.size * 2 + w.size * 2 + b.size * 4
                      + y_elems * 2 + G * 2 * Cp * 4)

    return pl.pallas_call(
        _make_conv_kernel(apply_pre, pad_out),
        grid=(G,),
        in_specs=in_specs,
        out_specs=[y_spec, pl.BlockSpec((1, 2, Cp), lambda n: (n, 0, 0))],
        out_shape=[jax.ShapeDtypeStruct(y_shape, jnp.bfloat16),
                   jax.ShapeDtypeStruct((G, 2, Cp), jnp.float32)],
        compiler_params=_COMPILER_PARAMS,
        cost_estimate=pl.CostEstimate(flops=int(flops), transcendentals=0,
                                      bytes_accessed=int(bytes_accessed)),
    )(*args)


def _bn_affine(stats, gamma_row, beta_row, count):
    """Combine per-block (sum, sum_sq) partials into BN scale/shift rows."""
    s = jnp.sum(stats, axis=0)                  # (2, Cp)
    mean = (s[0] / count)[None, :]
    ex2 = (s[1] / count)[None, :]
    var = jnp.maximum(ex2 - mean * mean, 0.0)   # biased variance
    scale = gamma_row / jnp.sqrt(var + EPS)
    shift = beta_row - mean * scale
    return scale, shift


def residual_block(x_nchw, params):
    """x_nchw: [N, C, H, W] float32 (PyTorch layout). Returns [N, C, H, W]."""
    N, C, H, W = x_nchw.shape
    Cp = ((C + 127) // 128) * 128
    bt = _pick_bt(N, H, W)

    # NCHW -> NHWC once; zero-pad channels to a lane-dense Cp.
    x_c = jnp.transpose(x_nchw, (0, 2, 3, 1)).astype(jnp.float32)
    x_c = jnp.pad(x_c, ((0, 0), (0, 0), (0, 0), (0, Cp - C)))
    # Spatially padded bf16 copy for conv1 (border exact zeros).
    x_sp = jnp.pad(x_c, ((0, 0), (1, 1), (1, 1), (0, 0))).astype(jnp.bfloat16)

    def prep_w(w):  # PyTorch (Cout, Cin, 3, 3) -> (9, Cp_in, Cp_out) bf16
        w = jnp.transpose(w, (2, 3, 1, 0)).astype(jnp.float32)  # (3,3,Cin,Cout)
        w = jnp.pad(w, ((0, 0), (0, 0), (0, Cp - C), (0, Cp - C)))
        return w.reshape(9, Cp, Cp).astype(jnp.bfloat16)

    def row(v):
        return jnp.pad(v.astype(jnp.float32), (0, Cp - C)).reshape(1, Cp)

    w1, w2 = prep_w(params["w1"]), prep_w(params["w2"])
    b1, b2 = row(params["b1"]), row(params["b2"])
    g1, be1 = row(params["g1"]), row(params["be1"])
    g2, be2 = row(params["g2"]), row(params["be2"])
    alpha = row(params["a"])
    count = float(N * H * W)

    # conv1 (no pre-transform) -> padded bf16 output + BN1 partials.
    y1p, st1 = _conv_call(x_sp, w1, b1, pre=None, pad_out=True, bt=bt)
    sc1, sh1 = _bn_affine(st1, g1, be1, count)

    # BN1 + PReLU fused into conv2; conv2 -> bf16 output + BN2 partials.
    y2, st2 = _conv_call(y1p, w2, b2, pre=(sc1, sh1, alpha),
                         pad_out=False, bt=bt)
    sc2, sh2 = _bn_affine(st2, g2, be2, count)

    # BN2 affine + residual add.
    res_bytes = (N * H * W * Cp) * (2 + 4 + 4) + 2 * Cp * 4 * 2
    out = pl.pallas_call(
        bn_residual_kernel,
        grid=(N // bt,),
        in_specs=[
            pl.BlockSpec((bt, H, W, Cp), lambda n: (n, 0, 0, 0)),
            pl.BlockSpec((bt, H, W, Cp), lambda n: (n, 0, 0, 0)),
            pl.BlockSpec((1, Cp), lambda n: (0, 0)),
            pl.BlockSpec((1, Cp), lambda n: (0, 0)),
        ],
        out_specs=pl.BlockSpec((bt, H, W, Cp), lambda n: (n, 0, 0, 0)),
        out_shape=jax.ShapeDtypeStruct((N, H, W, Cp), jnp.float32),
        compiler_params=_COMPILER_PARAMS,
        cost_estimate=pl.CostEstimate(flops=int(3 * N * H * W * Cp),
                                      transcendentals=0,
                                      bytes_accessed=int(res_bytes)),
    )(y2, x_c, sc2, sh2)

    out = out[..., :C]                         # drop channel padding
    return jnp.transpose(out, (0, 3, 1, 2))    # back to NCHW


def init_params(channels, key):
    ks = jax.random.split(key, 8)
    C = channels
    return dict(
        w1=0.1 * jax.random.normal(ks[0], (C, C, 3, 3), jnp.float32),
        b1=0.1 * jax.random.normal(ks[1], (C,), jnp.float32),
        g1=1.0 + 0.1 * jax.random.normal(ks[2], (C,), jnp.float32),
        be1=0.1 * jax.random.normal(ks[3], (C,), jnp.float32),
        a=jnp.full((C,), 0.25, jnp.float32),     # nn.PReLU(channels) default
        w2=0.1 * jax.random.normal(ks[4], (C, C, 3, 3), jnp.float32),
        b2=0.1 * jax.random.normal(ks[5], (C,), jnp.float32),
        g2=1.0 + 0.1 * jax.random.normal(ks[6], (C,), jnp.float32),
        be2=0.1 * jax.random.normal(ks[7], (C,), jnp.float32),
    )


def _reference(x, p):
    """Pure-JAX f32 reference mirroring the PyTorch module (training-mode BN)."""
    def conv(h, w, b):
        y = jax.lax.conv_general_dilated(
            h, w, window_strides=(1, 1), padding=((1, 1), (1, 1)),
            dimension_numbers=("NCHW", "OIHW", "NCHW"))
        return y + b.reshape(1, -1, 1, 1)

    def bn(h, g, be):
        mean = jnp.mean(h, axis=(0, 2, 3), keepdims=True)
        var = jnp.var(h, axis=(0, 2, 3), keepdims=True)  # biased
        return (h - mean) / jnp.sqrt(var + EPS) * g.reshape(1, -1, 1, 1) \
            + be.reshape(1, -1, 1, 1)

    def prelu(h, a):
        a = a.reshape(1, -1, 1, 1)
        return jnp.where(h >= 0, h, a * h)

    y = conv(x, p["w1"], p["b1"])
    y = prelu(bn(y, p["g1"], p["be1"]), p["a"])
    y = conv(y, p["w2"], p["b2"])
    y = bn(y, p["g2"], p["be2"])
    return y + x


if __name__ == "__main__":
    key = jax.random.PRNGKey(0)
    k_x, k_p = jax.random.split(key)

    N, C, H, W = 2, 4, 16, 16
    x = jax.random.normal(k_x, (N, C, H, W), jnp.float32)
    params = init_params(C, k_p)

    y = jax.jit(residual_block)(x, params)
    jax.block_until_ready(y)
    assert y.shape == (N, C, H, W)

    # Correctness check vs pure-JAX reference (bf16 matmul tolerance).
    y_ref = _reference(x, params)
    err = float(jnp.max(jnp.abs(y - y_ref)))
    assert err < 1e-1, f"max abs err {err}"
    print("KERNEL_OK")
</pallas_src>

<mosaic_0001>
module attributes {stable_mosaic.version = 11 : i64} {
  func.func @kernel(%arg0: i32, %arg1: memref<2x18x18x128xbf16, #tpu.memory_space<vmem>>, %arg2: memref<9x128x128xbf16, #tpu.memory_space<vmem>>, %arg3: memref<1x128xf32, #tpu.memory_space<vmem>>, %arg4: memref<2x18x18x128xbf16, #tpu.memory_space<vmem>>, %arg5: memref<1x2x128xf32, #tpu.memory_space<vmem>>) attributes {dimension_semantics = [#tpu.dimension_semantics<parallel>], iteration_bounds = array<i64: 1>, scalar_prefetch = 0 : i64, scratch_operands = 0 : i64, tpu.core_type = #tpu.core_type<tc>, window_params = [{transform_indices = @transform_0, window_bounds = array<i64: 2, 18, 18, 128>}, {pipeline_mode = #tpu.pipeline_mode<synchronous>, transform_indices = @transform_1, window_bounds = array<i64: 9, 128, 128>}, {pipeline_mode = #tpu.pipeline_mode<synchronous>, transform_indices = @transform_2, window_bounds = array<i64: 1, 128>}, {transform_indices = @transform_3, window_bounds = array<i64: 2, 18, 18, 128>}, {transform_indices = @transform_4, window_bounds = array<i64: 1, 2, 128>}]} {
    %c0 = arith.constant 0 : index
    %c0_0 = arith.constant 0 : index
    %c0_1 = arith.constant 0 : index
    %c0_2 = arith.constant 0 : index
    %0 = vector.load %arg1[%c0, %c0_0, %c0_1, %c0_2] : memref<2x18x18x128xbf16, #tpu.memory_space<vmem>>, vector<2x18x18x128xbf16>
    %cst = arith.constant 0.000000e+00 : f32
    %1 = vector.broadcast %cst : f32 to vector<512x128xf32>
    %2 = vector.extract_strided_slice %0 {offsets = [0, 0, 0, 0], sizes = [2, 16, 16, 128], strides = [1, 1, 1, 1]} : vector<2x18x18x128xbf16> to vector<2x16x16x128xbf16>
    %3 = vector.shape_cast %2 : vector<2x16x16x128xbf16> to vector<512x128xbf16>
    %c0_3 = arith.constant 0 : index
    %c0_4 = arith.constant 0 : index
    %c0_5 = arith.constant 0 : index
    %4 = vector.load %arg2[%c0_3, %c0_4, %c0_5] : memref<9x128x128xbf16, #tpu.memory_space<vmem>>, vector<1x128x128xbf16>
    %5 = vector.shape_cast %4 : vector<1x128x128xbf16> to vector<128x128xbf16>
    %cst_6 = arith.constant dense<0.000000e+00> : vector<512x128xf32>
    %6 = tpu.matmul %3, %5, %cst_6 {dimension_numbers = #tpu.dot_dimension_numbers<[1], [0], [0], [1], [0, 0, 1, 1], [], []>} : vector<512x128xbf16>, vector<128x128xbf16>, vector<512x128xf32> -> vector<512x128xf32>
    %7 = arith.addf %1, %6 : vector<512x128xf32>
    %8 = vector.extract_strided_slice %0 {offsets = [0, 0, 1, 0], sizes = [2, 16, 16, 128], strides = [1, 1, 1, 1]} : vector<2x18x18x128xbf16> to vector<2x16x16x128xbf16>
    %9 = vector.shape_cast %8 : vector<2x16x16x128xbf16> to vector<512x128xbf16>
    %c1 = arith.constant 1 : index
    %c0_7 = arith.constant 0 : index
    %c0_8 = arith.constant 0 : index
    %10 = vector.load %arg2[%c1, %c0_7, %c0_8] : memref<9x128x128xbf16, #tpu.memory_space<vmem>>, vector<1x128x128xbf16>
    %11 = vector.shape_cast %10 : vector<1x128x128xbf16> to vector<128x128xbf16>
    %cst_9 = arith.constant dense<0.000000e+00> : vector<512x128xf32>
    %12 = tpu.matmul %9, %11, %cst_9 {dimension_numbers = #tpu.dot_dimension_numbers<[1], [0], [0], [1], [0, 0, 1, 1], [], []>} : vector<512x128xbf16>, vector<128x128xbf16>, vector<512x128xf32> -> vector<512x128xf32>
    %13 = arith.addf %7, %12 : vector<512x128xf32>
    %14 = vector.extract_strided_slice %0 {offsets = [0, 0, 2, 0], sizes = [2, 16, 16, 128], strides = [1, 1, 1, 1]} : vector<2x18x18x128xbf16> to vector<2x16x16x128xbf16>
    %15 = vector.shape_cast %14 : vector<2x16x16x128xbf16> to vector<512x128xbf16>
    %c2 = arith.constant 2 : index
    %c0_10 = arith.constant 0 : index
    %c0_11 = arith.constant 0 : index
    %16 = vector.load %arg2[%c2, %c0_10, %c0_11] : memref<9x128x128xbf16, #tpu.memory_space<vmem>>, vector<1x128x128xbf16>
    %17 = vector.shape_cast %16 : vector<1x128x128xbf16> to vector<128x128xbf16>
    %cst_12 = arith.constant dense<0.000000e+00> : vector<512x128xf32>
    %18 = tpu.matmul %15, %17, %cst_12 {dimension_numbers = #tpu.dot_dimension_numbers<[1], [0], [0], [1], [0, 0, 1, 1], [], []>} : vector<512x128xbf16>, vector<128x128xbf16>, vector<512x128xf32> -> vector<512x128xf32>
    %19 = arith.addf %13, %18 : vector<512x128xf32>
    %20 = vector.extract_strided_slice %0 {offsets = [0, 1, 0, 0], sizes = [2, 16, 16, 128], strides = [1, 1, 1, 1]} : vector<2x18x18x128xbf16> to vector<2x16x16x128xbf16>
    %21 = vector.shape_cast %20 : vector<2x16x16x128xbf16> to vector<512x128xbf16>
    %c3 = arith.constant 3 : index
    %c0_13 = arith.constant 0 : index
    %c0_14 = arith.constant 0 : index
    %22 = vector.load %arg2[%c3, %c0_13, %c0_14] : memref<9x128x128xbf16, #tpu.memory_space<vmem>>, vector<1x128x128xbf16>
    %23 = vector.shape_cast %22 : vector<1x128x128xbf16> to vector<128x128xbf16>
    %cst_15 = arith.constant dense<0.000000e+00> : vector<512x128xf32>
    %24 = tpu.matmul %21, %23, %cst_15 {dimension_numbers = #tpu.dot_dimension_numbers<[1], [0], [0], [1], [0, 0, 1, 1], [], []>} : vector<512x128xbf16>, vector<128x128xbf16>, vector<512x128xf32> -> vector<512x128xf32>
    %25 = arith.addf %19, %24 : vector<512x128xf32>
    %26 = vector.extract_strided_slice %0 {offsets = [0, 1, 1, 0], sizes = [2, 16, 16, 128], strides = [1, 1, 1, 1]} : vector<2x18x18x128xbf16> to vector<2x16x16x128xbf16>
    %27 = vector.shape_cast %26 : vector<2x16x16x128xbf16> to vector<512x128xbf16>
    %c4 = arith.constant 4 : index
    %c0_16 = arith.constant 0 : index
    %c0_17 = arith.constant 0 : index
    %28 = vector.load %arg2[%c4, %c0_16, %c0_17] : memref<9x128x128xbf16, #tpu.memory_space<vmem>>, vector<1x128x128xbf16>
    %29 = vector.shape_cast %28 : vector<1x128x128xbf16> to vector<128x128xbf16>
    %cst_18 = arith.constant dense<0.000000e+00> : vector<512x128xf32>
    %30 = tpu.matmul %27, %29, %cst_18 {dimension_numbers = #tpu.dot_dimension_numbers<[1], [0], [0], [1], [0, 0, 1, 1], [], []>} : vector<512x128xbf16>, vector<128x128xbf16>, vector<512x128xf32> -> vector<512x128xf32>
    %31 = arith.addf %25, %30 : vector<512x128xf32>
    %32 = vector.extract_strided_slice %0 {offsets = [0, 1, 2, 0], sizes = [2, 16, 16, 128], strides = [1, 1, 1, 1]} : vector<2x18x18x128xbf16> to vector<2x16x16x128xbf16>
    %33 = vector.shape_cast %32 : vector<2x16x16x128xbf16> to vector<512x128xbf16>
    %c5 = arith.constant 5 : index
    %c0_19 = arith.constant 0 : index
    %c0_20 = arith.constant 0 : index
    %34 = vector.load %arg2[%c5, %c0_19, %c0_20] : memref<9x128x128xbf16, #tpu.memory_space<vmem>>, vector<1x128x128xbf16>
    %35 = vector.shape_cast %34 : vector<1x128x128xbf16> to vector<128x128xbf16>
    %cst_21 = arith.constant dense<0.000000e+00> : vector<512x128xf32>
    %36 = tpu.matmul %33, %35, %cst_21 {dimension_numbers = #tpu.dot_dimension_numbers<[1], [0], [0], [1], [0, 0, 1, 1], [], []>} : vector<512x128xbf16>, vector<128x128xbf16>, vector<512x128xf32> -> vector<512x128xf32>
    %37 = arith.addf %31, %36 : vector<512x128xf32>
    %38 = vector.extract_strided_slice %0 {offsets = [0, 2, 0, 0], sizes = [2, 16, 16, 128], strides = [1, 1, 1, 1]} : vector<2x18x18x128xbf16> to vector<2x16x16x128xbf16>
    %39 = vector.shape_cast %38 : vector<2x16x16x128xbf16> to vector<512x128xbf16>
    %c6 = arith.constant 6 : index
    %c0_22 = arith.constant 0 : index
    %c0_23 = arith.constant 0 : index
    %40 = vector.load %arg2[%c6, %c0_22, %c0_23] : memref<9x128x128xbf16, #tpu.memory_space<vmem>>, vector<1x128x128xbf16>
    %41 = vector.shape_cast %40 : vector<1x128x128xbf16> to vector<128x128xbf16>
    %cst_24 = arith.constant dense<0.000000e+00> : vector<512x128xf32>
    %42 = tpu.matmul %39, %41, %cst_24 {dimension_numbers = #tpu.dot_dimension_numbers<[1], [0], [0], [1], [0, 0, 1, 1], [], []>} : vector<512x128xbf16>, vector<128x128xbf16>, vector<512x128xf32> -> vector<512x128xf32>
    %43 = arith.addf %37, %42 : vector<512x128xf32>
    %44 = vector.extract_strided_slice %0 {offsets = [0, 2, 1, 0], sizes = [2, 16, 16, 128], strides = [1, 1, 1, 1]} : vector<2x18x18x128xbf16> to vector<2x16x16x128xbf16>
    %45 = vector.shape_cast %44 : vector<2x16x16x128xbf16> to vector<512x128xbf16>
    %c7 = arith.constant 7 : index
    %c0_25 = arith.constant 0 : index
    %c0_26 = arith.constant 0 : index
    %46 = vector.load %arg2[%c7, %c0_25, %c0_26] : memref<9x128x128xbf16, #tpu.memory_space<vmem>>, vector<1x128x128xbf16>
    %47 = vector.shape_cast %46 : vector<1x128x128xbf16> to vector<128x128xbf16>
    %cst_27 = arith.constant dense<0.000000e+00> : vector<512x128xf32>
    %48 = tpu.matmul %45, %47, %cst_27 {dimension_numbers = #tpu.dot_dimension_numbers<[1], [0], [0], [1], [0, 0, 1, 1], [], []>} : vector<512x128xbf16>, vector<128x128xbf16>, vector<512x128xf32> -> vector<512x128xf32>
    %49 = arith.addf %43, %48 : vector<512x128xf32>
    %50 = vector.extract_strided_slice %0 {offsets = [0, 2, 2, 0], sizes = [2, 16, 16, 128], strides = [1, 1, 1, 1]} : vector<2x18x18x128xbf16> to vector<2x16x16x128xbf16>
    %51 = vector.shape_cast %50 : vector<2x16x16x128xbf16> to vector<512x128xbf16>
    %c8 = arith.constant 8 : index
    %c0_28 = arith.constant 0 : index
    %c0_29 = arith.constant 0 : index
    %52 = vector.load %arg2[%c8, %c0_28, %c0_29] : memref<9x128x128xbf16, #tpu.memory_space<vmem>>, vector<1x128x128xbf16>
    %53 = vector.shape_cast %52 : vector<1x128x128xbf16> to vector<128x128xbf16>
    %cst_30 = arith.constant dense<0.000000e+00> : vector<512x128xf32>
    %54 = tpu.matmul %51, %53, %cst_30 {dimension_numbers = #tpu.dot_dimension_numbers<[1], [0], [0], [1], [0, 0, 1, 1], [], []>} : vector<512x128xbf16>, vector<128x128xbf16>, vector<512x128xf32> -> vector<512x128xf32>
    %55 = arith.addf %49, %54 : vector<512x128xf32>
    %c0_31 = arith.constant 0 : index
    %c0_32 = arith.constant 0 : index
    %56 = vector.load %arg3[%c0_31, %c0_32] : memref<1x128xf32, #tpu.memory_space<vmem>>, vector<1x128xf32>
    %57 = vector.broadcast %56 : vector<1x128xf32> to vector<512x128xf32>
    %58 = arith.addf %55, %57 : vector<512x128xf32>
    %cst_33 = arith.constant dense<0.000000e+00> : vector<128xf32>
    %59 = vector.multi_reduction <add>, %58, %cst_33 [0] : vector<512x128xf32> to vector<128xf32>
    %60 = vector.shape_cast %59 : vector<128xf32> to vector<1x128xf32>
    %61 = arith.mulf %58, %58 : vector<512x128xf32>
    %cst_34 = arith.constant dense<0.000000e+00> : vector<128xf32>
    %62 = vector.multi_reduction <add>, %61, %cst_34 [0] : vector<512x128xf32> to vector<128xf32>
    %63 = vector.shape_cast %62 : vector<128xf32> to vector<1x128xf32>
    %64 = tpu.concatenate %60, %63 in 0 : vector<1x128xf32>, vector<1x128xf32> -> vector<2x128xf32>
    %65 = vector.shape_cast %64 : vector<2x128xf32> to vector<1x2x128xf32>
    %c0_35 = arith.constant 0 : index
    %c0_36 = arith.constant 0 : index
    %c0_37 = arith.constant 0 : index
    %66 = vector.load %arg5[%c0_35, %c0_36, %c0_37] : memref<1x2x128xf32, #tpu.memory_space<vmem>>, vector<1x2x128xf32>
    tpu.vector_store %arg5[%c0_35, %c0_36, %c0_37], %65 {strides = array<i32>} : memref<1x2x128xf32, #tpu.memory_space<vmem>>, vector<1x2x128xf32>,
    %67 = vector.shape_cast %58 : vector<512x128xf32> to vector<2x16x16x128xf32>
    %68 = arith.truncf %67 : vector<2x16x16x128xf32> to vector<2x16x16x128xbf16>
    %cst_38 = arith.constant 0.000000e+00 : bf16
    %69 = vector.broadcast %cst_38 : bf16 to vector<2x1x18x128xbf16>
    %cst_39 = arith.constant 0.000000e+00 : bf16
    %70 = vector.broadcast %cst_39 : bf16 to vector<2x16x1x128xbf16>
    %c0_40 = arith.constant 0 : index
    %c0_41 = arith.constant 0 : index
    %c0_42 = arith.constant 0 : index
    %c0_43 = arith.constant 0 : index
    %71 = vector.load %arg4[%c0_40, %c0_41, %c0_42, %c0_43] : memref<2x18x18x128xbf16, #tpu.memory_space<vmem>>, vector<2x1x18x128xbf16>
    tpu.vector_store %arg4[%c0_40, %c0_41, %c0_42, %c0_43], %69 {strides = array<i32>} : memref<2x18x18x128xbf16, #tpu.memory_space<vmem>>, vector<2x1x18x128xbf16>,
    %c0_44 = arith.constant 0 : index
    %c17 = arith.constant 17 : index
    %c0_45 = arith.constant 0 : index
    %c0_46 = arith.constant 0 : index
    %72 = vector.load %arg4[%c0_44, %c17, %c0_45, %c0_46] : memref<2x18x18x128xbf16, #tpu.memory_space<vmem>>, vector<2x1x18x128xbf16>
    tpu.vector_store %arg4[%c0_44, %c17, %c0_45, %c0_46], %69 {strides = array<i32>} : memref<2x18x18x128xbf16, #tpu.memory_space<vmem>>, vector<2x1x18x128xbf16>,
    %c0_47 = arith.constant 0 : index
    %c1_48 = arith.constant 1 : index
    %c0_49 = arith.constant 0 : index
    %c0_50 = arith.constant 0 : index
    %73 = vector.load %arg4[%c0_47, %c1_48, %c0_49, %c0_50] : memref<2x18x18x128xbf16, #tpu.memory_space<vmem>>, vector<2x16x1x128xbf16>
    tpu.vector_store %arg4[%c0_47, %c1_48, %c0_49, %c0_50], %70 {strides = array<i32>} : memref<2x18x18x128xbf16, #tpu.memory_space<vmem>>, vector<2x16x1x128xbf16>,
    %c0_51 = arith.constant 0 : index
    %c1_52 = arith.constant 1 : index
    %c17_53 = arith.constant 17 : index
    %c0_54 = arith.constant 0 : index
    %74 = vector.load %arg4[%c0_51, %c1_52, %c17_53, %c0_54] : memref<2x18x18x128xbf16, #tpu.memory_space<vmem>>, vector<2x16x1x128xbf16>
    tpu.vector_store %arg4[%c0_51, %c1_52, %c17_53, %c0_54], %70 {strides = array<i32>} : memref<2x18x18x128xbf16, #tpu.memory_space<vmem>>, vector<2x16x1x128xbf16>,
    %c0_55 = arith.constant 0 : index
    %c1_56 = arith.constant 1 : index
    %c1_57 = arith.constant 1 : index
    %c0_58 = arith.constant 0 : index
    %75 = vector.load %arg4[%c0_55, %c1_56, %c1_57, %c0_58] : memref<2x18x18x128xbf16, #tpu.memory_space<vmem>>, vector<2x16x16x128xbf16>
    tpu.vector_store %arg4[%c0_55, %c1_56, %c1_57, %c0_58], %68 {strides = array<i32>} : memref<2x18x18x128xbf16, #tpu.memory_space<vmem>>, vector<2x16x16x128xbf16>,
    return
  }
  func.func @transform_0(%arg0: i32) -> (i32, i32, i32, i32) {
    %c0_i32 = arith.constant 0 : i32
    %c0_i32_0 = arith.constant 0 : i32
    %c0_i32_1 = arith.constant 0 : i32
    %c0_i32_2 = arith.constant 0 : i32
    return %arg0, %c0_i32, %c0_i32_0, %c0_i32_1 : i32, i32, i32, i32
  }
  func.func @transform_1(%arg0: i32) -> (i32, i32, i32) {
    %c0_i32 = arith.constant 0 : i32
    %c0_i32_0 = arith.constant 0 : i32
    %c0_i32_1 = arith.constant 0 : i32
    %c0_i32_2 = arith.constant 0 : i32
    return %c0_i32, %c0_i32_0, %c0_i32_1 : i32, i32, i32
  }
  func.func @transform_2(%arg0: i32) -> (i32, i32) {
    %c0_i32 = arith.constant 0 : i32
    %c0_i32_0 = arith.constant 0 : i32
    %c0_i32_1 = arith.constant 0 : i32
    return %c0_i32, %c0_i32_0 : i32, i32
  }
  func.func @transform_3(%arg0: i32) -> (i32, i32, i32, i32) {
    %c0_i32 = arith.constant 0 : i32
    %c0_i32_0 = arith.constant 0 : i32
    %c0_i32_1 = arith.constant 0 : i32
    %c0_i32_2 = arith.constant 0 : i32
    return %arg0, %c0_i32, %c0_i32_0, %c0_i32_1 : i32, i32, i32, i32
  }
  func.func @transform_4(%arg0: i32) -> (i32, i32, i32) {
    %c0_i32 = arith.constant 0 : i32
    %c0_i32_0 = arith.constant 0 : i32
    %c0_i32_1 = arith.constant 0 : i32
    return %arg0, %c0_i32, %c0_i32_0 : i32, i32, i32
  }
}

module attributes {stable_mosaic.version = 11 : i64} {
  func.func @bn_residual_kernel(%arg0: i32, %arg1: memref<2x16x16x128xbf16, #tpu.memory_space<vmem>>, %arg2: memref<2x16x16x128xf32, #tpu.memory_space<vmem>>, %arg3: memref<1x128xf32, #tpu.memory_space<vmem>>, %arg4: memref<1x128xf32, #tpu.memory_space<vmem>>, %arg5: memref<2x16x16x128xf32, #tpu.memory_space<vmem>>) attributes {dimension_semantics = [#tpu.dimension_semantics<parallel>], iteration_bounds = array<i64: 1>, scalar_prefetch = 0 : i64, scratch_operands = 0 : i64, tpu.core_type = #tpu.core_type<tc>, window_params = [{transform_indices = @transform_0, window_bounds = array<i64: 2, 16, 16, 128>}, {transform_indices = @transform_1, window_bounds = array<i64: 2, 16, 16, 128>}, {pipeline_mode = #tpu.pipeline_mode<synchronous>, transform_indices = @transform_2, window_bounds = array<i64: 1, 128>}, {pipeline_mode = #tpu.pipeline_mode<synchronous>, transform_indices = @transform_3, window_bounds = array<i64: 1, 128>}, {transform_indices = @transform_4, window_bounds = array<i64: 2, 16, 16, 128>}]} {
    %c0 = arith.constant 0 : index
    %c0_0 = arith.constant 0 : index
    %c0_1 = arith.constant 0 : index
    %c0_2 = arith.constant 0 : index
    %0 = vector.load %arg1[%c0, %c0_0, %c0_1, %c0_2] : memref<2x16x16x128xbf16, #tpu.memory_space<vmem>>, vector<2x16x16x128xbf16>
    %1 = arith.extf %0 : vector<2x16x16x128xbf16> to vector<2x16x16x128xf32>
    %c0_3 = arith.constant 0 : index
    %c0_4 = arith.constant 0 : index
    %2 = vector.load %arg3[%c0_3, %c0_4] : memref<1x128xf32, #tpu.memory_space<vmem>>, vector<1x128xf32>
    %3 = vector.shape_cast %2 : vector<1x128xf32> to vector<1x1x1x128xf32>
    %4 = vector.broadcast %3 : vector<1x1x1x128xf32> to vector<2x16x16x128xf32>
    %5 = arith.mulf %1, %4 : vector<2x16x16x128xf32>
    %c0_5 = arith.constant 0 : index
    %c0_6 = arith.constant 0 : index
    %6 = vector.load %arg4[%c0_5, %c0_6] : memref<1x128xf32, #tpu.memory_space<vmem>>, vector<1x128xf32>
    %7 = vector.shape_cast %6 : vector<1x128xf32> to vector<1x1x1x128xf32>
    %8 = vector.broadcast %7 : vector<1x1x1x128xf32> to vector<2x16x16x128xf32>
    %9 = arith.addf %5, %8 : vector<2x16x16x128xf32>
    %c0_7 = arith.constant 0 : index
    %c0_8 = arith.constant 0 : index
    %c0_9 = arith.constant 0 : index
    %c0_10 = arith.constant 0 : index
    %10 = vector.load %arg2[%c0_7, %c0_8, %c0_9, %c0_10] : memref<2x16x16x128xf32, #tpu.memory_space<vmem>>, vector<2x16x16x128xf32>
    %11 = arith.addf %9, %10 : vector<2x16x16x128xf32>
    %c0_11 = arith.constant 0 : index
    %c0_12 = arith.constant 0 : index
    %c0_13 = arith.constant 0 : index
    %c0_14 = arith.constant 0 : index
    %12 = vector.load %arg5[%c0_11, %c0_12, %c0_13, %c0_14] : memref<2x16x16x128xf32, #tpu.memory_space<vmem>>, vector<2x16x16x128xf32>
    tpu.vector_store %arg5[%c0_11, %c0_12, %c0_13, %c0_14], %11 {strides = array<i32>} : memref<2x16x16x128xf32, #tpu.memory_space<vmem>>, vector<2x16x16x128xf32>,
    return
  }
  func.func @transform_0(%arg0: i32) -> (i32, i32, i32, i32) {
    %c0_i32 = arith.constant 0 : i32
    %c0_i32_0 = arith.constant 0 : i32
    %c0_i32_1 = arith.constant 0 : i32
    %c0_i32_2 = arith.constant 0 : i32
    return %arg0, %c0_i32, %c0_i32_0, %c0_i32_1 : i32, i32, i32, i32
  }
  func.func @transform_1(%arg0: i32) -> (i32, i32, i32, i32) {
    %c0_i32 = arith.constant 0 : i32
    %c0_i32_0 = arith.constant 0 : i32
    %c0_i32_1 = arith.constant 0 : i32
    %c0_i32_2 = arith.constant 0 : i32
    return %arg0, %c0_i32, %c0_i32_0, %c0_i32_1 : i32, i32, i32, i32
  }
  func.func @transform_2(%arg0: i32) -> (i32, i32) {
    %c0_i32 = arith.constant 0 : i32
    %c0_i32_0 = arith.constant 0 : i32
    %c0_i32_1 = arith.constant 0 : i32
    return %c0_i32, %c0_i32_0 : i32, i32
  }
  func.func @transform_3(%arg0: i32) -> (i32, i32) {
    %c0_i32 = arith.constant 0 : i32
    %c0_i32_0 = arith.constant 0 : i32
    %c0_i32_1 = arith.constant 0 : i32
    return %c0_i32, %c0_i32_0 : i32, i32
  }
  func.func @transform_4(%arg0: i32) -> (i32, i32, i32, i32) {
    %c0_i32 = arith.constant 0 : i32
    %c0_i32_0 = arith.constant 0 : i32
    %c0_i32_1 = arith.constant 0 : i32
    %c0_i32_2 = arith.constant 0 : i32
    return %arg0, %c0_i32, %c0_i32_0, %c0_i32_1 : i32, i32, i32, i32
  }
}

module attributes {stable_mosaic.version = 11 : i64} {
  func.func @kernel(%arg0: i32, %arg1: memref<2x18x18x128xbf16, #tpu.memory_space<vmem>>, %arg2: memref<1x128xf32, #tpu.memory_space<vmem>>, %arg3: memref<1x128xf32, #tpu.memory_space<vmem>>, %arg4: memref<1x128xf32, #tpu.memory_space<vmem>>, %arg5: memref<9x128x128xbf16, #tpu.memory_space<vmem>>, %arg6: memref<1x128xf32, #tpu.memory_space<vmem>>, %arg7: memref<2x16x16x128xbf16, #tpu.memory_space<vmem>>, %arg8: memref<1x2x128xf32, #tpu.memory_space<vmem>>) attributes {dimension_semantics = [#tpu.dimension_semantics<parallel>], iteration_bounds = array<i64: 1>, scalar_prefetch = 0 : i64, scratch_operands = 0 : i64, tpu.core_type = #tpu.core_type<tc>, window_params = [{transform_indices = @transform_0, window_bounds = array<i64: 2, 18, 18, 128>}, {pipeline_mode = #tpu.pipeline_mode<synchronous>, transform_indices = @transform_1, window_bounds = array<i64: 1, 128>}, {pipeline_mode = #tpu.pipeline_mode<synchronous>, transform_indices = @transform_2, window_bounds = array<i64: 1, 128>}, {pipeline_mode = #tpu.pipeline_mode<synchronous>, transform_indices = @transform_3, window_bounds = array<i64: 1, 128>}, {pipeline_mode = #tpu.pipeline_mode<synchronous>, transform_indices = @transform_4, window_bounds = array<i64: 9, 128, 128>}, {pipeline_mode = #tpu.pipeline_mode<synchronous>, transform_indices = @transform_5, window_bounds = array<i64: 1, 128>}, {transform_indices = @transform_6, window_bounds = array<i64: 2, 16, 16, 128>}, {transform_indices = @transform_7, window_bounds = array<i64: 1, 2, 128>}]} {
    %c0 = arith.constant 0 : index
    %c0_0 = arith.constant 0 : index
    %c0_1 = arith.constant 0 : index
    %c0_2 = arith.constant 0 : index
    %0 = vector.load %arg1[%c0, %c0_0, %c0_1, %c0_2] : memref<2x18x18x128xbf16, #tpu.memory_space<vmem>>, vector<2x18x18x128xbf16>
    %1 = arith.extf %0 : vector<2x18x18x128xbf16> to vector<2x18x18x128xf32>
    %c0_3 = arith.constant 0 : index
    %c0_4 = arith.constant 0 : index
    %2 = vector.load %arg2[%c0_3, %c0_4] : memref<1x128xf32, #tpu.memory_space<vmem>>, vector<1x128xf32>
    %3 = vector.shape_cast %2 : vector<1x128xf32> to vector<1x1x1x128xf32>
    %4 = vector.broadcast %3 : vector<1x1x1x128xf32> to vector<2x18x18x128xf32>
    %5 = arith.mulf %1, %4 : vector<2x18x18x128xf32>
    %c0_5 = arith.constant 0 : index
    %c0_6 = arith.constant 0 : index
    %6 = vector.load %arg3[%c0_5, %c0_6] : memref<1x128xf32, #tpu.memory_space<vmem>>, vector<1x128xf32>
    %7 = vector.shape_cast %6 : vector<1x128xf32> to vector<1x1x1x128xf32>
    %8 = vector.broadcast %7 : vector<1x1x1x128xf32> to vector<2x18x18x128xf32>
    %9 = arith.addf %5, %8 : vector<2x18x18x128xf32>
    %cst = arith.constant 0.000000e+00 : f32
    %10 = vector.broadcast %cst : f32 to vector<2x18x18x128xf32>
    %11 = arith.cmpf oge, %9, %10 : vector<2x18x18x128xf32>
    %c0_7 = arith.constant 0 : index
    %c0_8 = arith.constant 0 : index
    %12 = vector.load %arg4[%c0_7, %c0_8] : memref<1x128xf32, #tpu.memory_space<vmem>>, vector<1x128xf32>
    %13 = vector.shape_cast %12 : vector<1x128xf32> to vector<1x1x1x128xf32>
    %14 = vector.broadcast %13 : vector<1x1x1x128xf32> to vector<2x18x18x128xf32>
    %15 = arith.mulf %14, %9 : vector<2x18x18x128xf32>
    %16 = arith.select %11, %9, %15 : vector<2x18x18x128xi1>, vector<2x18x18x128xf32>
    %17 = tpu.iota {dimensions = array<i32: 0>} : vector<18x18x1xi32>
    %18 = tpu.iota {dimensions = array<i32: 1>} : vector<18x18x1xi32>
    %c1_i32 = arith.constant 1 : i32
    %19 = vector.broadcast %c1_i32 : i32 to vector<18x18x1xi32>
    %20 = arith.cmpi sge, %17, %19 : vector<18x18x1xi32>
    %c16_i32 = arith.constant 16 : i32
    %21 = vector.broadcast %c16_i32 : i32 to vector<18x18x1xi32>
    %22 = arith.cmpi sle, %17, %21 : vector<18x18x1xi32>
    %23 = arith.andi %20, %22 : vector<18x18x1xi1>
    %c1_i32_9 = arith.constant 1 : i32
    %24 = vector.broadcast %c1_i32_9 : i32 to vector<18x18x1xi32>
    %25 = arith.cmpi sge, %18, %24 : vector<18x18x1xi32>
    %26 = arith.andi %23, %25 : vector<18x18x1xi1>
    %c16_i32_10 = arith.constant 16 : i32
    %27 = vector.broadcast %c16_i32_10 : i32 to vector<18x18x1xi32>
    %28 = arith.cmpi sle, %18, %27 : vector<18x18x1xi32>
    %29 = arith.andi %26, %28 : vector<18x18x1xi1>
    %cst_11 = arith.constant 0.000000e+00 : f32
    %30 = vector.shape_cast %29 : vector<18x18x1xi1> to vector<1x18x18x1xi1>
    %31 = vector.broadcast %30 : vector<1x18x18x1xi1> to vector<2x18x18x128xi1>
    %32 = vector.broadcast %cst_11 : f32 to vector<2x18x18x128xf32>
    %33 = arith.select %31, %16, %32 : vector<2x18x18x128xi1>, vector<2x18x18x128xf32>
    %34 = arith.truncf %33 : vector<2x18x18x128xf32> to vector<2x18x18x128xbf16>
    %cst_12 = arith.constant 0.000000e+00 : f32
    %35 = vector.broadcast %cst_12 : f32 to vector<512x128xf32>
    %36 = vector.extract_strided_slice %34 {offsets = [0, 0, 0, 0], sizes = [2, 16, 16, 128], strides = [1, 1, 1, 1]} : vector<2x18x18x128xbf16> to vector<2x16x16x128xbf16>
    %37 = vector.shape_cast %36 : vector<2x16x16x128xbf16> to vector<512x128xbf16>
    %c0_13 = arith.constant 0 : index
    %c0_14 = arith.constant 0 : index
    %c0_15 = arith.constant 0 : index
    %38 = vector.load %arg5[%c0_13, %c0_14, %c0_15] : memref<9x128x128xbf16, #tpu.memory_space<vmem>>, vector<1x128x128xbf16>
    %39 = vector.shape_cast %38 : vector<1x128x128xbf16> to vector<128x128xbf16>
    %cst_16 = arith.constant dense<0.000000e+00> : vector<512x128xf32>
    %40 = tpu.matmul %37, %39, %cst_16 {dimension_numbers = #tpu.dot_dimension_numbers<[1], [0], [0], [1], [0, 0, 1, 1], [], []>} : vector<512x128xbf16>, vector<128x128xbf16>, vector<512x128xf32> -> vector<512x128xf32>
    %41 = arith.addf %35, %40 : vector<512x128xf32>
    %42 = vector.extract_strided_slice %34 {offsets = [0, 0, 1, 0], sizes = [2, 16, 16, 128], strides = [1, 1, 1, 1]} : vector<2x18x18x128xbf16> to vector<2x16x16x128xbf16>
    %43 = vector.shape_cast %42 : vector<2x16x16x128xbf16> to vector<512x128xbf16>
    %c1 = arith.constant 1 : index
    %c0_17 = arith.constant 0 : index
    %c0_18 = arith.constant 0 : index
    %44 = vector.load %arg5[%c1, %c0_17, %c0_18] : memref<9x128x128xbf16, #tpu.memory_space<vmem>>, vector<1x128x128xbf16>
    %45 = vector.shape_cast %44 : vector<1x128x128xbf16> to vector<128x128xbf16>
    %cst_19 = arith.constant dense<0.000000e+00> : vector<512x128xf32>
    %46 = tpu.matmul %43, %45, %cst_19 {dimension_numbers = #tpu.dot_dimension_numbers<[1], [0], [0], [1], [0, 0, 1, 1], [], []>} : vector<512x128xbf16>, vector<128x128xbf16>, vector<512x128xf32> -> vector<512x128xf32>
    %47 = arith.addf %41, %46 : vector<512x128xf32>
    %48 = vector.extract_strided_slice %34 {offsets = [0, 0, 2, 0], sizes = [2, 16, 16, 128], strides = [1, 1, 1, 1]} : vector<2x18x18x128xbf16> to vector<2x16x16x128xbf16>
    %49 = vector.shape_cast %48 : vector<2x16x16x128xbf16> to vector<512x128xbf16>
    %c2 = arith.constant 2 : index
    %c0_20 = arith.constant 0 : index
    %c0_21 = arith.constant 0 : index
    %50 = vector.load %arg5[%c2, %c0_20, %c0_21] : memref<9x128x128xbf16, #tpu.memory_space<vmem>>, vector<1x128x128xbf16>
    %51 = vector.shape_cast %50 : vector<1x128x128xbf16> to vector<128x128xbf16>
    %cst_22 = arith.constant dense<0.000000e+00> : vector<512x128xf32>
    %52 = tpu.matmul %49, %51, %cst_22 {dimension_numbers = #tpu.dot_dimension_numbers<[1], [0], [0], [1], [0, 0, 1, 1], [], []>} : vector<512x128xbf16>, vector<128x128xbf16>, vector<512x128xf32> -> vector<512x128xf32>
    %53 = arith.addf %47, %52 : vector<512x128xf32>
    %54 = vector.extract_strided_slice %34 {offsets = [0, 1, 0, 0], sizes = [2, 16, 16, 128], strides = [1, 1, 1, 1]} : vector<2x18x18x128xbf16> to vector<2x16x16x128xbf16>
    %55 = vector.shape_cast %54 : vector<2x16x16x128xbf16> to vector<512x128xbf16>
    %c3 = arith.constant 3 : index
    %c0_23 = arith.constant 0 : index
    %c0_24 = arith.constant 0 : index
    %56 = vector.load %arg5[%c3, %c0_23, %c0_24] : memref<9x128x128xbf16, #tpu.memory_space<vmem>>, vector<1x128x128xbf16>
    %57 = vector.shape_cast %56 : vector<1x128x128xbf16> to vector<128x128xbf16>
    %cst_25 = arith.constant dense<0.000000e+00> : vector<512x128xf32>
    %58 = tpu.matmul %55, %57, %cst_25 {dimension_numbers = #tpu.dot_dimension_numbers<[1], [0], [0], [1], [0, 0, 1, 1], [], []>} : vector<512x128xbf16>, vector<128x128xbf16>, vector<512x128xf32> -> vector<512x128xf32>
    %59 = arith.addf %53, %58 : vector<512x128xf32>
    %60 = vector.extract_strided_slice %34 {offsets = [0, 1, 1, 0], sizes = [2, 16, 16, 128], strides = [1, 1, 1, 1]} : vector<2x18x18x128xbf16> to vector<2x16x16x128xbf16>
    %61 = vector.shape_cast %60 : vector<2x16x16x128xbf16> to vector<512x128xbf16>
    %c4 = arith.constant 4 : index
    %c0_26 = arith.constant 0 : index
    %c0_27 = arith.constant 0 : index
    %62 = vector.load %arg5[%c4, %c0_26, %c0_27] : memref<9x128x128xbf16, #tpu.memory_space<vmem>>, vector<1x128x128xbf16>
    %63 = vector.shape_cast %62 : vector<1x128x128xbf16> to vector<128x128xbf16>
    %cst_28 = arith.constant dense<0.000000e+00> : vector<512x128xf32>
    %64 = tpu.matmul %61, %63, %cst_28 {dimension_numbers = #tpu.dot_dimension_numbers<[1], [0], [0], [1], [0, 0, 1, 1], [], []>} : vector<512x128xbf16>, vector<128x128xbf16>, vector<512x128xf32> -> vector<512x128xf32>
    %65 = arith.addf %59, %64 : vector<512x128xf32>
    %66 = vector.extract_strided_slice %34 {offsets = [0, 1, 2, 0], sizes = [2, 16, 16, 128], strides = [1, 1, 1, 1]} : vector<2x18x18x128xbf16> to vector<2x16x16x128xbf16>
    %67 = vector.shape_cast %66 : vector<2x16x16x128xbf16> to vector<512x128xbf16>
    %c5 = arith.constant 5 : index
    %c0_29 = arith.constant 0 : index
    %c0_30 = arith.constant 0 : index
    %68 = vector.load %arg5[%c5, %c0_29, %c0_30] : memref<9x128x128xbf16, #tpu.memory_space<vmem>>, vector<1x128x128xbf16>
    %69 = vector.shape_cast %68 : vector<1x128x128xbf16> to vector<128x128xbf16>
    %cst_31 = arith.constant dense<0.000000e+00> : vector<512x128xf32>
    %70 = tpu.matmul %67, %69, %cst_31 {dimension_numbers = #tpu.dot_dimension_numbers<[1], [0], [0], [1], [0, 0, 1, 1], [], []>} : vector<512x128xbf16>, vector<128x128xbf16>, vector<512x128xf32> -> vector<512x128xf32>
    %71 = arith.addf %65, %70 : vector<512x128xf32>
    %72 = vector.extract_strided_slice %34 {offsets = [0, 2, 0, 0], sizes = [2, 16, 16, 128], strides = [1, 1, 1, 1]} : vector<2x18x18x128xbf16> to vector<2x16x16x128xbf16>
    %73 = vector.shape_cast %72 : vector<2x16x16x128xbf16> to vector<512x128xbf16>
    %c6 = arith.constant 6 : index
    %c0_32 = arith.constant 0 : index
    %c0_33 = arith.constant 0 : index
    %74 = vector.load %arg5[%c6, %c0_32, %c0_33] : memref<9x128x128xbf16, #tpu.memory_space<vmem>>, vector<1x128x128xbf16>
    %75 = vector.shape_cast %74 : vector<1x128x128xbf16> to vector<128x128xbf16>
    %cst_34 = arith.constant dense<0.000000e+00> : vector<512x128xf32>
    %76 = tpu.matmul %73, %75, %cst_34 {dimension_numbers = #tpu.dot_dimension_numbers<[1], [0], [0], [1], [0, 0, 1, 1], [], []>} : vector<512x128xbf16>, vector<128x128xbf16>, vector<512x128xf32> -> vector<512x128xf32>
    %77 = arith.addf %71, %76 : vector<512x128xf32>
    %78 = vector.extract_strided_slice %34 {offsets = [0, 2, 1, 0], sizes = [2, 16, 16, 128], strides = [1, 1, 1, 1]} : vector<2x18x18x128xbf16> to vector<2x16x16x128xbf16>
    %79 = vector.shape_cast %78 : vector<2x16x16x128xbf16> to vector<512x128xbf16>
    %c7 = arith.constant 7 : index
    %c0_35 = arith.constant 0 : index
    %c0_36 = arith.constant 0 : index
    %80 = vector.load %arg5[%c7, %c0_35, %c0_36] : memref<9x128x128xbf16, #tpu.memory_space<vmem>>, vector<1x128x128xbf16>
    %81 = vector.shape_cast %80 : vector<1x128x128xbf16> to vector<128x128xbf16>
    %cst_37 = arith.constant dense<0.000000e+00> : vector<512x128xf32>
    %82 = tpu.matmul %79, %81, %cst_37 {dimension_numbers = #tpu.dot_dimension_numbers<[1], [0], [0], [1], [0, 0, 1, 1], [], []>} : vector<512x128xbf16>, vector<128x128xbf16>, vector<512x128xf32> -> vector<512x128xf32>
    %83 = arith.addf %77, %82 : vector<512x128xf32>
    %84 = vector.extract_strided_slice %34 {offsets = [0, 2, 2, 0], sizes = [2, 16, 16, 128], strides = [1, 1, 1, 1]} : vector<2x18x18x128xbf16> to vector<2x16x16x128xbf16>
    %85 = vector.shape_cast %84 : vector<2x16x16x128xbf16> to vector<512x128xbf16>
    %c8 = arith.constant 8 : index
    %c0_38 = arith.constant 0 : index
    %c0_39 = arith.constant 0 : index
    %86 = vector.load %arg5[%c8, %c0_38, %c0_39] : memref<9x128x128xbf16, #tpu.memory_space<vmem>>, vector<1x128x128xbf16>
    %87 = vector.shape_cast %86 : vector<1x128x128xbf16> to vector<128x128xbf16>
    %cst_40 = arith.constant dense<0.000000e+00> : vector<512x128xf32>
    %88 = tpu.matmul %85, %87, %cst_40 {dimension_numbers = #tpu.dot_dimension_numbers<[1], [0], [0], [1], [0, 0, 1, 1], [], []>} : vector<512x128xbf16>, vector<128x128xbf16>, vector<512x128xf32> -> vector<512x128xf32>
    %89 = arith.addf %83, %88 : vector<512x128xf32>
    %c0_41 = arith.constant 0 : index
    %c0_42 = arith.constant 0 : index
    %90 = vector.load %arg6[%c0_41, %c0_42] : memref<1x128xf32, #tpu.memory_space<vmem>>, vector<1x128xf32>
    %91 = vector.broadcast %90 : vector<1x128xf32> to vector<512x128xf32>
    %92 = arith.addf %89, %91 : vector<512x128xf32>
    %cst_43 = arith.constant dense<0.000000e+00> : vector<128xf32>
    %93 = vector.multi_reduction <add>, %92, %cst_43 [0] : vector<512x128xf32> to vector<128xf32>
    %94 = vector.shape_cast %93 : vector<128xf32> to vector<1x128xf32>
    %95 = arith.mulf %92, %92 : vector<512x128xf32>
    %cst_44 = arith.constant dense<0.000000e+00> : vector<128xf32>
    %96 = vector.multi_reduction <add>, %95, %cst_44 [0] : vector<512x128xf32> to vector<128xf32>
    %97 = vector.shape_cast %96 : vector<128xf32> to vector<1x128xf32>
    %98 = tpu.concatenate %94, %97 in 0 : vector<1x128xf32>, vector<1x128xf32> -> vector<2x128xf32>
    %99 = vector.shape_cast %98 : vector<2x128xf32> to vector<1x2x128xf32>
    %c0_45 = arith.constant 0 : index
    %c0_46 = arith.constant 0 : index
    %c0_47 = arith.constant 0 : index
    %100 = vector.load %arg8[%c0_45, %c0_46, %c0_47] : memref<1x2x128xf32, #tpu.memory_space<vmem>>, vector<1x2x128xf32>
    tpu.vector_store %arg8[%c0_45, %c0_46, %c0_47], %99 {strides = array<i32>} : memref<1x2x128xf32, #tpu.memory_space<vmem>>, vector<1x2x128xf32>,
    %101 = vector.shape_cast %92 : vector<512x128xf32> to vector<2x16x16x128xf32>
    %102 = arith.truncf %101 : vector<2x16x16x128xf32> to vector<2x16x16x128xbf16>
    %c0_48 = arith.constant 0 : index
    %c0_49 = arith.constant 0 : index
    %c0_50 = arith.constant 0 : index
    %c0_51 = arith.constant 0 : index
    %103 = vector.load %arg7[%c0_48, %c0_49, %c0_50, %c0_51] : memref<2x16x16x128xbf16, #tpu.memory_space<vmem>>, vector<2x16x16x128xbf16>
    tpu.vector_store %arg7[%c0_48, %c0_49, %c0_50, %c0_51], %102 {strides = array<i32>} : memref<2x16x16x128xbf16, #tpu.memory_space<vmem>>, vector<2x16x16x128xbf16>,
    return
  }
  func.func @transform_0(%arg0: i32) -> (i32, i32, i32, i32) {
    %c0_i32 = arith.constant 0 : i32
    %c0_i32_0 = arith.constant 0 : i32
    %c0_i32_1 = arith.constant 0 : i32
    %c0_i32_2 = arith.constant 0 : i32
    return %arg0, %c0_i32, %c0_i32_0, %c0_i32_1 : i32, i32, i32, i32
  }
  func.func @transform_1(%arg0: i32) -> (i32, i32) {
    %c0_i32 = arith.constant 0 : i32
    %c0_i32_0 = arith.constant 0 : i32
    %c0_i32_1 = arith.constant 0 : i32
    return %c0_i32, %c0_i32_0 : i32, i32
  }
  func.func @transform_2(%arg0: i32) -> (i32, i32) {
    %c0_i32 = arith.constant 0 : i32
    %c0_i32_0 = arith.constant 0 : i32
    %c0_i32_1 = arith.constant 0 : i32
    return %c0_i32, %c0_i32_0 : i32, i32
  }
  func.func @transform_3(%arg0: i32) -> (i32, i32) {
    %c0_i32 = arith.constant 0 : i32
    %c0_i32_0 = arith.constant 0 : i32
    %c0_i32_1 = arith.constant 0 : i32
    return %c0_i32, %c0_i32_0 : i32, i32
  }
  func.func @transform_4(%arg0: i32) -> (i32, i32, i32) {
    %c0_i32 = arith.constant 0 : i32
    %c0_i32_0 = arith.constant 0 : i32
    %c0_i32_1 = arith.constant 0 : i32
    %c0_i32_2 = arith.constant 0 : i32
    return %c0_i32, %c0_i32_0, %c0_i32_1 : i32, i32, i32
  }
  func.func @transform_5(%arg0: i32) -> (i32, i32) {
    %c0_i32 = arith.constant 0 : i32
    %c0_i32_0 = arith.constant 0 : i32
    %c0_i32_1 = arith.constant 0 : i32
    return %c0_i32, %c0_i32_0 : i32, i32
  }
  func.func @transform_6(%arg0: i32) -> (i32, i32, i32, i32) {
    %c0_i32 = arith.constant 0 : i32
    %c0_i32_0 = arith.constant 0 : i32
    %c0_i32_1 = arith.constant 0 : i32
    %c0_i32_2 = arith.constant 0 : i32
    return %arg0, %c0_i32, %c0_i32_0, %c0_i32_1 : i32, i32, i32, i32
  }
  func.func @transform_7(%arg0: i32) -> (i32, i32, i32) {
    %c0_i32 = arith.constant 0 : i32
    %c0_i32_0 = arith.constant 0 : i32
    %c0_i32_1 = arith.constant 0 : i32
    return %arg0, %c0_i32, %c0_i32_0 : i32, i32, i32
  }
}

</mosaic_0001>

<llo_original>
// kernel: residual_block.5
$region0: #{residual_block.5}
  #allocation0 [shape = 'u32[]', space=smem, size = 0x4, offset = 0x4, fixed_abs, tag = 'smem constant byte address 0x4 - core index']
  #allocation1 [shape = 'u32[144,128]{1,0:T(1,128)}', space=vmem, size = 0x12000, scoped, tag = 'internal scratch']
  %s0 = inlined_call_operand.vmem [shape: bf16[2,16,16,128], index: 0, kind: input, shape index: {}]
  %s1 = inlined_call_operand.vmem [shape: f32[2,16,16,128], index: 1, kind: input, shape index: {}]
  %s2 = inlined_call_operand.vmem [shape: f32[1,128], index: 2, kind: input, shape index: {}]
  %s3 = inlined_call_operand.vmem [shape: f32[1,128], index: 3, kind: input, shape index: {}]
  %s4 = inlined_call_operand.vmem [shape: f32[2,16,16,128], index: 4, kind: output, shape index: {}]
  %s5 = sld [smem:[#allocation0]]
  $region26: #{residual_block.5} parent=0
    _
  %s7 = ssub.s32 1, %s5
  %s8 = scalar_select 0, %s7, %s5
  // Predicated region
  $region2: #{residual_block.5} parent=0 // pred_check
    _
  $region3: #{residual_block.5} parent=0 // pred_check_branch
    %10 = sbr.rel (0) target = $region5
  $region4: #{residual_block.5} parent=0 // pred_region
    _
  $region5: #{residual_block.5} parent=0 // pred_fallthru
    _
  // Predicated region
  $region6: #{residual_block.5} parent=0 // pred_check
    _
  $region7: #{residual_block.5} parent=0 // pred_check_branch
    %12 = sbr.rel (0) target = $region9
  $region8: #{residual_block.5} parent=0 // pred_region
    _
  $region9: #{residual_block.5} parent=0 // pred_fallthru
    _
  // Predicated region
  $region10: #{residual_block.5} parent=0 // pred_check
    _
  $region11: #{residual_block.5} parent=0 // pred_check_branch
    %14 = sbr.rel (0) target = $region13
  $region12: #{residual_block.5} parent=0 // pred_region
    _
  $region13: #{residual_block.5} parent=0 // pred_fallthru
    _
  // Predicated region
  $region14: #{residual_block.5} parent=0 // pred_check
    _
  $region15: #{residual_block.5} parent=0 // pred_check_branch
    %16 = sbr.rel (0) target = $region17
  $region16: #{residual_block.5} parent=0 // pred_region
    _
  $region17: #{residual_block.5} parent=0 // pred_fallthru
    _
  %v17 = vld [vmem:[%s0] sm:$0xf]
  %v18 = vld [vmem:[%s0 + $0x4] sm:$0xf]
  %v19 = vld [vmem:[%s0 + $0x8] sm:$0xf]
  %v20 = vld [vmem:[%s0 + $0xc] sm:$0xf]
  %v21 = vld [vmem:[%s0 + $0x10] sm:$0xf]
  %v22 = vld [vmem:[%s0 + $0x14] sm:$0xf]
  %v23 = vld [vmem:[%s0 + $0x18] sm:$0xf]
  %v24 = vld [vmem:[%s0 + $0x1c] sm:$0xf]
  %v25 = vld [vmem:[%s0 + $0x20] sm:$0xf]
  %v26 = vld [vmem:[%s0 + $0x24] sm:$0xf]
  %v27 = vld [vmem:[%s0 + $0x28] sm:$0xf]
  %v28 = vld [vmem:[%s0 + $0x2c] sm:$0xf]
  %v29 = vld [vmem:[%s0 + $0x30] sm:$0xf]
  %v30 = vld [vmem:[%s0 + $0x34] sm:$0xf]
  %v31 = vld [vmem:[%s0 + $0x38] sm:$0xf]
  %v32 = vld [vmem:[%s0 + $0x3c] sm:$0xf]
  %v33 = vld [vmem:[%s0 + $0x40] sm:$0xf]
  %v34 = vld [vmem:[%s0 + $0x44] sm:$0xf]
  %v35 = vld [vmem:[%s0 + $0x48] sm:$0xf]
  %v36 = vld [vmem:[%s0 + $0x4c] sm:$0xf]
  %v37 = vld [vmem:[%s0 + $0x50] sm:$0xf]
  %v38 = vld [vmem:[%s0 + $0x54] sm:$0xf]
  %v39 = vld [vmem:[%s0 + $0x58] sm:$0xf]
  %v40 = vld [vmem:[%s0 + $0x5c] sm:$0xf]
  %v41 = vld [vmem:[%s0 + $0x60] sm:$0xf]
  %v42 = vld [vmem:[%s0 + $0x64] sm:$0xf]
  %v43 = vld [vmem:[%s0 + $0x68] sm:$0xf]
  %v44 = vld [vmem:[%s0 + $0x6c] sm:$0xf]
  %v45 = vld [vmem:[%s0 + $0x70] sm:$0xf]
  %v46 = vld [vmem:[%s0 + $0x74] sm:$0xf]
  %v47 = vld [vmem:[%s0 + $0x78] sm:$0xf]
  %v48 = vld [vmem:[%s0 + $0x7c] sm:$0xf]
  %v49 = vld [vmem:[%s0 + $0x80] sm:$0xf]
  %v50 = vld [vmem:[%s0 + $0x84] sm:$0xf]
  %v51 = vld [vmem:[%s0 + $0x88] sm:$0xf]
  %v52 = vld [vmem:[%s0 + $0x8c] sm:$0xf]
  %v53 = vld [vmem:[%s0 + $0x90] sm:$0xf]
  %v54 = vld [vmem:[%s0 + $0x94] sm:$0xf]
  %v55 = vld [vmem:[%s0 + $0x98] sm:$0xf]
  %v56 = vld [vmem:[%s0 + $0x9c] sm:$0xf]
  %v57 = vld [vmem:[%s0 + $0xa0] sm:$0xf]
  %v58 = vld [vmem:[%s0 + $0xa4] sm:$0xf]
  %v59 = vld [vmem:[%s0 + $0xa8] sm:$0xf]
  %v60 = vld [vmem:[%s0 + $0xac] sm:$0xf]
  %v61 = vld [vmem:[%s0 + $0xb0] sm:$0xf]
  %v62 = vld [vmem:[%s0 + $0xb4] sm:$0xf]
  %v63 = vld [vmem:[%s0 + $0xb8] sm:$0xf]
  %v64 = vld [vmem:[%s0 + $0xbc] sm:$0xf]
  %v65 = vld [vmem:[%s0 + $0xc0] sm:$0xf]
  %v66 = vld [vmem:[%s0 + $0xc4] sm:$0xf]
  %v67 = vld [vmem:[%s0 + $0xc8] sm:$0xf]
  %v68 = vld [vmem:[%s0 + $0xcc] sm:$0xf]
  %v69 = vld [vmem:[%s0 + $0xd0] sm:$0xf]
  %v70 = vld [vmem:[%s0 + $0xd4] sm:$0xf]
  %v71 = vld [vmem:[%s0 + $0xd8] sm:$0xf]
  %v72 = vld [vmem:[%s0 + $0xdc] sm:$0xf]
  %v73 = vld [vmem:[%s0 + $0xe0] sm:$0xf]
  %v74 = vld [vmem:[%s0 + $0xe4] sm:$0xf]
  %v75 = vld [vmem:[%s0 + $0xe8] sm:$0xf]
  %v76 = vld [vmem:[%s0 + $0xec] sm:$0xf]
  %v77 = vld [vmem:[%s0 + $0xf0] sm:$0xf]
  %v78 = vld [vmem:[%s0 + $0xf4] sm:$0xf]
  %v79 = vld [vmem:[%s0 + $0xf8] sm:$0xf]
  %v80 = vld [vmem:[%s0 + $0xfc] sm:$0xf]
  %v81 = vunpack.c.l.bf16 %v17
  %v82 = vunpack.c.l.bf16 %v18
  %v83 = vunpack.c.l.bf16 %v19
  %v84 = vunpack.c.l.bf16 %v20
  %v85 = vunpack.c.l.bf16 %v21
  %v86 = vunpack.c.l.bf16 %v22
  %v87 = vunpack.c.l.bf16 %v23
  %v88 = vunpack.c.l.bf16 %v24
  %v89 = vunpack.c.l.bf16 %v25
  %v90 = vunpack.c.l.bf16 %v26
  %v91 = vunpack.c.l.bf16 %v27
  %v92 = vunpack.c.l.bf16 %v28
  %v93 = vunpack.c.l.bf16 %v29
  %v94 = vunpack.c.l.bf16 %v30
  %v95 = vunpack.c.l.bf16 %v31
  %v96 = vunpack.c.l.bf16 %v32
  %v97 = vunpack.c.l.bf16 %v33
  %v98 = vunpack.c.l.bf16 %v34
  %v99 = vunpack.c.l.bf16 %v35
  %v100 = vunpack.c.l.bf16 %v36
  %v101 = vunpack.c.l.bf16 %v37
  %v102 = vunpack.c.l.bf16 %v38
  %v103 = vunpack.c.l.bf16 %v39
  %v104 = vunpack.c.l.bf16 %v40
  %v105 = vunpack.c.l.bf16 %v41
  %v106 = vunpack.c.l.bf16 %v42
  %v107 = vunpack.c.l.bf16 %v43
  %v108 = vunpack.c.l.bf16 %v44
  %v109 = vunpack.c.l.bf16 %v45
  %v110 = vunpack.c.l.bf16 %v46
  %v111 = vunpack.c.l.bf16 %v47
  %v112 = vunpack.c.l.bf16 %v48
  %v113 = vunpack.c.l.bf16 %v49
  %v114 = vunpack.c.l.bf16 %v50
  %v115 = vunpack.c.l.bf16 %v51
  %v116 = vunpack.c.l.bf16 %v52
  %v117 = vunpack.c.l.bf16 %v53
  %v118 = vunpack.c.l.bf16 %v54
  %v119 = vunpack.c.l.bf16 %v55
  %v120 = vunpack.c.l.bf16 %v56
  %v121 = vunpack.c.l.bf16 %v57
  %v122 = vunpack.c.l.bf16 %v58
  %v123 = vunpack.c.l.bf16 %v59
  %v124 = vunpack.c.l.bf16 %v60
  %v125 = vunpack.c.l.bf16 %v61
  %v126 = vunpack.c.l.bf16 %v62
  %v127 = vunpack.c.l.bf16 %v63
  %v128 = vunpack.c.l.bf16 %v64
  %v129 = vunpack.c.l.bf16 %v65
  %v130 = vunpack.c.l.bf16 %v66
  %v131 = vunpack.c.l.bf16 %v67
  %v132 = vunpack.c.l.bf16 %v68
  %v133 = vunpack.c.l.bf16 %v69
  %v134 = vunpack.c.l.bf16 %v70
  %v135 = vunpack.c.l.bf16 %v71
  %v136 = vunpack.c.l.bf16 %v72
  %v137 = vunpack.c.l.bf16 %v73
  %v138 = vunpack.c.l.bf16 %v74
  %v139 = vunpack.c.l.bf16 %v75
  %v140 = vunpack.c.l.bf16 %v76
  %v141 = vunpack.c.l.bf16 %v77
  %v142 = vunpack.c.l.bf16 %v78
  %v143 = vunpack.c.l.bf16 %v79
  %v144 = vunpack.c.l.bf16 %v80
  %v145 = vld [vmem:[%s2] sm:$0x1]
  %v147 = vlaneseq
  %v148 = vshrl.u32 %v147, 7
  %v149 = vsub.s32 0, %v148
  %v150 = vrot.slane %v145, %v149
  %v152 = vmul.f32 %v81, %v150
  %v153 = vmul.f32 %v82, %v150
  %v154 = vmul.f32 %v83, %v150
  %v155 = vmul.f32 %v84, %v150
  %v156 = vmul.f32 %v85, %v150
  %v157 = vmul.f32 %v86, %v150
  %v158 = vmul.f32 %v87, %v150
  %v159 = vmul.f32 %v88, %v150
  %v160 = vmul.f32 %v89, %v150
  %v161 = vmul.f32 %v90, %v150
  %v162 = vmul.f32 %v91, %v150
  %v163 = vmul.f32 %v92, %v150
  %v164 = vmul.f32 %v93, %v150
  %v165 = vmul.f32 %v94, %v150
  %v166 = vmul.f32 %v95, %v150
  %v167 = vmul.f32 %v96, %v150
  %v168 = vmul.f32 %v97, %v150
  %v169 = vmul.f32 %v98, %v150
  %v170 = vmul.f32 %v99, %v150
  %v171 = vmul.f32 %v100, %v150
  %v172 = vmul.f32 %v101, %v150
  %v173 = vmul.f32 %v102, %v150
  %v174 = vmul.f32 %v103, %v150
  %v175 = vmul.f32 %v104, %v150
  %v176 = vmul.f32 %v105, %v150
  %v177 = vmul.f32 %v106, %v150
  %v178 = vmul.f32 %v107, %v150
  %v179 = vmul.f32 %v108, %v150
  %v180 = vmul.f32 %v109, %v150
  %v181 = vmul.f32 %v110, %v150
  %v182 = vmul.f32 %v111, %v150
  %v183 = vmul.f32 %v112, %v150
  %v184 = vmul.f32 %v113, %v150
  %v185 = vmul.f32 %v114, %v150
  %v186 = vmul.f32 %v115, %v150
  %v187 = vmul.f32 %v116, %v150
  %v188 = vmul.f32 %v117, %v150
  %v189 = vmul.f32 %v118, %v150
  %v190 = vmul.f32 %v119, %v150
  %v191 = vmul.f32 %v120, %v150
  %v192 = vmul.f32 %v121, %v150
  %v193 = vmul.f32 %v122, %v150
  %v194 = vmul.f32 %v123, %v150
  %v195 = vmul.f32 %v124, %v150
  %v196 = vmul.f32 %v125, %v150
  %v197 = vmul.f32 %v126, %v150
  %v198 = vmul.f32 %v127, %v150
  %v199 = vmul.f32 %v128, %v150
  %v200 = vmul.f32 %v129, %v150
  %v201 = vmul.f32 %v130, %v150
  %v202 = vmul.f32 %v131, %v150
  %v203 = vmul.f32 %v132, %v150
  %v204 = vmul.f32 %v133, %v150
  %v205 = vmul.f32 %v134, %v150
  %v206 = vmul.f32 %v135, %v150
  %v207 = vmul.f32 %v136, %v150
  %v208 = vmul.f32 %v137, %v150
  %v209 = vmul.f32 %v138, %v150
  %v210 = vmul.f32 %v139, %v150
  %v211 = vmul.f32 %v140, %v150
  %v212 = vmul.f32 %v141, %v150
  %v213 = vmul.f32 %v142, %v150
  %v214 = vmul.f32 %v143, %v150
  %v215 = vmul.f32 %v144, %v150
  %v216 = vld [vmem:[%s3] sm:$0x1]
  %v218 = vlaneseq
  %v219 = vshrl.u32 %v218, 7
  %v220 = vsub.s32 0, %v219
  %v221 = vrot.slane %v216, %v220
  %v223 = vadd.f32 %v152, %v221
  %v224 = vadd.f32 %v153, %v221
  %v225 = vadd.f32 %v154, %v221
  %v226 = vadd.f32 %v155, %v221
  %v227 = vadd.f32 %v156, %v221
  %v228 = vadd.f32 %v157, %v221
  %v229 = vadd.f32 %v158, %v221
  %v230 = vadd.f32 %v159, %v221
  %v231 = vadd.f32 %v160, %v221
  %v232 = vadd.f32 %v161, %v221
  %v233 = vadd.f32 %v162, %v221
  %v234 = vadd.f32 %v163, %v221
  %v235 = vadd.f32 %v164, %v221
  %v236 = vadd.f32 %v165, %v221
  %v237 = vadd.f32 %v166, %v221
  %v238 = vadd.f32 %v167, %v221
  %v239 = vadd.f32 %v168, %v221
  %v240 = vadd.f32 %v169, %v221
  %v241 = vadd.f32 %v170, %v221
  %v242 = vadd.f32 %v171, %v221
  %v243 = vadd.f32 %v172, %v221
  %v244 = vadd.f32 %v173, %v221
  %v245 = vadd.f32 %v174, %v221
  %v246 = vadd.f32 %v175, %v221
  %v247 = vadd.f32 %v176, %v221
  %v248 = vadd.f32 %v177, %v221
  %v249 = vadd.f32 %v178, %v221
  %v250 = vadd.f32 %v179, %v221
  %v251 = vadd.f32 %v180, %v221
  %v252 = vadd.f32 %v181, %v221
  %v253 = vadd.f32 %v182, %v221
  %v254 = vadd.f32 %v183, %v221
  %v255 = vadd.f32 %v184, %v221
  %v256 = vadd.f32 %v185, %v221
  %v257 = vadd.f32 %v186, %v221
  %v258 = vadd.f32 %v187, %v221
  %v259 = vadd.f32 %v188, %v221
  %v260 = vadd.f32 %v189, %v221
  %v261 = vadd.f32 %v190, %v221
  %v262 = vadd.f32 %v191, %v221
  %v263 = vadd.f32 %v192, %v221
  %v264 = vadd.f32 %v193, %v221
  %v265 = vadd.f32 %v194, %v221
  %v266 = vadd.f32 %v195, %v221
  %v267 = vadd.f32 %v196, %v221
  %v268 = vadd.f32 %v197, %v221
  %v269 = vadd.f32 %v198, %v221
  %v270 = vadd.f32 %v199, %v221
  %v271 = vadd.f32 %v200, %v221
  %v272 = vadd.f32 %v201, %v221
  %v273 = vadd.f32 %v202, %v221
  %v274 = vadd.f32 %v203, %v221
  %v275 = vadd.f32 %v204, %v221
  %v276 = vadd.f32 %v205, %v221
  %v277 = vadd.f32 %v206, %v221
  %v278 = vadd.f32 %v207, %v221
  %v279 = vadd.f32 %v208, %v221
  %v280 = vadd.f32 %v209, %v221
  %v281 = vadd.f32 %v210, %v221
  %v282 = vadd.f32 %v211, %v221
  %v283 = vadd.f32 %v212, %v221
  %v284 = vadd.f32 %v213, %v221
  %v285 = vadd.f32 %v214, %v221
  %v286 = vadd.f32 %v215, %v221
  %v287 = vld [vmem:[%s1] sm:$0xff]
  %v288 = vld [vmem:[%s1 + $0x8] sm:$0xff]
  %v289 = vld [vmem:[%s1 + $0x10] sm:$0xff]
  %v290 = vld [vmem:[%s1 + $0x18] sm:$0xff]
  %v291 = vld [vmem:[%s1 + $0x20] sm:$0xff]
  %v292 = vld [vmem:[%s1 + $0x28] sm:$0xff]
  %v293 = vld [vmem:[%s1 + $0x30] sm:$0xff]
  %v294 = vld [vmem:[%s1 + $0x38] sm:$0xff]
  %v295 = vld [vmem:[%s1 + $0x40] sm:$0xff]
  %v296 = vld [vmem:[%s1 + $0x48] sm:$0xff]
  %v297 = vld [vmem:[%s1 + $0x50] sm:$0xff]
  %v298 = vld [vmem:[%s1 + $0x58] sm:$0xff]
  %v299 = vld [vmem:[%s1 + $0x60] sm:$0xff]
  %v300 = vld [vmem:[%s1 + $0x68] sm:$0xff]
  %v301 = vld [vmem:[%s1 + $0x70] sm:$0xff]
  %v302 = vld [vmem:[%s1 + $0x78] sm:$0xff]
  %v303 = vld [vmem:[%s1 + $0x80] sm:$0xff]
  %v304 = vld [vmem:[%s1 + $0x88] sm:$0xff]
  %v305 = vld [vmem:[%s1 + $0x90] sm:$0xff]
  %v306 = vld [vmem:[%s1 + $0x98] sm:$0xff]
  %v307 = vld [vmem:[%s1 + $0xa0] sm:$0xff]
  %v308 = vld [vmem:[%s1 + $0xa8] sm:$0xff]
  %v309 = vld [vmem:[%s1 + $0xb0] sm:$0xff]
  %v310 = vld [vmem:[%s1 + $0xb8] sm:$0xff]
  %v311 = vld [vmem:[%s1 + $0xc0] sm:$0xff]
  %v312 = vld [vmem:[%s1 + $0xc8] sm:$0xff]
  %v313 = vld [vmem:[%s1 + $0xd0] sm:$0xff]
  %v314 = vld [vmem:[%s1 + $0xd8] sm:$0xff]
  %v315 = vld [vmem:[%s1 + $0xe0] sm:$0xff]
  %v316 = vld [vmem:[%s1 + $0xe8] sm:$0xff]
  %v317 = vld [vmem:[%s1 + $0xf0] sm:$0xff]
  %v318 = vld [vmem:[%s1 + $0xf8] sm:$0xff]
  %v319 = vld [vmem:[%s1 + $0x100] sm:$0xff]
  %v320 = vld [vmem:[%s1 + $0x108] sm:$0xff]
  %v321 = vld [vmem:[%s1 + $0x110] sm:$0xff]
  %v322 = vld [vmem:[%s1 + $0x118] sm:$0xff]
  %v323 = vld [vmem:[%s1 + $0x120] sm:$0xff]
  %v324 = vld [vmem:[%s1 + $0x128] sm:$0xff]
  %v325 = vld [vmem:[%s1 + $0x130] sm:$0xff]
  %v326 = vld [vmem:[%s1 + $0x138] sm:$0xff]
  %v327 = vld [vmem:[%s1 + $0x140] sm:$0xff]
  %v328 = vld [vmem:[%s1 + $0x148] sm:$0xff]
  %v329 = vld [vmem:[%s1 + $0x150] sm:$0xff]
  %v330 = vld [vmem:[%s1 + $0x158] sm:$0xff]
  %v331 = vld [vmem:[%s1 + $0x160] sm:$0xff]
  %v332 = vld [vmem:[%s1 + $0x168] sm:$0xff]
  %v333 = vld [vmem:[%s1 + $0x170] sm:$0xff]
  %v334 = vld [vmem:[%s1 + $0x178] sm:$0xff]
  %v335 = vld [vmem:[%s1 + $0x180] sm:$0xff]
  %v336 = vld [vmem:[%s1 + $0x188] sm:$0xff]
  %v337 = vld [vmem:[%s1 + $0x190] sm:$0xff]
  %v338 = vld [vmem:[%s1 + $0x198] sm:$0xff]
  %v339 = vld [vmem:[%s1 + $0x1a0] sm:$0xff]
  %v340 = vld [vmem:[%s1 + $0x1a8] sm:$0xff]
  %v341 = vld [vmem:[%s1 + $0x1b0] sm:$0xff]
  %v342 = vld [vmem:[%s1 + $0x1b8] sm:$0xff]
  %v343 = vld [vmem:[%s1 + $0x1c0] sm:$0xff]
  %v344 = vld [vmem:[%s1 + $0x1c8] sm:$0xff]
  %v345 = vld [vmem:[%s1 + $0x1d0] sm:$0xff]
  %v346 = vld [vmem:[%s1 + $0x1d8] sm:$0xff]
  %v347 = vld [vmem:[%s1 + $0x1e0] sm:$0xff]
  %v348 = vld [vmem:[%s1 + $0x1e8] sm:$0xff]
  %v349 = vld [vmem:[%s1 + $0x1f0] sm:$0xff]
  %v350 = vld [vmem:[%s1 + $0x1f8] sm:$0xff]
  %v351 = vadd.f32 %v223, %v287
  %v352 = vadd.f32 %v224, %v288
  %v353 = vadd.f32 %v225, %v289
  %v354 = vadd.f32 %v226, %v290
  %v355 = vadd.f32 %v227, %v291
  %v356 = vadd.f32 %v228, %v292
  %v357 = vadd.f32 %v229, %v293
  %v358 = vadd.f32 %v230, %v294
  %v359 = vadd.f32 %v231, %v295
  %v360 = vadd.f32 %v232, %v296
  %v361 = vadd.f32 %v233, %v297
  %v362 = vadd.f32 %v234, %v298
  %v363 = vadd.f32 %v235, %v299
  %v364 = vadd.f32 %v236, %v300
  %v365 = vadd.f32 %v237, %v301
  %v366 = vadd.f32 %v238, %v302
  %v367 = vadd.f32 %v239, %v303
  %v368 = vadd.f32 %v240, %v304
  %v369 = vadd.f32 %v241, %v305
  %v370 = vadd.f32 %v242, %v306
  %v371 = vadd.f32 %v243, %v307
  %v372 = vadd.f32 %v244, %v308
  %v373 = vadd.f32 %v245, %v309
  %v374 = vadd.f32 %v246, %v310
  %v375 = vadd.f32 %v247, %v311
  %v376 = vadd.f32 %v248, %v312
  %v377 = vadd.f32 %v249, %v313
  %v378 = vadd.f32 %v250, %v314
  %v379 = vadd.f32 %v251, %v315
  %v380 = vadd.f32 %v252, %v316
  %v381 = vadd.f32 %v253, %v317
  %v382 = vadd.f32 %v254, %v318
  %v383 = vadd.f32 %v255, %v319
  %v384 = vadd.f32 %v256, %v320
  %v385 = vadd.f32 %v257, %v321
  %v386 = vadd.f32 %v258, %v322
  %v387 = vadd.f32 %v259, %v323
  %v388 = vadd.f32 %v260, %v324
  %v389 = vadd.f32 %v261, %v325
  %v390 = vadd.f32 %v262, %v326
  %v391 = vadd.f32 %v263, %v327
  %v392 = vadd.f32 %v264, %v328
  %v393 = vadd.f32 %v265, %v329
  %v394 = vadd.f32 %v266, %v330
  %v395 = vadd.f32 %v267, %v331
  %v396 = vadd.f32 %v268, %v332
  %v397 = vadd.f32 %v269, %v333
  %v398 = vadd.f32 %v270, %v334
  %v399 = vadd.f32 %v271, %v335
  %v400 = vadd.f32 %v272, %v336
  %v401 = vadd.f32 %v273, %v337
  %v402 = vadd.f32 %v274, %v338
  %v403 = vadd.f32 %v275, %v339
  %v404 = vadd.f32 %v276, %v340
  %v405 = vadd.f32 %v277, %v341
  %v406 = vadd.f32 %v278, %v342
  %v407 = vadd.f32 %v279, %v343
  %v408 = vadd.f32 %v280, %v344
  %v409 = vadd.f32 %v281, %v345
  %v410 = vadd.f32 %v282, %v346
  %v411 = vadd.f32 %v283, %v347
  %v412 = vadd.f32 %v284, %v348
  %v413 = vadd.f32 %v285, %v349
  %v414 = vadd.f32 %v286, %v350
  %415 = vst [vmem:[%s4] sm:$0xff] %v351
  %416 = vst [vmem:[%s4 + $0x8] sm:$0xff] %v352
  %417 = vst [vmem:[%s4 + $0x10] sm:$0xff] %v353
  %418 = vst [vmem:[%s4 + $0x18] sm:$0xff] %v354
  %419 = vst [vmem:[%s4 + $0x20] sm:$0xff] %v355
  %420 = vst [vmem:[%s4 + $0x28] sm:$0xff] %v356
  %421 = vst [vmem:[%s4 + $0x30] sm:$0xff] %v357
  %422 = vst [vmem:[%s4 + $0x38] sm:$0xff] %v358
  %423 = vst [vmem:[%s4 + $0x40] sm:$0xff] %v359
  %424 = vst [vmem:[%s4 + $0x48] sm:$0xff] %v360
  %425 = vst [vmem:[%s4 + $0x50] sm:$0xff] %v361
  %426 = vst [vmem:[%s4 + $0x58] sm:$0xff] %v362
  %427 = vst [vmem:[%s4 + $0x60] sm:$0xff] %v363
  %428 = vst [vmem:[%s4 + $0x68] sm:$0xff] %v364
  %429 = vst [vmem:[%s4 + $0x70] sm:$0xff] %v365
  %430 = vst [vmem:[%s4 + $0x78] sm:$0xff] %v366
  %431 = vst [vmem:[%s4 + $0x80] sm:$0xff] %v367
  %432 = vst [vmem:[%s4 + $0x88] sm:$0xff] %v368
  %433 = vst [vmem:[%s4 + $0x90] sm:$0xff] %v369
  %434 = vst [vmem:[%s4 + $0x98] sm:$0xff] %v370
  %435 = vst [vmem:[%s4 + $0xa0] sm:$0xff] %v371
  %436 = vst [vmem:[%s4 + $0xa8] sm:$0xff] %v372
  %437 = vst [vmem:[%s4 + $0xb0] sm:$0xff] %v373
  %438 = vst [vmem:[%s4 + $0xb8] sm:$0xff] %v374
  %439 = vst [vmem:[%s4 + $0xc0] sm:$0xff] %v375
  %440 = vst [vmem:[%s4 + $0xc8] sm:$0xff] %v376
  %441 = vst [vmem:[%s4 + $0xd0] sm:$0xff] %v377
  %442 = vst [vmem:[%s4 + $0xd8] sm:$0xff] %v378
  %443 = vst [vmem:[%s4 + $0xe0] sm:$0xff] %v379
  %444 = vst [vmem:[%s4 + $0xe8] sm:$0xff] %v380
  %445 = vst [vmem:[%s4 + $0xf0] sm:$0xff] %v381
  %446 = vst [vmem:[%s4 + $0xf8] sm:$0xff] %v382
  %447 = vst [vmem:[%s4 + $0x100] sm:$0xff] %v383
  %448 = vst [vmem:[%s4 + $0x108] sm:$0xff] %v384
  %449 = vst [vmem:[%s4 + $0x110] sm:$0xff] %v385
  %450 = vst [vmem:[%s4 + $0x118] sm:$0xff] %v386
  %451 = vst [vmem:[%s4 + $0x120] sm:$0xff] %v387
  %452 = vst [vmem:[%s4 + $0x128] sm:$0xff] %v388
  %453 = vst [vmem:[%s4 + $0x130] sm:$0xff] %v389
  %454 = vst [vmem:[%s4 + $0x138] sm:$0xff] %v390
  %455 = vst [vmem:[%s4 + $0x140] sm:$0xff] %v391
  %456 = vst [vmem:[%s4 + $0x148] sm:$0xff] %v392
  %457 = vst [vmem:[%s4 + $0x150] sm:$0xff] %v393
  %458 = vst [vmem:[%s4 + $0x158] sm:$0xff] %v394
  %459 = vst [vmem:[%s4 + $0x160] sm:$0xff] %v395
  %460 = vst [vmem:[%s4 + $0x168] sm:$0xff] %v396
  %461 = vst [vmem:[%s4 + $0x170] sm:$0xff] %v397
  %462 = vst [vmem:[%s4 + $0x178] sm:$0xff] %v398
  %463 = vst [vmem:[%s4 + $0x180] sm:$0xff] %v399
  %464 = vst [vmem:[%s4 + $0x188] sm:$0xff] %v400
  %465 = vst [vmem:[%s4 + $0x190] sm:$0xff] %v401
  %466 = vst [vmem:[%s4 + $0x198] sm:$0xff] %v402
  %467 = vst [vmem:[%s4 + $0x1a0] sm:$0xff] %v403
  %468 = vst [vmem:[%s4 + $0x1a8] sm:$0xff] %v404
  %469 = vst [vmem:[%s4 + $0x1b0] sm:$0xff] %v405
  %470 = vst [vmem:[%s4 + $0x1b8] sm:$0xff] %v406
  %471 = vst [vmem:[%s4 + $0x1c0] sm:$0xff] %v407
  %472 = vst [vmem:[%s4 + $0x1c8] sm:$0xff] %v408
  %473 = vst [vmem:[%s4 + $0x1d0] sm:$0xff] %v409
  %474 = vst [vmem:[%s4 + $0x1d8] sm:$0xff] %v410
  %475 = vst [vmem:[%s4 + $0x1e0] sm:$0xff] %v411
  %476 = vst [vmem:[%s4 + $0x1e8] sm:$0xff] %v412
  %477 = vst [vmem:[%s4 + $0x1f0] sm:$0xff] %v413
  %478 = vst [vmem:[%s4 + $0x1f8] sm:$0xff] %v414
  // Predicated region
  $region18: #{residual_block.5} parent=0 // pred_check
    _
  $region19: #{residual_block.5} parent=0 // pred_check_branch
    %480 = sbr.rel (0) target = $region21
  $region20: #{residual_block.5} parent=0 // pred_region
    _
  $region21: #{residual_block.5} parent=0 // pred_fallthru
    _
  // Predicated region
  $region22: #{residual_block.5} parent=0 // pred_check
    _
  $region23: #{residual_block.5} parent=0 // pred_check_branch
    %482 = sbr.rel (0) target = $region25
  $region24: #{residual_block.5} parent=0 // pred_region
    _
  $region25: #{residual_block.5} parent=0 // pred_fallthru
    _

// kernel: residual_block.4
$region0: #{residual_block.4}
  #allocation0 [shape = 'u32[]', space=smem, size = 0x4, offset = 0x4, fixed_abs, tag = 'smem constant byte address 0x4 - core index']
  #allocation1 [shape = 'u32[144,128]{1,0:T(1,128)}', space=vmem, size = 0x12000, scoped, tag = 'internal scratch']
  %s0 = inlined_call_operand.vmem [shape: bf16[2,18,18,128], index: 0, kind: input, shape index: {}]
  %s1 = inlined_call_operand.vmem [shape: f32[1,128], index: 1, kind: input, shape index: {}]
  %s2 = inlined_call_operand.vmem [shape: f32[1,128], index: 2, kind: input, shape index: {}]
  %s3 = inlined_call_operand.vmem [shape: f32[1,128], index: 3, kind: input, shape index: {}]
  %s4 = inlined_call_operand.vmem [shape: bf16[9,128,128], index: 4, kind: input, shape index: {}]
  %s5 = inlined_call_operand.vmem [shape: f32[1,128], index: 5, kind: input, shape index: {}]
  %s6 = inlined_call_operand.vmem [shape: bf16[2,16,16,128], index: 6, kind: output, shape index: {0}]
  %s7 = inlined_call_operand.vmem [shape: f32[1,2,128], index: 7, kind: output, shape index: {1}]
  %8 = xla_tuple %s6, %s7
  %s9 = sld [smem:[#allocation0]]
  $region42: #{residual_block.4} parent=0
    _
  %s11 = ssub.s32 1, %s9
  %s12 = scalar_select 0, %s11, %s9
  // Predicated region
  $region2: #{residual_block.4} parent=0 // pred_check
    _
  $region3: #{residual_block.4} parent=0 // pred_check_branch
    %14 = sbr.rel (0) target = $region5
  $region4: #{residual_block.4} parent=0 // pred_region
    _
  $region5: #{residual_block.4} parent=0 // pred_fallthru
    _
  // Predicated region
  $region6: #{residual_block.4} parent=0 // pred_check
    _
  $region7: #{residual_block.4} parent=0 // pred_check_branch
    %16 = sbr.rel (0) target = $region9
  $region8: #{residual_block.4} parent=0 // pred_region
    _
  $region9: #{residual_block.4} parent=0 // pred_fallthru
    _
  // Predicated region
  $region10: #{residual_block.4} parent=0 // pred_check
    _
  $region11: #{residual_block.4} parent=0 // pred_check_branch
    %18 = sbr.rel (0) target = $region13
  $region12: #{residual_block.4} parent=0 // pred_region
    _
  $region13: #{residual_block.4} parent=0 // pred_fallthru
    _
  // Predicated region
  $region14: #{residual_block.4} parent=0 // pred_check
    _
  $region15: #{residual_block.4} parent=0 // pred_check_branch
    %20 = sbr.rel (0) target = $region17
  $region16: #{residual_block.4} parent=0 // pred_region
    _
  $region17: #{residual_block.4} parent=0 // pred_fallthru
    _
  // Predicated region
  $region18: #{residual_block.4} parent=0 // pred_check
    _
  $region19: #{residual_block.4} parent=0 // pred_check_branch
    %22 = sbr.rel (0) target = $region21
  $region20: #{residual_block.4} parent=0 // pred_region
    _
  $region21: #{residual_block.4} parent=0 // pred_fallthru
    _
  // Predicated region
  $region22: #{residual_block.4} parent=0 // pred_check
    _
  $region23: #{residual_block.4} parent=0 // pred_check_branch
    %24 = sbr.rel (0) target = $region25
  $region24: #{residual_block.4} parent=0 // pred_region
    _
  $region25: #{residual_block.4} parent=0 // pred_fallthru
    _
  %v26 = vld [vmem:[%s0] sm:$0xf]
  %v27 = vld [vmem:[%s0 + $0x4] sm:$0xf]
  %v28 = vld [vmem:[%s0 + $0x8] sm:$0x1]
  %v29 = vld [vmem:[%s0 + $0xc] sm:$0xf]
  %v30 = vld [vmem:[%s0 + $0x10] sm:$0xf]
  %v31 = vld [vmem:[%s0 + $0x14] sm:$0x1]
  %v32 = vld [vmem:[%s0 + $0x18] sm:$0xf]
  %v33 = vld [vmem:[%s0 + $0x1c] sm:$0xf]
  %v34 = vld [vmem:[%s0 + $0x20] sm:$0x1]
  %v35 = vld [vmem:[%s0 + $0x24] sm:$0xf]
  %v36 = vld [vmem:[%s0 + $0x28] sm:$0xf]
  %v37 = vld [vmem:[%s0 + $0x2c] sm:$0x1]
  %v38 = vld [vmem:[%s0 + $0x30] sm:$0xf]
  %v39 = vld [vmem:[%s0 + $0x34] sm:$0xf]
  %v40 = vld [vmem:[%s0 + $0x38] sm:$0x1]
  %v41 = vld [vmem:[%s0 + $0x3c] sm:$0xf]
  %v42 = vld [vmem:[%s0 + $0x40] sm:$0xf]
  %v43 = vld [vmem:[%s0 + $0x44] sm:$0x1]
  %v44 = vld [vmem:[%s0 + $0x48] sm:$0xf]
  %v45 = vld [vmem:[%s0 + $0x4c] sm:$0xf]
  %v46 = vld [vmem:[%s0 + $0x50] sm:$0x1]
  %v47 = vld [vmem:[%s0 + $0x54] sm:$0xf]
  %v48 = vld [vmem:[%s0 + $0x58] sm:$0xf]
  %v49 = vld [vmem:[%s0 + $0x5c] sm:$0x1]
  %v50 = vld [vmem:[%s0 + $0x60] sm:$0xf]
  %v51 = vld [vmem:[%s0 + $0x64] sm:$0xf]
  %v52 = vld [vmem:[%s0 + $0x68] sm:$0x1]
  %v53 = vld [vmem:[%s0 + $0x6c] sm:$0xf]
  %v54 = vld [vmem:[%s0 + $0x70] sm:$0xf]
  %v55 = vld [vmem:[%s0 + $0x74] sm:$0x1]
  %v56 = vld [vmem:[%s0 + $0x78] sm:$0xf]
  %v57 = vld [vmem:[%s0 + $0x7c] sm:$0xf]
  %v58 = vld [vmem:[%s0 + $0x80] sm:$0x1]
  %v59 = vld [vmem:[%s0 + $0x84] sm:$0xf]
  %v60 = vld [vmem:[%s0 + $0x88] sm:$0xf]
  %v61 = vld [vmem:[%s0 + $0x8c] sm:$0x1]
  %v62 = vld [vmem:[%s0 + $0x90] sm:$0xf]
  %v63 = vld [vmem:[%s0 + $0x94] sm:$0xf]
  %v64 = vld [vmem:[%s0 + $0x98] sm:$0x1]
  %v65 = vld [vmem:[%s0 + $0x9c] sm:$0xf]
  %v66 = vld [vmem:[%s0 + $0xa0] sm:$0xf]
  %v67 = vld [vmem:[%s0 + $0xa4] sm:$0x1]
  %v68 = vld [vmem:[%s0 + $0xa8] sm:$0xf]
  %v69 = vld [vmem:[%s0 + $0xac] sm:$0xf]
  %v70 = vld [vmem:[%s0 + $0xb0] sm:$0x1]
  %v71 = vld [vmem:[%s0 + $0xb4] sm:$0xf]
  %v72 = vld [vmem:[%s0 + $0xb8] sm:$0xf]
  %v73 = vld [vmem:[%s0 + $0xbc] sm:$0x1]
  %v74 = vld [vmem:[%s0 + $0xc0] sm:$0xf]
  %v75 = vld [vmem:[%s0 + $0xc4] sm:$0xf]
  %v76 = vld [vmem:[%s0 + $0xc8] sm:$0x1]
  %v77 = vld [vmem:[%s0 + $0xcc] sm:$0xf]
  %v78 = vld [vmem:[%s0 + $0xd0] sm:$0xf]
  %v79 = vld [vmem:[%s0 + $0xd4] sm:$0x1]
  %v80 = vld [vmem:[%s0 + $0xd8] sm:$0xf]
  %v81 = vld [vmem:[%s0 + $0xdc] sm:$0xf]
  %v82 = vld [vmem:[%s0 + $0xe0] sm:$0x1]
  %v83 = vld [vmem:[%s0 + $0xe4] sm:$0xf]
  %v84 = vld [vmem:[%s0 + $0xe8] sm:$0xf]
  %v85 = vld [vmem:[%s0 + $0xec] sm:$0x1]
  %v86 = vld [vmem:[%s0 + $0xf0] sm:$0xf]
  %v87 = vld [vmem:[%s0 + $0xf4] sm:$0xf]
  %v88 = vld [vmem:[%s0 + $0xf8] sm:$0x1]
  %v89 = vld [vmem:[%s0 + $0xfc] sm:$0xf]
  %v90 = vld [vmem:[%s0 + $0x100] sm:$0xf]
  %v91 = vld [vmem:[%s0 + $0x104] sm:$0x1]
  %v92 = vld [vmem:[%s0 + $0x108] sm:$0xf]
  %v93 = vld [vmem:[%s0 + $0x10c] sm:$0xf]
  %v94 = vld [vmem:[%s0 + $0x110] sm:$0x1]
  %v95 = vld [vmem:[%s0 + $0x114] sm:$0xf]
  %v96 = vld [vmem:[%s0 + $0x118] sm:$0xf]
  %v97 = vld [vmem:[%s0 + $0x11c] sm:$0x1]
  %v98 = vld [vmem:[%s0 + $0x120] sm:$0xf]
  %v99 = vld [vmem:[%s0 + $0x124] sm:$0xf]
  %v100 = vld [vmem:[%s0 + $0x128] sm:$0x1]
  %v101 = vld [vmem:[%s0 + $0x12c] sm:$0xf]
  %v102 = vld [vmem:[%s0 + $0x130] sm:$0xf]
  %v103 = vld [vmem:[%s0 + $0x134] sm:$0x1]
  %v104 = vld [vmem:[%s0 + $0x138] sm:$0xf]
  %v105 = vld [vmem:[%s0 + $0x13c] sm:$0xf]
  %v106 = vld [vmem:[%s0 + $0x140] sm:$0x1]
  %v107 = vld [vmem:[%s0 + $0x144] sm:$0xf]
  %v108 = vld [vmem:[%s0 + $0x148] sm:$0xf]
  %v109 = vld [vmem:[%s0 + $0x14c] sm:$0x1]
  %v110 = vld [vmem:[%s0 + $0x150] sm:$0xf]
  %v111 = vld [vmem:[%s0 + $0x154] sm:$0xf]
  %v112 = vld [vmem:[%s0 + $0x158] sm:$0x1]
  %v113 = vld [vmem:[%s0 + $0x15c] sm:$0xf]
  %v114 = vld [vmem:[%s0 + $0x160] sm:$0xf]
  %v115 = vld [vmem:[%s0 + $0x164] sm:$0x1]
  %v116 = vld [vmem:[%s0 + $0x168] sm:$0xf]
  %v117 = vld [vmem:[%s0 + $0x16c] sm:$0xf]
  %v118 = vld [vmem:[%s0 + $0x170] sm:$0x1]
  %v119 = vld [vmem:[%s0 + $0x174] sm:$0xf]
  %v120 = vld [vmem:[%s0 + $0x178] sm:$0xf]
  %v121 = vld [vmem:[%s0 + $0x17c] sm:$0x1]
  %v122 = vld [vmem:[%s0 + $0x180] sm:$0xf]
  %v123 = vld [vmem:[%s0 + $0x184] sm:$0xf]
  %v124 = vld [vmem:[%s0 + $0x188] sm:$0x1]
  %v125 = vld [vmem:[%s0 + $0x18c] sm:$0xf]
  %v126 = vld [vmem:[%s0 + $0x190] sm:$0xf]
  %v127 = vld [vmem:[%s0 + $0x194] sm:$0x1]
  %v128 = vld [vmem:[%s0 + $0x198] sm:$0xf]
  %v129 = vld [vmem:[%s0 + $0x19c] sm:$0xf]
  %v130 = vld [vmem:[%s0 + $0x1a0] sm:$0x1]
  %v131 = vld [vmem:[%s0 + $0x1a4] sm:$0xf]
  %v132 = vld [vmem:[%s0 + $0x1a8] sm:$0xf]
  %v133 = vld [vmem:[%s0 + $0x1ac] sm:$0x1]
  %v134 = vunpack.c.l.bf16 %v26
  %v135 = vunpack.c.l.bf16 %v27
  %v136 = vunpack.c.l.bf16 %v28
  %v137 = vunpack.c.l.bf16 %v29
  %v138 = vunpack.c.l.bf16 %v30
  %v139 = vunpack.c.l.bf16 %v31
  %v140 = vunpack.c.l.bf16 %v32
  %v141 = vunpack.c.l.bf16 %v33
  %v142 = vunpack.c.l.bf16 %v34
  %v143 = vunpack.c.l.bf16 %v35
  %v144 = vunpack.c.l.bf16 %v36
  %v145 = vunpack.c.l.bf16 %v37
  %v146 = vunpack.c.l.bf16 %v38
  %v147 = vunpack.c.l.bf16 %v39
  %v148 = vunpack.c.l.bf16 %v40
  %v149 = vunpack.c.l.bf16 %v41
  %v150 = vunpack.c.l.bf16 %v42
  %v151 = vunpack.c.l.bf16 %v43
  %v152 = vunpack.c.l.bf16 %v44
  %v153 = vunpack.c.l.bf16 %v45
  %v154 = vunpack.c.l.bf16 %v46
  %v155 = vunpack.c.l.bf16 %v47
  %v156 = vunpack.c.l.bf16 %v48
  %v157 = vunpack.c.l.bf16 %v49
  %v158 = vunpack.c.l.bf16 %v50
  %v159 = vunpack.c.l.bf16 %v51
  %v160 = vunpack.c.l.bf16 %v52
  %v161 = vunpack.c.l.bf16 %v53
  %v162 = vunpack.c.l.bf16 %v54
  %v163 = vunpack.c.l.bf16 %v55
  %v164 = vunpack.c.l.bf16 %v56
  %v165 = vunpack.c.l.bf16 %v57
  %v166 = vunpack.c.l.bf16 %v58
  %v167 = vunpack.c.l.bf16 %v59
  %v168 = vunpack.c.l.bf16 %v60
  %v169 = vunpack.c.l.bf16 %v61
  %v170 = vunpack.c.l.bf16 %v62
  %v171 = vunpack.c.l.bf16 %v63
  %v172 = vunpack.c.l.bf16 %v64
  %v173 = vunpack.c.l.bf16 %v65
  %v174 = vunpack.c.l.bf16 %v66
  %v175 = vunpack.c.l.bf16 %v67
  %v176 = vunpack.c.l.bf16 %v68
  %v177 = vunpack.c.l.bf16 %v69
  %v178 = vunpack.c.l.bf16 %v70
  %v179 = vunpack.c.l.bf16 %v71
  %v180 = vunpack.c.l.bf16 %v72
  %v181 = vunpack.c.l.bf16 %v73
  %v182 = vunpack.c.l.bf16 %v74
  %v183 = vunpack.c.l.bf16 %v75
  %v184 = vunpack.c.l.bf16 %v76
  %v185 = vunpack.c.l.bf16 %v77
  %v186 = vunpack.c.l.bf16 %v78
  %v187 = vunpack.c.l.bf16 %v79
  %v188 = vunpack.c.l.bf16 %v80
  %v189 = vunpack.c.l.bf16 %v81
  %v190 = vunpack.c.l.bf16 %v82
  %v191 = vunpack.c.l.bf16 %v83
  %v192 = vunpack.c.l.bf16 %v84
  %v193 = vunpack.c.l.bf16 %v85
  %v194 = vunpack.c.l.bf16 %v86
  %v195 = vunpack.c.l.bf16 %v87
  %v196 = vunpack.c.l.bf16 %v88
  %v197 = vunpack.c.l.bf16 %v89
  %v198 = vunpack.c.l.bf16 %v90
  %v199 = vunpack.c.l.bf16 %v91
  %v200 = vunpack.c.l.bf16 %v92
  %v201 = vunpack.c.l.bf16 %v93
  %v202 = vunpack.c.l.bf16 %v94
  %v203 = vunpack.c.l.bf16 %v95
  %v204 = vunpack.c.l.bf16 %v96
  %v205 = vunpack.c.l.bf16 %v97
  %v206 = vunpack.c.l.bf16 %v98
  %v207 = vunpack.c.l.bf16 %v99
  %v208 = vunpack.c.l.bf16 %v100
  %v209 = vunpack.c.l.bf16 %v101
  %v210 = vunpack.c.l.bf16 %v102
  %v211 = vunpack.c.l.bf16 %v103
  %v212 = vunpack.c.l.bf16 %v104
  %v213 = vunpack.c.l.bf16 %v105
  %v214 = vunpack.c.l.bf16 %v106
  %v215 = vunpack.c.l.bf16 %v107
  %v216 = vunpack.c.l.bf16 %v108
  %v217 = vunpack.c.l.bf16 %v109
  %v218 = vunpack.c.l.bf16 %v110
  %v219 = vunpack.c.l.bf16 %v111
  %v220 = vunpack.c.l.bf16 %v112
  %v221 = vunpack.c.l.bf16 %v113
  %v222 = vunpack.c.l.bf16 %v114
  %v223 = vunpack.c.l.bf16 %v115
  %v224 = vunpack.c.l.bf16 %v116
  %v225 = vunpack.c.l.bf16 %v117
  %v226 = vunpack.c.l.bf16 %v118
  %v227 = vunpack.c.l.bf16 %v119
  %v228 = vunpack.c.l.bf16 %v120
  %v229 = vunpack.c.l.bf16 %v121
  %v230 = vunpack.c.l.bf16 %v122
  %v231 = vunpack.c.l.bf16 %v123
  %v232 = vunpack.c.l.bf16 %v124
  %v233 = vunpack.c.l.bf16 %v125
  %v234 = vunpack.c.l.bf16 %v126
  %v235 = vunpack.c.l.bf16 %v127
  %v236 = vunpack.c.l.bf16 %v128
  %v237 = vunpack.c.l.bf16 %v129
  %v238 = vunpack.c.l.bf16 %v130
  %v239 = vunpack.c.l.bf16 %v131
  %v240 = vunpack.c.l.bf16 %v132
  %v241 = vunpack.c.l.bf16 %v133
  %v242 = vld [vmem:[%s1] sm:$0x1]
  %v244 = vlaneseq
  %v245 = vshrl.u32 %v244, 7
  %v246 = vsub.s32 0, %v245
  %v247 = vrot.slane %v242, %v246
  %v249 = vmul.f32 %v134, %v247
  %v250 = vmul.f32 %v135, %v247
  %v251 = vmul.f32 %v136, %v247
  %v252 = vmul.f32 %v137, %v247
  %v253 = vmul.f32 %v138, %v247
  %v254 = vmul.f32 %v139, %v247
  %v255 = vmul.f32 %v140, %v247
  %v256 = vmul.f32 %v141, %v247
  %v257 = vmul.f32 %v142, %v247
  %v258 = vmul.f32 %v143, %v247
  %v259 = vmul.f32 %v144, %v247
  %v260 = vmul.f32 %v145, %v247
  %v261 = vmul.f32 %v146, %v247
  %v262 = vmul.f32 %v147, %v247
  %v263 = vmul.f32 %v148, %v247
  %v264 = vmul.f32 %v149, %v247
  %v265 = vmul.f32 %v150, %v247
  %v266 = vmul.f32 %v151, %v247
  %v267 = vmul.f32 %v152, %v247
  %v268 = vmul.f32 %v153, %v247
  %v269 = vmul.f32 %v154, %v247
  %v270 = vmul.f32 %v155, %v247
  %v271 = vmul.f32 %v156, %v247
  %v272 = vmul.f32 %v157, %v247
  %v273 = vmul.f32 %v158, %v247
  %v274 = vmul.f32 %v159, %v247
  %v275 = vmul.f32 %v160, %v247
  %v276 = vmul.f32 %v161, %v247
  %v277 = vmul.f32 %v162, %v247
  %v278 = vmul.f32 %v163, %v247
  %v279 = vmul.f32 %v164, %v247
  %v280 = vmul.f32 %v165, %v247
  %v281 = vmul.f32 %v166, %v247
  %v282 = vmul.f32 %v167, %v247
  %v283 = vmul.f32 %v168, %v247
  %v284 = vmul.f32 %v169, %v247
  %v285 = vmul.f32 %v170, %v247
  %v286 = vmul.f32 %v171, %v247
  %v287 = vmul.f32 %v172, %v247
  %v288 = vmul.f32 %v173, %v247
  %v289 = vmul.f32 %v174, %v247
  %v290 = vmul.f32 %v175, %v247
  %v291 = vmul.f32 %v176, %v247
  %v292 = vmul.f32 %v177, %v247
  %v293 = vmul.f32 %v178, %v247
  %v294 = vmul.f32 %v179, %v247
  %v295 = vmul.f32 %v180, %v247
  %v296 = vmul.f32 %v181, %v247
  %v297 = vmul.f32 %v182, %v247
  %v298 = vmul.f32 %v183, %v247
  %v299 = vmul.f32 %v184, %v247
  %v300 = vmul.f32 %v185, %v247
  %v301 = vmul.f32 %v186, %v247
  %v302 = vmul.f32 %v187, %v247
  %v303 = vmul.f32 %v188, %v247
  %v304 = vmul.f32 %v189, %v247
  %v305 = vmul.f32 %v190, %v247
  %v306 = vmul.f32 %v191, %v247
  %v307 = vmul.f32 %v192, %v247
  %v308 = vmul.f32 %v193, %v247
  %v309 = vmul.f32 %v194, %v247
  %v310 = vmul.f32 %v195, %v247
  %v311 = vmul.f32 %v196, %v247
  %v312 = vmul.f32 %v197, %v247
  %v313 = vmul.f32 %v198, %v247
  %v314 = vmul.f32 %v199, %v247
  %v315 = vmul.f32 %v200, %v247
  %v316 = vmul.f32 %v201, %v247
  %v317 = vmul.f32 %v202, %v247
  %v318 = vmul.f32 %v203, %v247
  %v319 = vmul.f32 %v204, %v247
  %v320 = vmul.f32 %v205, %v247
  %v321 = vmul.f32 %v206, %v247
  %v322 = vmul.f32 %v207, %v247
  %v323 = vmul.f32 %v208, %v247
  %v324 = vmul.f32 %v209, %v247
  %v325 = vmul.f32 %v210, %v247
  %v326 = vmul.f32 %v211, %v247
  %v327 = vmul.f32 %v212, %v247
  %v328 = vmul.f32 %v213, %v247
  %v329 = vmul.f32 %v214, %v247
  %v330 = vmul.f32 %v215, %v247
  %v331 = vmul.f32 %v216, %v247
  %v332 = vmul.f32 %v217, %v247
  %v333 = vmul.f32 %v218, %v247
  %v334 = vmul.f32 %v219, %v247
  %v335 = vmul.f32 %v220, %v247
  %v336 = vmul.f32 %v221, %v247
  %v337 = vmul.f32 %v222, %v247
  %v338 = vmul.f32 %v223, %v247
  %v339 = vmul.f32 %v224, %v247
  %v340 = vmul.f32 %v225, %v247
  %v341 = vmul.f32 %v226, %v247
  %v342 = vmul.f32 %v227, %v247
  %v343 = vmul.f32 %v228, %v247
  %v344 = vmul.f32 %v229, %v247
  %v345 = vmul.f32 %v230, %v247
  %v346 = vmul.f32 %v231, %v247
  %v347 = vmul.f32 %v232, %v247
  %v348 = vmul.f32 %v233, %v247
  %v349 = vmul.f32 %v234, %v247
  %v350 = vmul.f32 %v235, %v247
  %v351 = vmul.f32 %v236, %v247
  %v352 = vmul.f32 %v237, %v247
  %v353 = vmul.f32 %v238, %v247
  %v354 = vmul.f32 %v239, %v247
  %v355 = vmul.f32 %v240, %v247
  %v356 = vmul.f32 %v241, %v247
  %v357 = vld [vmem:[%s2] sm:$0x1]
  %v359 = vlaneseq
  %v360 = vshrl.u32 %v359, 7
  %v361 = vsub.s32 0, %v360
  %v362 = vrot.slane %v357, %v361
  %v364 = vadd.f32 %v249, %v362
  %v365 = vadd.f32 %v250, %v362
  %v366 = vadd.f32 %v251, %v362
  %v367 = vadd.f32 %v252, %v362
  %v368 = vadd.f32 %v253, %v362
  %v369 = vadd.f32 %v254, %v362
  %v370 = vadd.f32 %v255, %v362
  %v371 = vadd.f32 %v256, %v362
  %v372 = vadd.f32 %v257, %v362
  %v373 = vadd.f32 %v258, %v362
  %v374 = vadd.f32 %v259, %v362
  %v375 = vadd.f32 %v260, %v362
  %v376 = vadd.f32 %v261, %v362
  %v377 = vadd.f32 %v262, %v362
  %v378 = vadd.f32 %v263, %v362
  %v379 = vadd.f32 %v264, %v362
  %v380 = vadd.f32 %v265, %v362
  %v381 = vadd.f32 %v266, %v362
  %v382 = vadd.f32 %v267, %v362
  %v383 = vadd.f32 %v268, %v362
  %v384 = vadd.f32 %v269, %v362
  %v385 = vadd.f32 %v270, %v362
  %v386 = vadd.f32 %v271, %v362
  %v387 = vadd.f32 %v272, %v362
  %v388 = vadd.f32 %v273, %v362
  %v389 = vadd.f32 %v274, %v362
  %v390 = vadd.f32 %v275, %v362
  %v391 = vadd.f32 %v276, %v362
  %v392 = vadd.f32 %v277, %v362
  %v393 = vadd.f32 %v278, %v362
  %v394 = vadd.f32 %v279, %v362
  %v395 = vadd.f32 %v280, %v362
  %v396 = vadd.f32 %v281, %v362
  %v397 = vadd.f32 %v282, %v362
  %v398 = vadd.f32 %v283, %v362
  %v399 = vadd.f32 %v284, %v362
  %v400 = vadd.f32 %v285, %v362
  %v401 = vadd.f32 %v286, %v362
  %v402 = vadd.f32 %v287, %v362
  %v403 = vadd.f32 %v288, %v362
  %v404 = vadd.f32 %v289, %v362
  %v405 = vadd.f32 %v290, %v362
  %v406 = vadd.f32 %v291, %v362
  %v407 = vadd.f32 %v292, %v362
  %v408 = vadd.f32 %v293, %v362
  %v409 = vadd.f32 %v294, %v362
  %v410 = vadd.f32 %v295, %v362
  %v411 = vadd.f32 %v296, %v362
  %v412 = vadd.f32 %v297, %v362
  %v413 = vadd.f32 %v298, %v362
  %v414 = vadd.f32 %v299, %v362
  %v415 = vadd.f32 %v300, %v362
  %v416 = vadd.f32 %v301, %v362
  %v417 = vadd.f32 %v302, %v362
  %v418 = vadd.f32 %v303, %v362
  %v419 = vadd.f32 %v304, %v362
  %v420 = vadd.f32 %v305, %v362
  %v421 = vadd.f32 %v306, %v362
  %v422 = vadd.f32 %v307, %v362
  %v423 = vadd.f32 %v308, %v362
  %v424 = vadd.f32 %v309, %v362
  %v425 = vadd.f32 %v310, %v362
  %v426 = vadd.f32 %v311, %v362
  %v427 = vadd.f32 %v312, %v362
  %v428 = vadd.f32 %v313, %v362
  %v429 = vadd.f32 %v314, %v362
  %v430 = vadd.f32 %v315, %v362
  %v431 = vadd.f32 %v316, %v362
  %v432 = vadd.f32 %v317, %v362
  %v433 = vadd.f32 %v318, %v362
  %v434 = vadd.f32 %v319, %v362
  %v435 = vadd.f32 %v320, %v362
  %v436 = vadd.f32 %v321, %v362
  %v437 = vadd.f32 %v322, %v362
  %v438 = vadd.f32 %v323, %v362
  %v439 = vadd.f32 %v324, %v362
  %v440 = vadd.f32 %v325, %v362
  %v441 = vadd.f32 %v326, %v362
  %v442 = vadd.f32 %v327, %v362
  %v443 = vadd.f32 %v328, %v362
  %v444 = vadd.f32 %v329, %v362
  %v445 = vadd.f32 %v330, %v362
  %v446 = vadd.f32 %v331, %v362
  %v447 = vadd.f32 %v332, %v362
  %v448 = vadd.f32 %v333, %v362
  %v449 = vadd.f32 %v334, %v362
  %v450 = vadd.f32 %v335, %v362
  %v451 = vadd.f32 %v336, %v362
  %v452 = vadd.f32 %v337, %v362
  %v453 = vadd.f32 %v338, %v362
  %v454 = vadd.f32 %v339, %v362
  %v455 = vadd.f32 %v340, %v362
  %v456 = vadd.f32 %v341, %v362
  %v457 = vadd.f32 %v342, %v362
  %v458 = vadd.f32 %v343, %v362
  %v459 = vadd.f32 %v344, %v362
  %v460 = vadd.f32 %v345, %v362
  %v461 = vadd.f32 %v346, %v362
  %v462 = vadd.f32 %v347, %v362
  %v463 = vadd.f32 %v348, %v362
  %v464 = vadd.f32 %v349, %v362
  %v465 = vadd.f32 %v350, %v362
  %v466 = vadd.f32 %v351, %v362
  %v467 = vadd.f32 %v352, %v362
  %v468 = vadd.f32 %v353, %v362
  %v469 = vadd.f32 %v354, %v362
  %v470 = vadd.f32 %v355, %v362
  %v471 = vadd.f32 %v356, %v362
  %vm472 = vcmp.ge.f32.partialorder %v364, 0.0
  %vm473 = vcmp.ge.f32.partialorder %v365, 0.0
  %vm474 = vcmp.ge.f32.partialorder %v366, 0.0
  %vm475 = vcmp.ge.f32.partialorder %v367, 0.0
  %vm476 = vcmp.ge.f32.partialorder %v368, 0.0
  %vm477 = vcmp.ge.f32.partialorder %v369, 0.0
  %vm478 = vcmp.ge.f32.partialorder %v370, 0.0
  %vm479 = vcmp.ge.f32.partialorder %v371, 0.0
  %vm480 = vcmp.ge.f32.partialorder %v372, 0.0
  %vm481 = vcmp.ge.f32.partialorder %v373, 0.0
  %vm482 = vcmp.ge.f32.partialorder %v374, 0.0
  %vm483 = vcmp.ge.f32.partialorder %v375, 0.0
  %vm484 = vcmp.ge.f32.partialorder %v376, 0.0
  %vm485 = vcmp.ge.f32.partialorder %v377, 0.0
  %vm486 = vcmp.ge.f32.partialorder %v378, 0.0
  %vm487 = vcmp.ge.f32.partialorder %v379, 0.0
  %vm488 = vcmp.ge.f32.partialorder %v380, 0.0
  %vm489 = vcmp.ge.f32.partialorder %v381, 0.0
  %vm490 = vcmp.ge.f32.partialorder %v382, 0.0
  %vm491 = vcmp.ge.f32.partialorder %v383, 0.0
  %vm492 = vcmp.ge.f32.partialorder %v384, 0.0
  %vm493 = vcmp.ge.f32.partialorder %v385, 0.0
  %vm494 = vcmp.ge.f32.partialorder %v386, 0.0
  %vm495 = vcmp.ge.f32.partialorder %v387, 0.0
  %vm496 = vcmp.ge.f32.partialorder %v388, 0.0
  %vm497 = vcmp.ge.f32.partialorder %v389, 0.0
  %vm498 = vcmp.ge.f32.partialorder %v390, 0.0
  %vm499 = vcmp.ge.f32.partialorder %v391, 0.0
  %vm500 = vcmp.ge.f32.partialorder %v392, 0.0
  %vm501 = vcmp.ge.f32.partialorder %v393, 0.0
  %vm502 = vcmp.ge.f32.partialorder %v394, 0.0
  %vm503 = vcmp.ge.f32.partialorder %v395, 0.0
  %vm504 = vcmp.ge.f32.partialorder %v396, 0.0
  %vm505 = vcmp.ge.f32.partialorder %v397, 0.0
  %vm506 = vcmp.ge.f32.partialorder %v398, 0.0
  %vm507 = vcmp.ge.f32.partialorder %v399, 0.0
  %vm508 = vcmp.ge.f32.partialorder %v400, 0.0
  %vm509 = vcmp.ge.f32.partialorder %v401, 0.0
  %vm510 = vcmp.ge.f32.partialorder %v402, 0.0
  %vm511 = vcmp.ge.f32.partialorder %v403, 0.0
  %vm512 = vcmp.ge.f32.partialorder %v404, 0.0
  %vm513 = vcmp.ge.f32.partialorder %v405, 0.0
  %vm514 = vcmp.ge.f32.partialorder %v406, 0.0
  %vm515 = vcmp.ge.f32.partialorder %v407, 0.0
  %vm516 = vcmp.ge.f32.partialorder %v408, 0.0
  %vm517 = vcmp.ge.f32.partialorder %v409, 0.0
  %vm518 = vcmp.ge.f32.partialorder %v410, 0.0
  %vm519 = vcmp.ge.f32.partialorder %v411, 0.0
  %vm520 = vcmp.ge.f32.partialorder %v412, 0.0
  %vm521 = vcmp.ge.f32.partialorder %v413, 0.0
  %vm522 = vcmp.ge.f32.partialorder %v414, 0.0
  %vm523 = vcmp.ge.f32.partialorder %v415, 0.0
  %vm524 = vcmp.ge.f32.partialorder %v416, 0.0
  %vm525 = vcmp.ge.f32.partialorder %v417, 0.0
  %vm526 = vcmp.ge.f32.partialorder %v418, 0.0
  %vm527 = vcmp.ge.f32.partialorder %v419, 0.0
  %vm528 = vcmp.ge.f32.partialorder %v420, 0.0
  %vm529 = vcmp.ge.f32.partialorder %v421, 0.0
  %vm530 = vcmp.ge.f32.partialorder %v422, 0.0
  %vm531 = vcmp.ge.f32.partialorder %v423, 0.0
  %vm532 = vcmp.ge.f32.partialorder %v424, 0.0
  %vm533 = vcmp.ge.f32.partialorder %v425, 0.0
  %vm534 = vcmp.ge.f32.partialorder %v426, 0.0
  %vm535 = vcmp.ge.f32.partialorder %v427, 0.0
  %vm536 = vcmp.ge.f32.partialorder %v428, 0.0
  %vm537 = vcmp.ge.f32.partialorder %v429, 0.0
  %vm538 = vcmp.ge.f32.partialorder %v430, 0.0
  %vm539 = vcmp.ge.f32.partialorder %v431, 0.0
  %vm540 = vcmp.ge.f32.partialorder %v432, 0.0
  %vm541 = vcmp.ge.f32.partialorder %v433, 0.0
  %vm542 = vcmp.ge.f32.partialorder %v434, 0.0
  %vm543 = vcmp.ge.f32.partialorder %v435, 0.0
  %vm544 = vcmp.ge.f32.partialorder %v436, 0.0
  %vm545 = vcmp.ge.f32.partialorder %v437, 0.0
  %vm546 = vcmp.ge.f32.partialorder %v438, 0.0
  %vm547 = vcmp.ge.f32.partialorder %v439, 0.0
  %vm548 = vcmp.ge.f32.partialorder %v440, 0.0
  %vm549 = vcmp.ge.f32.partialorder %v441, 0.0
  %vm550 = vcmp.ge.f32.partialorder %v442, 0.0
  %vm551 = vcmp.ge.f32.partialorder %v443, 0.0
  %vm552 = vcmp.ge.f32.partialorder %v444, 0.0
  %vm553 = vcmp.ge.f32.partialorder %v445, 0.0
  %vm554 = vcmp.ge.f32.partialorder %v446, 0.0
  %vm555 = vcmp.ge.f32.partialorder %v447, 0.0
  %vm556 = vcmp.ge.f32.partialorder %v448, 0.0
  %vm557 = vcmp.ge.f32.partialorder %v449, 0.0
  %vm558 = vcmp.ge.f32.partialorder %v450, 0.0
  %vm559 = vcmp.ge.f32.partialorder %v451, 0.0
  %vm560 = vcmp.ge.f32.partialorder %v452, 0.0
  %vm561 = vcmp.ge.f32.partialorder %v453, 0.0
  %vm562 = vcmp.ge.f32.partialorder %v454, 0.0
  %vm563 = vcmp.ge.f32.partialorder %v455, 0.0
  %vm564 = vcmp.ge.f32.partialorder %v456, 0.0
  %vm565 = vcmp.ge.f32.partialorder %v457, 0.0
  %vm566 = vcmp.ge.f32.partialorder %v458, 0.0
  %vm567 = vcmp.ge.f32.partialorder %v459, 0.0
  %vm568 = vcmp.ge.f32.partialorder %v460, 0.0
  %vm569 = vcmp.ge.f32.partialorder %v461, 0.0
  %vm570 = vcmp.ge.f32.partialorder %v462, 0.0
  %vm571 = vcmp.ge.f32.partialorder %v463, 0.0
  %vm572 = vcmp.ge.f32.partialorder %v464, 0.0
  %vm573 = vcmp.ge.f32.partialorder %v465, 0.0
  %vm574 = vcmp.ge.f32.partialorder %v466, 0.0
  %vm575 = vcmp.ge.f32.partialorder %v467, 0.0
  %vm576 = vcmp.ge.f32.partialorder %v468, 0.0
  %vm577 = vcmp.ge.f32.partialorder %v469, 0.0
  %vm578 = vcmp.ge.f32.partialorder %v470, 0.0
  %vm579 = vcmp.ge.f32.partialorder %v471, 0.0
  %v580 = vld [vmem:[%s3] sm:$0x1]
  %v582 = vlaneseq
  %v583 = vshrl.u32 %v582, 7
  %v584 = vsub.s32 0, %v583
  %v585 = vrot.slane %v580, %v584
  %v587 = vmul.f32 %v585, %v364
  %v588 = vmul.f32 %v585, %v365
  %v589 = vmul.f32 %v585, %v366
  %v590 = vmul.f32 %v585, %v367
  %v591 = vmul.f32 %v585, %v368
  %v592 = vmul.f32 %v585, %v369
  %v593 = vmul.f32 %v585, %v370
  %v594 = vmul.f32 %v585, %v371
  %v595 = vmul.f32 %v585, %v372
  %v596 = vmul.f32 %v585, %v373
  %v597 = vmul.f32 %v585, %v374
  %v598 = vmul.f32 %v585, %v375
  %v599 = vmul.f32 %v585, %v376
  %v600 = vmul.f32 %v585, %v377
  %v601 = vmul.f32 %v585, %v378
  %v602 = vmul.f32 %v585, %v379
  %v603 = vmul.f32 %v585, %v380
  %v604 = vmul.f32 %v585, %v381
  %v605 = vmul.f32 %v585, %v382
  %v606 = vmul.f32 %v585, %v383
  %v607 = vmul.f32 %v585, %v384
  %v608 = vmul.f32 %v585, %v385
  %v609 = vmul.f32 %v585, %v386
  %v610 = vmul.f32 %v585, %v387
  %v611 = vmul.f32 %v585, %v388
  %v612 = vmul.f32 %v585, %v389
  %v613 = vmul.f32 %v585, %v390
  %v614 = vmul.f32 %v585, %v391
  %v615 = vmul.f32 %v585, %v392
  %v616 = vmul.f32 %v585, %v393
  %v617 = vmul.f32 %v585, %v394
  %v618 = vmul.f32 %v585, %v395
  %v619 = vmul.f32 %v585, %v396
  %v620 = vmul.f32 %v585, %v397
  %v621 = vmul.f32 %v585, %v398
  %v622 = vmul.f32 %v585, %v399
  %v623 = vmul.f32 %v585, %v400
  %v624 = vmul.f32 %v585, %v401
  %v625 = vmul.f32 %v585, %v402
  %v626 = vmul.f32 %v585, %v403
  %v627 = vmul.f32 %v585, %v404
  %v628 = vmul.f32 %v585, %v405
  %v629 = vmul.f32 %v585, %v406
  %v630 = vmul.f32 %v585, %v407
  %v631 = vmul.f32 %v585, %v408
  %v632 = vmul.f32 %v585, %v409
  %v633 = vmul.f32 %v585, %v410
  %v634 = vmul.f32 %v585, %v411
  %v635 = vmul.f32 %v585, %v412
  %v636 = vmul.f32 %v585, %v413
  %v637 = vmul.f32 %v585, %v414
  %v638 = vmul.f32 %v585, %v415
  %v639 = vmul.f32 %v585, %v416
  %v640 = vmul.f32 %v585, %v417
  %v641 = vmul.f32 %v585, %v418
  %v642 = vmul.f32 %v585, %v419
  %v643 = vmul.f32 %v585, %v420
  %v644 = vmul.f32 %v585, %v421
  %v645 = vmul.f32 %v585, %v422
  %v646 = vmul.f32 %v585, %v423
  %v647 = vmul.f32 %v585, %v424
  %v648 = vmul.f32 %v585, %v425
  %v649 = vmul.f32 %v585, %v426
  %v650 = vmul.f32 %v585, %v427
  %v651 = vmul.f32 %v585, %v428
  %v652 = vmul.f32 %v585, %v429
  %v653 = vmul.f32 %v585, %v430
  %v654 = vmul.f32 %v585, %v431
  %v655 = vmul.f32 %v585, %v432
  %v656 = vmul.f32 %v585, %v433
  %v657 = vmul.f32 %v585, %v434
  %v658 = vmul.f32 %v585, %v435
  %v659 = vmul.f32 %v585, %v436
  %v660 = vmul.f32 %v585, %v437
  %v661 = vmul.f32 %v585, %v438
  %v662 = vmul.f32 %v585, %v439
  %v663 = vmul.f32 %v585, %v440
  %v664 = vmul.f32 %v585, %v441
  %v665 = vmul.f32 %v585, %v442
  %v666 = vmul.f32 %v585, %v443
  %v667 = vmul.f32 %v585, %v444
  %v668 = vmul.f32 %v585, %v445
  %v669 = vmul.f32 %v585, %v446
  %v670 = vmul.f32 %v585, %v447
  %v671 = vmul.f32 %v585, %v448
  %v672 = vmul.f32 %v585, %v449
  %v673 = vmul.f32 %v585, %v450
  %v674 = vmul.f32 %v585, %v451
  %v675 = vmul.f32 %v585, %v452
  %v676 = vmul.f32 %v585, %v453
  %v677 = vmul.f32 %v585, %v454
  %v678 = vmul.f32 %v585, %v455
  %v679 = vmul.f32 %v585, %v456
  %v680 = vmul.f32 %v585, %v457
  %v681 = vmul.f32 %v585, %v458
  %v682 = vmul.f32 %v585, %v459
  %v683 = vmul.f32 %v585, %v460
  %v684 = vmul.f32 %v585, %v461
  %v685 = vmul.f32 %v585, %v462
  %v686 = vmul.f32 %v585, %v463
  %v687 = vmul.f32 %v585, %v464
  %v688 = vmul.f32 %v585, %v465
  %v689 = vmul.f32 %v585, %v466
  %v690 = vmul.f32 %v585, %v467
  %v691 = vmul.f32 %v585, %v468
  %v692 = vmul.f32 %v585, %v469
  %v693 = vmul.f32 %v585, %v470
  %v694 = vmul.f32 %v585, %v471
  %v695 = vsel %vm472, %v364, %v587
  %v696 = vsel %vm473, %v365, %v588
  %v697 = vsel %vm474, %v366, %v589
  %v698 = vsel %vm475, %v367, %v590
  %v699 = vsel %vm476, %v368, %v591
  %v700 = vsel %vm477, %v369, %v592
  %v701 = vsel %vm478, %v370, %v593
  %v702 = vsel %vm479, %v371, %v594
  %v703 = vsel %vm480, %v372, %v595
  %v704 = vsel %vm481, %v373, %v596
  %v705 = vsel %vm482, %v374, %v597
  %v706 = vsel %vm483, %v375, %v598
  %v707 = vsel %vm484, %v376, %v599
  %v708 = vsel %vm485, %v377, %v600
  %v709 = vsel %vm486, %v378, %v601
  %v710 = vsel %vm487, %v379, %v602
  %v711 = vsel %vm488, %v380, %v603
  %v712 = vsel %vm489, %v381, %v604
  %v713 = vsel %vm490, %v382, %v605
  %v714 = vsel %vm491, %v383, %v606
  %v715 = vsel %vm492, %v384, %v607
  %v716 = vsel %vm493, %v385, %v608
  %v717 = vsel %vm494, %v386, %v609
  %v718 = vsel %vm495, %v387, %v610
  %v719 = vsel %vm496, %v388, %v611
  %v720 = vsel %vm497, %v389, %v612
  %v721 = vsel %vm498, %v390, %v613
  %v722 = vsel %vm499, %v391, %v614
  %v723 = vsel %vm500, %v392, %v615
  %v724 = vsel %vm501, %v393, %v616
  %v725 = vsel %vm502, %v394, %v617
  %v726 = vsel %vm503, %v395, %v618
  %v727 = vsel %vm504, %v396, %v619
  %v728 = vsel %vm505, %v397, %v620
  %v729 = vsel %vm506, %v398, %v621
  %v730 = vsel %vm507, %v399, %v622
  %v731 = vsel %vm508, %v400, %v623
  %v732 = vsel %vm509, %v401, %v624
  %v733 = vsel %vm510, %v402, %v625
  %v734 = vsel %vm511, %v403, %v626
  %v735 = vsel %vm512, %v404, %v627
  %v736 = vsel %vm513, %v405, %v628
  %v737 = vsel %vm514, %v406, %v629
  %v738 = vsel %vm515, %v407, %v630
  %v739 = vsel %vm516, %v408, %v631
  %v740 = vsel %vm517, %v409, %v632
  %v741 = vsel %vm518, %v410, %v633
  %v742 = vsel %vm519, %v411, %v634
  %v743 = vsel %vm520, %v412, %v635
  %v744 = vsel %vm521, %v413, %v636
  %v745 = vsel %vm522, %v414, %v637
  %v746 = vsel %vm523, %v415, %v638
  %v747 = vsel %vm524, %v416, %v639
  %v748 = vsel %vm525, %v417, %v640
  %v749 = vsel %vm526, %v418, %v641
  %v750 = vsel %vm527, %v419, %v642
  %v751 = vsel %vm528, %v420, %v643
  %v752 = vsel %vm529, %v421, %v644
  %v753 = vsel %vm530, %v422, %v645
  %v754 = vsel %vm531, %v423, %v646
  %v755 = vsel %vm532, %v424, %v647
  %v756 = vsel %vm533, %v425, %v648
  %v757 = vsel %vm534, %v426, %v649
  %v758 = vsel %vm535, %v427, %v650
  %v759 = vsel %vm536, %v428, %v651
  %v760 = vsel %vm537, %v429, %v652
  %v761 = vsel %vm538, %v430, %v653
  %v762 = vsel %vm539, %v431, %v654
  %v763 = vsel %vm540, %v432, %v655
  %v764 = vsel %vm541, %v433, %v656
  %v765 = vsel %vm542, %v434, %v657
  %v766 = vsel %vm543, %v435, %v658
  %v767 = vsel %vm544, %v436, %v659
  %v768 = vsel %vm545, %v437, %v660
  %v769 = vsel %vm546, %v438, %v661
  %v770 = vsel %vm547, %v439, %v662
  %v771 = vsel %vm548, %v440, %v663
  %v772 = vsel %vm549, %v441, %v664
  %v773 = vsel %vm550, %v442, %v665
  %v774 = vsel %vm551, %v443, %v666
  %v775 = vsel %vm552, %v444, %v667
  %v776 = vsel %vm553, %v445, %v668
  %v777 = vsel %vm554, %v446, %v669
  %v778 = vsel %vm555, %v447, %v670
  %v779 = vsel %vm556, %v448, %v671
  %v780 = vsel %vm557, %v449, %v672
  %v781 = vsel %vm558, %v450, %v673
  %v782 = vsel %vm559, %v451, %v674
  %v783 = vsel %vm560, %v452, %v675
  %v784 = vsel %vm561, %v453, %v676
  %v785 = vsel %vm562, %v454, %v677
  %v786 = vsel %vm563, %v455, %v678
  %v787 = vsel %vm564, %v456, %v679
  %v788 = vsel %vm565, %v457, %v680
  %v789 = vsel %vm566, %v458, %v681
  %v790 = vsel %vm567, %v459, %v682
  %v791 = vsel %vm568, %v460, %v683
  %v792 = vsel %vm569, %v461, %v684
  %v793 = vsel %vm570, %v462, %v685
  %v794 = vsel %vm571, %v463, %v686
  %v795 = vsel %vm572, %v464, %v687
  %v796 = vsel %vm573, %v465, %v688
  %v797 = vsel %vm574, %v466, %v689
  %v798 = vsel %vm575, %v467, %v690
  %v799 = vsel %vm576, %v468, %v691
  %v800 = vsel %vm577, %v469, %v692
  %v801 = vsel %vm578, %v470, %v693
  %v802 = vsel %vm579, %v471, %v694
  %v803 = vlaneseq
  %v804 = vshrl.u32 %v803, 7
  %v805 = vadd.s32 %v804, 8
  %v806 = vadd.s32 %v804, 16
  %vm807 = vcmp.ge.s32.totalorder %v804, 1
  %vm808 = vcmp.ge.s32.totalorder %v805, 1
  %vm809 = vcmp.ge.s32.totalorder %v806, 1
  %vm810 = vmand 0, %vm807
  %vm811 = vmand 0, %vm808
  %vm812 = vmand 0, %vm809
  %vm813 = vmand 1, %vm807
  %vm814 = vmand 1, %vm808
  %vm815 = vmand 1, %vm809
  %vm816 = vcmp.le.s32.totalorder %v804, 16
  %vm817 = vcmp.le.s32.totalorder %v805, 16
  %vm818 = vcmp.le.s32.totalorder %v806, 16
  %vm819 = vmand %vm810, %vm816
  %vm820 = vmand %vm811, %vm817
  %vm821 = vmand %vm812, %vm818
  %vm822 = vmand %vm813, %vm816
  %vm823 = vmand %vm814, %vm817
  %vm824 = vmand %vm815, %vm818
  %v825 = vsel %vm819, 1, 0
  %v826 = vsel %vm820, 1, 0
  %v827 = vsel %vm821, 1, 0
  %v828 = vsel %vm822, 1, 0
  %v829 = vsel %vm823, 1, 0
  %v830 = vsel %vm824, 1, 0
  %vm831 = vcmp.eq.s32.totalorder %v825, 1
  %vm832 = vcmp.eq.s32.totalorder %v826, 1
  %vm833 = vcmp.eq.s32.totalorder %v827, 1
  %vm834 = vcmp.eq.s32.totalorder %v828, 1
  %vm835 = vcmp.eq.s32.totalorder %v829, 1
  %vm836 = vcmp.eq.s32.totalorder %v830, 1
  %v837 = vsel %vm831, %v695, 0.0
  %v838 = vsel %vm832, %v696, 0.0
  %v839 = vsel %vm833, %v697, 0.0
  %v840 = vsel %vm834, %v698, 0.0
  %v841 = vsel %vm835, %v699, 0.0
  %v842 = vsel %vm836, %v700, 0.0
  %v843 = vsel %vm834, %v701, 0.0
  %v844 = vsel %vm835, %v702, 0.0
  %v845 = vsel %vm836, %v703, 0.0
  %v846 = vsel %vm834, %v704, 0.0
  %v847 = vsel %vm835, %v705, 0.0
  %v848 = vsel %vm836, %v706, 0.0
  %v849 = vsel %vm834, %v707, 0.0
  %v850 = vsel %vm835, %v708, 0.0
  %v851 = vsel %vm836, %v709, 0.0
  %v852 = vsel %vm834, %v710, 0.0
  %v853 = vsel %vm835, %v711, 0.0
  %v854 = vsel %vm836, %v712, 0.0
  %v855 = vsel %vm834, %v713, 0.0
  %v856 = vsel %vm835, %v714, 0.0
  %v857 = vsel %vm836, %v715, 0.0
  %v858 = vsel %vm834, %v716, 0.0
  %v859 = vsel %vm835, %v717, 0.0
  %v860 = vsel %vm836, %v718, 0.0
  %v861 = vsel %vm834, %v719, 0.0
  %v862 = vsel %vm835, %v720, 0.0
  %v863 = vsel %vm836, %v721, 0.0
  %v864 = vsel %vm834, %v722, 0.0
  %v865 = vsel %vm835, %v723, 0.0
  %v866 = vsel %vm836, %v724, 0.0
  %v867 = vsel %vm834, %v725, 0.0
  %v868 = vsel %vm835, %v726, 0.0
  %v869 = vsel %vm836, %v727, 0.0
  %v870 = vsel %vm834, %v728, 0.0
  %v871 = vsel %vm835, %v729, 0.0
  %v872 = vsel %vm836, %v730, 0.0
  %v873 = vsel %vm834, %v731, 0.0
  %v874 = vsel %vm835, %v732, 0.0
  %v875 = vsel %vm836, %v733, 0.0
  %v876 = vsel %vm834, %v734, 0.0
  %v877 = vsel %vm835, %v735, 0.0
  %v878 = vsel %vm836, %v736, 0.0
  %v879 = vsel %vm834, %v737, 0.0
  %v880 = vsel %vm835, %v738, 0.0
  %v881 = vsel %vm836, %v739, 0.0
  %v882 = vsel %vm834, %v740, 0.0
  %v883 = vsel %vm835, %v741, 0.0
  %v884 = vsel %vm836, %v742, 0.0
  %v885 = vsel %vm834, %v743, 0.0
  %v886 = vsel %vm835, %v744, 0.0
  %v887 = vsel %vm836, %v745, 0.0
  %v888 = vsel %vm831, %v746, 0.0
  %v889 = vsel %vm832, %v747, 0.0
  %v890 = vsel %vm833, %v748, 0.0
  %v891 = vsel %vm831, %v749, 0.0
  %v892 = vsel %vm832, %v750, 0.0
  %v893 = vsel %vm833, %v751, 0.0
  %v894 = vsel %vm834, %v752, 0.0
  %v895 = vsel %vm835, %v753, 0.0
  %v896 = vsel %vm836, %v754, 0.0
  %v897 = vsel %vm834, %v755, 0.0
  %v898 = vsel %vm835, %v756, 0.0
  %v899 = vsel %vm836, %v757, 0.0
  %v900 = vsel %vm834, %v758, 0.0
  %v901 = vsel %vm835, %v759, 0.0
  %v902 = vsel %vm836, %v760, 0.0
  %v903 = vsel %vm834, %v761, 0.0
  %v904 = vsel %vm835, %v762, 0.0
  %v905 = vsel %vm836, %v763, 0.0
  %v906 = vsel %vm834, %v764, 0.0
  %v907 = vsel %vm835, %v765, 0.0
  %v908 = vsel %vm836, %v766, 0.0
  %v909 = vsel %vm834, %v767, 0.0
  %v910 = vsel %vm835, %v768, 0.0
  %v911 = vsel %vm836, %v769, 0.0
  %v912 = vsel %vm834, %v770, 0.0
  %v913 = vsel %vm835, %v771, 0.0
  %v914 = vsel %vm836, %v772, 0.0
  %v915 = vsel %vm834, %v773, 0.0
  %v916 = vsel %vm835, %v774, 0.0
  %v917 = vsel %vm836, %v775, 0.0
  %v918 = vsel %vm834, %v776, 0.0
  %v919 = vsel %vm835, %v777, 0.0
  %v920 = vsel %vm836, %v778, 0.0
  %v921 = vsel %vm834, %v779, 0.0
  %v922 = vsel %vm835, %v780, 0.0
  %v923 = vsel %vm836, %v781, 0.0
  %v924 = vsel %vm834, %v782, 0.0
  %v925 = vsel %vm835, %v783, 0.0
  %v926 = vsel %vm836, %v784, 0.0
  %v927 = vsel %vm834, %v785, 0.0
  %v928 = vsel %vm835, %v786, 0.0
  %v929 = vsel %vm836, %v787, 0.0
  %v930 = vsel %vm834, %v788, 0.0
  %v931 = vsel %vm835, %v789, 0.0
  %v932 = vsel %vm836, %v790, 0.0
  %v933 = vsel %vm834, %v791, 0.0
  %v934 = vsel %vm835, %v792, 0.0
  %v935 = vsel %vm836, %v793, 0.0
  %v936 = vsel %vm834, %v794, 0.0
  %v937 = vsel %vm835, %v795, 0.0
  %v938 = vsel %vm836, %v796, 0.0
  %v939 = vsel %vm834, %v797, 0.0
  %v940 = vsel %vm835, %v798, 0.0
  %v941 = vsel %vm836, %v799, 0.0
  %v942 = vsel %vm831, %v800, 0.0
  %v943 = vsel %vm832, %v801, 0.0
  %v944 = vsel %vm833, %v802, 0.0
  %v945 = vpack.c.bf16 %v838, %v837
  %v946 = vpack.c.bf16 %v839, %v839
  %v947 = vpack.c.bf16 %v841, %v840
  %v948 = vpack.c.bf16 %v842, %v842
  %v949 = vpack.c.bf16 %v844, %v843
  %v950 = vpack.c.bf16 %v845, %v845
  %v951 = vpack.c.bf16 %v847, %v846
  %v952 = vpack.c.bf16 %v848, %v848
  %v953 = vpack.c.bf16 %v850, %v849
  %v954 = vpack.c.bf16 %v851, %v851
  %v955 = vpack.c.bf16 %v853, %v852
  %v956 = vpack.c.bf16 %v854, %v854
  %v957 = vpack.c.bf16 %v856, %v855
  %v958 = vpack.c.bf16 %v857, %v857
  %v959 = vpack.c.bf16 %v859, %v858
  %v960 = vpack.c.bf16 %v860, %v860
  %v961 = vpack.c.bf16 %v862, %v861
  %v962 = vpack.c.bf16 %v863, %v863
  %v963 = vpack.c.bf16 %v865, %v864
  %v964 = vpack.c.bf16 %v866, %v866
  %v965 = vpack.c.bf16 %v868, %v867
  %v966 = vpack.c.bf16 %v869, %v869
  %v967 = vpack.c.bf16 %v871, %v870
  %v968 = vpack.c.bf16 %v872, %v872
  %v969 = vpack.c.bf16 %v874, %v873
  %v970 = vpack.c.bf16 %v875, %v875
  %v971 = vpack.c.bf16 %v877, %v876
  %v972 = vpack.c.bf16 %v878, %v878
  %v973 = vpack.c.bf16 %v880, %v879
  %v974 = vpack.c.bf16 %v881, %v881
  %v975 = vpack.c.bf16 %v883, %v882
  %v976 = vpack.c.bf16 %v884, %v884
  %v977 = vpack.c.bf16 %v886, %v885
  %v978 = vpack.c.bf16 %v887, %v887
  %v979 = vpack.c.bf16 %v889, %v888
  %v980 = vpack.c.bf16 %v890, %v890
  %v981 = vpack.c.bf16 %v892, %v891
  %v982 = vpack.c.bf16 %v893, %v893
  %v983 = vpack.c.bf16 %v895, %v894
  %v984 = vpack.c.bf16 %v896, %v896
  %v985 = vpack.c.bf16 %v898, %v897
  %v986 = vpack.c.bf16 %v899, %v899
  %v987 = vpack.c.bf16 %v901, %v900
  %v988 = vpack.c.bf16 %v902, %v902
  %v989 = vpack.c.bf16 %v904, %v903
  %v990 = vpack.c.bf16 %v905, %v905
  %v991 = vpack.c.bf16 %v907, %v906
  %v992 = vpack.c.bf16 %v908, %v908
  %v993 = vpack.c.bf16 %v910, %v909
  %v994 = vpack.c.bf16 %v911, %v911
  %v995 = vpack.c.bf16 %v913, %v912
  %v996 = vpack.c.bf16 %v914, %v914
  %v997 = vpack.c.bf16 %v916, %v915
  %v998 = vpack.c.bf16 %v917, %v917
  %v999 = vpack.c.bf16 %v919, %v918
  %v1000 = vpack.c.bf16 %v920, %v920
  %v1001 = vpack.c.bf16 %v922, %v921
  %v1002 = vpack.c.bf16 %v923, %v923
  %v1003 = vpack.c.bf16 %v925, %v924
  %v1004 = vpack.c.bf16 %v926, %v926
  %v1005 = vpack.c.bf16 %v928, %v927
  %v1006 = vpack.c.bf16 %v929, %v929
  %v1007 = vpack.c.bf16 %v931, %v930
  %v1008 = vpack.c.bf16 %v932, %v932
  %v1009 = vpack.c.bf16 %v934, %v933
  %v1010 = vpack.c.bf16 %v935, %v935
  %v1011 = vpack.c.bf16 %v937, %v936
  %v1012 = vpack.c.bf16 %v938, %v938
  %v1013 = vpack.c.bf16 %v940, %v939
  %v1014 = vpack.c.bf16 %v941, %v941
  %v1015 = vpack.c.bf16 %v943, %v942
  %v1016 = vpack.c.bf16 %v944, %v944
  %v1017 = vld [vmem:[%s4] sm:$0xf]
  %v1018 = vld [vmem:[%s4 + $0x4] sm:$0xf]
  %v1019 = vld [vmem:[%s4 + $0x8] sm:$0xf]
  %v1020 = vld [vmem:[%s4 + $0xc] sm:$0xf]
  %v1021 = vld [vmem:[%s4 + $0x10] sm:$0xf]
  %v1022 = vld [vmem:[%s4 + $0x14] sm:$0xf]
  %v1023 = vld [vmem:[%s4 + $0x18] sm:$0xf]
  %v1024 = vld [vmem:[%s4 + $0x1c] sm:$0xf]
  %v1025 = vld [vmem:[%s4 + $0x20] sm:$0xf]
  %v1026 = vld [vmem:[%s4 + $0x24] sm:$0xf]
  %v1027 = vld [vmem:[%s4 + $0x28] sm:$0xf]
  %v1028 = vld [vmem:[%s4 + $0x2c] sm:$0xf]
  %v1029 = vld [vmem:[%s4 + $0x30] sm:$0xf]
  %v1030 = vld [vmem:[%s4 + $0x34] sm:$0xf]
  %v1031 = vld [vmem:[%s4 + $0x38] sm:$0xf]
  %v1032 = vld [vmem:[%s4 + $0x3c] sm:$0xf]
  %vm1033 = vsmask.f32 7424
  %v1035 = vshrl.u32 %v945, 16
  %v1037 = vshll.u32 %v945, 16
  %v1039 = vrot.slane %v1037, 1
  %v1040 = vor.u32 %v1035, %v1039
  %v1042 = vshll.u32 %v946, 16
  %v1044 = vrot.slane %v1042, 1
  %v1045 = vsel %vm1033, %v1040, %v1044
  %v1047 = vshrl.u32 %v947, 16
  %v1049 = vshll.u32 %v947, 16
  %v1051 = vrot.slane %v1049, 1
  %v1052 = vor.u32 %v1047, %v1051
  %v1054 = vshll.u32 %v948, 16
  %v1056 = vrot.slane %v1054, 1
  %v1057 = vsel %vm1033, %v1052, %v1056
  %v1059 = vshrl.u32 %v949, 16
  %v1061 = vshll.u32 %v949, 16
  %v1063 = vrot.slane %v1061, 1
  %v1064 = vor.u32 %v1059, %v1063
  %v1066 = vshll.u32 %v950, 16
  %v1068 = vrot.slane %v1066, 1
  %v1069 = vsel %vm1033, %v1064, %v1068
  %v1071 = vshrl.u32 %v951, 16
  %v1073 = vshll.u32 %v951, 16
  %v1075 = vrot.slane %v1073, 1
  %v1076 = vor.u32 %v1071, %v1075
  %v1078 = vshll.u32 %v952, 16
  %v1080 = vrot.slane %v1078, 1
  %v1081 = vsel %vm1033, %v1076, %v1080
  %v1083 = vshrl.u32 %v953, 16
  %v1085 = vshll.u32 %v953, 16
  %v1087 = vrot.slane %v1085, 1
  %v1088 = vor.u32 %v1083, %v1087
  %v1090 = vshll.u32 %v954, 16
  %v1092 = vrot.slane %v1090, 1
  %v1093 = vsel %vm1033, %v1088, %v1092
  %v1095 = vshrl.u32 %v955, 16
  %v1097 = vshll.u32 %v955, 16
  %v1099 = vrot.slane %v1097, 1
  %v1100 = vor.u32 %v1095, %v1099
  %v1102 = vshll.u32 %v956, 16
  %v1104 = vrot.slane %v1102, 1
  %v1105 = vsel %vm1033, %v1100, %v1104
  %v1107 = vshrl.u32 %v957, 16
  %v1109 = vshll.u32 %v957, 16
  %v1111 = vrot.slane %v1109, 1
  %v1112 = vor.u32 %v1107, %v1111
  %v1114 = vshll.u32 %v958, 16
  %v1116 = vrot.slane %v1114, 1
  %v1117 = vsel %vm1033, %v1112, %v1116
  %v1119 = vshrl.u32 %v959, 16
  %v1121 = vshll.u32 %v959, 16
  %v1123 = vrot.slane %v1121, 1
  %v1124 = vor.u32 %v1119, %v1123
  %v1126 = vshll.u32 %v960, 16
  %v1128 = vrot.slane %v1126, 1
  %v1129 = vsel %vm1033, %v1124, %v1128
  %v1131 = vshrl.u32 %v961, 16
  %v1133 = vshll.u32 %v961, 16
  %v1135 = vrot.slane %v1133, 1
  %v1136 = vor.u32 %v1131, %v1135
  %v1138 = vshll.u32 %v962, 16
  %v1140 = vrot.slane %v1138, 1
  %v1141 = vsel %vm1033, %v1136, %v1140
  %v1143 = vshrl.u32 %v963, 16
  %v1145 = vshll.u32 %v963, 16
  %v1147 = vrot.slane %v1145, 1
  %v1148 = vor.u32 %v1143, %v1147
  %v1150 = vshll.u32 %v964, 16
  %v1152 = vrot.slane %v1150, 1
  %v1153 = vsel %vm1033, %v1148, %v1152
  %v1155 = vshrl.u32 %v965, 16
  %v1157 = vshll.u32 %v965, 16
  %v1159 = vrot.slane %v1157, 1
  %v1160 = vor.u32 %v1155, %v1159
  %v1162 = vshll.u32 %v966, 16
  %v1164 = vrot.slane %v1162, 1
  %v1165 = vsel %vm1033, %v1160, %v1164
  %v1167 = vshrl.u32 %v967, 16
  %v1169 = vshll.u32 %v967, 16
  %v1171 = vrot.slane %v1169, 1
  %v1172 = vor.u32 %v1167, %v1171
  %v1174 = vshll.u32 %v968, 16
  %v1176 = vrot.slane %v1174, 1
  %v1177 = vsel %vm1033, %v1172, %v1176
  %v1179 = vshrl.u32 %v969, 16
  %v1181 = vshll.u32 %v969, 16
  %v1183 = vrot.slane %v1181, 1
  %v1184 = vor.u32 %v1179, %v1183
  %v1186 = vshll.u32 %v970, 16
  %v1188 = vrot.slane %v1186, 1
  %v1189 = vsel %vm1033, %v1184, %v1188
  %v1191 = vshrl.u32 %v971, 16
  %v1193 = vshll.u32 %v971, 16
  %v1195 = vrot.slane %v1193, 1
  %v1196 = vor.u32 %v1191, %v1195
  %v1198 = vshll.u32 %v972, 16
  %v1200 = vrot.slane %v1198, 1
  %v1201 = vsel %vm1033, %v1196, %v1200
  %v1203 = vshrl.u32 %v973, 16
  %v1205 = vshll.u32 %v973, 16
  %v1207 = vrot.slane %v1205, 1
  %v1208 = vor.u32 %v1203, %v1207
  %v1210 = vshll.u32 %v974, 16
  %v1212 = vrot.slane %v1210, 1
  %v1213 = vsel %vm1033, %v1208, %v1212
  %v1215 = vshrl.u32 %v975, 16
  %v1217 = vshll.u32 %v975, 16
  %v1219 = vrot.slane %v1217, 1
  %v1220 = vor.u32 %v1215, %v1219
  %v1222 = vshll.u32 %v976, 16
  %v1224 = vrot.slane %v1222, 1
  %v1225 = vsel %vm1033, %v1220, %v1224
  %v1227 = vshrl.u32 %v981, 16
  %v1229 = vshll.u32 %v981, 16
  %v1231 = vrot.slane %v1229, 1
  %v1232 = vor.u32 %v1227, %v1231
  %v1234 = vshll.u32 %v982, 16
  %v1236 = vrot.slane %v1234, 1
  %v1237 = vsel %vm1033, %v1232, %v1236
  %v1239 = vshrl.u32 %v983, 16
  %v1241 = vshll.u32 %v983, 16
  %v1243 = vrot.slane %v1241, 1
  %v1244 = vor.u32 %v1239, %v1243
  %v1246 = vshll.u32 %v984, 16
  %v1248 = vrot.slane %v1246, 1
  %v1249 = vsel %vm1033, %v1244, %v1248
  %v1251 = vshrl.u32 %v985, 16
  %v1253 = vshll.u32 %v985, 16
  %v1255 = vrot.slane %v1253, 1
  %v1256 = vor.u32 %v1251, %v1255
  %v1258 = vshll.u32 %v986, 16
  %v1260 = vrot.slane %v1258, 1
  %v1261 = vsel %vm1033, %v1256, %v1260
  %v1263 = vshrl.u32 %v987, 16
  %v1265 = vshll.u32 %v987, 16
  %v1267 = vrot.slane %v1265, 1
  %v1268 = vor.u32 %v1263, %v1267
  %v1270 = vshll.u32 %v988, 16
  %v1272 = vrot.slane %v1270, 1
  %v1273 = vsel %vm1033, %v1268, %v1272
  %v1275 = vshrl.u32 %v989, 16
  %v1277 = vshll.u32 %v989, 16
  %v1279 = vrot.slane %v1277, 1
  %v1280 = vor.u32 %v1275, %v1279
  %v1282 = vshll.u32 %v990, 16
  %v1284 = vrot.slane %v1282, 1
  %v1285 = vsel %vm1033, %v1280, %v1284
  %v1287 = vshrl.u32 %v991, 16
  %v1289 = vshll.u32 %v991, 16
  %v1291 = vrot.slane %v1289, 1
  %v1292 = vor.u32 %v1287, %v1291
  %v1294 = vshll.u32 %v992, 16
  %v1296 = vrot.slane %v1294, 1
  %v1297 = vsel %vm1033, %v1292, %v1296
  %v1299 = vshrl.u32 %v993, 16
  %v1301 = vshll.u32 %v993, 16
  %v1303 = vrot.slane %v1301, 1
  %v1304 = vor.u32 %v1299, %v1303
  %v1306 = vshll.u32 %v994, 16
  %v1308 = vrot.slane %v1306, 1
  %v1309 = vsel %vm1033, %v1304, %v1308
  %v1311 = vshrl.u32 %v995, 16
  %v1313 = vshll.u32 %v995, 16
  %v1315 = vrot.slane %v1313, 1
  %v1316 = vor.u32 %v1311, %v1315
  %v1318 = vshll.u32 %v996, 16
  %v1320 = vrot.slane %v1318, 1
  %v1321 = vsel %vm1033, %v1316, %v1320
  %v1323 = vshrl.u32 %v997, 16
  %v1325 = vshll.u32 %v997, 16
  %v1327 = vrot.slane %v1325, 1
  %v1328 = vor.u32 %v1323, %v1327
  %v1330 = vshll.u32 %v998, 16
  %v1332 = vrot.slane %v1330, 1
  %v1333 = vsel %vm1033, %v1328, %v1332
  %v1335 = vshrl.u32 %v999, 16
  %v1337 = vshll.u32 %v999, 16
  %v1339 = vrot.slane %v1337, 1
  %v1340 = vor.u32 %v1335, %v1339
  %v1342 = vshll.u32 %v1000, 16
  %v1344 = vrot.slane %v1342, 1
  %v1345 = vsel %vm1033, %v1340, %v1344
  %v1347 = vshrl.u32 %v1001, 16
  %v1349 = vshll.u32 %v1001, 16
  %v1351 = vrot.slane %v1349, 1
  %v1352 = vor.u32 %v1347, %v1351
  %v1354 = vshll.u32 %v1002, 16
  %v1356 = vrot.slane %v1354, 1
  %v1357 = vsel %vm1033, %v1352, %v1356
  %v1359 = vshrl.u32 %v1003, 16
  %v1361 = vshll.u32 %v1003, 16
  %v1363 = vrot.slane %v1361, 1
  %v1364 = vor.u32 %v1359, %v1363
  %v1366 = vshll.u32 %v1004, 16
  %v1368 = vrot.slane %v1366, 1
  %v1369 = vsel %vm1033, %v1364, %v1368
  %v1371 = vshrl.u32 %v1005, 16
  %v1373 = vshll.u32 %v1005, 16
  %v1375 = vrot.slane %v1373, 1
  %v1376 = vor.u32 %v1371, %v1375
  %v1378 = vshll.u32 %v1006, 16
  %v1380 = vrot.slane %v1378, 1
  %v1381 = vsel %vm1033, %v1376, %v1380
  %v1383 = vshrl.u32 %v1007, 16
  %v1385 = vshll.u32 %v1007, 16
  %v1387 = vrot.slane %v1385, 1
  %v1388 = vor.u32 %v1383, %v1387
  %v1390 = vshll.u32 %v1008, 16
  %v1392 = vrot.slane %v1390, 1
  %v1393 = vsel %vm1033, %v1388, %v1392
  %v1395 = vshrl.u32 %v1009, 16
  %v1397 = vshll.u32 %v1009, 16
  %v1399 = vrot.slane %v1397, 1
  %v1400 = vor.u32 %v1395, %v1399
  %v1402 = vshll.u32 %v1010, 16
  %v1404 = vrot.slane %v1402, 1
  %v1405 = vsel %vm1033, %v1400, %v1404
  %v1407 = vshrl.u32 %v1011, 16
  %v1409 = vshll.u32 %v1011, 16
  %v1411 = vrot.slane %v1409, 1
  %v1412 = vor.u32 %v1407, %v1411
  %v1414 = vshll.u32 %v1012, 16
  %v1416 = vrot.slane %v1414, 1
  %v1417 = vsel %vm1033, %v1412, %v1416
  %s1450 = scalar_lea.vmem %s4, 64
  %v1451 = vld [vmem:[%s1450] sm:$0xf]
  %v1452 = vld [vmem:[%s1450 + $0x4] sm:$0xf]
  %v1453 = vld [vmem:[%s1450 + $0x8] sm:$0xf]
  %v1454 = vld [vmem:[%s1450 + $0xc] sm:$0xf]
  %v1455 = vld [vmem:[%s1450 + $0x10] sm:$0xf]
  %v1456 = vld [vmem:[%s1450 + $0x14] sm:$0xf]
  %v1457 = vld [vmem:[%s1450 + $0x18] sm:$0xf]
  %v1458 = vld [vmem:[%s1450 + $0x1c] sm:$0xf]
  %v1459 = vld [vmem:[%s1450 + $0x20] sm:$0xf]
  %v1460 = vld [vmem:[%s1450 + $0x24] sm:$0xf]
  %v1461 = vld [vmem:[%s1450 + $0x28] sm:$0xf]
  %v1462 = vld [vmem:[%s1450 + $0x2c] sm:$0xf]
  %v1463 = vld [vmem:[%s1450 + $0x30] sm:$0xf]
  %v1464 = vld [vmem:[%s1450 + $0x34] sm:$0xf]
  %v1465 = vld [vmem:[%s1450 + $0x38] sm:$0xf]
  %v1466 = vld [vmem:[%s1450 + $0x3c] sm:$0xf]
  %v1483 = vunpack.c.l.b16 %v1451
  %v1484 = vunpack.c.l.b16 %v1452
  %v1485 = vunpack.c.l.b16 %v1453
  %v1486 = vunpack.c.l.b16 %v1454
  %v1487 = vunpack.c.l.b16 %v1455
  %v1488 = vunpack.c.l.b16 %v1456
  %v1489 = vunpack.c.l.b16 %v1457
  %v1490 = vunpack.c.l.b16 %v1458
  %v1491 = vunpack.c.l.b16 %v1459
  %v1492 = vunpack.c.l.b16 %v1460
  %v1493 = vunpack.c.l.b16 %v1461
  %v1494 = vunpack.c.l.b16 %v1462
  %v1495 = vunpack.c.l.b16 %v1463
  %v1496 = vunpack.c.l.b16 %v1464
  %v1497 = vunpack.c.l.b16 %v1465
  %v1498 = vunpack.c.l.b16 %v1466
  %v1499 = vpack.c.b16 %v1484, %v1483
  %v1500 = vpack.c.b16 %v1486, %v1485
  %v1501 = vpack.c.b16 %v1488, %v1487
  %v1502 = vpack.c.b16 %v1490, %v1489
  %v1503 = vpack.c.b16 %v1492, %v1491
  %v1504 = vpack.c.b16 %v1494, %v1493
  %v1505 = vpack.c.b16 %v1496, %v1495
  %v1506 = vpack.c.b16 %v1498, %v1497
  %1515 = vmatprep.subr.bf16.mxu0 0
  %1516 = vmatpush1.bf16.msra.mxu0 %v1499
  %1517 = vmatprep.subr.bf16.mxu0 0
  %1518 = vmatpush1.bf16.msra.mxu0 %v1500
  %1519 = vmatprep.subr.bf16.mxu0 0
  %1520 = vmatpush1.bf16.msra.mxu0 %v1501
  %1521 = vmatprep.subr.bf16.mxu0 0
  %1522 = vmatpush1.bf16.msra.mxu0 %v1502
  %1523 = vmatprep.subr.bf16.mxu0 0
  %1524 = vmatpush1.bf16.msra.mxu0 %v1503
  %1525 = vmatprep.subr.bf16.mxu0 0
  %1526 = vmatpush1.bf16.msra.mxu0 %v1504
  %1527 = vmatprep.subr.bf16.mxu0 0
  %1528 = vmatpush1.bf16.msra.mxu0 %v1505
  %1529 = vmatprep.subr.bf16.mxu0 0
  %1530 = vmatpush1.bf16.msra.mxu0 %v1506
  %1531 = vmatprep.subr.bf16.mxu0 0
  %1532 = vmatpush1.bf16.msra.mxu0 0
  %1533 = vmatprep.subr.bf16.mxu0 0
  %1534 = vmatpush1.bf16.msra.mxu0 0
  %1535 = vmatprep.subr.bf16.mxu0 0
  %1536 = vmatpush1.bf16.msra.mxu0 0
  %1537 = vmatprep.subr.bf16.mxu0 0
  %1538 = vmatpush1.bf16.msra.mxu0 0
  %1539 = vmatprep.subr.bf16.mxu0 0
  %1540 = vmatpush1.bf16.msra.mxu0 0
  %1541 = vmatprep.subr.bf16.mxu0 0
  %1542 = vmatpush1.bf16.msra.mxu0 0
  %1543 = vmatprep.subr.bf16.mxu0 0
  %1544 = vmatpush1.bf16.msra.mxu0 0
  %1545 = vmatprep.subr.bf16.mxu0 0
  %1546 = vmatpush1.bf16.msra.mxu0 0
  %1547 = vmatprep.mubr.bf16.mxu0 0
  %1548 = vmatmul.mubr.bf16.gmra.mrb[0].mxu0 %v1045
  %v1549 = vpop.f32.mrb[0].mxu0
  %v1550 = vadd.f32 0.0, %v1549
  %v1551 = vpop.f32.mrb[0].mxu0
  %v1552 = vpop.f32.mrb[0].mxu0
  %v1553 = vadd.f32 0.0, %v1552
  %v1554 = vpop.f32.mrb[0].mxu0
  %1555 = vmatprep.mubr.bf16.mxu0 0
  %1556 = vmatmul.mubr.bf16.gmra.mrb[0].mxu0 %v1057
  %v1557 = vpop.f32.mrb[0].mxu0
  %v1558 = vadd.f32 0.0, %v1557
  %v1559 = vpop.f32.mrb[0].mxu0
  %v1560 = vpop.f32.mrb[0].mxu0
  %v1561 = vadd.f32 0.0, %v1560
  %v1562 = vpop.f32.mrb[0].mxu0
  %1563 = vmatprep.mubr.bf16.mxu0 0
  %1564 = vmatmul.mubr.bf16.gmra.mrb[0].mxu0 %v1069
  %v1565 = vpop.f32.mrb[0].mxu0
  %v1566 = vadd.f32 0.0, %v1565
  %v1567 = vpop.f32.mrb[0].mxu0
  %v1568 = vpop.f32.mrb[0].mxu0
  %v1569 = vadd.f32 0.0, %v1568
  %v1570 = vpop.f32.mrb[0].mxu0
  %1571 = vmatprep.mubr.bf16.mxu0 0
  %1572 = vmatmul.mubr.bf16.gmra.mrb[0].mxu0 %v1081
  %v1573 = vpop.f32.mrb[0].mxu0
  %v1574 = vadd.f32 0.0, %v1573
  %v1575 = vpop.f32.mrb[0].mxu0
  %v1576 = vpop.f32.mrb[0].mxu0
  %v1577 = vadd.f32 0.0, %v1576
  %v1578 = vpop.f32.mrb[0].mxu0
  %1579 = vmatprep.mubr.bf16.mxu0 0
  %1580 = vmatmul.mubr.bf16.gmra.mrb[0].mxu0 %v1093
  %v1581 = vpop.f32.mrb[0].mxu0
  %v1582 = vadd.f32 0.0, %v1581
  %v1583 = vpop.f32.mrb[0].mxu0
  %v1584 = vpop.f32.mrb[0].mxu0
  %v1585 = vadd.f32 0.0, %v1584
  %v1586 = vpop.f32.mrb[0].mxu0
  %1587 = vmatprep.mubr.bf16.mxu0 0
  %1588 = vmatmul.mubr.bf16.gmra.mrb[0].mxu0 %v1105
  %v1589 = vpop.f32.mrb[0].mxu0
  %v1590 = vadd.f32 0.0, %v1589
  %v1591 = vpop.f32.mrb[0].mxu0
  %v1592 = vpop.f32.mrb[0].mxu0
  %v1593 = vadd.f32 0.0, %v1592
  %v1594 = vpop.f32.mrb[0].mxu0
  %1595 = vmatprep.mubr.bf16.mxu0 0
  %1596 = vmatmul.mubr.bf16.gmra.mrb[0].mxu0 %v1117
  %v1597 = vpop.f32.mrb[0].mxu0
  %v1598 = vadd.f32 0.0, %v1597
  %v1599 = vpop.f32.mrb[0].mxu0
  %v1600 = vpop.f32.mrb[0].mxu0
  %v1601 = vadd.f32 0.0, %v1600
  %v1602 = vpop.f32.mrb[0].mxu0
  %1603 = vmatprep.mubr.bf16.mxu0 0
  %1604 = vmatmul.mubr.bf16.gmra.mrb[0].mxu0 %v1129
  %v1605 = vpop.f32.mrb[0].mxu0
  %v1606 = vadd.f32 0.0, %v1605
  %v1607 = vpop.f32.mrb[0].mxu0
  %v1608 = vpop.f32.mrb[0].mxu0
  %v1609 = vadd.f32 0.0, %v1608
  %v1610 = vpop.f32.mrb[0].mxu0
  %1611 = vmatprep.mubr.bf16.mxu0 0
  %1612 = vmatmul.mubr.bf16.gmra.mrb[0].mxu0 %v1141
  %v1613 = vpop.f32.mrb[0].mxu0
  %v1614 = vadd.f32 0.0, %v1613
  %v1615 = vpop.f32.mrb[0].mxu0
  %v1616 = vpop.f32.mrb[0].mxu0
  %v1617 = vadd.f32 0.0, %v1616
  %v1618 = vpop.f32.mrb[0].mxu0
  %1619 = vmatprep.mubr.bf16.mxu0 0
  %1620 = vmatmul.mubr.bf16.gmra.mrb[0].mxu0 %v1153
  %v1621 = vpop.f32.mrb[0].mxu0
  %v1622 = vadd.f32 0.0, %v1621
  %v1623 = vpop.f32.mrb[0].mxu0
  %v1624 = vpop.f32.mrb[0].mxu0
  %v1625 = vadd.f32 0.0, %v1624
  %v1626 = vpop.f32.mrb[0].mxu0
  %1627 = vmatprep.mubr.bf16.mxu0 0
  %1628 = vmatmul.mubr.bf16.gmra.mrb[0].mxu0 %v1165
  %v1629 = vpop.f32.mrb[0].mxu0
  %v1630 = vadd.f32 0.0, %v1629
  %v1631 = vpop.f32.mrb[0].mxu0
  %v1632 = vpop.f32.mrb[0].mxu0
  %v1633 = vadd.f32 0.0, %v1632
  %v1634 = vpop.f32.mrb[0].mxu0
  %1635 = vmatprep.mubr.bf16.mxu0 0
  %1636 = vmatmul.mubr.bf16.gmra.mrb[0].mxu0 %v1177
  %v1637 = vpop.f32.mrb[0].mxu0
  %v1638 = vadd.f32 0.0, %v1637
  %v1639 = vpop.f32.mrb[0].mxu0
  %v1640 = vpop.f32.mrb[0].mxu0
  %v1641 = vadd.f32 0.0, %v1640
  %v1642 = vpop.f32.mrb[0].mxu0
  %1643 = vmatprep.mubr.bf16.mxu0 0
  %1644 = vmatmul.mubr.bf16.gmra.mrb[0].mxu0 %v1189
  %v1645 = vpop.f32.mrb[0].mxu0
  %v1646 = vadd.f32 0.0, %v1645
  %v1647 = vpop.f32.mrb[0].mxu0
  %v1648 = vpop.f32.mrb[0].mxu0
  %v1649 = vadd.f32 0.0, %v1648
  %v1650 = vpop.f32.mrb[0].mxu0
  %1651 = vmatprep.mubr.bf16.mxu0 0
  %1652 = vmatmul.mubr.bf16.gmra.mrb[0].mxu0 %v1201
  %v1653 = vpop.f32.mrb[0].mxu0
  %v1654 = vadd.f32 0.0, %v1653
  %v1655 = vpop.f32.mrb[0].mxu0
  %v1656 = vpop.f32.mrb[0].mxu0
  %v1657 = vadd.f32 0.0, %v1656
  %v1658 = vpop.f32.mrb[0].mxu0
  %1659 = vmatprep.mubr.bf16.mxu0 0
  %1660 = vmatmul.mubr.bf16.gmra.mrb[0].mxu0 %v1213
  %v1661 = vpop.f32.mrb[0].mxu0
  %v1662 = vadd.f32 0.0, %v1661
  %v1663 = vpop.f32.mrb[0].mxu0
  %v1664 = vpop.f32.mrb[0].mxu0
  %v1665 = vadd.f32 0.0, %v1664
  %v1666 = vpop.f32.mrb[0].mxu0
  %1667 = vmatprep.mubr.bf16.mxu0 0
  %1668 = vmatmul.mubr.bf16.gmra.mrb[0].mxu0 %v1225
  %v1669 = vpop.f32.mrb[0].mxu0
  %v1670 = vadd.f32 0.0, %v1669
  %v1671 = vpop.f32.mrb[0].mxu0
  %v1672 = vpop.f32.mrb[0].mxu0
  %v1673 = vadd.f32 0.0, %v1672
  %v1674 = vpop.f32.mrb[0].mxu0
  %1675 = vmatprep.mubr.bf16.mxu0 0
  %1676 = vmatmul.mubr.bf16.gmra.mrb[0].mxu0 %v1237
  %v1677 = vpop.f32.mrb[0].mxu0
  %v1678 = vadd.f32 0.0, %v1677
  %v1679 = vpop.f32.mrb[0].mxu0
  %v1680 = vpop.f32.mrb[0].mxu0
  %v1681 = vadd.f32 0.0, %v1680
  %v1682 = vpop.f32.mrb[0].mxu0
  %1683 = vmatprep.mubr.bf16.mxu0 0
  %1684 = vmatmul.mubr.bf16.gmra.mrb[0].mxu0 %v1249
  %v1685 = vpop.f32.mrb[0].mxu0
  %v1686 = vadd.f32 0.0, %v1685
  %v1687 = vpop.f32.mrb[0].mxu0
  %v1688 = vpop.f32.mrb[0].mxu0
  %v1689 = vadd.f32 0.0, %v1688
  %v1690 = vpop.f32.mrb[0].mxu0
  %1691 = vmatprep.mubr.bf16.mxu0 0
  %1692 = vmatmul.mubr.bf16.gmra.mrb[0].mxu0 %v1261
  %v1693 = vpop.f32.mrb[0].mxu0
  %v1694 = vadd.f32 0.0, %v1693
  %v1695 = vpop.f32.mrb[0].mxu0
  %v1696 = vpop.f32.mrb[0].mxu0
  %v1697 = vadd.f32 0.0, %v1696
  %v1698 = vpop.f32.mrb[0].mxu0
  %1699 = vmatprep.mubr.bf16.mxu0 0
  %1700 = vmatmul.mubr.bf16.gmra.mrb[0].mxu0 %v1273
  %v1701 = vpop.f32.mrb[0].mxu0
  %v1702 = vadd.f32 0.0, %v1701
  %v1703 = vpop.f32.mrb[0].mxu0
  %v1704 = vpop.f32.mrb[0].mxu0
  %v1705 = vadd.f32 0.0, %v1704
  %v1706 = vpop.f32.mrb[0].mxu0
  %1707 = vmatprep.mubr.bf16.mxu0 0
  %1708 = vmatmul.mubr.bf16.gmra.mrb[0].mxu0 %v1285
  %v1709 = vpop.f32.mrb[0].mxu0
  %v1710 = vadd.f32 0.0, %v1709
  %v1711 = vpop.f32.mrb[0].mxu0
  %v1712 = vpop.f32.mrb[0].mxu0
  %v1713 = vadd.f32 0.0, %v1712
  %v1714 = vpop.f32.mrb[0].mxu0
  %1715 = vmatprep.mubr.bf16.mxu0 0
  %1716 = vmatmul.mubr.bf16.gmra.mrb[0].mxu0 %v1297
  %v1717 = vpop.f32.mrb[0].mxu0
  %v1718 = vadd.f32 0.0, %v1717
  %v1719 = vpop.f32.mrb[0].mxu0
  %v1720 = vpop.f32.mrb[0].mxu0
  %v1721 = vadd.f32 0.0, %v1720
  %v1722 = vpop.f32.mrb[0].mxu0
  %1723 = vmatprep.mubr.bf16.mxu0 0
  %1724 = vmatmul.mubr.bf16.gmra.mrb[0].mxu0 %v1309
  %v1725 = vpop.f32.mrb[0].mxu0
  %v1726 = vadd.f32 0.0, %v1725
  %v1727 = vpop.f32.mrb[0].mxu0
  %v1728 = vpop.f32.mrb[0].mxu0
  %v1729 = vadd.f32 0.0, %v1728
  %v1730 = vpop.f32.mrb[0].mxu0
  %1731 = vmatprep.mubr.bf16.mxu0 0
  %1732 = vmatmul.mubr.bf16.gmra.mrb[0].mxu0 %v1321
  %v1733 = vpop.f32.mrb[0].mxu0
  %v1734 = vadd.f32 0.0, %v1733
  %v1735 = vpop.f32.mrb[0].mxu0
  %v1736 = vpop.f32.mrb[0].mxu0
  %v1737 = vadd.f32 0.0, %v1736
  %v1738 = vpop.f32.mrb[0].mxu0
  %1739 = vmatprep.mubr.bf16.mxu0 0
  %1740 = vmatmul.mubr.bf16.gmra.mrb[0].mxu0 %v1333
  %v1741 = vpop.f32.mrb[0].mxu0
  %v1742 = vadd.f32 0.0, %v1741
  %v1743 = vpop.f32.mrb[0].mxu0
  %v1744 = vpop.f32.mrb[0].mxu0
  %v1745 = vadd.f32 0.0, %v1744
  %v1746 = vpop.f32.mrb[0].mxu0
  %1747 = vmatprep.mubr.bf16.mxu0 0
  %1748 = vmatmul.mubr.bf16.gmra.mrb[0].mxu0 %v1345
  %v1749 = vpop.f32.mrb[0].mxu0
  %v1750 = vadd.f32 0.0, %v1749
  %v1751 = vpop.f32.mrb[0].mxu0
  %v1752 = vpop.f32.mrb[0].mxu0
  %v1753 = vadd.f32 0.0, %v1752
  %v1754 = vpop.f32.mrb[0].mxu0
  %1755 = vmatprep.mubr.bf16.mxu0 0
  %1756 = vmatmul.mubr.bf16.gmra.mrb[0].mxu0 %v1357
  %v1757 = vpop.f32.mrb[0].mxu0
  %v1758 = vadd.f32 0.0, %v1757
  %v1759 = vpop.f32.mrb[0].mxu0
  %v1760 = vpop.f32.mrb[0].mxu0
  %v1761 = vadd.f32 0.0, %v1760
  %v1762 = vpop.f32.mrb[0].mxu0
  %1763 = vmatprep.mubr.bf16.mxu0 0
  %1764 = vmatmul.mubr.bf16.gmra.mrb[0].mxu0 %v1369
  %v1765 = vpop.f32.mrb[0].mxu0
  %v1766 = vadd.f32 0.0, %v1765
  %v1767 = vpop.f32.mrb[0].mxu0
  %v1768 = vpop.f32.mrb[0].mxu0
  %v1769 = vadd.f32 0.0, %v1768
  %v1770 = vpop.f32.mrb[0].mxu0
  %1771 = vmatprep.mubr.bf16.mxu0 0
  %1772 = vmatmul.mubr.bf16.gmra.mrb[0].mxu0 %v1381
  %v1773 = vpop.f32.mrb[0].mxu0
  %v1774 = vadd.f32 0.0, %v1773
  %v1775 = vpop.f32.mrb[0].mxu0
  %v1776 = vpop.f32.mrb[0].mxu0
  %v1777 = vadd.f32 0.0, %v1776
  %v1778 = vpop.f32.mrb[0].mxu0
  %1779 = vmatprep.mubr.bf16.mxu0 0
  %1780 = vmatmul.mubr.bf16.gmra.mrb[0].mxu0 %v1393
  %v1781 = vpop.f32.mrb[0].mxu0
  %v1782 = vadd.f32 0.0, %v1781
  %v1783 = vpop.f32.mrb[0].mxu0
  %v1784 = vpop.f32.mrb[0].mxu0
  %v1785 = vadd.f32 0.0, %v1784
  %v1786 = vpop.f32.mrb[0].mxu0
  %1787 = vmatprep.mubr.bf16.mxu0 0
  %1788 = vmatmul.mubr.bf16.gmra.mrb[0].mxu0 %v1405
  %v1789 = vpop.f32.mrb[0].mxu0
  %v1790 = vadd.f32 0.0, %v1789
  %v1791 = vpop.f32.mrb[0].mxu0
  %v1792 = vpop.f32.mrb[0].mxu0
  %v1793 = vadd.f32 0.0, %v1792
  %v1794 = vpop.f32.mrb[0].mxu0
  %1795 = vmatprep.mubr.bf16.mxu0 0
  %1796 = vmatmul.mubr.bf16.gmra.mrb[0].mxu0 %v1417
  %v1797 = vpop.f32.mrb[0].mxu0
  %v1798 = vadd.f32 0.0, %v1797
  %v1799 = vpop.f32.mrb[0].mxu0
  %v1800 = vpop.f32.mrb[0].mxu0
  %v1801 = vadd.f32 0.0, %v1800
  %v1802 = vpop.f32.mrb[0].mxu0
  %1803 = vdwg.mxu0
  %v1820 = vunpack.c.l.b16 %v1017
  %v1821 = vunpack.c.l.b16 %v1018
  %v1822 = vunpack.c.l.b16 %v1019
  %v1823 = vunpack.c.l.b16 %v1020
  %v1824 = vunpack.c.l.b16 %v1021
  %v1825 = vunpack.c.l.b16 %v1022
  %v1826 = vunpack.c.l.b16 %v1023
  %v1827 = vunpack.c.l.b16 %v1024
  %v1828 = vunpack.c.l.b16 %v1025
  %v1829 = vunpack.c.l.b16 %v1026
  %v1830 = vunpack.c.l.b16 %v1027
  %v1831 = vunpack.c.l.b16 %v1028
  %v1832 = vunpack.c.l.b16 %v1029
  %v1833 = vunpack.c.l.b16 %v1030
  %v1834 = vunpack.c.l.b16 %v1031
  %v1835 = vunpack.c.l.b16 %v1032
  %v1836 = vpack.c.b16 %v1821, %v1820
  %v1837 = vpack.c.b16 %v1823, %v1822
  %v1838 = vpack.c.b16 %v1825, %v1824
  %v1839 = vpack.c.b16 %v1827, %v1826
  %v1840 = vpack.c.b16 %v1829, %v1828
  %v1841 = vpack.c.b16 %v1831, %v1830
  %v1842 = vpack.c.b16 %v1833, %v1832
  %v1843 = vpack.c.b16 %v1835, %v1834
  %1852 = vmatprep.subr.bf16.mxu0 0
  %1853 = vmatpush1.bf16.msra.mxu0 %v1836
  %1854 = vmatprep.subr.bf16.mxu0 0
  %1855 = vmatpush1.bf16.msra.mxu0 %v1837
  %1856 = vmatprep.subr.bf16.mxu0 0
  %1857 = vmatpush1.bf16.msra.mxu0 %v1838
  %1858 = vmatprep.subr.bf16.mxu0 0
  %1859 = vmatpush1.bf16.msra.mxu0 %v1839
  %1860 = vmatprep.subr.bf16.mxu0 0
  %1861 = vmatpush1.bf16.msra.mxu0 %v1840
  %1862 = vmatprep.subr.bf16.mxu0 0
  %1863 = vmatpush1.bf16.msra.mxu0 %v1841
  %1864 = vmatprep.subr.bf16.mxu0 0
  %1865 = vmatpush1.bf16.msra.mxu0 %v1842
  %1866 = vmatprep.subr.bf16.mxu0 0
  %1867 = vmatpush1.bf16.msra.mxu0 %v1843
  %1868 = vmatprep.subr.bf16.mxu0 0
  %1869 = vmatpush1.bf16.msra.mxu0 0
  %1870 = vmatprep.subr.bf16.mxu0 0
  %1871 = vmatpush1.bf16.msra.mxu0 0
  %1872 = vmatprep.subr.bf16.mxu0 0
  %1873 = vmatpush1.bf16.msra.mxu0 0
  %1874 = vmatprep.subr.bf16.mxu0 0
  %1875 = vmatpush1.bf16.msra.mxu0 0
  %1876 = vmatprep.subr.bf16.mxu0 0
  %1877 = vmatpush1.bf16.msra.mxu0 0
  %1878 = vmatprep.subr.bf16.mxu0 0
  %1879 = vmatpush1.bf16.msra.mxu0 0
  %1880 = vmatprep.subr.bf16.mxu0 0
  %1881 = vmatpush1.bf16.msra.mxu0 0
  %1882 = vmatprep.subr.bf16.mxu0 0
  %1883 = vmatpush1.bf16.msra.mxu0 0
  %1884 = vmatprep.mubr.bf16.mxu0 0
  %1885 = vmatmul.mubr.bf16.gmra.mrb[0].mxu0 %v945
  %v1886 = vpop.f32.mrb[0].mxu0
  %v1887 = vadd.f32 %v1550, %v1886
  %v1888 = vpop.f32.mrb[0].mxu0
  %v1889 = vpop.f32.mrb[0].mxu0
  %v1890 = vadd.f32 %v1553, %v1889
  %v1891 = vpop.f32.mrb[0].mxu0
  %1892 = vmatprep.mubr.bf16.mxu0 0
  %1893 = vmatmul.mubr.bf16.gmra.mrb[0].mxu0 %v947
  %v1894 = vpop.f32.mrb[0].mxu0
  %v1895 = vadd.f32 %v1558, %v1894
  %v1896 = vpop.f32.mrb[0].mxu0
  %v1897 = vpop.f32.mrb[0].mxu0
  %v1898 = vadd.f32 %v1561, %v1897
  %v1899 = vpop.f32.mrb[0].mxu0
  %1900 = vmatprep.mubr.bf16.mxu0 0
  %1901 = vmatmul.mubr.bf16.gmra.mrb[0].mxu0 %v949
  %v1902 = vpop.f32.mrb[0].mxu0
  %v1903 = vadd.f32 %v1566, %v1902
  %v1904 = vpop.f32.mrb[0].mxu0
  %v1905 = vpop.f32.mrb[0].mxu0
  %v1906 = vadd.f32 %v1569, %v1905
  %v1907 = vpop.f32.mrb[0].mxu0
  %1908 = vmatprep.mubr.bf16.mxu0 0
  %1909 = vmatmul.mubr.bf16.gmra.mrb[0].mxu0 %v951
  %v1910 = vpop.f32.mrb[0].mxu0
  %v1911 = vadd.f32 %v1574, %v1910
  %v1912 = vpop.f32.mrb[0].mxu0
  %v1913 = vpop.f32.mrb[0].mxu0
  %v1914 = vadd.f32 %v1577, %v1913
  %v1915 = vpop.f32.mrb[0].mxu0
  %1916 = vmatprep.mubr.bf16.mxu0 0
  %1917 = vmatmul.mubr.bf16.gmra.mrb[0].mxu0 %v953
  %v1918 = vpop.f32.mrb[0].mxu0
  %v1919 = vadd.f32 %v1582, %v1918
  %v1920 = vpop.f32.mrb[0].mxu0
  %v1921 = vpop.f32.mrb[0].mxu0
  %v1922 = vadd.f32 %v1585, %v1921
  %v1923 = vpop.f32.mrb[0].mxu0
  %1924 = vmatprep.mubr.bf16.mxu0 0
  %1925 = vmatmul.mubr.bf16.gmra.mrb[0].mxu0 %v955
  %v1926 = vpop.f32.mrb[0].mxu0
  %v1927 = vadd.f32 %v1590, %v1926
  %v1928 = vpop.f32.mrb[0].mxu0
  %v1929 = vpop.f32.mrb[0].mxu0
  %v1930 = vadd.f32 %v1593, %v1929
  %v1931 = vpop.f32.mrb[0].mxu0
  %1932 = vmatprep.mubr.bf16.mxu0 0
  %1933 = vmatmul.mubr.bf16.gmra.mrb[0].mxu0 %v957
  %v1934 = vpop.f32.mrb[0].mxu0
  %v1935 = vadd.f32 %v1598, %v1934
  %v1936 = vpop.f32.mrb[0].mxu0
  %v1937 = vpop.f32.mrb[0].mxu0
  %v1938 = vadd.f32 %v1601, %v1937
  %v1939 = vpop.f32.mrb[0].mxu0
  %1940 = vmatprep.mubr.bf16.mxu0 0
  %1941 = vmatmul.mubr.bf16.gmra.mrb[0].mxu0 %v959
  %v1942 = vpop.f32.mrb[0].mxu0
  %v1943 = vadd.f32 %v1606, %v1942
  %v1944 = vpop.f32.mrb[0].mxu0
  %v1945 = vpop.f32.mrb[0].mxu0
  %v1946 = vadd.f32 %v1609, %v1945
  %v1947 = vpop.f32.mrb[0].mxu0
  %1948 = vmatprep.mubr.bf16.mxu0 0
  %1949 = vmatmul.mubr.bf16.gmra.mrb[0].mxu0 %v961
  %v1950 = vpop.f32.mrb[0].mxu0
  %v1951 = vadd.f32 %v1614, %v1950
  %v1952 = vpop.f32.mrb[0].mxu0
  %v1953 = vpop.f32.mrb[0].mxu0
  %v1954 = vadd.f32 %v1617, %v1953
  %v1955 = vpop.f32.mrb[0].mxu0
  %1956 = vmatprep.mubr.bf16.mxu0 0
  %1957 = vmatmul.mubr.bf16.gmra.mrb[0].mxu0 %v963
  %v1958 = vpop.f32.mrb[0].mxu0
  %v1959 = vadd.f32 %v1622, %v1958
  %v1960 = vpop.f32.mrb[0].mxu0
  %v1961 = vpop.f32.mrb[0].mxu0
  %v1962 = vadd.f32 %v1625, %v1961
  %v1963 = vpop.f32.mrb[0].mxu0
  %1964 = vmatprep.mubr.bf16.mxu0 0
  %1965 = vmatmul.mubr.bf16.gmra.mrb[0].mxu0 %v965
  %v1966 = vpop.f32.mrb[0].mxu0
  %v1967 = vadd.f32 %v1630, %v1966
  %v1968 = vpop.f32.mrb[0].mxu0
  %v1969 = vpop.f32.mrb[0].mxu0
  %v1970 = vadd.f32 %v1633, %v1969
  %v1971 = vpop.f32.mrb[0].mxu0
  %1972 = vmatprep.mubr.bf16.mxu0 0
  %1973 = vmatmul.mubr.bf16.gmra.mrb[0].mxu0 %v967
  %v1974 = vpop.f32.mrb[0].mxu0
  %v1975 = vadd.f32 %v1638, %v1974
  %v1976 = vpop.f32.mrb[0].mxu0
  %v1977 = vpop.f32.mrb[0].mxu0
  %v1978 = vadd.f32 %v1641, %v1977
  %v1979 = vpop.f32.mrb[0].mxu0
  %1980 = vmatprep.mubr.bf16.mxu0 0
  %1981 = vmatmul.mubr.bf16.gmra.mrb[0].mxu0 %v969
  %v1982 = vpop.f32.mrb[0].mxu0
  %v1983 = vadd.f32 %v1646, %v1982
  %v1984 = vpop.f32.mrb[0].mxu0
  %v1985 = vpop.f32.mrb[0].mxu0
  %v1986 = vadd.f32 %v1649, %v1985
  %v1987 = vpop.f32.mrb[0].mxu0
  %1988 = vmatprep.mubr.bf16.mxu0 0
  %1989 = vmatmul.mubr.bf16.gmra.mrb[0].mxu0 %v971
  %v1990 = vpop.f32.mrb[0].mxu0
  %v1991 = vadd.f32 %v1654, %v1990
  %v1992 = vpop.f32.mrb[0].mxu0
  %v1993 = vpop.f32.mrb[0].mxu0
  %v1994 = vadd.f32 %v1657, %v1993
  %v1995 = vpop.f32.mrb[0].mxu0
  %1996 = vmatprep.mubr.bf16.mxu0 0
  %1997 = vmatmul.mubr.bf16.gmra.mrb[0].mxu0 %v973
  %v1998 = vpop.f32.mrb[0].mxu0
  %v1999 = vadd.f32 %v1662, %v1998
  %v2000 = vpop.f32.mrb[0].mxu0
  %v2001 = vpop.f32.mrb[0].mxu0
  %v2002 = vadd.f32 %v1665, %v2001
  %v2003 = vpop.f32.mrb[0].mxu0
  %2004 = vmatprep.mubr.bf16.mxu0 0
  %2005 = vmatmul.mubr.bf16.gmra.mrb[0].mxu0 %v975
  %v2006 = vpop.f32.mrb[0].mxu0
  %v2007 = vadd.f32 %v1670, %v2006
  %v2008 = vpop.f32.mrb[0].mxu0
  %v2009 = vpop.f32.mrb[0].mxu0
  %v2010 = vadd.f32 %v1673, %v2009
  %v2011 = vpop.f32.mrb[0].mxu0
  %2012 = vmatprep.mubr.bf16.mxu0 0
  %2013 = vmatmul.mubr.bf16.gmra.mrb[0].mxu0 %v981
  %v2014 = vpop.f32.mrb[0].mxu0
  %v2015 = vadd.f32 %v1678, %v2014
  %v2016 = vpop.f32.mrb[0].mxu0
  %v2017 = vpop.f32.mrb[0].mxu0
  %v2018 = vadd.f32 %v1681, %v2017
  %v2019 = vpop.f32.mrb[0].mxu0
  %2020 = vmatprep.mubr.bf16.mxu0 0
  %2021 = vmatmul.mubr.bf16.gmra.mrb[0].mxu0 %v983
  %v2022 = vpop.f32.mrb[0].mxu0
  %v2023 = vadd.f32 %v1686, %v2022
  %v2024 = vpop.f32.mrb[0].mxu0
  %v2025 = vpop.f32.mrb[0].mxu0
  %v2026 = vadd.f32 %v1689, %v2025
  %v2027 = vpop.f32.mrb[0].mxu0
  %2028 = vmatprep.mubr.bf16.mxu0 0
  %2029 = vmatmul.mubr.bf16.gmra.mrb[0].mxu0 %v985
  %v2030 = vpop.f32.mrb[0].mxu0
  %v2031 = vadd.f32 %v1694, %v2030
  %v2032 = vpop.f32.mrb[0].mxu0
  %v2033 = vpop.f32.mrb[0].mxu0
  %v2034 = vadd.f32 %v1697, %v2033
  %v2035 = vpop.f32.mrb[0].mxu0
  %2036 = vmatprep.mubr.bf16.mxu0 0
  %2037 = vmatmul.mubr.bf16.gmra.mrb[0].mxu0 %v987
  %v2038 = vpop.f32.mrb[0].mxu0
  %v2039 = vadd.f32 %v1702, %v2038
  %v2040 = vpop.f32.mrb[0].mxu0
  %v2041 = vpop.f32.mrb[0].mxu0
  %v2042 = vadd.f32 %v1705, %v2041
  %v2043 = vpop.f32.mrb[0].mxu0
  %2044 = vmatprep.mubr.bf16.mxu0 0
  %2045 = vmatmul.mubr.bf16.gmra.mrb[0].mxu0 %v989
  %v2046 = vpop.f32.mrb[0].mxu0
  %v2047 = vadd.f32 %v1710, %v2046
  %v2048 = vpop.f32.mrb[0].mxu0
  %v2049 = vpop.f32.mrb[0].mxu0
  %v2050 = vadd.f32 %v1713, %v2049
  %v2051 = vpop.f32.mrb[0].mxu0
  %2052 = vmatprep.mubr.bf16.mxu0 0
  %2053 = vmatmul.mubr.bf16.gmra.mrb[0].mxu0 %v991
  %v2054 = vpop.f32.mrb[0].mxu0
  %v2055 = vadd.f32 %v1718, %v2054
  %v2056 = vpop.f32.mrb[0].mxu0
  %v2057 = vpop.f32.mrb[0].mxu0
  %v2058 = vadd.f32 %v1721, %v2057
  %v2059 = vpop.f32.mrb[0].mxu0
  %2060 = vmatprep.mubr.bf16.mxu0 0
  %2061 = vmatmul.mubr.bf16.gmra.mrb[0].mxu0 %v993
  %v2062 = vpop.f32.mrb[0].mxu0
  %v2063 = vadd.f32 %v1726, %v2062
  %v2064 = vpop.f32.mrb[0].mxu0
  %v2065 = vpop.f32.mrb[0].mxu0
  %v2066 = vadd.f32 %v1729, %v2065
  %v2067 = vpop.f32.mrb[0].mxu0
  %2068 = vmatprep.mubr.bf16.mxu0 0
  %2069 = vmatmul.mubr.bf16.gmra.mrb[0].mxu0 %v995
  %v2070 = vpop.f32.mrb[0].mxu0
  %v2071 = vadd.f32 %v1734, %v2070
  %v2072 = vpop.f32.mrb[0].mxu0
  %v2073 = vpop.f32.mrb[0].mxu0
  %v2074 = vadd.f32 %v1737, %v2073
  %v2075 = vpop.f32.mrb[0].mxu0
  %2076 = vmatprep.mubr.bf16.mxu0 0
  %2077 = vmatmul.mubr.bf16.gmra.mrb[0].mxu0 %v997
  %v2078 = vpop.f32.mrb[0].mxu0
  %v2079 = vadd.f32 %v1742, %v2078
  %v2080 = vpop.f32.mrb[0].mxu0
  %v2081 = vpop.f32.mrb[0].mxu0
  %v2082 = vadd.f32 %v1745, %v2081
  %v2083 = vpop.f32.mrb[0].mxu0
  %2084 = vmatprep.mubr.bf16.mxu0 0
  %2085 = vmatmul.mubr.bf16.gmra.mrb[0].mxu0 %v999
  %v2086 = vpop.f32.mrb[0].mxu0
  %v2087 = vadd.f32 %v1750, %v2086
  %v2088 = vpop.f32.mrb[0].mxu0
  %v2089 = vpop.f32.mrb[0].mxu0
  %v2090 = vadd.f32 %v1753, %v2089
  %v2091 = vpop.f32.mrb[0].mxu0
  %2092 = vmatprep.mubr.bf16.mxu0 0
  %2093 = vmatmul.mubr.bf16.gmra.mrb[0].mxu0 %v1001
  %v2094 = vpop.f32.mrb[0].mxu0
  %v2095 = vadd.f32 %v1758, %v2094
  %v2096 = vpop.f32.mrb[0].mxu0
  %v2097 = vpop.f32.mrb[0].mxu0
  %v2098 = vadd.f32 %v1761, %v2097
  %v2099 = vpop.f32.mrb[0].mxu0
  %2100 = vmatprep.mubr.bf16.mxu0 0
  %2101 = vmatmul.mubr.bf16.gmra.mrb[0].mxu0 %v1003
  %v2102 = vpop.f32.mrb[0].mxu0
  %v2103 = vadd.f32 %v1766, %v2102
  %v2104 = vpop.f32.mrb[0].mxu0
  %v2105 = vpop.f32.mrb[0].mxu0
  %v2106 = vadd.f32 %v1769, %v2105
  %v2107 = vpop.f32.mrb[0].mxu0
  %2108 = vmatprep.mubr.bf16.mxu0 0
  %2109 = vmatmul.mubr.bf16.gmra.mrb[0].mxu0 %v1005
  %v2110 = vpop.f32.mrb[0].mxu0
  %v2111 = vadd.f32 %v1774, %v2110
  %v2112 = vpop.f32.mrb[0].mxu0
  %v2113 = vpop.f32.mrb[0].mxu0
  %v2114 = vadd.f32 %v1777, %v2113
  %v2115 = vpop.f32.mrb[0].mxu0
  %2116 = vmatprep.mubr.bf16.mxu0 0
  %2117 = vmatmul.mubr.bf16.gmra.mrb[0].mxu0 %v1007
  %v2118 = vpop.f32.mrb[0].mxu0
  %v2119 = vadd.f32 %v1782, %v2118
  %v2120 = vpop.f32.mrb[0].mxu0
  %v2121 = vpop.f32.mrb[0].mxu0
  %v2122 = vadd.f32 %v1785, %v2121
  %v2123 = vpop.f32.mrb[0].mxu0
  %2124 = vmatprep.mubr.bf16.mxu0 0
  %2125 = vmatmul.mubr.bf16.gmra.mrb[0].mxu0 %v1009
  %v2126 = vpop.f32.mrb[0].mxu0
  %v2127 = vadd.f32 %v1790, %v2126
  %v2128 = vpop.f32.mrb[0].mxu0
  %v2129 = vpop.f32.mrb[0].mxu0
  %v2130 = vadd.f32 %v1793, %v2129
  %v2131 = vpop.f32.mrb[0].mxu0
  %2132 = vmatprep.mubr.bf16.mxu0 0
  %2133 = vmatmul.mubr.bf16.gmra.mrb[0].mxu0 %v1011
  %v2134 = vpop.f32.mrb[0].mxu0
  %v2135 = vadd.f32 %v1798, %v2134
  %v2136 = vpop.f32.mrb[0].mxu0
  %v2137 = vpop.f32.mrb[0].mxu0
  %v2138 = vadd.f32 %v1801, %v2137
  %v2139 = vpop.f32.mrb[0].mxu0
  %2140 = vdwg.mxu0
  %vm2205 = vcmask 1046528
  %v2206 = vrot.slane %v945, 1
  %v2207 = vrot.slane %v946, 1
  %v2208 = vsel %vm2205, %v2206, %v2207
  %v2209 = vrot.slane %v947, 1
  %v2210 = vrot.slane %v948, 1
  %v2211 = vsel %vm2205, %v2209, %v2210
  %v2212 = vrot.slane %v949, 1
  %v2213 = vrot.slane %v950, 1
  %v2214 = vsel %vm2205, %v2212, %v2213
  %v2215 = vrot.slane %v951, 1
  %v2216 = vrot.slane %v952, 1
  %v2217 = vsel %vm2205, %v2215, %v2216
  %v2218 = vrot.slane %v953, 1
  %v2219 = vrot.slane %v954, 1
  %v2220 = vsel %vm2205, %v2218, %v2219
  %v2221 = vrot.slane %v955, 1
  %v2222 = vrot.slane %v956, 1
  %v2223 = vsel %vm2205, %v2221, %v2222
  %v2224 = vrot.slane %v957, 1
  %v2225 = vrot.slane %v958, 1
  %v2226 = vsel %vm2205, %v2224, %v2225
  %v2227 = vrot.slane %v959, 1
  %v2228 = vrot.slane %v960, 1
  %v2229 = vsel %vm2205, %v2227, %v2228
  %v2230 = vrot.slane %v961, 1
  %v2231 = vrot.slane %v962, 1
  %v2232 = vsel %vm2205, %v2230, %v2231
  %v2233 = vrot.slane %v963, 1
  %v2234 = vrot.slane %v964, 1
  %v2235 = vsel %vm2205, %v2233, %v2234
  %v2236 = vrot.slane %v965, 1
  %v2237 = vrot.slane %v966, 1
  %v2238 = vsel %vm2205, %v2236, %v2237
  %v2239 = vrot.slane %v967, 1
  %v2240 = vrot.slane %v968, 1
  %v2241 = vsel %vm2205, %v2239, %v2240
  %v2242 = vrot.slane %v969, 1
  %v2243 = vrot.slane %v970, 1
  %v2244 = vsel %vm2205, %v2242, %v2243
  %v2245 = vrot.slane %v971, 1
  %v2246 = vrot.slane %v972, 1
  %v2247 = vsel %vm2205, %v2245, %v2246
  %v2248 = vrot.slane %v973, 1
  %v2249 = vrot.slane %v974, 1
  %v2250 = vsel %vm2205, %v2248, %v2249
  %v2251 = vrot.slane %v975, 1
  %v2252 = vrot.slane %v976, 1
  %v2253 = vsel %vm2205, %v2251, %v2252
  %v2254 = vrot.slane %v981, 1
  %v2255 = vrot.slane %v982, 1
  %v2256 = vsel %vm2205, %v2254, %v2255
  %v2257 = vrot.slane %v983, 1
  %v2258 = vrot.slane %v984, 1
  %v2259 = vsel %vm2205, %v2257, %v2258
  %v2260 = vrot.slane %v985, 1
  %v2261 = vrot.slane %v986, 1
  %v2262 = vsel %vm2205, %v2260, %v2261
  %v2263 = vrot.slane %v987, 1
  %v2264 = vrot.slane %v988, 1
  %v2265 = vsel %vm2205, %v2263, %v2264
  %v2266 = vrot.slane %v989, 1
  %v2267 = vrot.slane %v990, 1
  %v2268 = vsel %vm2205, %v2266, %v2267
  %v2269 = vrot.slane %v991, 1
  %v2270 = vrot.slane %v992, 1
  %v2271 = vsel %vm2205, %v2269, %v2270
  %v2272 = vrot.slane %v993, 1
  %v2273 = vrot.slane %v994, 1
  %v2274 = vsel %vm2205, %v2272, %v2273
  %v2275 = vrot.slane %v995, 1
  %v2276 = vrot.slane %v996, 1
  %v2277 = vsel %vm2205, %v2275, %v2276
  %v2278 = vrot.slane %v997, 1
  %v2279 = vrot.slane %v998, 1
  %v2280 = vsel %vm2205, %v2278, %v2279
  %v2281 = vrot.slane %v999, 1
  %v2282 = vrot.slane %v1000, 1
  %v2283 = vsel %vm2205, %v2281, %v2282
  %v2284 = vrot.slane %v1001, 1
  %v2285 = vrot.slane %v1002, 1
  %v2286 = vsel %vm2205, %v2284, %v2285
  %v2287 = vrot.slane %v1003, 1
  %v2288 = vrot.slane %v1004, 1
  %v2289 = vsel %vm2205, %v2287, %v2288
  %v2290 = vrot.slane %v1005, 1
  %v2291 = vrot.slane %v1006, 1
  %v2292 = vsel %vm2205, %v2290, %v2291
  %v2293 = vrot.slane %v1007, 1
  %v2294 = vrot.slane %v1008, 1
  %v2295 = vsel %vm2205, %v2293, %v2294
  %v2296 = vrot.slane %v1009, 1
  %v2297 = vrot.slane %v1010, 1
  %v2298 = vsel %vm2205, %v2296, %v2297
  %v2299 = vrot.slane %v1011, 1
  %v2300 = vrot.slane %v1012, 1
  %v2301 = vsel %vm2205, %v2299, %v2300
  %s2334 = scalar_lea.vmem %s4, 128
  %v2335 = vld [vmem:[%s2334] sm:$0xf]
  %v2336 = vld [vmem:[%s2334 + $0x4] sm:$0xf]
  %v2337 = vld [vmem:[%s2334 + $0x8] sm:$0xf]
  %v2338 = vld [vmem:[%s2334 + $0xc] sm:$0xf]
  %v2339 = vld [vmem:[%s2334 + $0x10] sm:$0xf]
  %v2340 = vld [vmem:[%s2334 + $0x14] sm:$0xf]
  %v2341 = vld [vmem:[%s2334 + $0x18] sm:$0xf]
  %v2342 = vld [vmem:[%s2334 + $0x1c] sm:$0xf]
  %v2343 = vld [vmem:[%s2334 + $0x20] sm:$0xf]
  %v2344 = vld [vmem:[%s2334 + $0x24] sm:$0xf]
  %v2345 = vld [vmem:[%s2334 + $0x28] sm:$0xf]
  %v2346 = vld [vmem:[%s2334 + $0x2c] sm:$0xf]
  %v2347 = vld [vmem:[%s2334 + $0x30] sm:$0xf]
  %v2348 = vld [vmem:[%s2334 + $0x34] sm:$0xf]
  %v2349 = vld [vmem:[%s2334 + $0x38] sm:$0xf]
  %v2350 = vld [vmem:[%s2334 + $0x3c] sm:$0xf]
  %v2367 = vunpack.c.l.b16 %v2335
  %v2368 = vunpack.c.l.b16 %v2336
  %v2369 = vunpack.c.l.b16 %v2337
  %v2370 = vunpack.c.l.b16 %v2338
  %v2371 = vunpack.c.l.b16 %v2339
  %v2372 = vunpack.c.l.b16 %v2340
  %v2373 = vunpack.c.l.b16 %v2341
  %v2374 = vunpack.c.l.b16 %v2342
  %v2375 = vunpack.c.l.b16 %v2343
  %v2376 = vunpack.c.l.b16 %v2344
  %v2377 = vunpack.c.l.b16 %v2345
  %v2378 = vunpack.c.l.b16 %v2346
  %v2379 = vunpack.c.l.b16 %v2347
  %v2380 = vunpack.c.l.b16 %v2348
  %v2381 = vunpack.c.l.b16 %v2349
  %v2382 = vunpack.c.l.b16 %v2350
  %v2383 = vpack.c.b16 %v2368, %v2367
  %v2384 = vpack.c.b16 %v2370, %v2369
  %v2385 = vpack.c.b16 %v2372, %v2371
  %v2386 = vpack.c.b16 %v2374, %v2373
  %v2387 = vpack.c.b16 %v2376, %v2375
  %v2388 = vpack.c.b16 %v2378, %v2377
  %v2389 = vpack.c.b16 %v2380, %v2379
  %v2390 = vpack.c.b16 %v2382, %v2381
  %2399 = vmatprep.subr.bf16.mxu0 0
  %2400 = vmatpush1.bf16.msra.mxu0 %v2383
  %2401 = vmatprep.subr.bf16.mxu0 0
  %2402 = vmatpush1.bf16.msra.mxu0 %v2384
  %2403 = vmatprep.subr.bf16.mxu0 0
  %2404 = vmatpush1.bf16.msra.mxu0 %v2385
  %2405 = vmatprep.subr.bf16.mxu0 0
  %2406 = vmatpush1.bf16.msra.mxu0 %v2386
  %2407 = vmatprep.subr.bf16.mxu0 0
  %2408 = vmatpush1.bf16.msra.mxu0 %v2387
  %2409 = vmatprep.subr.bf16.mxu0 0
  %2410 = vmatpush1.bf16.msra.mxu0 %v2388
  %2411 = vmatprep.subr.bf16.mxu0 0
  %2412 = vmatpush1.bf16.msra.mxu0 %v2389
  %2413 = vmatprep.subr.bf16.mxu0 0
  %2414 = vmatpush1.bf16.msra.mxu0 %v2390
  %2415 = vmatprep.subr.bf16.mxu0 0
  %2416 = vmatpush1.bf16.msra.mxu0 0
  %2417 = vmatprep.subr.bf16.mxu0 0
  %2418 = vmatpush1.bf16.msra.mxu0 0
  %2419 = vmatprep.subr.bf16.mxu0 0
  %2420 = vmatpush1.bf16.msra.mxu0 0
  %2421 = vmatprep.subr.bf16.mxu0 0
  %2422 = vmatpush1.bf16.msra.mxu0 0
  %2423 = vmatprep.subr.bf16.mxu0 0
  %2424 = vmatpush1.bf16.msra.mxu0 0
  %2425 = vmatprep.subr.bf16.mxu0 0
  %2426 = vmatpush1.bf16.msra.mxu0 0
  %2427 = vmatprep.subr.bf16.mxu0 0
  %2428 = vmatpush1.bf16.msra.mxu0 0
  %2429 = vmatprep.subr.bf16.mxu0 0
  %2430 = vmatpush1.bf16.msra.mxu0 0
  %2431 = vmatprep.mubr.bf16.mxu0 0
  %2432 = vmatmul.mubr.bf16.gmra.mrb[0].mxu0 %v2208
  %v2433 = vpop.f32.mrb[0].mxu0
  %v2434 = vadd.f32 0.0, %v2433
  %v2435 = vpop.f32.mrb[0].mxu0
  %v2436 = vpop.f32.mrb[0].mxu0
  %v2437 = vadd.f32 0.0, %v2436
  %v2438 = vpop.f32.mrb[0].mxu0
  %2439 = vmatprep.mubr.bf16.mxu0 0
  %2440 = vmatmul.mubr.bf16.gmra.mrb[0].mxu0 %v2211
  %v2441 = vpop.f32.mrb[0].mxu0
  %v2442 = vadd.f32 0.0, %v2441
  %v2443 = vpop.f32.mrb[0].mxu0
  %v2444 = vpop.f32.mrb[0].mxu0
  %v2445 = vadd.f32 0.0, %v2444
  %v2446 = vpop.f32.mrb[0].mxu0
  %2447 = vmatprep.mubr.bf16.mxu0 0
  %2448 = vmatmul.mubr.bf16.gmra.mrb[0].mxu0 %v2214
  %v2449 = vpop.f32.mrb[0].mxu0
  %v2450 = vadd.f32 0.0, %v2449
  %v2451 = vpop.f32.mrb[0].mxu0
  %v2452 = vpop.f32.mrb[0].mxu0
  %v2453 = vadd.f32 0.0, %v2452
  %v2454 = vpop.f32.mrb[0].mxu0
  %2455 = vmatprep.mubr.bf16.mxu0 0
  %2456 = vmatmul.mubr.bf16.gmra.mrb[0].mxu0 %v2217
  %v2457 = vpop.f32.mrb[0].mxu0
  %v2458 = vadd.f32 0.0, %v2457
  %v2459 = vpop.f32.mrb[0].mxu0
  %v2460 = vpop.f32.mrb[0].mxu0
  %v2461 = vadd.f32 0.0, %v2460
  %v2462 = vpop.f32.mrb[0].mxu0
  %2463 = vmatprep.mubr.bf16.mxu0 0
  %2464 = vmatmul.mubr.bf16.gmra.mrb[0].mxu0 %v2220
  %v2465 = vpop.f32.mrb[0].mxu0
  %v2466 = vadd.f32 0.0, %v2465
  %v2467 = vpop.f32.mrb[0].mxu0
  %v2468 = vpop.f32.mrb[0].mxu0
  %v2469 = vadd.f32 0.0, %v2468
  %v2470 = vpop.f32.mrb[0].mxu0
  %2471 = vmatprep.mubr.bf16.mxu0 0
  %2472 = vmatmul.mubr.bf16.gmra.mrb[0].mxu0 %v2223
  %v2473 = vpop.f32.mrb[0].mxu0
  %v2474 = vadd.f32 0.0, %v2473
  %v2475 = vpop.f32.mrb[0].mxu0
  %v2476 = vpop.f32.mrb[0].mxu0
  %v2477 = vadd.f32 0.0, %v2476
  %v2478 = vpop.f32.mrb[0].mxu0
  %2479 = vmatprep.mubr.bf16.mxu0 0
  %2480 = vmatmul.mubr.bf16.gmra.mrb[0].mxu0 %v2226
  %v2481 = vpop.f32.mrb[0].mxu0
  %v2482 = vadd.f32 0.0, %v2481
  %v2483 = vpop.f32.mrb[0].mxu0
  %v2484 = vpop.f32.mrb[0].mxu0
  %v2485 = vadd.f32 0.0, %v2484
  %v2486 = vpop.f32.mrb[0].mxu0
  %2487 = vmatprep.mubr.bf16.mxu0 0
  %2488 = vmatmul.mubr.bf16.gmra.mrb[0].mxu0 %v2229
  %v2489 = vpop.f32.mrb[0].mxu0
  %v2490 = vadd.f32 0.0, %v2489
  %v2491 = vpop.f32.mrb[0].mxu0
  %v2492 = vpop.f32.mrb[0].mxu0
  %v2493 = vadd.f32 0.0, %v2492
  %v2494 = vpop.f32.mrb[0].mxu0
  %2495 = vmatprep.mubr.bf16.mxu0 0
  %2496 = vmatmul.mubr.bf16.gmra.mrb[0].mxu0 %v2232
  %v2497 = vpop.f32.mrb[0].mxu0
  %v2498 = vadd.f32 0.0, %v2497
  %v2499 = vpop.f32.mrb[0].mxu0
  %v2500 = vpop.f32.mrb[0].mxu0
  %v2501 = vadd.f32 0.0, %v2500
  %v2502 = vpop.f32.mrb[0].mxu0
  %2503 = vmatprep.mubr.bf16.mxu0 0
  %2504 = vmatmul.mubr.bf16.gmra.mrb[0].mxu0 %v2235
  %v2505 = vpop.f32.mrb[0].mxu0
  %v2506 = vadd.f32 0.0, %v2505
  %v2507 = vpop.f32.mrb[0].mxu0
  %v2508 = vpop.f32.mrb[0].mxu0
  %v2509 = vadd.f32 0.0, %v2508
  %v2510 = vpop.f32.mrb[0].mxu0
  %2511 = vmatprep.mubr.bf16.mxu0 0
  %2512 = vmatmul.mubr.bf16.gmra.mrb[0].mxu0 %v2238
  %v2513 = vpop.f32.mrb[0].mxu0
  %v2514 = vadd.f32 0.0, %v2513
  %v2515 = vpop.f32.mrb[0].mxu0
  %v2516 = vpop.f32.mrb[0].mxu0
  %v2517 = vadd.f32 0.0, %v2516
  %v2518 = vpop.f32.mrb[0].mxu0
  %2519 = vmatprep.mubr.bf16.mxu0 0
  %2520 = vmatmul.mubr.bf16.gmra.mrb[0].mxu0 %v2241
  %v2521 = vpop.f32.mrb[0].mxu0
  %v2522 = vadd.f32 0.0, %v2521
  %v2523 = vpop.f32.mrb[0].mxu0
  %v2524 = vpop.f32.mrb[0].mxu0
  %v2525 = vadd.f32 0.0, %v2524
  %v2526 = vpop.f32.mrb[0].mxu0
  %2527 = vmatprep.mubr.bf16.mxu0 0
  %2528 = vmatmul.mubr.bf16.gmra.mrb[0].mxu0 %v2244
  %v2529 = vpop.f32.mrb[0].mxu0
  %v2530 = vadd.f32 0.0, %v2529
  %v2531 = vpop.f32.mrb[0].mxu0
  %v2532 = vpop.f32.mrb[0].mxu0
  %v2533 = vadd.f32 0.0, %v2532
  %v2534 = vpop.f32.mrb[0].mxu0
  %2535 = vmatprep.mubr.bf16.mxu0 0
  %2536 = vmatmul.mubr.bf16.gmra.mrb[0].mxu0 %v2247
  %v2537 = vpop.f32.mrb[0].mxu0
  %v2538 = vadd.f32 0.0, %v2537
  %v2539 = vpop.f32.mrb[0].mxu0
  %v2540 = vpop.f32.mrb[0].mxu0
  %v2541 = vadd.f32 0.0, %v2540
  %v2542 = vpop.f32.mrb[0].mxu0
  %2543 = vmatprep.mubr.bf16.mxu0 0
  %2544 = vmatmul.mubr.bf16.gmra.mrb[0].mxu0 %v2250
  %v2545 = vpop.f32.mrb[0].mxu0
  %v2546 = vadd.f32 0.0, %v2545
  %v2547 = vpop.f32.mrb[0].mxu0
  %v2548 = vpop.f32.mrb[0].mxu0
  %v2549 = vadd.f32 0.0, %v2548
  %v2550 = vpop.f32.mrb[0].mxu0
  %2551 = vmatprep.mubr.bf16.mxu0 0
  %2552 = vmatmul.mubr.bf16.gmra.mrb[0].mxu0 %v2253
  %v2553 = vpop.f32.mrb[0].mxu0
  %v2554 = vadd.f32 0.0, %v2553
  %v2555 = vpop.f32.mrb[0].mxu0
  %v2556 = vpop.f32.mrb[0].mxu0
  %v2557 = vadd.f32 0.0, %v2556
  %v2558 = vpop.f32.mrb[0].mxu0
  %2559 = vmatprep.mubr.bf16.mxu0 0
  %2560 = vmatmul.mubr.bf16.gmra.mrb[0].mxu0 %v2256
  %v2561 = vpop.f32.mrb[0].mxu0
  %v2562 = vadd.f32 0.0, %v2561
  %v2563 = vpop.f32.mrb[0].mxu0
  %v2564 = vpop.f32.mrb[0].mxu0
  %v2565 = vadd.f32 0.0, %v2564
  %v2566 = vpop.f32.mrb[0].mxu0
  %2567 = vmatprep.mubr.bf16.mxu0 0
  %2568 = vmatmul.mubr.bf16.gmra.mrb[0].mxu0 %v2259
  %v2569 = vpop.f32.mrb[0].mxu0
  %v2570 = vadd.f32 0.0, %v2569
  %v2571 = vpop.f32.mrb[0].mxu0
  %v2572 = vpop.f32.mrb[0].mxu0
  %v2573 = vadd.f32 0.0, %v2572
  %v2574 = vpop.f32.mrb[0].mxu0
  %2575 = vmatprep.mubr.bf16.mxu0 0
  %2576 = vmatmul.mubr.bf16.gmra.mrb[0].mxu0 %v2262
  %v2577 = vpop.f32.mrb[0].mxu0
  %v2578 = vadd.f32 0.0, %v2577
  %v2579 = vpop.f32.mrb[0].mxu0
  %v2580 = vpop.f32.mrb[0].mxu0
  %v2581 = vadd.f32 0.0, %v2580
  %v2582 = vpop.f32.mrb[0].mxu0
  %2583 = vmatprep.mubr.bf16.mxu0 0
  %2584 = vmatmul.mubr.bf16.gmra.mrb[0].mxu0 %v2265
  %v2585 = vpop.f32.mrb[0].mxu0
  %v2586 = vadd.f32 0.0, %v2585
  %v2587 = vpop.f32.mrb[0].mxu0
  %v2588 = vpop.f32.mrb[0].mxu0
  %v2589 = vadd.f32 0.0, %v2588
  %v2590 = vpop.f32.mrb[0].mxu0
  %2591 = vmatprep.mubr.bf16.mxu0 0
  %2592 = vmatmul.mubr.bf16.gmra.mrb[0].mxu0 %v2268
  %v2593 = vpop.f32.mrb[0].mxu0
  %v2594 = vadd.f32 0.0, %v2593
  %v2595 = vpop.f32.mrb[0].mxu0
  %v2596 = vpop.f32.mrb[0].mxu0
  %v2597 = vadd.f32 0.0, %v2596
  %v2598 = vpop.f32.mrb[0].mxu0
  %2599 = vmatprep.mubr.bf16.mxu0 0
  %2600 = vmatmul.mubr.bf16.gmra.mrb[0].mxu0 %v2271
  %v2601 = vpop.f32.mrb[0].mxu0
  %v2602 = vadd.f32 0.0, %v2601
  %v2603 = vpop.f32.mrb[0].mxu0
  %v2604 = vpop.f32.mrb[0].mxu0
  %v2605 = vadd.f32 0.0, %v2604
  %v2606 = vpop.f32.mrb[0].mxu0
  %2607 = vmatprep.mubr.bf16.mxu0 0
  %2608 = vmatmul.mubr.bf16.gmra.mrb[0].mxu0 %v2274
  %v2609 = vpop.f32.mrb[0].mxu0
  %v2610 = vadd.f32 0.0, %v2609
  %v2611 = vpop.f32.mrb[0].mxu0
  %v2612 = vpop.f32.mrb[0].mxu0
  %v2613 = vadd.f32 0.0, %v2612
  %v2614 = vpop.f32.mrb[0].mxu0
  %2615 = vmatprep.mubr.bf16.mxu0 0
  %2616 = vmatmul.mubr.bf16.gmra.mrb[0].mxu0 %v2277
  %v2617 = vpop.f32.mrb[0].mxu0
  %v2618 = vadd.f32 0.0, %v2617
  %v2619 = vpop.f32.mrb[0].mxu0
  %v2620 = vpop.f32.mrb[0].mxu0
  %v2621 = vadd.f32 0.0, %v2620
  %v2622 = vpop.f32.mrb[0].mxu0
  %2623 = vmatprep.mubr.bf16.mxu0 0
  %2624 = vmatmul.mubr.bf16.gmra.mrb[0].mxu0 %v2280
  %v2625 = vpop.f32.mrb[0].mxu0
  %v2626 = vadd.f32 0.0, %v2625
  %v2627 = vpop.f32.mrb[0].mxu0
  %v2628 = vpop.f32.mrb[0].mxu0
  %v2629 = vadd.f32 0.0, %v2628
  %v2630 = vpop.f32.mrb[0].mxu0
  %2631 = vmatprep.mubr.bf16.mxu0 0
  %2632 = vmatmul.mubr.bf16.gmra.mrb[0].mxu0 %v2283
  %v2633 = vpop.f32.mrb[0].mxu0
  %v2634 = vadd.f32 0.0, %v2633
  %v2635 = vpop.f32.mrb[0].mxu0
  %v2636 = vpop.f32.mrb[0].mxu0
  %v2637 = vadd.f32 0.0, %v2636
  %v2638 = vpop.f32.mrb[0].mxu0
  %2639 = vmatprep.mubr.bf16.mxu0 0
  %2640 = vmatmul.mubr.bf16.gmra.mrb[0].mxu0 %v2286
  %v2641 = vpop.f32.mrb[0].mxu0
  %v2642 = vadd.f32 0.0, %v2641
  %v2643 = vpop.f32.mrb[0].mxu0
  %v2644 = vpop.f32.mrb[0].mxu0
  %v2645 = vadd.f32 0.0, %v2644
  %v2646 = vpop.f32.mrb[0].mxu0
  %2647 = vmatprep.mubr.bf16.mxu0 0
  %2648 = vmatmul.mubr.bf16.gmra.mrb[0].mxu0 %v2289
  %v2649 = vpop.f32.mrb[0].mxu0
  %v2650 = vadd.f32 0.0, %v2649
  %v2651 = vpop.f32.mrb[0].mxu0
  %v2652 = vpop.f32.mrb[0].mxu0
  %v2653 = vadd.f32 0.0, %v2652
  %v2654 = vpop.f32.mrb[0].mxu0
  %2655 = vmatprep.mubr.bf16.mxu0 0
  %2656 = vmatmul.mubr.bf16.gmra.mrb[0].mxu0 %v2292
  %v2657 = vpop.f32.mrb[0].mxu0
  %v2658 = vadd.f32 0.0, %v2657
  %v2659 = vpop.f32.mrb[0].mxu0
  %v2660 = vpop.f32.mrb[0].mxu0
  %v2661 = vadd.f32 0.0, %v2660
  %v2662 = vpop.f32.mrb[0].mxu0
  %2663 = vmatprep.mubr.bf16.mxu0 0
  %2664 = vmatmul.mubr.bf16.gmra.mrb[0].mxu0 %v2295
  %v2665 = vpop.f32.mrb[0].mxu0
  %v2666 = vadd.f32 0.0, %v2665
  %v2667 = vpop.f32.mrb[0].mxu0
  %v2668 = vpop.f32.mrb[0].mxu0
  %v2669 = vadd.f32 0.0, %v2668
  %v2670 = vpop.f32.mrb[0].mxu0
  %2671 = vmatprep.mubr.bf16.mxu0 0
  %2672 = vmatmul.mubr.bf16.gmra.mrb[0].mxu0 %v2298
  %v2673 = vpop.f32.mrb[0].mxu0
  %v2674 = vadd.f32 0.0, %v2673
  %v2675 = vpop.f32.mrb[0].mxu0
  %v2676 = vpop.f32.mrb[0].mxu0
  %v2677 = vadd.f32 0.0, %v2676
  %v2678 = vpop.f32.mrb[0].mxu0
  %2679 = vmatprep.mubr.bf16.mxu0 0
  %2680 = vmatmul.mubr.bf16.gmra.mrb[0].mxu0 %v2301
  %v2681 = vpop.f32.mrb[0].mxu0
  %v2682 = vadd.f32 0.0, %v2681
  %v2683 = vpop.f32.mrb[0].mxu0
  %v2684 = vpop.f32.mrb[0].mxu0
  %v2685 = vadd.f32 0.0, %v2684
  %v2686 = vpop.f32.mrb[0].mxu0
  %2687 = vdwg.mxu0
  %v2688 = vadd.f32 %v1887, %v2434
  %v2689 = vadd.f32 %v1890, %v2437
  %v2690 = vadd.f32 %v1895, %v2442
  %v2691 = vadd.f32 %v1898, %v2445
  %v2692 = vadd.f32 %v1903, %v2450
  %v2693 = vadd.f32 %v1906, %v2453
  %v2694 = vadd.f32 %v1911, %v2458
  %v2695 = vadd.f32 %v1914, %v2461
  %v2696 = vadd.f32 %v1919, %v2466
  %v2697 = vadd.f32 %v1922, %v2469
  %v2698 = vadd.f32 %v1927, %v2474
  %v2699 = vadd.f32 %v1930, %v2477
  %v2700 = vadd.f32 %v1935, %v2482
  %v2701 = vadd.f32 %v1938, %v2485
  %v2702 = vadd.f32 %v1943, %v2490
  %v2703 = vadd.f32 %v1946, %v2493
  %v2704 = vadd.f32 %v1951, %v2498
  %v2705 = vadd.f32 %v1954, %v2501
  %v2706 = vadd.f32 %v1959, %v2506
  %v2707 = vadd.f32 %v1962, %v2509
  %v2708 = vadd.f32 %v1967, %v2514
  %v2709 = vadd.f32 %v1970, %v2517
  %v2710 = vadd.f32 %v1975, %v2522
  %v2711 = vadd.f32 %v1978, %v2525
  %v2712 = vadd.f32 %v1983, %v2530
  %v2713 = vadd.f32 %v1986, %v2533
  %v2714 = vadd.f32 %v1991, %v2538
  %v2715 = vadd.f32 %v1994, %v2541
  %v2716 = vadd.f32 %v1999, %v2546
  %v2717 = vadd.f32 %v2002, %v2549
  %v2718 = vadd.f32 %v2007, %v2554
  %v2719 = vadd.f32 %v2010, %v2557
  %v2720 = vadd.f32 %v2015, %v2562
  %v2721 = vadd.f32 %v2018, %v2565
  %v2722 = vadd.f32 %v2023, %v2570
  %v2723 = vadd.f32 %v2026, %v2573
  %v2724 = vadd.f32 %v2031, %v2578
  %v2725 = vadd.f32 %v2034, %v2581
  %v2726 = vadd.f32 %v2039, %v2586
  %v2727 = vadd.f32 %v2042, %v2589
  %v2728 = vadd.f32 %v2047, %v2594
  %v2729 = vadd.f32 %v2050, %v2597
  %v2730 = vadd.f32 %v2055, %v2602
  %v2731 = vadd.f32 %v2058, %v2605
  %v2732 = vadd.f32 %v2063, %v2610
  %v2733 = vadd.f32 %v2066, %v2613
  %v2734 = vadd.f32 %v2071, %v2618
  %v2735 = vadd.f32 %v2074, %v2621
  %v2736 = vadd.f32 %v2079, %v2626
  %v2737 = vadd.f32 %v2082, %v2629
  %v2738 = vadd.f32 %v2087, %v2634
  %v2739 = vadd.f32 %v2090, %v2637
  %v2740 = vadd.f32 %v2095, %v2642
  %v2741 = vadd.f32 %v2098, %v2645
  %v2742 = vadd.f32 %v2103, %v2650
  %v2743 = vadd.f32 %v2106, %v2653
  %v2744 = vadd.f32 %v2111, %v2658
  %v2745 = vadd.f32 %v2114, %v2661
  %v2746 = vadd.f32 %v2119, %v2666
  %v2747 = vadd.f32 %v2122, %v2669
  %v2748 = vadd.f32 %v2127, %v2674
  %v2749 = vadd.f32 %v2130, %v2677
  %v2750 = vadd.f32 %v2135, %v2682
  %v2751 = vadd.f32 %v2138, %v2685
  %s2752 = scalar_lea.vmem %s4, 192
  %v2753 = vld [vmem:[%s2752] sm:$0xf]
  %v2754 = vld [vmem:[%s2752 + $0x4] sm:$0xf]
  %v2755 = vld [vmem:[%s2752 + $0x8] sm:$0xf]
  %v2756 = vld [vmem:[%s2752 + $0xc] sm:$0xf]
  %v2757 = vld [vmem:[%s2752 + $0x10] sm:$0xf]
  %v2758 = vld [vmem:[%s2752 + $0x14] sm:$0xf]
  %v2759 = vld [vmem:[%s2752 + $0x18] sm:$0xf]
  %v2760 = vld [vmem:[%s2752 + $0x1c] sm:$0xf]
  %v2761 = vld [vmem:[%s2752 + $0x20] sm:$0xf]
  %v2762 = vld [vmem:[%s2752 + $0x24] sm:$0xf]
  %v2763 = vld [vmem:[%s2752 + $0x28] sm:$0xf]
  %v2764 = vld [vmem:[%s2752 + $0x2c] sm:$0xf]
  %v2765 = vld [vmem:[%s2752 + $0x30] sm:$0xf]
  %v2766 = vld [vmem:[%s2752 + $0x34] sm:$0xf]
  %v2767 = vld [vmem:[%s2752 + $0x38] sm:$0xf]
  %v2768 = vld [vmem:[%s2752 + $0x3c] sm:$0xf]
  %v2785 = vunpack.c.l.b16 %v2753
  %v2786 = vunpack.c.l.b16 %v2754
  %v2787 = vunpack.c.l.b16 %v2755
  %v2788 = vunpack.c.l.b16 %v2756
  %v2789 = vunpack.c.l.b16 %v2757
  %v2790 = vunpack.c.l.b16 %v2758
  %v2791 = vunpack.c.l.b16 %v2759
  %v2792 = vunpack.c.l.b16 %v2760
  %v2793 = vunpack.c.l.b16 %v2761
  %v2794 = vunpack.c.l.b16 %v2762
  %v2795 = vunpack.c.l.b16 %v2763
  %v2796 = vunpack.c.l.b16 %v2764
  %v2797 = vunpack.c.l.b16 %v2765
  %v2798 = vunpack.c.l.b16 %v2766
  %v2799 = vunpack.c.l.b16 %v2767
  %v2800 = vunpack.c.l.b16 %v2768
  %v2801 = vpack.c.b16 %v2786, %v2785
  %v2802 = vpack.c.b16 %v2788, %v2787
  %v2803 = vpack.c.b16 %v2790, %v2789
  %v2804 = vpack.c.b16 %v2792, %v2791
  %v2805 = vpack.c.b16 %v2794, %v2793
  %v2806 = vpack.c.b16 %v2796, %v2795
  %v2807 = vpack.c.b16 %v2798, %v2797
  %v2808 = vpack.c.b16 %v2800, %v2799
  %2817 = vmatprep.subr.bf16.mxu0 0
  %2818 = vmatpush1.bf16.msra.mxu0 %v2801
  %2819 = vmatprep.subr.bf16.mxu0 0
  %2820 = vmatpush1.bf16.msra.mxu0 %v2802
  %2821 = vmatprep.subr.bf16.mxu0 0
  %2822 = vmatpush1.bf16.msra.mxu0 %v2803
  %2823 = vmatprep.subr.bf16.mxu0 0
  %2824 = vmatpush1.bf16.msra.mxu0 %v2804
  %2825 = vmatprep.subr.bf16.mxu0 0
  %2826 = vmatpush1.bf16.msra.mxu0 %v2805
  %2827 = vmatprep.subr.bf16.mxu0 0
  %2828 = vmatpush1.bf16.msra.mxu0 %v2806
  %2829 = vmatprep.subr.bf16.mxu0 0
  %2830 = vmatpush1.bf16.msra.mxu0 %v2807
  %2831 = vmatprep.subr.bf16.mxu0 0
  %2832 = vmatpush1.bf16.msra.mxu0 %v2808
  %2833 = vmatprep.subr.bf16.mxu0 0
  %2834 = vmatpush1.bf16.msra.mxu0 0
  %2835 = vmatprep.subr.bf16.mxu0 0
  %2836 = vmatpush1.bf16.msra.mxu0 0
  %2837 = vmatprep.subr.bf16.mxu0 0
  %2838 = vmatpush1.bf16.msra.mxu0 0
  %2839 = vmatprep.subr.bf16.mxu0 0
  %2840 = vmatpush1.bf16.msra.mxu0 0
  %2841 = vmatprep.subr.bf16.mxu0 0
  %2842 = vmatpush1.bf16.msra.mxu0 0
  %2843 = vmatprep.subr.bf16.mxu0 0
  %2844 = vmatpush1.bf16.msra.mxu0 0
  %2845 = vmatprep.subr.bf16.mxu0 0
  %2846 = vmatpush1.bf16.msra.mxu0 0
  %2847 = vmatprep.subr.bf16.mxu0 0
  %2848 = vmatpush1.bf16.msra.mxu0 0
  %2849 = vmatprep.mubr.bf16.mxu0 0
  %2850 = vmatmul.mubr.bf16.gmra.mrb[0].mxu0 %v947
  %v2851 = vpop.f32.mrb[0].mxu0
  %v2852 = vadd.f32 0.0, %v2851
  %v2853 = vpop.f32.mrb[0].mxu0
  %v2854 = vpop.f32.mrb[0].mxu0
  %v2855 = vadd.f32 0.0, %v2854
  %v2856 = vpop.f32.mrb[0].mxu0
  %2857 = vmatprep.mubr.bf16.mxu0 0
  %2858 = vmatmul.mubr.bf16.gmra.mrb[0].mxu0 %v949
  %v2859 = vpop.f32.mrb[0].mxu0
  %v2860 = vadd.f32 0.0, %v2859
  %v2861 = vpop.f32.mrb[0].mxu0
  %v2862 = vpop.f32.mrb[0].mxu0
  %v2863 = vadd.f32 0.0, %v2862
  %v2864 = vpop.f32.mrb[0].mxu0
  %2865 = vmatprep.mubr.bf16.mxu0 0
  %2866 = vmatmul.mubr.bf16.gmra.mrb[0].mxu0 %v951
  %v2867 = vpop.f32.mrb[0].mxu0
  %v2868 = vadd.f32 0.0, %v2867
  %v2869 = vpop.f32.mrb[0].mxu0
  %v2870 = vpop.f32.mrb[0].mxu0
  %v2871 = vadd.f32 0.0, %v2870
  %v2872 = vpop.f32.mrb[0].mxu0
  %2873 = vmatprep.mubr.bf16.mxu0 0
  %2874 = vmatmul.mubr.bf16.gmra.mrb[0].mxu0 %v953
  %v2875 = vpop.f32.mrb[0].mxu0
  %v2876 = vadd.f32 0.0, %v2875
  %v2877 = vpop.f32.mrb[0].mxu0
  %v2878 = vpop.f32.mrb[0].mxu0
  %v2879 = vadd.f32 0.0, %v2878
  %v2880 = vpop.f32.mrb[0].mxu0
  %2881 = vmatprep.mubr.bf16.mxu0 0
  %2882 = vmatmul.mubr.bf16.gmra.mrb[0].mxu0 %v955
  %v2883 = vpop.f32.mrb[0].mxu0
  %v2884 = vadd.f32 0.0, %v2883
  %v2885 = vpop.f32.mrb[0].mxu0
  %v2886 = vpop.f32.mrb[0].mxu0
  %v2887 = vadd.f32 0.0, %v2886
  %v2888 = vpop.f32.mrb[0].mxu0
  %2889 = vmatprep.mubr.bf16.mxu0 0
  %2890 = vmatmul.mubr.bf16.gmra.mrb[0].mxu0 %v957
  %v2891 = vpop.f32.mrb[0].mxu0
  %v2892 = vadd.f32 0.0, %v2891
  %v2893 = vpop.f32.mrb[0].mxu0
  %v2894 = vpop.f32.mrb[0].mxu0
  %v2895 = vadd.f32 0.0, %v2894
  %v2896 = vpop.f32.mrb[0].mxu0
  %2897 = vmatprep.mubr.bf16.mxu0 0
  %2898 = vmatmul.mubr.bf16.gmra.mrb[0].mxu0 %v959
  %v2899 = vpop.f32.mrb[0].mxu0
  %v2900 = vadd.f32 0.0, %v2899
  %v2901 = vpop.f32.mrb[0].mxu0
  %v2902 = vpop.f32.mrb[0].mxu0
  %v2903 = vadd.f32 0.0, %v2902
  %v2904 = vpop.f32.mrb[0].mxu0
  %2905 = vmatprep.mubr.bf16.mxu0 0
  %2906 = vmatmul.mubr.bf16.gmra.mrb[0].mxu0 %v961
  %v2907 = vpop.f32.mrb[0].mxu0
  %v2908 = vadd.f32 0.0, %v2907
  %v2909 = vpop.f32.mrb[0].mxu0
  %v2910 = vpop.f32.mrb[0].mxu0
  %v2911 = vadd.f32 0.0, %v2910
  %v2912 = vpop.f32.mrb[0].mxu0
  %2913 = vmatprep.mubr.bf16.mxu0 0
  %2914 = vmatmul.mubr.bf16.gmra.mrb[0].mxu0 %v963
  %v2915 = vpop.f32.mrb[0].mxu0
  %v2916 = vadd.f32 0.0, %v2915
  %v2917 = vpop.f32.mrb[0].mxu0
  %v2918 = vpop.f32.mrb[0].mxu0
  %v2919 = vadd.f32 0.0, %v2918
  %v2920 = vpop.f32.mrb[0].mxu0
  %2921 = vmatprep.mubr.bf16.mxu0 0
  %2922 = vmatmul.mubr.bf16.gmra.mrb[0].mxu0 %v965
  %v2923 = vpop.f32.mrb[0].mxu0
  %v2924 = vadd.f32 0.0, %v2923
  %v2925 = vpop.f32.mrb[0].mxu0
  %v2926 = vpop.f32.mrb[0].mxu0
  %v2927 = vadd.f32 0.0, %v2926
  %v2928 = vpop.f32.mrb[0].mxu0
  %2929 = vmatprep.mubr.bf16.mxu0 0
  %2930 = vmatmul.mubr.bf16.gmra.mrb[0].mxu0 %v967
  %v2931 = vpop.f32.mrb[0].mxu0
  %v2932 = vadd.f32 0.0, %v2931
  %v2933 = vpop.f32.mrb[0].mxu0
  %v2934 = vpop.f32.mrb[0].mxu0
  %v2935 = vadd.f32 0.0, %v2934
  %v2936 = vpop.f32.mrb[0].mxu0
  %2937 = vmatprep.mubr.bf16.mxu0 0
  %2938 = vmatmul.mubr.bf16.gmra.mrb[0].mxu0 %v969
  %v2939 = vpop.f32.mrb[0].mxu0
  %v2940 = vadd.f32 0.0, %v2939
  %v2941 = vpop.f32.mrb[0].mxu0
  %v2942 = vpop.f32.mrb[0].mxu0
  %v2943 = vadd.f32 0.0, %v2942
  %v2944 = vpop.f32.mrb[0].mxu0
  %2945 = vmatprep.mubr.bf16.mxu0 0
  %2946 = vmatmul.mubr.bf16.gmra.mrb[0].mxu0 %v971
  %v2947 = vpop.f32.mrb[0].mxu0
  %v2948 = vadd.f32 0.0, %v2947
  %v2949 = vpop.f32.mrb[0].mxu0
  %v2950 = vpop.f32.mrb[0].mxu0
  %v2951 = vadd.f32 0.0, %v2950
  %v2952 = vpop.f32.mrb[0].mxu0
  %2953 = vmatprep.mubr.bf16.mxu0 0
  %2954 = vmatmul.mubr.bf16.gmra.mrb[0].mxu0 %v973
  %v2955 = vpop.f32.mrb[0].mxu0
  %v2956 = vadd.f32 0.0, %v2955
  %v2957 = vpop.f32.mrb[0].mxu0
  %v2958 = vpop.f32.mrb[0].mxu0
  %v2959 = vadd.f32 0.0, %v2958
  %v2960 = vpop.f32.mrb[0].mxu0
  %2961 = vmatprep.mubr.bf16.mxu0 0
  %2962 = vmatmul.mubr.bf16.gmra.mrb[0].mxu0 %v975
  %v2963 = vpop.f32.mrb[0].mxu0
  %v2964 = vadd.f32 0.0, %v2963
  %v2965 = vpop.f32.mrb[0].mxu0
  %v2966 = vpop.f32.mrb[0].mxu0
  %v2967 = vadd.f32 0.0, %v2966
  %v2968 = vpop.f32.mrb[0].mxu0
  %2969 = vmatprep.mubr.bf16.mxu0 0
  %2970 = vmatmul.mubr.bf16.gmra.mrb[0].mxu0 %v977
  %v2971 = vpop.f32.mrb[0].mxu0
  %v2972 = vadd.f32 0.0, %v2971
  %v2973 = vpop.f32.mrb[0].mxu0
  %v2974 = vpop.f32.mrb[0].mxu0
  %v2975 = vadd.f32 0.0, %v2974
  %v2976 = vpop.f32.mrb[0].mxu0
  %2977 = vmatprep.mubr.bf16.mxu0 0
  %2978 = vmatmul.mubr.bf16.gmra.mrb[0].mxu0 %v983
  %v2979 = vpop.f32.mrb[0].mxu0
  %v2980 = vadd.f32 0.0, %v2979
  %v2981 = vpop.f32.mrb[0].mxu0
  %v2982 = vpop.f32.mrb[0].mxu0
  %v2983 = vadd.f32 0.0, %v2982
  %v2984 = vpop.f32.mrb[0].mxu0
  %2985 = vmatprep.mubr.bf16.mxu0 0
  %2986 = vmatmul.mubr.bf16.gmra.mrb[0].mxu0 %v985
  %v2987 = vpop.f32.mrb[0].mxu0
  %v2988 = vadd.f32 0.0, %v2987
  %v2989 = vpop.f32.mrb[0].mxu0
  %v2990 = vpop.f32.mrb[0].mxu0
  %v2991 = vadd.f32 0.0, %v2990
  %v2992 = vpop.f32.mrb[0].mxu0
  %2993 = vmatprep.mubr.bf16.mxu0 0
  %2994 = vmatmul.mubr.bf16.gmra.mrb[0].mxu0 %v987
  %v2995 = vpop.f32.mrb[0].mxu0
  %v2996 = vadd.f32 0.0, %v2995
  %v2997 = vpop.f32.mrb[0].mxu0
  %v2998 = vpop.f32.mrb[0].mxu0
  %v2999 = vadd.f32 0.0, %v2998
  %v3000 = vpop.f32.mrb[0].mxu0
  %3001 = vmatprep.mubr.bf16.mxu0 0
  %3002 = vmatmul.mubr.bf16.gmra.mrb[0].mxu0 %v989
  %v3003 = vpop.f32.mrb[0].mxu0
  %v3004 = vadd.f32 0.0, %v3003
  %v3005 = vpop.f32.mrb[0].mxu0
  %v3006 = vpop.f32.mrb[0].mxu0
  %v3007 = vadd.f32 0.0, %v3006
  %v3008 = vpop.f32.mrb[0].mxu0
  %3009 = vmatprep.mubr.bf16.mxu0 0
  %3010 = vmatmul.mubr.bf16.gmra.mrb[0].mxu0 %v991
  %v3011 = vpop.f32.mrb[0].mxu0
  %v3012 = vadd.f32 0.0, %v3011
  %v3013 = vpop.f32.mrb[0].mxu0
  %v3014 = vpop.f32.mrb[0].mxu0
  %v3015 = vadd.f32 0.0, %v3014
  %v3016 = vpop.f32.mrb[0].mxu0
  %3017 = vmatprep.mubr.bf16.mxu0 0
  %3018 = vmatmul.mubr.bf16.gmra.mrb[0].mxu0 %v993
  %v3019 = vpop.f32.mrb[0].mxu0
  %v3020 = vadd.f32 0.0, %v3019
  %v3021 = vpop.f32.mrb[0].mxu0
  %v3022 = vpop.f32.mrb[0].mxu0
  %v3023 = vadd.f32 0.0, %v3022
  %v3024 = vpop.f32.mrb[0].mxu0
  %3025 = vmatprep.mubr.bf16.mxu0 0
  %3026 = vmatmul.mubr.bf16.gmra.mrb[0].mxu0 %v995
  %v3027 = vpop.f32.mrb[0].mxu0
  %v3028 = vadd.f32 0.0, %v3027
  %v3029 = vpop.f32.mrb[0].mxu0
  %v3030 = vpop.f32.mrb[0].mxu0
  %v3031 = vadd.f32 0.0, %v3030
  %v3032 = vpop.f32.mrb[0].mxu0
  %3033 = vmatprep.mubr.bf16.mxu0 0
  %3034 = vmatmul.mubr.bf16.gmra.mrb[0].mxu0 %v997
  %v3035 = vpop.f32.mrb[0].mxu0
  %v3036 = vadd.f32 0.0, %v3035
  %v3037 = vpop.f32.mrb[0].mxu0
  %v3038 = vpop.f32.mrb[0].mxu0
  %v3039 = vadd.f32 0.0, %v3038
  %v3040 = vpop.f32.mrb[0].mxu0
  %3041 = vmatprep.mubr.bf16.mxu0 0
  %3042 = vmatmul.mubr.bf16.gmra.mrb[0].mxu0 %v999
  %v3043 = vpop.f32.mrb[0].mxu0
  %v3044 = vadd.f32 0.0, %v3043
  %v3045 = vpop.f32.mrb[0].mxu0
  %v3046 = vpop.f32.mrb[0].mxu0
  %v3047 = vadd.f32 0.0, %v3046
  %v3048 = vpop.f32.mrb[0].mxu0
  %3049 = vmatprep.mubr.bf16.mxu0 0
  %3050 = vmatmul.mubr.bf16.gmra.mrb[0].mxu0 %v1001
  %v3051 = vpop.f32.mrb[0].mxu0
  %v3052 = vadd.f32 0.0, %v3051
  %v3053 = vpop.f32.mrb[0].mxu0
  %v3054 = vpop.f32.mrb[0].mxu0
  %v3055 = vadd.f32 0.0, %v3054
  %v3056 = vpop.f32.mrb[0].mxu0
  %3057 = vmatprep.mubr.bf16.mxu0 0
  %3058 = vmatmul.mubr.bf16.gmra.mrb[0].mxu0 %v1003
  %v3059 = vpop.f32.mrb[0].mxu0
  %v3060 = vadd.f32 0.0, %v3059
  %v3061 = vpop.f32.mrb[0].mxu0
  %v3062 = vpop.f32.mrb[0].mxu0
  %v3063 = vadd.f32 0.0, %v3062
  %v3064 = vpop.f32.mrb[0].mxu0
  %3065 = vmatprep.mubr.bf16.mxu0 0
  %3066 = vmatmul.mubr.bf16.gmra.mrb[0].mxu0 %v1005
  %v3067 = vpop.f32.mrb[0].mxu0
  %v3068 = vadd.f32 0.0, %v3067
  %v3069 = vpop.f32.mrb[0].mxu0
  %v3070 = vpop.f32.mrb[0].mxu0
  %v3071 = vadd.f32 0.0, %v3070
  %v3072 = vpop.f32.mrb[0].mxu0
  %3073 = vmatprep.mubr.bf16.mxu0 0
  %3074 = vmatmul.mubr.bf16.gmra.mrb[0].mxu0 %v1007
  %v3075 = vpop.f32.mrb[0].mxu0
  %v3076 = vadd.f32 0.0, %v3075
  %v3077 = vpop.f32.mrb[0].mxu0
  %v3078 = vpop.f32.mrb[0].mxu0
  %v3079 = vadd.f32 0.0, %v3078
  %v3080 = vpop.f32.mrb[0].mxu0
  %3081 = vmatprep.mubr.bf16.mxu0 0
  %3082 = vmatmul.mubr.bf16.gmra.mrb[0].mxu0 %v1009
  %v3083 = vpop.f32.mrb[0].mxu0
  %v3084 = vadd.f32 0.0, %v3083
  %v3085 = vpop.f32.mrb[0].mxu0
  %v3086 = vpop.f32.mrb[0].mxu0
  %v3087 = vadd.f32 0.0, %v3086
  %v3088 = vpop.f32.mrb[0].mxu0
  %3089 = vmatprep.mubr.bf16.mxu0 0
  %3090 = vmatmul.mubr.bf16.gmra.mrb[0].mxu0 %v1011
  %v3091 = vpop.f32.mrb[0].mxu0
  %v3092 = vadd.f32 0.0, %v3091
  %v3093 = vpop.f32.mrb[0].mxu0
  %v3094 = vpop.f32.mrb[0].mxu0
  %v3095 = vadd.f32 0.0, %v3094
  %v3096 = vpop.f32.mrb[0].mxu0
  %3097 = vmatprep.mubr.bf16.mxu0 0
  %3098 = vmatmul.mubr.bf16.gmra.mrb[0].mxu0 %v1013
  %v3099 = vpop.f32.mrb[0].mxu0
  %v3100 = vadd.f32 0.0, %v3099
  %v3101 = vpop.f32.mrb[0].mxu0
  %v3102 = vpop.f32.mrb[0].mxu0
  %v3103 = vadd.f32 0.0, %v3102
  %v3104 = vpop.f32.mrb[0].mxu0
  %3105 = vdwg.mxu0
  %v3106 = vadd.f32 %v2688, %v2852
  %v3107 = vadd.f32 %v2689, %v2855
  %v3108 = vadd.f32 %v2690, %v2860
  %v3109 = vadd.f32 %v2691, %v2863
  %v3110 = vadd.f32 %v2692, %v2868
  %v3111 = vadd.f32 %v2693, %v2871
  %v3112 = vadd.f32 %v2694, %v2876
  %v3113 = vadd.f32 %v2695, %v2879
  %v3114 = vadd.f32 %v2696, %v2884
  %v3115 = vadd.f32 %v2697, %v2887
  %v3116 = vadd.f32 %v2698, %v2892
  %v3117 = vadd.f32 %v2699, %v2895
  %v3118 = vadd.f32 %v2700, %v2900
  %v3119 = vadd.f32 %v2701, %v2903
  %v3120 = vadd.f32 %v2702, %v2908
  %v3121 = vadd.f32 %v2703, %v2911
  %v3122 = vadd.f32 %v2704, %v2916
  %v3123 = vadd.f32 %v2705, %v2919
  %v3124 = vadd.f32 %v2706, %v2924
  %v3125 = vadd.f32 %v2707, %v2927
  %v3126 = vadd.f32 %v2708, %v2932
  %v3127 = vadd.f32 %v2709, %v2935
  %v3128 = vadd.f32 %v2710, %v2940
  %v3129 = vadd.f32 %v2711, %v2943
  %v3130 = vadd.f32 %v2712, %v2948
  %v3131 = vadd.f32 %v2713, %v2951
  %v3132 = vadd.f32 %v2714, %v2956
  %v3133 = vadd.f32 %v2715, %v2959
  %v3134 = vadd.f32 %v2716, %v2964
  %v3135 = vadd.f32 %v2717, %v2967
  %v3136 = vadd.f32 %v2718, %v2972
  %v3137 = vadd.f32 %v2719, %v2975
  %v3138 = vadd.f32 %v2720, %v2980
  %v3139 = vadd.f32 %v2721, %v2983
  %v3140 = vadd.f32 %v2722, %v2988
  %v3141 = vadd.f32 %v2723, %v2991
  %v3142 = vadd.f32 %v2724, %v2996
  %v3143 = vadd.f32 %v2725, %v2999
  %v3144 = vadd.f32 %v2726, %v3004
  %v3145 = vadd.f32 %v2727, %v3007
  %v3146 = vadd.f32 %v2728, %v3012
  %v3147 = vadd.f32 %v2729, %v3015
  %v3148 = vadd.f32 %v2730, %v3020
  %v3149 = vadd.f32 %v2731, %v3023
  %v3150 = vadd.f32 %v2732, %v3028
  %v3151 = vadd.f32 %v2733, %v3031
  %v3152 = vadd.f32 %v2734, %v3036
  %v3153 = vadd.f32 %v2735, %v3039
  %v3154 = vadd.f32 %v2736, %v3044
  %v3155 = vadd.f32 %v2737, %v3047
  %v3156 = vadd.f32 %v2738, %v3052
  %v3157 = vadd.f32 %v2739, %v3055
  %v3158 = vadd.f32 %v2740, %v3060
  %v3159 = vadd.f32 %v2741, %v3063
  %v3160 = vadd.f32 %v2742, %v3068
  %v3161 = vadd.f32 %v2743, %v3071
  %v3162 = vadd.f32 %v2744, %v3076
  %v3163 = vadd.f32 %v2745, %v3079
  %v3164 = vadd.f32 %v2746, %v3084
  %v3165 = vadd.f32 %v2747, %v3087
  %v3166 = vadd.f32 %v2748, %v3092
  %v3167 = vadd.f32 %v2749, %v3095
  %v3168 = vadd.f32 %v2750, %v3100
  %v3169 = vadd.f32 %v2751, %v3103
  %v3171 = vshrl.u32 %v977, 16
  %v3173 = vshll.u32 %v977, 16
  %v3175 = vrot.slane %v3173, 1
  %v3176 = vor.u32 %v3171, %v3175
  %v3178 = vshll.u32 %v978, 16
  %v3180 = vrot.slane %v3178, 1
  %v3181 = vsel %vm1033, %v3176, %v3180
  %v3183 = vshrl.u32 %v1013, 16
  %v3185 = vshll.u32 %v1013, 16
  %v3187 = vrot.slane %v3185, 1
  %v3188 = vor.u32 %v3183, %v3187
  %v3190 = vshll.u32 %v1014, 16
  %v3192 = vrot.slane %v3190, 1
  %v3193 = vsel %vm1033, %v3188, %v3192
  %s3196 = scalar_lea.vmem %s4, 256
  %v3197 = vld [vmem:[%s3196] sm:$0xf]
  %v3198 = vld [vmem:[%s3196 + $0x4] sm:$0xf]
  %v3199 = vld [vmem:[%s3196 + $0x8] sm:$0xf]
  %v3200 = vld [vmem:[%s3196 + $0xc] sm:$0xf]
  %v3201 = vld [vmem:[%s3196 + $0x10] sm:$0xf]
  %v3202 = vld [vmem:[%s3196 + $0x14] sm:$0xf]
  %v3203 = vld [vmem:[%s3196 + $0x18] sm:$0xf]
  %v3204 = vld [vmem:[%s3196 + $0x1c] sm:$0xf]
  %v3205 = vld [vmem:[%s3196 + $0x20] sm:$0xf]
  %v3206 = vld [vmem:[%s3196 + $0x24] sm:$0xf]
  %v3207 = vld [vmem:[%s3196 + $0x28] sm:$0xf]
  %v3208 = vld [vmem:[%s3196 + $0x2c] sm:$0xf]
  %v3209 = vld [vmem:[%s3196 + $0x30] sm:$0xf]
  %v3210 = vld [vmem:[%s3196 + $0x34] sm:$0xf]
  %v3211 = vld [vmem:[%s3196 + $0x38] sm:$0xf]
  %v3212 = vld [vmem:[%s3196 + $0x3c] sm:$0xf]
  %v3229 = vunpack.c.l.b16 %v3197
  %v3230 = vunpack.c.l.b16 %v3198
  %v3231 = vunpack.c.l.b16 %v3199
  %v3232 = vunpack.c.l.b16 %v3200
  %v3233 = vunpack.c.l.b16 %v3201
  %v3234 = vunpack.c.l.b16 %v3202
  %v3235 = vunpack.c.l.b16 %v3203
  %v3236 = vunpack.c.l.b16 %v3204
  %v3237 = vunpack.c.l.b16 %v3205
  %v3238 = vunpack.c.l.b16 %v3206
  %v3239 = vunpack.c.l.b16 %v3207
  %v3240 = vunpack.c.l.b16 %v3208
  %v3241 = vunpack.c.l.b16 %v3209
  %v3242 = vunpack.c.l.b16 %v3210
  %v3243 = vunpack.c.l.b16 %v3211
  %v3244 = vunpack.c.l.b16 %v3212
  %v3245 = vpack.c.b16 %v3230, %v3229
  %v3246 = vpack.c.b16 %v3232, %v3231
  %v3247 = vpack.c.b16 %v3234, %v3233
  %v3248 = vpack.c.b16 %v3236, %v3235
  %v3249 = vpack.c.b16 %v3238, %v3237
  %v3250 = vpack.c.b16 %v3240, %v3239
  %v3251 = vpack.c.b16 %v3242, %v3241
  %v3252 = vpack.c.b16 %v3244, %v3243
  %3261 = vmatprep.subr.bf16.mxu0 0
  %3262 = vmatpush1.bf16.msra.mxu0 %v3245
  %3263 = vmatprep.subr.bf16.mxu0 0
  %3264 = vmatpush1.bf16.msra.mxu0 %v3246
  %3265 = vmatprep.subr.bf16.mxu0 0
  %3266 = vmatpush1.bf16.msra.mxu0 %v3247
  %3267 = vmatprep.subr.bf16.mxu0 0
  %3268 = vmatpush1.bf16.msra.mxu0 %v3248
  %3269 = vmatprep.subr.bf16.mxu0 0
  %3270 = vmatpush1.bf16.msra.mxu0 %v3249
  %3271 = vmatprep.subr.bf16.mxu0 0
  %3272 = vmatpush1.bf16.msra.mxu0 %v3250
  %3273 = vmatprep.subr.bf16.mxu0 0
  %3274 = vmatpush1.bf16.msra.mxu0 %v3251
  %3275 = vmatprep.subr.bf16.mxu0 0
  %3276 = vmatpush1.bf16.msra.mxu0 %v3252
  %3277 = vmatprep.subr.bf16.mxu0 0
  %3278 = vmatpush1.bf16.msra.mxu0 0
  %3279 = vmatprep.subr.bf16.mxu0 0
  %3280 = vmatpush1.bf16.msra.mxu0 0
  %3281 = vmatprep.subr.bf16.mxu0 0
  %3282 = vmatpush1.bf16.msra.mxu0 0
  %3283 = vmatprep.subr.bf16.mxu0 0
  %3284 = vmatpush1.bf16.msra.mxu0 0
  %3285 = vmatprep.subr.bf16.mxu0 0
  %3286 = vmatpush1.bf16.msra.mxu0 0
  %3287 = vmatprep.subr.bf16.mxu0 0
  %3288 = vmatpush1.bf16.msra.mxu0 0
  %3289 = vmatprep.subr.bf16.mxu0 0
  %3290 = vmatpush1.bf16.msra.mxu0 0
  %3291 = vmatprep.subr.bf16.mxu0 0
  %3292 = vmatpush1.bf16.msra.mxu0 0
  %3293 = vmatprep.mubr.bf16.mxu0 0
  %3294 = vmatmul.mubr.bf16.gmra.mrb[0].mxu0 %v1057
  %v3295 = vpop.f32.mrb[0].mxu0
  %v3296 = vadd.f32 0.0, %v3295
  %v3297 = vpop.f32.mrb[0].mxu0
  %v3298 = vpop.f32.mrb[0].mxu0
  %v3299 = vadd.f32 0.0, %v3298
  %v3300 = vpop.f32.mrb[0].mxu0
  %3301 = vmatprep.mubr.bf16.mxu0 0
  %3302 = vmatmul.mubr.bf16.gmra.mrb[0].mxu0 %v1069
  %v3303 = vpop.f32.mrb[0].mxu0
  %v3304 = vadd.f32 0.0, %v3303
  %v3305 = vpop.f32.mrb[0].mxu0
  %v3306 = vpop.f32.mrb[0].mxu0
  %v3307 = vadd.f32 0.0, %v3306
  %v3308 = vpop.f32.mrb[0].mxu0
  %3309 = vmatprep.mubr.bf16.mxu0 0
  %3310 = vmatmul.mubr.bf16.gmra.mrb[0].mxu0 %v1081
  %v3311 = vpop.f32.mrb[0].mxu0
  %v3312 = vadd.f32 0.0, %v3311
  %v3313 = vpop.f32.mrb[0].mxu0
  %v3314 = vpop.f32.mrb[0].mxu0
  %v3315 = vadd.f32 0.0, %v3314
  %v3316 = vpop.f32.mrb[0].mxu0
  %3317 = vmatprep.mubr.bf16.mxu0 0
  %3318 = vmatmul.mubr.bf16.gmra.mrb[0].mxu0 %v1093
  %v3319 = vpop.f32.mrb[0].mxu0
  %v3320 = vadd.f32 0.0, %v3319
  %v3321 = vpop.f32.mrb[0].mxu0
  %v3322 = vpop.f32.mrb[0].mxu0
  %v3323 = vadd.f32 0.0, %v3322
  %v3324 = vpop.f32.mrb[0].mxu0
  %3325 = vmatprep.mubr.bf16.mxu0 0
  %3326 = vmatmul.mubr.bf16.gmra.mrb[0].mxu0 %v1105
  %v3327 = vpop.f32.mrb[0].mxu0
  %v3328 = vadd.f32 0.0, %v3327
  %v3329 = vpop.f32.mrb[0].mxu0
  %v3330 = vpop.f32.mrb[0].mxu0
  %v3331 = vadd.f32 0.0, %v3330
  %v3332 = vpop.f32.mrb[0].mxu0
  %3333 = vmatprep.mubr.bf16.mxu0 0
  %3334 = vmatmul.mubr.bf16.gmra.mrb[0].mxu0 %v1117
  %v3335 = vpop.f32.mrb[0].mxu0
  %v3336 = vadd.f32 0.0, %v3335
  %v3337 = vpop.f32.mrb[0].mxu0
  %v3338 = vpop.f32.mrb[0].mxu0
  %v3339 = vadd.f32 0.0, %v3338
  %v3340 = vpop.f32.mrb[0].mxu0
  %3341 = vmatprep.mubr.bf16.mxu0 0
  %3342 = vmatmul.mubr.bf16.gmra.mrb[0].mxu0 %v1129
  %v3343 = vpop.f32.mrb[0].mxu0
  %v3344 = vadd.f32 0.0, %v3343
  %v3345 = vpop.f32.mrb[0].mxu0
  %v3346 = vpop.f32.mrb[0].mxu0
  %v3347 = vadd.f32 0.0, %v3346
  %v3348 = vpop.f32.mrb[0].mxu0
  %3349 = vmatprep.mubr.bf16.mxu0 0
  %3350 = vmatmul.mubr.bf16.gmra.mrb[0].mxu0 %v1141
  %v3351 = vpop.f32.mrb[0].mxu0
  %v3352 = vadd.f32 0.0, %v3351
  %v3353 = vpop.f32.mrb[0].mxu0
  %v3354 = vpop.f32.mrb[0].mxu0
  %v3355 = vadd.f32 0.0, %v3354
  %v3356 = vpop.f32.mrb[0].mxu0
  %3357 = vmatprep.mubr.bf16.mxu0 0
  %3358 = vmatmul.mubr.bf16.gmra.mrb[0].mxu0 %v1153
  %v3359 = vpop.f32.mrb[0].mxu0
  %v3360 = vadd.f32 0.0, %v3359
  %v3361 = vpop.f32.mrb[0].mxu0
  %v3362 = vpop.f32.mrb[0].mxu0
  %v3363 = vadd.f32 0.0, %v3362
  %v3364 = vpop.f32.mrb[0].mxu0
  %3365 = vmatprep.mubr.bf16.mxu0 0
  %3366 = vmatmul.mubr.bf16.gmra.mrb[0].mxu0 %v1165
  %v3367 = vpop.f32.mrb[0].mxu0
  %v3368 = vadd.f32 0.0, %v3367
  %v3369 = vpop.f32.mrb[0].mxu0
  %v3370 = vpop.f32.mrb[0].mxu0
  %v3371 = vadd.f32 0.0, %v3370
  %v3372 = vpop.f32.mrb[0].mxu0
  %3373 = vmatprep.mubr.bf16.mxu0 0
  %3374 = vmatmul.mubr.bf16.gmra.mrb[0].mxu0 %v1177
  %v3375 = vpop.f32.mrb[0].mxu0
  %v3376 = vadd.f32 0.0, %v3375
  %v3377 = vpop.f32.mrb[0].mxu0
  %v3378 = vpop.f32.mrb[0].mxu0
  %v3379 = vadd.f32 0.0, %v3378
  %v3380 = vpop.f32.mrb[0].mxu0
  %3381 = vmatprep.mubr.bf16.mxu0 0
  %3382 = vmatmul.mubr.bf16.gmra.mrb[0].mxu0 %v1189
  %v3383 = vpop.f32.mrb[0].mxu0
  %v3384 = vadd.f32 0.0, %v3383
  %v3385 = vpop.f32.mrb[0].mxu0
  %v3386 = vpop.f32.mrb[0].mxu0
  %v3387 = vadd.f32 0.0, %v3386
  %v3388 = vpop.f32.mrb[0].mxu0
  %3389 = vmatprep.mubr.bf16.mxu0 0
  %3390 = vmatmul.mubr.bf16.gmra.mrb[0].mxu0 %v1201
  %v3391 = vpop.f32.mrb[0].mxu0
  %v3392 = vadd.f32 0.0, %v3391
  %v3393 = vpop.f32.mrb[0].mxu0
  %v3394 = vpop.f32.mrb[0].mxu0
  %v3395 = vadd.f32 0.0, %v3394
  %v3396 = vpop.f32.mrb[0].mxu0
  %3397 = vmatprep.mubr.bf16.mxu0 0
  %3398 = vmatmul.mubr.bf16.gmra.mrb[0].mxu0 %v1213
  %v3399 = vpop.f32.mrb[0].mxu0
  %v3400 = vadd.f32 0.0, %v3399
  %v3401 = vpop.f32.mrb[0].mxu0
  %v3402 = vpop.f32.mrb[0].mxu0
  %v3403 = vadd.f32 0.0, %v3402
  %v3404 = vpop.f32.mrb[0].mxu0
  %3405 = vmatprep.mubr.bf16.mxu0 0
  %3406 = vmatmul.mubr.bf16.gmra.mrb[0].mxu0 %v1225
  %v3407 = vpop.f32.mrb[0].mxu0
  %v3408 = vadd.f32 0.0, %v3407
  %v3409 = vpop.f32.mrb[0].mxu0
  %v3410 = vpop.f32.mrb[0].mxu0
  %v3411 = vadd.f32 0.0, %v3410
  %v3412 = vpop.f32.mrb[0].mxu0
  %3413 = vmatprep.mubr.bf16.mxu0 0
  %3414 = vmatmul.mubr.bf16.gmra.mrb[0].mxu0 %v3181
  %v3415 = vpop.f32.mrb[0].mxu0
  %v3416 = vadd.f32 0.0, %v3415
  %v3417 = vpop.f32.mrb[0].mxu0
  %v3418 = vpop.f32.mrb[0].mxu0
  %v3419 = vadd.f32 0.0, %v3418
  %v3420 = vpop.f32.mrb[0].mxu0
  %3421 = vmatprep.mubr.bf16.mxu0 0
  %3422 = vmatmul.mubr.bf16.gmra.mrb[0].mxu0 %v1249
  %v3423 = vpop.f32.mrb[0].mxu0
  %v3424 = vadd.f32 0.0, %v3423
  %v3425 = vpop.f32.mrb[0].mxu0
  %v3426 = vpop.f32.mrb[0].mxu0
  %v3427 = vadd.f32 0.0, %v3426
  %v3428 = vpop.f32.mrb[0].mxu0
  %3429 = vmatprep.mubr.bf16.mxu0 0
  %3430 = vmatmul.mubr.bf16.gmra.mrb[0].mxu0 %v1261
  %v3431 = vpop.f32.mrb[0].mxu0
  %v3432 = vadd.f32 0.0, %v3431
  %v3433 = vpop.f32.mrb[0].mxu0
  %v3434 = vpop.f32.mrb[0].mxu0
  %v3435 = vadd.f32 0.0, %v3434
  %v3436 = vpop.f32.mrb[0].mxu0
  %3437 = vmatprep.mubr.bf16.mxu0 0
  %3438 = vmatmul.mubr.bf16.gmra.mrb[0].mxu0 %v1273
  %v3439 = vpop.f32.mrb[0].mxu0
  %v3440 = vadd.f32 0.0, %v3439
  %v3441 = vpop.f32.mrb[0].mxu0
  %v3442 = vpop.f32.mrb[0].mxu0
  %v3443 = vadd.f32 0.0, %v3442
  %v3444 = vpop.f32.mrb[0].mxu0
  %3445 = vmatprep.mubr.bf16.mxu0 0
  %3446 = vmatmul.mubr.bf16.gmra.mrb[0].mxu0 %v1285
  %v3447 = vpop.f32.mrb[0].mxu0
  %v3448 = vadd.f32 0.0, %v3447
  %v3449 = vpop.f32.mrb[0].mxu0
  %v3450 = vpop.f32.mrb[0].mxu0
  %v3451 = vadd.f32 0.0, %v3450
  %v3452 = vpop.f32.mrb[0].mxu0
  %3453 = vmatprep.mubr.bf16.mxu0 0
  %3454 = vmatmul.mubr.bf16.gmra.mrb[0].mxu0 %v1297
  %v3455 = vpop.f32.mrb[0].mxu0
  %v3456 = vadd.f32 0.0, %v3455
  %v3457 = vpop.f32.mrb[0].mxu0
  %v3458 = vpop.f32.mrb[0].mxu0
  %v3459 = vadd.f32 0.0, %v3458
  %v3460 = vpop.f32.mrb[0].mxu0
  %3461 = vmatprep.mubr.bf16.mxu0 0
  %3462 = vmatmul.mubr.bf16.gmra.mrb[0].mxu0 %v1309
  %v3463 = vpop.f32.mrb[0].mxu0
  %v3464 = vadd.f32 0.0, %v3463
  %v3465 = vpop.f32.mrb[0].mxu0
  %v3466 = vpop.f32.mrb[0].mxu0
  %v3467 = vadd.f32 0.0, %v3466
  %v3468 = vpop.f32.mrb[0].mxu0
  %3469 = vmatprep.mubr.bf16.mxu0 0
  %3470 = vmatmul.mubr.bf16.gmra.mrb[0].mxu0 %v1321
  %v3471 = vpop.f32.mrb[0].mxu0
  %v3472 = vadd.f32 0.0, %v3471
  %v3473 = vpop.f32.mrb[0].mxu0
  %v3474 = vpop.f32.mrb[0].mxu0
  %v3475 = vadd.f32 0.0, %v3474
  %v3476 = vpop.f32.mrb[0].mxu0
  %3477 = vmatprep.mubr.bf16.mxu0 0
  %3478 = vmatmul.mubr.bf16.gmra.mrb[0].mxu0 %v1333
  %v3479 = vpop.f32.mrb[0].mxu0
  %v3480 = vadd.f32 0.0, %v3479
  %v3481 = vpop.f32.mrb[0].mxu0
  %v3482 = vpop.f32.mrb[0].mxu0
  %v3483 = vadd.f32 0.0, %v3482
  %v3484 = vpop.f32.mrb[0].mxu0
  %3485 = vmatprep.mubr.bf16.mxu0 0
  %3486 = vmatmul.mubr.bf16.gmra.mrb[0].mxu0 %v1345
  %v3487 = vpop.f32.mrb[0].mxu0
  %v3488 = vadd.f32 0.0, %v3487
  %v3489 = vpop.f32.mrb[0].mxu0
  %v3490 = vpop.f32.mrb[0].mxu0
  %v3491 = vadd.f32 0.0, %v3490
  %v3492 = vpop.f32.mrb[0].mxu0
  %3493 = vmatprep.mubr.bf16.mxu0 0
  %3494 = vmatmul.mubr.bf16.gmra.mrb[0].mxu0 %v1357
  %v3495 = vpop.f32.mrb[0].mxu0
  %v3496 = vadd.f32 0.0, %v3495
  %v3497 = vpop.f32.mrb[0].mxu0
  %v3498 = vpop.f32.mrb[0].mxu0
  %v3499 = vadd.f32 0.0, %v3498
  %v3500 = vpop.f32.mrb[0].mxu0
  %3501 = vmatprep.mubr.bf16.mxu0 0
  %3502 = vmatmul.mubr.bf16.gmra.mrb[0].mxu0 %v1369
  %v3503 = vpop.f32.mrb[0].mxu0
  %v3504 = vadd.f32 0.0, %v3503
  %v3505 = vpop.f32.mrb[0].mxu0
  %v3506 = vpop.f32.mrb[0].mxu0
  %v3507 = vadd.f32 0.0, %v3506
  %v3508 = vpop.f32.mrb[0].mxu0
  %3509 = vmatprep.mubr.bf16.mxu0 0
  %3510 = vmatmul.mubr.bf16.gmra.mrb[0].mxu0 %v1381
  %v3511 = vpop.f32.mrb[0].mxu0
  %v3512 = vadd.f32 0.0, %v3511
  %v3513 = vpop.f32.mrb[0].mxu0
  %v3514 = vpop.f32.mrb[0].mxu0
  %v3515 = vadd.f32 0.0, %v3514
  %v3516 = vpop.f32.mrb[0].mxu0
  %3517 = vmatprep.mubr.bf16.mxu0 0
  %3518 = vmatmul.mubr.bf16.gmra.mrb[0].mxu0 %v1393
  %v3519 = vpop.f32.mrb[0].mxu0
  %v3520 = vadd.f32 0.0, %v3519
  %v3521 = vpop.f32.mrb[0].mxu0
  %v3522 = vpop.f32.mrb[0].mxu0
  %v3523 = vadd.f32 0.0, %v3522
  %v3524 = vpop.f32.mrb[0].mxu0
  %3525 = vmatprep.mubr.bf16.mxu0 0
  %3526 = vmatmul.mubr.bf16.gmra.mrb[0].mxu0 %v1405
  %v3527 = vpop.f32.mrb[0].mxu0
  %v3528 = vadd.f32 0.0, %v3527
  %v3529 = vpop.f32.mrb[0].mxu0
  %v3530 = vpop.f32.mrb[0].mxu0
  %v3531 = vadd.f32 0.0, %v3530
  %v3532 = vpop.f32.mrb[0].mxu0
  %3533 = vmatprep.mubr.bf16.mxu0 0
  %3534 = vmatmul.mubr.bf16.gmra.mrb[0].mxu0 %v1417
  %v3535 = vpop.f32.mrb[0].mxu0
  %v3536 = vadd.f32 0.0, %v3535
  %v3537 = vpop.f32.mrb[0].mxu0
  %v3538 = vpop.f32.mrb[0].mxu0
  %v3539 = vadd.f32 0.0, %v3538
  %v3540 = vpop.f32.mrb[0].mxu0
  %3541 = vmatprep.mubr.bf16.mxu0 0
  %3542 = vmatmul.mubr.bf16.gmra.mrb[0].mxu0 %v3193
  %v3543 = vpop.f32.mrb[0].mxu0
  %v3544 = vadd.f32 0.0, %v3543
  %v3545 = vpop.f32.mrb[0].mxu0
  %v3546 = vpop.f32.mrb[0].mxu0
  %v3547 = vadd.f32 0.0, %v3546
  %v3548 = vpop.f32.mrb[0].mxu0
  %3549 = vdwg.mxu0
  %v3550 = vadd.f32 %v3106, %v3296
  %v3551 = vadd.f32 %v3107, %v3299
  %v3552 = vadd.f32 %v3108, %v3304
  %v3553 = vadd.f32 %v3109, %v3307
  %v3554 = vadd.f32 %v3110, %v3312
  %v3555 = vadd.f32 %v3111, %v3315
  %v3556 = vadd.f32 %v3112, %v3320
  %v3557 = vadd.f32 %v3113, %v3323
  %v3558 = vadd.f32 %v3114, %v3328
  %v3559 = vadd.f32 %v3115, %v3331
  %v3560 = vadd.f32 %v3116, %v3336
  %v3561 = vadd.f32 %v3117, %v3339
  %v3562 = vadd.f32 %v3118, %v3344
  %v3563 = vadd.f32 %v3119, %v3347
  %v3564 = vadd.f32 %v3120, %v3352
  %v3565 = vadd.f32 %v3121, %v3355
  %v3566 = vadd.f32 %v3122, %v3360
  %v3567 = vadd.f32 %v3123, %v3363
  %v3568 = vadd.f32 %v3124, %v3368
  %v3569 = vadd.f32 %v3125, %v3371
  %v3570 = vadd.f32 %v3126, %v3376
  %v3571 = vadd.f32 %v3127, %v3379
  %v3572 = vadd.f32 %v3128, %v3384
  %v3573 = vadd.f32 %v3129, %v3387
  %v3574 = vadd.f32 %v3130, %v3392
  %v3575 = vadd.f32 %v3131, %v3395
  %v3576 = vadd.f32 %v3132, %v3400
  %v3577 = vadd.f32 %v3133, %v3403
  %v3578 = vadd.f32 %v3134, %v3408
  %v3579 = vadd.f32 %v3135, %v3411
  %v3580 = vadd.f32 %v3136, %v3416
  %v3581 = vadd.f32 %v3137, %v3419
  %v3582 = vadd.f32 %v3138, %v3424
  %v3583 = vadd.f32 %v3139, %v3427
  %v3584 = vadd.f32 %v3140, %v3432
  %v3585 = vadd.f32 %v3141, %v3435
  %v3586 = vadd.f32 %v3142, %v3440
  %v3587 = vadd.f32 %v3143, %v3443
  %v3588 = vadd.f32 %v3144, %v3448
  %v3589 = vadd.f32 %v3145, %v3451
  %v3590 = vadd.f32 %v3146, %v3456
  %v3591 = vadd.f32 %v3147, %v3459
  %v3592 = vadd.f32 %v3148, %v3464
  %v3593 = vadd.f32 %v3149, %v3467
  %v3594 = vadd.f32 %v3150, %v3472
  %v3595 = vadd.f32 %v3151, %v3475
  %v3596 = vadd.f32 %v3152, %v3480
  %v3597 = vadd.f32 %v3153, %v3483
  %v3598 = vadd.f32 %v3154, %v3488
  %v3599 = vadd.f32 %v3155, %v3491
  %v3600 = vadd.f32 %v3156, %v3496
  %v3601 = vadd.f32 %v3157, %v3499
  %v3602 = vadd.f32 %v3158, %v3504
  %v3603 = vadd.f32 %v3159, %v3507
  %v3604 = vadd.f32 %v3160, %v3512
  %v3605 = vadd.f32 %v3161, %v3515
  %v3606 = vadd.f32 %v3162, %v3520
  %v3607 = vadd.f32 %v3163, %v3523
  %v3608 = vadd.f32 %v3164, %v3528
  %v3609 = vadd.f32 %v3165, %v3531
  %v3610 = vadd.f32 %v3166, %v3536
  %v3611 = vadd.f32 %v3167, %v3539
  %v3612 = vadd.f32 %v3168, %v3544
  %v3613 = vadd.f32 %v3169, %v3547
  %v3618 = vrot.slane %v977, 1
  %v3619 = vrot.slane %v978, 1
  %v3620 = vsel %vm2205, %v3618, %v3619
  %v3621 = vrot.slane %v1013, 1
  %v3622 = vrot.slane %v1014, 1
  %v3623 = vsel %vm2205, %v3621, %v3622
  %s3626 = scalar_lea.vmem %s4, 320
  %v3627 = vld [vmem:[%s3626] sm:$0xf]
  %v3628 = vld [vmem:[%s3626 + $0x4] sm:$0xf]
  %v3629 = vld [vmem:[%s3626 + $0x8] sm:$0xf]
  %v3630 = vld [vmem:[%s3626 + $0xc] sm:$0xf]
  %v3631 = vld [vmem:[%s3626 + $0x10] sm:$0xf]
  %v3632 = vld [vmem:[%s3626 + $0x14] sm:$0xf]
  %v3633 = vld [vmem:[%s3626 + $0x18] sm:$0xf]
  %v3634 = vld [vmem:[%s3626 + $0x1c] sm:$0xf]
  %v3635 = vld [vmem:[%s3626 + $0x20] sm:$0xf]
  %v3636 = vld [vmem:[%s3626 + $0x24] sm:$0xf]
  %v3637 = vld [vmem:[%s3626 + $0x28] sm:$0xf]
  %v3638 = vld [vmem:[%s3626 + $0x2c] sm:$0xf]
  %v3639 = vld [vmem:[%s3626 + $0x30] sm:$0xf]
  %v3640 = vld [vmem:[%s3626 + $0x34] sm:$0xf]
  %v3641 = vld [vmem:[%s3626 + $0x38] sm:$0xf]
  %v3642 = vld [vmem:[%s3626 + $0x3c] sm:$0xf]
  %v3659 = vunpack.c.l.b16 %v3627
  %v3660 = vunpack.c.l.b16 %v3628
  %v3661 = vunpack.c.l.b16 %v3629
  %v3662 = vunpack.c.l.b16 %v3630
  %v3663 = vunpack.c.l.b16 %v3631
  %v3664 = vunpack.c.l.b16 %v3632
  %v3665 = vunpack.c.l.b16 %v3633
  %v3666 = vunpack.c.l.b16 %v3634
  %v3667 = vunpack.c.l.b16 %v3635
  %v3668 = vunpack.c.l.b16 %v3636
  %v3669 = vunpack.c.l.b16 %v3637
  %v3670 = vunpack.c.l.b16 %v3638
  %v3671 = vunpack.c.l.b16 %v3639
  %v3672 = vunpack.c.l.b16 %v3640
  %v3673 = vunpack.c.l.b16 %v3641
  %v3674 = vunpack.c.l.b16 %v3642
  %v3675 = vpack.c.b16 %v3660, %v3659
  %v3676 = vpack.c.b16 %v3662, %v3661
  %v3677 = vpack.c.b16 %v3664, %v3663
  %v3678 = vpack.c.b16 %v3666, %v3665
  %v3679 = vpack.c.b16 %v3668, %v3667
  %v3680 = vpack.c.b16 %v3670, %v3669
  %v3681 = vpack.c.b16 %v3672, %v3671
  %v3682 = vpack.c.b16 %v3674, %v3673
  %3691 = vmatprep.subr.bf16.mxu0 0
  %3692 = vmatpush1.bf16.msra.mxu0 %v3675
  %3693 = vmatprep.subr.bf16.mxu0 0
  %3694 = vmatpush1.bf16.msra.mxu0 %v3676
  %3695 = vmatprep.subr.bf16.mxu0 0
  %3696 = vmatpush1.bf16.msra.mxu0 %v3677
  %3697 = vmatprep.subr.bf16.mxu0 0
  %3698 = vmatpush1.bf16.msra.mxu0 %v3678
  %3699 = vmatprep.subr.bf16.mxu0 0
  %3700 = vmatpush1.bf16.msra.mxu0 %v3679
  %3701 = vmatprep.subr.bf16.mxu0 0
  %3702 = vmatpush1.bf16.msra.mxu0 %v3680
  %3703 = vmatprep.subr.bf16.mxu0 0
  %3704 = vmatpush1.bf16.msra.mxu0 %v3681
  %3705 = vmatprep.subr.bf16.mxu0 0
  %3706 = vmatpush1.bf16.msra.mxu0 %v3682
  %3707 = vmatprep.subr.bf16.mxu0 0
  %3708 = vmatpush1.bf16.msra.mxu0 0
  %3709 = vmatprep.subr.bf16.mxu0 0
  %3710 = vmatpush1.bf16.msra.mxu0 0
  %3711 = vmatprep.subr.bf16.mxu0 0
  %3712 = vmatpush1.bf16.msra.mxu0 0
  %3713 = vmatprep.subr.bf16.mxu0 0
  %3714 = vmatpush1.bf16.msra.mxu0 0
  %3715 = vmatprep.subr.bf16.mxu0 0
  %3716 = vmatpush1.bf16.msra.mxu0 0
  %3717 = vmatprep.subr.bf16.mxu0 0
  %3718 = vmatpush1.bf16.msra.mxu0 0
  %3719 = vmatprep.subr.bf16.mxu0 0
  %3720 = vmatpush1.bf16.msra.mxu0 0
  %3721 = vmatprep.subr.bf16.mxu0 0
  %3722 = vmatpush1.bf16.msra.mxu0 0
  %3723 = vmatprep.mubr.bf16.mxu0 0
  %3724 = vmatmul.mubr.bf16.gmra.mrb[0].mxu0 %v2211
  %v3725 = vpop.f32.mrb[0].mxu0
  %v3726 = vadd.f32 0.0, %v3725
  %v3727 = vpop.f32.mrb[0].mxu0
  %v3728 = vpop.f32.mrb[0].mxu0
  %v3729 = vadd.f32 0.0, %v3728
  %v3730 = vpop.f32.mrb[0].mxu0
  %3731 = vmatprep.mubr.bf16.mxu0 0
  %3732 = vmatmul.mubr.bf16.gmra.mrb[0].mxu0 %v2214
  %v3733 = vpop.f32.mrb[0].mxu0
  %v3734 = vadd.f32 0.0, %v3733
  %v3735 = vpop.f32.mrb[0].mxu0
  %v3736 = vpop.f32.mrb[0].mxu0
  %v3737 = vadd.f32 0.0, %v3736
  %v3738 = vpop.f32.mrb[0].mxu0
  %3739 = vmatprep.mubr.bf16.mxu0 0
  %3740 = vmatmul.mubr.bf16.gmra.mrb[0].mxu0 %v2217
  %v3741 = vpop.f32.mrb[0].mxu0
  %v3742 = vadd.f32 0.0, %v3741
  %v3743 = vpop.f32.mrb[0].mxu0
  %v3744 = vpop.f32.mrb[0].mxu0
  %v3745 = vadd.f32 0.0, %v3744
  %v3746 = vpop.f32.mrb[0].mxu0
  %3747 = vmatprep.mubr.bf16.mxu0 0
  %3748 = vmatmul.mubr.bf16.gmra.mrb[0].mxu0 %v2220
  %v3749 = vpop.f32.mrb[0].mxu0
  %v3750 = vadd.f32 0.0, %v3749
  %v3751 = vpop.f32.mrb[0].mxu0
  %v3752 = vpop.f32.mrb[0].mxu0
  %v3753 = vadd.f32 0.0, %v3752
  %v3754 = vpop.f32.mrb[0].mxu0
  %3755 = vmatprep.mubr.bf16.mxu0 0
  %3756 = vmatmul.mubr.bf16.gmra.mrb[0].mxu0 %v2223
  %v3757 = vpop.f32.mrb[0].mxu0
  %v3758 = vadd.f32 0.0, %v3757
  %v3759 = vpop.f32.mrb[0].mxu0
  %v3760 = vpop.f32.mrb[0].mxu0
  %v3761 = vadd.f32 0.0, %v3760
  %v3762 = vpop.f32.mrb[0].mxu0
  %3763 = vmatprep.mubr.bf16.mxu0 0
  %3764 = vmatmul.mubr.bf16.gmra.mrb[0].mxu0 %v2226
  %v3765 = vpop.f32.mrb[0].mxu0
  %v3766 = vadd.f32 0.0, %v3765
  %v3767 = vpop.f32.mrb[0].mxu0
  %v3768 = vpop.f32.mrb[0].mxu0
  %v3769 = vadd.f32 0.0, %v3768
  %v3770 = vpop.f32.mrb[0].mxu0
  %3771 = vmatprep.mubr.bf16.mxu0 0
  %3772 = vmatmul.mubr.bf16.gmra.mrb[0].mxu0 %v2229
  %v3773 = vpop.f32.mrb[0].mxu0
  %v3774 = vadd.f32 0.0, %v3773
  %v3775 = vpop.f32.mrb[0].mxu0
  %v3776 = vpop.f32.mrb[0].mxu0
  %v3777 = vadd.f32 0.0, %v3776
  %v3778 = vpop.f32.mrb[0].mxu0
  %3779 = vmatprep.mubr.bf16.mxu0 0
  %3780 = vmatmul.mubr.bf16.gmra.mrb[0].mxu0 %v2232
  %v3781 = vpop.f32.mrb[0].mxu0
  %v3782 = vadd.f32 0.0, %v3781
  %v3783 = vpop.f32.mrb[0].mxu0
  %v3784 = vpop.f32.mrb[0].mxu0
  %v3785 = vadd.f32 0.0, %v3784
  %v3786 = vpop.f32.mrb[0].mxu0
  %3787 = vmatprep.mubr.bf16.mxu0 0
  %3788 = vmatmul.mubr.bf16.gmra.mrb[0].mxu0 %v2235
  %v3789 = vpop.f32.mrb[0].mxu0
  %v3790 = vadd.f32 0.0, %v3789
  %v3791 = vpop.f32.mrb[0].mxu0
  %v3792 = vpop.f32.mrb[0].mxu0
  %v3793 = vadd.f32 0.0, %v3792
  %v3794 = vpop.f32.mrb[0].mxu0
  %3795 = vmatprep.mubr.bf16.mxu0 0
  %3796 = vmatmul.mubr.bf16.gmra.mrb[0].mxu0 %v2238
  %v3797 = vpop.f32.mrb[0].mxu0
  %v3798 = vadd.f32 0.0, %v3797
  %v3799 = vpop.f32.mrb[0].mxu0
  %v3800 = vpop.f32.mrb[0].mxu0
  %v3801 = vadd.f32 0.0, %v3800
  %v3802 = vpop.f32.mrb[0].mxu0
  %3803 = vmatprep.mubr.bf16.mxu0 0
  %3804 = vmatmul.mubr.bf16.gmra.mrb[0].mxu0 %v2241
  %v3805 = vpop.f32.mrb[0].mxu0
  %v3806 = vadd.f32 0.0, %v3805
  %v3807 = vpop.f32.mrb[0].mxu0
  %v3808 = vpop.f32.mrb[0].mxu0
  %v3809 = vadd.f32 0.0, %v3808
  %v3810 = vpop.f32.mrb[0].mxu0
  %3811 = vmatprep.mubr.bf16.mxu0 0
  %3812 = vmatmul.mubr.bf16.gmra.mrb[0].mxu0 %v2244
  %v3813 = vpop.f32.mrb[0].mxu0
  %v3814 = vadd.f32 0.0, %v3813
  %v3815 = vpop.f32.mrb[0].mxu0
  %v3816 = vpop.f32.mrb[0].mxu0
  %v3817 = vadd.f32 0.0, %v3816
  %v3818 = vpop.f32.mrb[0].mxu0
  %3819 = vmatprep.mubr.bf16.mxu0 0
  %3820 = vmatmul.mubr.bf16.gmra.mrb[0].mxu0 %v2247
  %v3821 = vpop.f32.mrb[0].mxu0
  %v3822 = vadd.f32 0.0, %v3821
  %v3823 = vpop.f32.mrb[0].mxu0
  %v3824 = vpop.f32.mrb[0].mxu0
  %v3825 = vadd.f32 0.0, %v3824
  %v3826 = vpop.f32.mrb[0].mxu0
  %3827 = vmatprep.mubr.bf16.mxu0 0
  %3828 = vmatmul.mubr.bf16.gmra.mrb[0].mxu0 %v2250
  %v3829 = vpop.f32.mrb[0].mxu0
  %v3830 = vadd.f32 0.0, %v3829
  %v3831 = vpop.f32.mrb[0].mxu0
  %v3832 = vpop.f32.mrb[0].mxu0
  %v3833 = vadd.f32 0.0, %v3832
  %v3834 = vpop.f32.mrb[0].mxu0
  %3835 = vmatprep.mubr.bf16.mxu0 0
  %3836 = vmatmul.mubr.bf16.gmra.mrb[0].mxu0 %v2253
  %v3837 = vpop.f32.mrb[0].mxu0
  %v3838 = vadd.f32 0.0, %v3837
  %v3839 = vpop.f32.mrb[0].mxu0
  %v3840 = vpop.f32.mrb[0].mxu0
  %v3841 = vadd.f32 0.0, %v3840
  %v3842 = vpop.f32.mrb[0].mxu0
  %3843 = vmatprep.mubr.bf16.mxu0 0
  %3844 = vmatmul.mubr.bf16.gmra.mrb[0].mxu0 %v3620
  %v3845 = vpop.f32.mrb[0].mxu0
  %v3846 = vadd.f32 0.0, %v3845
  %v3847 = vpop.f32.mrb[0].mxu0
  %v3848 = vpop.f32.mrb[0].mxu0
  %v3849 = vadd.f32 0.0, %v3848
  %v3850 = vpop.f32.mrb[0].mxu0
  %3851 = vmatprep.mubr.bf16.mxu0 0
  %3852 = vmatmul.mubr.bf16.gmra.mrb[0].mxu0 %v2259
  %v3853 = vpop.f32.mrb[0].mxu0
  %v3854 = vadd.f32 0.0, %v3853
  %v3855 = vpop.f32.mrb[0].mxu0
  %v3856 = vpop.f32.mrb[0].mxu0
  %v3857 = vadd.f32 0.0, %v3856
  %v3858 = vpop.f32.mrb[0].mxu0
  %3859 = vmatprep.mubr.bf16.mxu0 0
  %3860 = vmatmul.mubr.bf16.gmra.mrb[0].mxu0 %v2262
  %v3861 = vpop.f32.mrb[0].mxu0
  %v3862 = vadd.f32 0.0, %v3861
  %v3863 = vpop.f32.mrb[0].mxu0
  %v3864 = vpop.f32.mrb[0].mxu0
  %v3865 = vadd.f32 0.0, %v3864
  %v3866 = vpop.f32.mrb[0].mxu0
  %3867 = vmatprep.mubr.bf16.mxu0 0
  %3868 = vmatmul.mubr.bf16.gmra.mrb[0].mxu0 %v2265
  %v3869 = vpop.f32.mrb[0].mxu0
  %v3870 = vadd.f32 0.0, %v3869
  %v3871 = vpop.f32.mrb[0].mxu0
  %v3872 = vpop.f32.mrb[0].mxu0
  %v3873 = vadd.f32 0.0, %v3872
  %v3874 = vpop.f32.mrb[0].mxu0
  %3875 = vmatprep.mubr.bf16.mxu0 0
  %3876 = vmatmul.mubr.bf16.gmra.mrb[0].mxu0 %v2268
  %v3877 = vpop.f32.mrb[0].mxu0
  %v3878 = vadd.f32 0.0, %v3877
  %v3879 = vpop.f32.mrb[0].mxu0
  %v3880 = vpop.f32.mrb[0].mxu0
  %v3881 = vadd.f32 0.0, %v3880
  %v3882 = vpop.f32.mrb[0].mxu0
  %3883 = vmatprep.mubr.bf16.mxu0 0
  %3884 = vmatmul.mubr.bf16.gmra.mrb[0].mxu0 %v2271
  %v3885 = vpop.f32.mrb[0].mxu0
  %v3886 = vadd.f32 0.0, %v3885
  %v3887 = vpop.f32.mrb[0].mxu0
  %v3888 = vpop.f32.mrb[0].mxu0
  %v3889 = vadd.f32 0.0, %v3888
  %v3890 = vpop.f32.mrb[0].mxu0
  %3891 = vmatprep.mubr.bf16.mxu0 0
  %3892 = vmatmul.mubr.bf16.gmra.mrb[0].mxu0 %v2274
  %v3893 = vpop.f32.mrb[0].mxu0
  %v3894 = vadd.f32 0.0, %v3893
  %v3895 = vpop.f32.mrb[0].mxu0
  %v3896 = vpop.f32.mrb[0].mxu0
  %v3897 = vadd.f32 0.0, %v3896
  %v3898 = vpop.f32.mrb[0].mxu0
  %3899 = vmatprep.mubr.bf16.mxu0 0
  %3900 = vmatmul.mubr.bf16.gmra.mrb[0].mxu0 %v2277
  %v3901 = vpop.f32.mrb[0].mxu0
  %v3902 = vadd.f32 0.0, %v3901
  %v3903 = vpop.f32.mrb[0].mxu0
  %v3904 = vpop.f32.mrb[0].mxu0
  %v3905 = vadd.f32 0.0, %v3904
  %v3906 = vpop.f32.mrb[0].mxu0
  %3907 = vmatprep.mubr.bf16.mxu0 0
  %3908 = vmatmul.mubr.bf16.gmra.mrb[0].mxu0 %v2280
  %v3909 = vpop.f32.mrb[0].mxu0
  %v3910 = vadd.f32 0.0, %v3909
  %v3911 = vpop.f32.mrb[0].mxu0
  %v3912 = vpop.f32.mrb[0].mxu0
  %v3913 = vadd.f32 0.0, %v3912
  %v3914 = vpop.f32.mrb[0].mxu0
  %3915 = vmatprep.mubr.bf16.mxu0 0
  %3916 = vmatmul.mubr.bf16.gmra.mrb[0].mxu0 %v2283
  %v3917 = vpop.f32.mrb[0].mxu0
  %v3918 = vadd.f32 0.0, %v3917
  %v3919 = vpop.f32.mrb[0].mxu0
  %v3920 = vpop.f32.mrb[0].mxu0
  %v3921 = vadd.f32 0.0, %v3920
  %v3922 = vpop.f32.mrb[0].mxu0
  %3923 = vmatprep.mubr.bf16.mxu0 0
  %3924 = vmatmul.mubr.bf16.gmra.mrb[0].mxu0 %v2286
  %v3925 = vpop.f32.mrb[0].mxu0
  %v3926 = vadd.f32 0.0, %v3925
  %v3927 = vpop.f32.mrb[0].mxu0
  %v3928 = vpop.f32.mrb[0].mxu0
  %v3929 = vadd.f32 0.0, %v3928
  %v3930 = vpop.f32.mrb[0].mxu0
  %3931 = vmatprep.mubr.bf16.mxu0 0
  %3932 = vmatmul.mubr.bf16.gmra.mrb[0].mxu0 %v2289
  %v3933 = vpop.f32.mrb[0].mxu0
  %v3934 = vadd.f32 0.0, %v3933
  %v3935 = vpop.f32.mrb[0].mxu0
  %v3936 = vpop.f32.mrb[0].mxu0
  %v3937 = vadd.f32 0.0, %v3936
  %v3938 = vpop.f32.mrb[0].mxu0
  %3939 = vmatprep.mubr.bf16.mxu0 0
  %3940 = vmatmul.mubr.bf16.gmra.mrb[0].mxu0 %v2292
  %v3941 = vpop.f32.mrb[0].mxu0
  %v3942 = vadd.f32 0.0, %v3941
  %v3943 = vpop.f32.mrb[0].mxu0
  %v3944 = vpop.f32.mrb[0].mxu0
  %v3945 = vadd.f32 0.0, %v3944
  %v3946 = vpop.f32.mrb[0].mxu0
  %3947 = vmatprep.mubr.bf16.mxu0 0
  %3948 = vmatmul.mubr.bf16.gmra.mrb[0].mxu0 %v2295
  %v3949 = vpop.f32.mrb[0].mxu0
  %v3950 = vadd.f32 0.0, %v3949
  %v3951 = vpop.f32.mrb[0].mxu0
  %v3952 = vpop.f32.mrb[0].mxu0
  %v3953 = vadd.f32 0.0, %v3952
  %v3954 = vpop.f32.mrb[0].mxu0
  %3955 = vmatprep.mubr.bf16.mxu0 0
  %3956 = vmatmul.mubr.bf16.gmra.mrb[0].mxu0 %v2298
  %v3957 = vpop.f32.mrb[0].mxu0
  %v3958 = vadd.f32 0.0, %v3957
  %v3959 = vpop.f32.mrb[0].mxu0
  %v3960 = vpop.f32.mrb[0].mxu0
  %v3961 = vadd.f32 0.0, %v3960
  %v3962 = vpop.f32.mrb[0].mxu0
  %3963 = vmatprep.mubr.bf16.mxu0 0
  %3964 = vmatmul.mubr.bf16.gmra.mrb[0].mxu0 %v2301
  %v3965 = vpop.f32.mrb[0].mxu0
  %v3966 = vadd.f32 0.0, %v3965
  %v3967 = vpop.f32.mrb[0].mxu0
  %v3968 = vpop.f32.mrb[0].mxu0
  %v3969 = vadd.f32 0.0, %v3968
  %v3970 = vpop.f32.mrb[0].mxu0
  %3971 = vmatprep.mubr.bf16.mxu0 0
  %3972 = vmatmul.mubr.bf16.gmra.mrb[0].mxu0 %v3623
  %v3973 = vpop.f32.mrb[0].mxu0
  %v3974 = vadd.f32 0.0, %v3973
  %v3975 = vpop.f32.mrb[0].mxu0
  %v3976 = vpop.f32.mrb[0].mxu0
  %v3977 = vadd.f32 0.0, %v3976
  %v3978 = vpop.f32.mrb[0].mxu0
  %3979 = vdwg.mxu0
  %v3980 = vadd.f32 %v3550, %v3726
  %v3981 = vadd.f32 %v3551, %v3729
  %v3982 = vadd.f32 %v3552, %v3734
  %v3983 = vadd.f32 %v3553, %v3737
  %v3984 = vadd.f32 %v3554, %v3742
  %v3985 = vadd.f32 %v3555, %v3745
  %v3986 = vadd.f32 %v3556, %v3750
  %v3987 = vadd.f32 %v3557, %v3753
  %v3988 = vadd.f32 %v3558, %v3758
  %v3989 = vadd.f32 %v3559, %v3761
  %v3990 = vadd.f32 %v3560, %v3766
  %v3991 = vadd.f32 %v3561, %v3769
  %v3992 = vadd.f32 %v3562, %v3774
  %v3993 = vadd.f32 %v3563, %v3777
  %v3994 = vadd.f32 %v3564, %v3782
  %v3995 = vadd.f32 %v3565, %v3785
  %v3996 = vadd.f32 %v3566, %v3790
  %v3997 = vadd.f32 %v3567, %v3793
  %v3998 = vadd.f32 %v3568, %v3798
  %v3999 = vadd.f32 %v3569, %v3801
  %v4000 = vadd.f32 %v3570, %v3806
  %v4001 = vadd.f32 %v3571, %v3809
  %v4002 = vadd.f32 %v3572, %v3814
  %v4003 = vadd.f32 %v3573, %v3817
  %v4004 = vadd.f32 %v3574, %v3822
  %v4005 = vadd.f32 %v3575, %v3825
  %v4006 = vadd.f32 %v3576, %v3830
  %v4007 = vadd.f32 %v3577, %v3833
  %v4008 = vadd.f32 %v3578, %v3838
  %v4009 = vadd.f32 %v3579, %v3841
  %v4010 = vadd.f32 %v3580, %v3846
  %v4011 = vadd.f32 %v3581, %v3849
  %v4012 = vadd.f32 %v3582, %v3854
  %v4013 = vadd.f32 %v3583, %v3857
  %v4014 = vadd.f32 %v3584, %v3862
  %v4015 = vadd.f32 %v3585, %v3865
  %v4016 = vadd.f32 %v3586, %v3870
  %v4017 = vadd.f32 %v3587, %v3873
  %v4018 = vadd.f32 %v3588, %v3878
  %v4019 = vadd.f32 %v3589, %v3881
  %v4020 = vadd.f32 %v3590, %v3886
  %v4021 = vadd.f32 %v3591, %v3889
  %v4022 = vadd.f32 %v3592, %v3894
  %v4023 = vadd.f32 %v3593, %v3897
  %v4024 = vadd.f32 %v3594, %v3902
  %v4025 = vadd.f32 %v3595, %v3905
  %v4026 = vadd.f32 %v3596, %v3910
  %v4027 = vadd.f32 %v3597, %v3913
  %v4028 = vadd.f32 %v3598, %v3918
  %v4029 = vadd.f32 %v3599, %v3921
  %v4030 = vadd.f32 %v3600, %v3926
  %v4031 = vadd.f32 %v3601, %v3929
  %v4032 = vadd.f32 %v3602, %v3934
  %v4033 = vadd.f32 %v3603, %v3937
  %v4034 = vadd.f32 %v3604, %v3942
  %v4035 = vadd.f32 %v3605, %v3945
  %v4036 = vadd.f32 %v3606, %v3950
  %v4037 = vadd.f32 %v3607, %v3953
  %v4038 = vadd.f32 %v3608, %v3958
  %v4039 = vadd.f32 %v3609, %v3961
  %v4040 = vadd.f32 %v3610, %v3966
  %v4041 = vadd.f32 %v3611, %v3969
  %v4042 = vadd.f32 %v3612, %v3974
  %v4043 = vadd.f32 %v3613, %v3977
  %s4044 = scalar_lea.vmem %s4, 384
  %v4045 = vld [vmem:[%s4044] sm:$0xf]
  %v4046 = vld [vmem:[%s4044 + $0x4] sm:$0xf]
  %v4047 = vld [vmem:[%s4044 + $0x8] sm:$0xf]
  %v4048 = vld [vmem:[%s4044 + $0xc] sm:$0xf]
  %v4049 = vld [vmem:[%s4044 + $0x10] sm:$0xf]
  %v4050 = vld [vmem:[%s4044 + $0x14] sm:$0xf]
  %v4051 = vld [vmem:[%s4044 + $0x18] sm:$0xf]
  %v4052 = vld [vmem:[%s4044 + $0x1c] sm:$0xf]
  %v4053 = vld [vmem:[%s4044 + $0x20] sm:$0xf]
  %v4054 = vld [vmem:[%s4044 + $0x24] sm:$0xf]
  %v4055 = vld [vmem:[%s4044 + $0x28] sm:$0xf]
  %v4056 = vld [vmem:[%s4044 + $0x2c] sm:$0xf]
  %v4057 = vld [vmem:[%s4044 + $0x30] sm:$0xf]
  %v4058 = vld [vmem:[%s4044 + $0x34] sm:$0xf]
  %v4059 = vld [vmem:[%s4044 + $0x38] sm:$0xf]
  %v4060 = vld [vmem:[%s4044 + $0x3c] sm:$0xf]
  %v4077 = vunpack.c.l.b16 %v4045
  %v4078 = vunpack.c.l.b16 %v4046
  %v4079 = vunpack.c.l.b16 %v4047
  %v4080 = vunpack.c.l.b16 %v4048
  %v4081 = vunpack.c.l.b16 %v4049
  %v4082 = vunpack.c.l.b16 %v4050
  %v4083 = vunpack.c.l.b16 %v4051
  %v4084 = vunpack.c.l.b16 %v4052
  %v4085 = vunpack.c.l.b16 %v4053
  %v4086 = vunpack.c.l.b16 %v4054
  %v4087 = vunpack.c.l.b16 %v4055
  %v4088 = vunpack.c.l.b16 %v4056
  %v4089 = vunpack.c.l.b16 %v4057
  %v4090 = vunpack.c.l.b16 %v4058
  %v4091 = vunpack.c.l.b16 %v4059
  %v4092 = vunpack.c.l.b16 %v4060
  %v4093 = vpack.c.b16 %v4078, %v4077
  %v4094 = vpack.c.b16 %v4080, %v4079
  %v4095 = vpack.c.b16 %v4082, %v4081
  %v4096 = vpack.c.b16 %v4084, %v4083
  %v4097 = vpack.c.b16 %v4086, %v4085
  %v4098 = vpack.c.b16 %v4088, %v4087
  %v4099 = vpack.c.b16 %v4090, %v4089
  %v4100 = vpack.c.b16 %v4092, %v4091
  %4109 = vmatprep.subr.bf16.mxu0 0
  %4110 = vmatpush1.bf16.msra.mxu0 %v4093
  %4111 = vmatprep.subr.bf16.mxu0 0
  %4112 = vmatpush1.bf16.msra.mxu0 %v4094
  %4113 = vmatprep.subr.bf16.mxu0 0
  %4114 = vmatpush1.bf16.msra.mxu0 %v4095
  %4115 = vmatprep.subr.bf16.mxu0 0
  %4116 = vmatpush1.bf16.msra.mxu0 %v4096
  %4117 = vmatprep.subr.bf16.mxu0 0
  %4118 = vmatpush1.bf16.msra.mxu0 %v4097
  %4119 = vmatprep.subr.bf16.mxu0 0
  %4120 = vmatpush1.bf16.msra.mxu0 %v4098
  %4121 = vmatprep.subr.bf16.mxu0 0
  %4122 = vmatpush1.bf16.msra.mxu0 %v4099
  %4123 = vmatprep.subr.bf16.mxu0 0
  %4124 = vmatpush1.bf16.msra.mxu0 %v4100
  %4125 = vmatprep.subr.bf16.mxu0 0
  %4126 = vmatpush1.bf16.msra.mxu0 0
  %4127 = vmatprep.subr.bf16.mxu0 0
  %4128 = vmatpush1.bf16.msra.mxu0 0
  %4129 = vmatprep.subr.bf16.mxu0 0
  %4130 = vmatpush1.bf16.msra.mxu0 0
  %4131 = vmatprep.subr.bf16.mxu0 0
  %4132 = vmatpush1.bf16.msra.mxu0 0
  %4133 = vmatprep.subr.bf16.mxu0 0
  %4134 = vmatpush1.bf16.msra.mxu0 0
  %4135 = vmatprep.subr.bf16.mxu0 0
  %4136 = vmatpush1.bf16.msra.mxu0 0
  %4137 = vmatprep.subr.bf16.mxu0 0
  %4138 = vmatpush1.bf16.msra.mxu0 0
  %4139 = vmatprep.subr.bf16.mxu0 0
  %4140 = vmatpush1.bf16.msra.mxu0 0
  %4141 = vmatprep.mubr.bf16.mxu0 0
  %4142 = vmatmul.mubr.bf16.gmra.mrb[0].mxu0 %v949
  %v4143 = vpop.f32.mrb[0].mxu0
  %v4144 = vadd.f32 0.0, %v4143
  %v4145 = vpop.f32.mrb[0].mxu0
  %v4146 = vpop.f32.mrb[0].mxu0
  %v4147 = vadd.f32 0.0, %v4146
  %v4148 = vpop.f32.mrb[0].mxu0
  %4149 = vmatprep.mubr.bf16.mxu0 0
  %4150 = vmatmul.mubr.bf16.gmra.mrb[0].mxu0 %v951
  %v4151 = vpop.f32.mrb[0].mxu0
  %v4152 = vadd.f32 0.0, %v4151
  %v4153 = vpop.f32.mrb[0].mxu0
  %v4154 = vpop.f32.mrb[0].mxu0
  %v4155 = vadd.f32 0.0, %v4154
  %v4156 = vpop.f32.mrb[0].mxu0
  %4157 = vmatprep.mubr.bf16.mxu0 0
  %4158 = vmatmul.mubr.bf16.gmra.mrb[0].mxu0 %v953
  %v4159 = vpop.f32.mrb[0].mxu0
  %v4160 = vadd.f32 0.0, %v4159
  %v4161 = vpop.f32.mrb[0].mxu0
  %v4162 = vpop.f32.mrb[0].mxu0
  %v4163 = vadd.f32 0.0, %v4162
  %v4164 = vpop.f32.mrb[0].mxu0
  %4165 = vmatprep.mubr.bf16.mxu0 0
  %4166 = vmatmul.mubr.bf16.gmra.mrb[0].mxu0 %v955
  %v4167 = vpop.f32.mrb[0].mxu0
  %v4168 = vadd.f32 0.0, %v4167
  %v4169 = vpop.f32.mrb[0].mxu0
  %v4170 = vpop.f32.mrb[0].mxu0
  %v4171 = vadd.f32 0.0, %v4170
  %v4172 = vpop.f32.mrb[0].mxu0
  %4173 = vmatprep.mubr.bf16.mxu0 0
  %4174 = vmatmul.mubr.bf16.gmra.mrb[0].mxu0 %v957
  %v4175 = vpop.f32.mrb[0].mxu0
  %v4176 = vadd.f32 0.0, %v4175
  %v4177 = vpop.f32.mrb[0].mxu0
  %v4178 = vpop.f32.mrb[0].mxu0
  %v4179 = vadd.f32 0.0, %v4178
  %v4180 = vpop.f32.mrb[0].mxu0
  %4181 = vmatprep.mubr.bf16.mxu0 0
  %4182 = vmatmul.mubr.bf16.gmra.mrb[0].mxu0 %v959
  %v4183 = vpop.f32.mrb[0].mxu0
  %v4184 = vadd.f32 0.0, %v4183
  %v4185 = vpop.f32.mrb[0].mxu0
  %v4186 = vpop.f32.mrb[0].mxu0
  %v4187 = vadd.f32 0.0, %v4186
  %v4188 = vpop.f32.mrb[0].mxu0
  %4189 = vmatprep.mubr.bf16.mxu0 0
  %4190 = vmatmul.mubr.bf16.gmra.mrb[0].mxu0 %v961
  %v4191 = vpop.f32.mrb[0].mxu0
  %v4192 = vadd.f32 0.0, %v4191
  %v4193 = vpop.f32.mrb[0].mxu0
  %v4194 = vpop.f32.mrb[0].mxu0
  %v4195 = vadd.f32 0.0, %v4194
  %v4196 = vpop.f32.mrb[0].mxu0
  %4197 = vmatprep.mubr.bf16.mxu0 0
  %4198 = vmatmul.mubr.bf16.gmra.mrb[0].mxu0 %v963
  %v4199 = vpop.f32.mrb[0].mxu0
  %v4200 = vadd.f32 0.0, %v4199
  %v4201 = vpop.f32.mrb[0].mxu0
  %v4202 = vpop.f32.mrb[0].mxu0
  %v4203 = vadd.f32 0.0, %v4202
  %v4204 = vpop.f32.mrb[0].mxu0
  %4205 = vmatprep.mubr.bf16.mxu0 0
  %4206 = vmatmul.mubr.bf16.gmra.mrb[0].mxu0 %v965
  %v4207 = vpop.f32.mrb[0].mxu0
  %v4208 = vadd.f32 0.0, %v4207
  %v4209 = vpop.f32.mrb[0].mxu0
  %v4210 = vpop.f32.mrb[0].mxu0
  %v4211 = vadd.f32 0.0, %v4210
  %v4212 = vpop.f32.mrb[0].mxu0
  %4213 = vmatprep.mubr.bf16.mxu0 0
  %4214 = vmatmul.mubr.bf16.gmra.mrb[0].mxu0 %v967
  %v4215 = vpop.f32.mrb[0].mxu0
  %v4216 = vadd.f32 0.0, %v4215
  %v4217 = vpop.f32.mrb[0].mxu0
  %v4218 = vpop.f32.mrb[0].mxu0
  %v4219 = vadd.f32 0.0, %v4218
  %v4220 = vpop.f32.mrb[0].mxu0
  %4221 = vmatprep.mubr.bf16.mxu0 0
  %4222 = vmatmul.mubr.bf16.gmra.mrb[0].mxu0 %v969
  %v4223 = vpop.f32.mrb[0].mxu0
  %v4224 = vadd.f32 0.0, %v4223
  %v4225 = vpop.f32.mrb[0].mxu0
  %v4226 = vpop.f32.mrb[0].mxu0
  %v4227 = vadd.f32 0.0, %v4226
  %v4228 = vpop.f32.mrb[0].mxu0
  %4229 = vmatprep.mubr.bf16.mxu0 0
  %4230 = vmatmul.mubr.bf16.gmra.mrb[0].mxu0 %v971
  %v4231 = vpop.f32.mrb[0].mxu0
  %v4232 = vadd.f32 0.0, %v4231
  %v4233 = vpop.f32.mrb[0].mxu0
  %v4234 = vpop.f32.mrb[0].mxu0
  %v4235 = vadd.f32 0.0, %v4234
  %v4236 = vpop.f32.mrb[0].mxu0
  %4237 = vmatprep.mubr.bf16.mxu0 0
  %4238 = vmatmul.mubr.bf16.gmra.mrb[0].mxu0 %v973
  %v4239 = vpop.f32.mrb[0].mxu0
  %v4240 = vadd.f32 0.0, %v4239
  %v4241 = vpop.f32.mrb[0].mxu0
  %v4242 = vpop.f32.mrb[0].mxu0
  %v4243 = vadd.f32 0.0, %v4242
  %v4244 = vpop.f32.mrb[0].mxu0
  %4245 = vmatprep.mubr.bf16.mxu0 0
  %4246 = vmatmul.mubr.bf16.gmra.mrb[0].mxu0 %v975
  %v4247 = vpop.f32.mrb[0].mxu0
  %v4248 = vadd.f32 0.0, %v4247
  %v4249 = vpop.f32.mrb[0].mxu0
  %v4250 = vpop.f32.mrb[0].mxu0
  %v4251 = vadd.f32 0.0, %v4250
  %v4252 = vpop.f32.mrb[0].mxu0
  %4253 = vmatprep.mubr.bf16.mxu0 0
  %4254 = vmatmul.mubr.bf16.gmra.mrb[0].mxu0 %v977
  %v4255 = vpop.f32.mrb[0].mxu0
  %v4256 = vadd.f32 0.0, %v4255
  %v4257 = vpop.f32.mrb[0].mxu0
  %v4258 = vpop.f32.mrb[0].mxu0
  %v4259 = vadd.f32 0.0, %v4258
  %v4260 = vpop.f32.mrb[0].mxu0
  %4261 = vmatprep.mubr.bf16.mxu0 0
  %4262 = vmatmul.mubr.bf16.gmra.mrb[0].mxu0 %v979
  %v4263 = vpop.f32.mrb[0].mxu0
  %v4264 = vadd.f32 0.0, %v4263
  %v4265 = vpop.f32.mrb[0].mxu0
  %v4266 = vpop.f32.mrb[0].mxu0
  %v4267 = vadd.f32 0.0, %v4266
  %v4268 = vpop.f32.mrb[0].mxu0
  %4269 = vmatprep.mubr.bf16.mxu0 0
  %4270 = vmatmul.mubr.bf16.gmra.mrb[0].mxu0 %v985
  %v4271 = vpop.f32.mrb[0].mxu0
  %v4272 = vadd.f32 0.0, %v4271
  %v4273 = vpop.f32.mrb[0].mxu0
  %v4274 = vpop.f32.mrb[0].mxu0
  %v4275 = vadd.f32 0.0, %v4274
  %v4276 = vpop.f32.mrb[0].mxu0
  %4277 = vmatprep.mubr.bf16.mxu0 0
  %4278 = vmatmul.mubr.bf16.gmra.mrb[0].mxu0 %v987
  %v4279 = vpop.f32.mrb[0].mxu0
  %v4280 = vadd.f32 0.0, %v4279
  %v4281 = vpop.f32.mrb[0].mxu0
  %v4282 = vpop.f32.mrb[0].mxu0
  %v4283 = vadd.f32 0.0, %v4282
  %v4284 = vpop.f32.mrb[0].mxu0
  %4285 = vmatprep.mubr.bf16.mxu0 0
  %4286 = vmatmul.mubr.bf16.gmra.mrb[0].mxu0 %v989
  %v4287 = vpop.f32.mrb[0].mxu0
  %v4288 = vadd.f32 0.0, %v4287
  %v4289 = vpop.f32.mrb[0].mxu0
  %v4290 = vpop.f32.mrb[0].mxu0
  %v4291 = vadd.f32 0.0, %v4290
  %v4292 = vpop.f32.mrb[0].mxu0
  %4293 = vmatprep.mubr.bf16.mxu0 0
  %4294 = vmatmul.mubr.bf16.gmra.mrb[0].mxu0 %v991
  %v4295 = vpop.f32.mrb[0].mxu0
  %v4296 = vadd.f32 0.0, %v4295
  %v4297 = vpop.f32.mrb[0].mxu0
  %v4298 = vpop.f32.mrb[0].mxu0
  %v4299 = vadd.f32 0.0, %v4298
  %v4300 = vpop.f32.mrb[0].mxu0
  %4301 = vmatprep.mubr.bf16.mxu0 0
  %4302 = vmatmul.mubr.bf16.gmra.mrb[0].mxu0 %v993
  %v4303 = vpop.f32.mrb[0].mxu0
  %v4304 = vadd.f32 0.0, %v4303
  %v4305 = vpop.f32.mrb[0].mxu0
  %v4306 = vpop.f32.mrb[0].mxu0
  %v4307 = vadd.f32 0.0, %v4306
  %v4308 = vpop.f32.mrb[0].mxu0
  %4309 = vmatprep.mubr.bf16.mxu0 0
  %4310 = vmatmul.mubr.bf16.gmra.mrb[0].mxu0 %v995
  %v4311 = vpop.f32.mrb[0].mxu0
  %v4312 = vadd.f32 0.0, %v4311
  %v4313 = vpop.f32.mrb[0].mxu0
  %v4314 = vpop.f32.mrb[0].mxu0
  %v4315 = vadd.f32 0.0, %v4314
  %v4316 = vpop.f32.mrb[0].mxu0
  %4317 = vmatprep.mubr.bf16.mxu0 0
  %4318 = vmatmul.mubr.bf16.gmra.mrb[0].mxu0 %v997
  %v4319 = vpop.f32.mrb[0].mxu0
  %v4320 = vadd.f32 0.0, %v4319
  %v4321 = vpop.f32.mrb[0].mxu0
  %v4322 = vpop.f32.mrb[0].mxu0
  %v4323 = vadd.f32 0.0, %v4322
  %v4324 = vpop.f32.mrb[0].mxu0
  %4325 = vmatprep.mubr.bf16.mxu0 0
  %4326 = vmatmul.mubr.bf16.gmra.mrb[0].mxu0 %v999
  %v4327 = vpop.f32.mrb[0].mxu0
  %v4328 = vadd.f32 0.0, %v4327
  %v4329 = vpop.f32.mrb[0].mxu0
  %v4330 = vpop.f32.mrb[0].mxu0
  %v4331 = vadd.f32 0.0, %v4330
  %v4332 = vpop.f32.mrb[0].mxu0
  %4333 = vmatprep.mubr.bf16.mxu0 0
  %4334 = vmatmul.mubr.bf16.gmra.mrb[0].mxu0 %v1001
  %v4335 = vpop.f32.mrb[0].mxu0
  %v4336 = vadd.f32 0.0, %v4335
  %v4337 = vpop.f32.mrb[0].mxu0
  %v4338 = vpop.f32.mrb[0].mxu0
  %v4339 = vadd.f32 0.0, %v4338
  %v4340 = vpop.f32.mrb[0].mxu0
  %4341 = vmatprep.mubr.bf16.mxu0 0
  %4342 = vmatmul.mubr.bf16.gmra.mrb[0].mxu0 %v1003
  %v4343 = vpop.f32.mrb[0].mxu0
  %v4344 = vadd.f32 0.0, %v4343
  %v4345 = vpop.f32.mrb[0].mxu0
  %v4346 = vpop.f32.mrb[0].mxu0
  %v4347 = vadd.f32 0.0, %v4346
  %v4348 = vpop.f32.mrb[0].mxu0
  %4349 = vmatprep.mubr.bf16.mxu0 0
  %4350 = vmatmul.mubr.bf16.gmra.mrb[0].mxu0 %v1005
  %v4351 = vpop.f32.mrb[0].mxu0
  %v4352 = vadd.f32 0.0, %v4351
  %v4353 = vpop.f32.mrb[0].mxu0
  %v4354 = vpop.f32.mrb[0].mxu0
  %v4355 = vadd.f32 0.0, %v4354
  %v4356 = vpop.f32.mrb[0].mxu0
  %4357 = vmatprep.mubr.bf16.mxu0 0
  %4358 = vmatmul.mubr.bf16.gmra.mrb[0].mxu0 %v1007
  %v4359 = vpop.f32.mrb[0].mxu0
  %v4360 = vadd.f32 0.0, %v4359
  %v4361 = vpop.f32.mrb[0].mxu0
  %v4362 = vpop.f32.mrb[0].mxu0
  %v4363 = vadd.f32 0.0, %v4362
  %v4364 = vpop.f32.mrb[0].mxu0
  %4365 = vmatprep.mubr.bf16.mxu0 0
  %4366 = vmatmul.mubr.bf16.gmra.mrb[0].mxu0 %v1009
  %v4367 = vpop.f32.mrb[0].mxu0
  %v4368 = vadd.f32 0.0, %v4367
  %v4369 = vpop.f32.mrb[0].mxu0
  %v4370 = vpop.f32.mrb[0].mxu0
  %v4371 = vadd.f32 0.0, %v4370
  %v4372 = vpop.f32.mrb[0].mxu0
  %4373 = vmatprep.mubr.bf16.mxu0 0
  %4374 = vmatmul.mubr.bf16.gmra.mrb[0].mxu0 %v1011
  %v4375 = vpop.f32.mrb[0].mxu0
  %v4376 = vadd.f32 0.0, %v4375
  %v4377 = vpop.f32.mrb[0].mxu0
  %v4378 = vpop.f32.mrb[0].mxu0
  %v4379 = vadd.f32 0.0, %v4378
  %v4380 = vpop.f32.mrb[0].mxu0
  %4381 = vmatprep.mubr.bf16.mxu0 0
  %4382 = vmatmul.mubr.bf16.gmra.mrb[0].mxu0 %v1013
  %v4383 = vpop.f32.mrb[0].mxu0
  %v4384 = vadd.f32 0.0, %v4383
  %v4385 = vpop.f32.mrb[0].mxu0
  %v4386 = vpop.f32.mrb[0].mxu0
  %v4387 = vadd.f32 0.0, %v4386
  %v4388 = vpop.f32.mrb[0].mxu0
  %4389 = vmatprep.mubr.bf16.mxu0 0
  %4390 = vmatmul.mubr.bf16.gmra.mrb[0].mxu0 %v1015
  %v4391 = vpop.f32.mrb[0].mxu0
  %v4392 = vadd.f32 0.0, %v4391
  %v4393 = vpop.f32.mrb[0].mxu0
  %v4394 = vpop.f32.mrb[0].mxu0
  %v4395 = vadd.f32 0.0, %v4394
  %v4396 = vpop.f32.mrb[0].mxu0
  %4397 = vdwg.mxu0
  %v4398 = vadd.f32 %v3980, %v4144
  %v4399 = vadd.f32 %v3981, %v4147
  %v4400 = vadd.f32 %v3982, %v4152
  %v4401 = vadd.f32 %v3983, %v4155
  %v4402 = vadd.f32 %v3984, %v4160
  %v4403 = vadd.f32 %v3985, %v4163
  %v4404 = vadd.f32 %v3986, %v4168
  %v4405 = vadd.f32 %v3987, %v4171
  %v4406 = vadd.f32 %v3988, %v4176
  %v4407 = vadd.f32 %v3989, %v4179
  %v4408 = vadd.f32 %v3990, %v4184
  %v4409 = vadd.f32 %v3991, %v4187
  %v4410 = vadd.f32 %v3992, %v4192
  %v4411 = vadd.f32 %v3993, %v4195
  %v4412 = vadd.f32 %v3994, %v4200
  %v4413 = vadd.f32 %v3995, %v4203
  %v4414 = vadd.f32 %v3996, %v4208
  %v4415 = vadd.f32 %v3997, %v4211
  %v4416 = vadd.f32 %v3998, %v4216
  %v4417 = vadd.f32 %v3999, %v4219
  %v4418 = vadd.f32 %v4000, %v4224
  %v4419 = vadd.f32 %v4001, %v4227
  %v4420 = vadd.f32 %v4002, %v4232
  %v4421 = vadd.f32 %v4003, %v4235
  %v4422 = vadd.f32 %v4004, %v4240
  %v4423 = vadd.f32 %v4005, %v4243
  %v4424 = vadd.f32 %v4006, %v4248
  %v4425 = vadd.f32 %v4007, %v4251
  %v4426 = vadd.f32 %v4008, %v4256
  %v4427 = vadd.f32 %v4009, %v4259
  %v4428 = vadd.f32 %v4010, %v4264
  %v4429 = vadd.f32 %v4011, %v4267
  %v4430 = vadd.f32 %v4012, %v4272
  %v4431 = vadd.f32 %v4013, %v4275
  %v4432 = vadd.f32 %v4014, %v4280
  %v4433 = vadd.f32 %v4015, %v4283
  %v4434 = vadd.f32 %v4016, %v4288
  %v4435 = vadd.f32 %v4017, %v4291
  %v4436 = vadd.f32 %v4018, %v4296
  %v4437 = vadd.f32 %v4019, %v4299
  %v4438 = vadd.f32 %v4020, %v4304
  %v4439 = vadd.f32 %v4021, %v4307
  %v4440 = vadd.f32 %v4022, %v4312
  %v4441 = vadd.f32 %v4023, %v4315
  %v4442 = vadd.f32 %v4024, %v4320
  %v4443 = vadd.f32 %v4025, %v4323
  %v4444 = vadd.f32 %v4026, %v4328
  %v4445 = vadd.f32 %v4027, %v4331
  %v4446 = vadd.f32 %v4028, %v4336
  %v4447 = vadd.f32 %v4029, %v4339
  %v4448 = vadd.f32 %v4030, %v4344
  %v4449 = vadd.f32 %v4031, %v4347
  %v4450 = vadd.f32 %v4032, %v4352
  %v4451 = vadd.f32 %v4033, %v4355
  %v4452 = vadd.f32 %v4034, %v4360
  %v4453 = vadd.f32 %v4035, %v4363
  %v4454 = vadd.f32 %v4036, %v4368
  %v4455 = vadd.f32 %v4037, %v4371
  %v4456 = vadd.f32 %v4038, %v4376
  %v4457 = vadd.f32 %v4039, %v4379
  %v4458 = vadd.f32 %v4040, %v4384
  %v4459 = vadd.f32 %v4041, %v4387
  %v4460 = vadd.f32 %v4042, %v4392
  %v4461 = vadd.f32 %v4043, %v4395
  %v4463 = vshrl.u32 %v979, 16
  %v4465 = vshll.u32 %v979, 16
  %v4467 = vrot.slane %v4465, 1
  %v4468 = vor.u32 %v4463, %v4467
  %v4470 = vshll.u32 %v980, 16
  %v4472 = vrot.slane %v4470, 1
  %v4473 = vsel %vm1033, %v4468, %v4472
  %v4475 = vshrl.u32 %v1015, 16
  %v4477 = vshll.u32 %v1015, 16
  %v4479 = vrot.slane %v4477, 1
  %v4480 = vor.u32 %v4475, %v4479
  %v4482 = vshll.u32 %v1016, 16
  %v4484 = vrot.slane %v4482, 1
  %v4485 = vsel %vm1033, %v4480, %v4484
  %s4488 = scalar_lea.vmem %s4, 448
  %v4489 = vld [vmem:[%s4488] sm:$0xf]
  %v4490 = vld [vmem:[%s4488 + $0x4] sm:$0xf]
  %v4491 = vld [vmem:[%s4488 + $0x8] sm:$0xf]
  %v4492 = vld [vmem:[%s4488 + $0xc] sm:$0xf]
  %v4493 = vld [vmem:[%s4488 + $0x10] sm:$0xf]
  %v4494 = vld [vmem:[%s4488 + $0x14] sm:$0xf]
  %v4495 = vld [vmem:[%s4488 + $0x18] sm:$0xf]
  %v4496 = vld [vmem:[%s4488 + $0x1c] sm:$0xf]
  %v4497 = vld [vmem:[%s4488 + $0x20] sm:$0xf]
  %v4498 = vld [vmem:[%s4488 + $0x24] sm:$0xf]
  %v4499 = vld [vmem:[%s4488 + $0x28] sm:$0xf]
  %v4500 = vld [vmem:[%s4488 + $0x2c] sm:$0xf]
  %v4501 = vld [vmem:[%s4488 + $0x30] sm:$0xf]
  %v4502 = vld [vmem:[%s4488 + $0x34] sm:$0xf]
  %v4503 = vld [vmem:[%s4488 + $0x38] sm:$0xf]
  %v4504 = vld [vmem:[%s4488 + $0x3c] sm:$0xf]
  %v4521 = vunpack.c.l.b16 %v4489
  %v4522 = vunpack.c.l.b16 %v4490
  %v4523 = vunpack.c.l.b16 %v4491
  %v4524 = vunpack.c.l.b16 %v4492
  %v4525 = vunpack.c.l.b16 %v4493
  %v4526 = vunpack.c.l.b16 %v4494
  %v4527 = vunpack.c.l.b16 %v4495
  %v4528 = vunpack.c.l.b16 %v4496
  %v4529 = vunpack.c.l.b16 %v4497
  %v4530 = vunpack.c.l.b16 %v4498
  %v4531 = vunpack.c.l.b16 %v4499
  %v4532 = vunpack.c.l.b16 %v4500
  %v4533 = vunpack.c.l.b16 %v4501
  %v4534 = vunpack.c.l.b16 %v4502
  %v4535 = vunpack.c.l.b16 %v4503
  %v4536 = vunpack.c.l.b16 %v4504
  %v4537 = vpack.c.b16 %v4522, %v4521
  %v4538 = vpack.c.b16 %v4524, %v4523
  %v4539 = vpack.c.b16 %v4526, %v4525
  %v4540 = vpack.c.b16 %v4528, %v4527
  %v4541 = vpack.c.b16 %v4530, %v4529
  %v4542 = vpack.c.b16 %v4532, %v4531
  %v4543 = vpack.c.b16 %v4534, %v4533
  %v4544 = vpack.c.b16 %v4536, %v4535
  %4553 = vmatprep.subr.bf16.mxu0 0
  %4554 = vmatpush1.bf16.msra.mxu0 %v4537
  %4555 = vmatprep.subr.bf16.mxu0 0
  %4556 = vmatpush1.bf16.msra.mxu0 %v4538
  %4557 = vmatprep.subr.bf16.mxu0 0
  %4558 = vmatpush1.bf16.msra.mxu0 %v4539
  %4559 = vmatprep.subr.bf16.mxu0 0
  %4560 = vmatpush1.bf16.msra.mxu0 %v4540
  %4561 = vmatprep.subr.bf16.mxu0 0
  %4562 = vmatpush1.bf16.msra.mxu0 %v4541
  %4563 = vmatprep.subr.bf16.mxu0 0
  %4564 = vmatpush1.bf16.msra.mxu0 %v4542
  %4565 = vmatprep.subr.bf16.mxu0 0
  %4566 = vmatpush1.bf16.msra.mxu0 %v4543
  %4567 = vmatprep.subr.bf16.mxu0 0
  %4568 = vmatpush1.bf16.msra.mxu0 %v4544
  %4569 = vmatprep.subr.bf16.mxu0 0
  %4570 = vmatpush1.bf16.msra.mxu0 0
  %4571 = vmatprep.subr.bf16.mxu0 0
  %4572 = vmatpush1.bf16.msra.mxu0 0
  %4573 = vmatprep.subr.bf16.mxu0 0
  %4574 = vmatpush1.bf16.msra.mxu0 0
  %4575 = vmatprep.subr.bf16.mxu0 0
  %4576 = vmatpush1.bf16.msra.mxu0 0
  %4577 = vmatprep.subr.bf16.mxu0 0
  %4578 = vmatpush1.bf16.msra.mxu0 0
  %4579 = vmatprep.subr.bf16.mxu0 0
  %4580 = vmatpush1.bf16.msra.mxu0 0
  %4581 = vmatprep.subr.bf16.mxu0 0
  %4582 = vmatpush1.bf16.msra.mxu0 0
  %4583 = vmatprep.subr.bf16.mxu0 0
  %4584 = vmatpush1.bf16.msra.mxu0 0
  %4585 = vmatprep.mubr.bf16.mxu0 0
  %4586 = vmatmul.mubr.bf16.gmra.mrb[0].mxu0 %v1069
  %v4587 = vpop.f32.mrb[0].mxu0
  %v4588 = vadd.f32 0.0, %v4587
  %v4589 = vpop.f32.mrb[0].mxu0
  %v4590 = vpop.f32.mrb[0].mxu0
  %v4591 = vadd.f32 0.0, %v4590
  %v4592 = vpop.f32.mrb[0].mxu0
  %4593 = vmatprep.mubr.bf16.mxu0 0
  %4594 = vmatmul.mubr.bf16.gmra.mrb[0].mxu0 %v1081
  %v4595 = vpop.f32.mrb[0].mxu0
  %v4596 = vadd.f32 0.0, %v4595
  %v4597 = vpop.f32.mrb[0].mxu0
  %v4598 = vpop.f32.mrb[0].mxu0
  %v4599 = vadd.f32 0.0, %v4598
  %v4600 = vpop.f32.mrb[0].mxu0
  %4601 = vmatprep.mubr.bf16.mxu0 0
  %4602 = vmatmul.mubr.bf16.gmra.mrb[0].mxu0 %v1093
  %v4603 = vpop.f32.mrb[0].mxu0
  %v4604 = vadd.f32 0.0, %v4603
  %v4605 = vpop.f32.mrb[0].mxu0
  %v4606 = vpop.f32.mrb[0].mxu0
  %v4607 = vadd.f32 0.0, %v4606
  %v4608 = vpop.f32.mrb[0].mxu0
  %4609 = vmatprep.mubr.bf16.mxu0 0
  %4610 = vmatmul.mubr.bf16.gmra.mrb[0].mxu0 %v1105
  %v4611 = vpop.f32.mrb[0].mxu0
  %v4612 = vadd.f32 0.0, %v4611
  %v4613 = vpop.f32.mrb[0].mxu0
  %v4614 = vpop.f32.mrb[0].mxu0
  %v4615 = vadd.f32 0.0, %v4614
  %v4616 = vpop.f32.mrb[0].mxu0
  %4617 = vmatprep.mubr.bf16.mxu0 0
  %4618 = vmatmul.mubr.bf16.gmra.mrb[0].mxu0 %v1117
  %v4619 = vpop.f32.mrb[0].mxu0
  %v4620 = vadd.f32 0.0, %v4619
  %v4621 = vpop.f32.mrb[0].mxu0
  %v4622 = vpop.f32.mrb[0].mxu0
  %v4623 = vadd.f32 0.0, %v4622
  %v4624 = vpop.f32.mrb[0].mxu0
  %4625 = vmatprep.mubr.bf16.mxu0 0
  %4626 = vmatmul.mubr.bf16.gmra.mrb[0].mxu0 %v1129
  %v4627 = vpop.f32.mrb[0].mxu0
  %v4628 = vadd.f32 0.0, %v4627
  %v4629 = vpop.f32.mrb[0].mxu0
  %v4630 = vpop.f32.mrb[0].mxu0
  %v4631 = vadd.f32 0.0, %v4630
  %v4632 = vpop.f32.mrb[0].mxu0
  %4633 = vmatprep.mubr.bf16.mxu0 0
  %4634 = vmatmul.mubr.bf16.gmra.mrb[0].mxu0 %v1141
  %v4635 = vpop.f32.mrb[0].mxu0
  %v4636 = vadd.f32 0.0, %v4635
  %v4637 = vpop.f32.mrb[0].mxu0
  %v4638 = vpop.f32.mrb[0].mxu0
  %v4639 = vadd.f32 0.0, %v4638
  %v4640 = vpop.f32.mrb[0].mxu0
  %4641 = vmatprep.mubr.bf16.mxu0 0
  %4642 = vmatmul.mubr.bf16.gmra.mrb[0].mxu0 %v1153
  %v4643 = vpop.f32.mrb[0].mxu0
  %v4644 = vadd.f32 0.0, %v4643
  %v4645 = vpop.f32.mrb[0].mxu0
  %v4646 = vpop.f32.mrb[0].mxu0
  %v4647 = vadd.f32 0.0, %v4646
  %v4648 = vpop.f32.mrb[0].mxu0
  %4649 = vmatprep.mubr.bf16.mxu0 0
  %4650 = vmatmul.mubr.bf16.gmra.mrb[0].mxu0 %v1165
  %v4651 = vpop.f32.mrb[0].mxu0
  %v4652 = vadd.f32 0.0, %v4651
  %v4653 = vpop.f32.mrb[0].mxu0
  %v4654 = vpop.f32.mrb[0].mxu0
  %v4655 = vadd.f32 0.0, %v4654
  %v4656 = vpop.f32.mrb[0].mxu0
  %4657 = vmatprep.mubr.bf16.mxu0 0
  %4658 = vmatmul.mubr.bf16.gmra.mrb[0].mxu0 %v1177
  %v4659 = vpop.f32.mrb[0].mxu0
  %v4660 = vadd.f32 0.0, %v4659
  %v4661 = vpop.f32.mrb[0].mxu0
  %v4662 = vpop.f32.mrb[0].mxu0
  %v4663 = vadd.f32 0.0, %v4662
  %v4664 = vpop.f32.mrb[0].mxu0
  %4665 = vmatprep.mubr.bf16.mxu0 0
  %4666 = vmatmul.mubr.bf16.gmra.mrb[0].mxu0 %v1189
  %v4667 = vpop.f32.mrb[0].mxu0
  %v4668 = vadd.f32 0.0, %v4667
  %v4669 = vpop.f32.mrb[0].mxu0
  %v4670 = vpop.f32.mrb[0].mxu0
  %v4671 = vadd.f32 0.0, %v4670
  %v4672 = vpop.f32.mrb[0].mxu0
  %4673 = vmatprep.mubr.bf16.mxu0 0
  %4674 = vmatmul.mubr.bf16.gmra.mrb[0].mxu0 %v1201
  %v4675 = vpop.f32.mrb[0].mxu0
  %v4676 = vadd.f32 0.0, %v4675
  %v4677 = vpop.f32.mrb[0].mxu0
  %v4678 = vpop.f32.mrb[0].mxu0
  %v4679 = vadd.f32 0.0, %v4678
  %v4680 = vpop.f32.mrb[0].mxu0
  %4681 = vmatprep.mubr.bf16.mxu0 0
  %4682 = vmatmul.mubr.bf16.gmra.mrb[0].mxu0 %v1213
  %v4683 = vpop.f32.mrb[0].mxu0
  %v4684 = vadd.f32 0.0, %v4683
  %v4685 = vpop.f32.mrb[0].mxu0
  %v4686 = vpop.f32.mrb[0].mxu0
  %v4687 = vadd.f32 0.0, %v4686
  %v4688 = vpop.f32.mrb[0].mxu0
  %4689 = vmatprep.mubr.bf16.mxu0 0
  %4690 = vmatmul.mubr.bf16.gmra.mrb[0].mxu0 %v1225
  %v4691 = vpop.f32.mrb[0].mxu0
  %v4692 = vadd.f32 0.0, %v4691
  %v4693 = vpop.f32.mrb[0].mxu0
  %v4694 = vpop.f32.mrb[0].mxu0
  %v4695 = vadd.f32 0.0, %v4694
  %v4696 = vpop.f32.mrb[0].mxu0
  %4697 = vmatprep.mubr.bf16.mxu0 0
  %4698 = vmatmul.mubr.bf16.gmra.mrb[0].mxu0 %v3181
  %v4699 = vpop.f32.mrb[0].mxu0
  %v4700 = vadd.f32 0.0, %v4699
  %v4701 = vpop.f32.mrb[0].mxu0
  %v4702 = vpop.f32.mrb[0].mxu0
  %v4703 = vadd.f32 0.0, %v4702
  %v4704 = vpop.f32.mrb[0].mxu0
  %4705 = vmatprep.mubr.bf16.mxu0 0
  %4706 = vmatmul.mubr.bf16.gmra.mrb[0].mxu0 %v4473
  %v4707 = vpop.f32.mrb[0].mxu0
  %v4708 = vadd.f32 0.0, %v4707
  %v4709 = vpop.f32.mrb[0].mxu0
  %v4710 = vpop.f32.mrb[0].mxu0
  %v4711 = vadd.f32 0.0, %v4710
  %v4712 = vpop.f32.mrb[0].mxu0
  %4713 = vmatprep.mubr.bf16.mxu0 0
  %4714 = vmatmul.mubr.bf16.gmra.mrb[0].mxu0 %v1261
  %v4715 = vpop.f32.mrb[0].mxu0
  %v4716 = vadd.f32 0.0, %v4715
  %v4717 = vpop.f32.mrb[0].mxu0
  %v4718 = vpop.f32.mrb[0].mxu0
  %v4719 = vadd.f32 0.0, %v4718
  %v4720 = vpop.f32.mrb[0].mxu0
  %4721 = vmatprep.mubr.bf16.mxu0 0
  %4722 = vmatmul.mubr.bf16.gmra.mrb[0].mxu0 %v1273
  %v4723 = vpop.f32.mrb[0].mxu0
  %v4724 = vadd.f32 0.0, %v4723
  %v4725 = vpop.f32.mrb[0].mxu0
  %v4726 = vpop.f32.mrb[0].mxu0
  %v4727 = vadd.f32 0.0, %v4726
  %v4728 = vpop.f32.mrb[0].mxu0
  %4729 = vmatprep.mubr.bf16.mxu0 0
  %4730 = vmatmul.mubr.bf16.gmra.mrb[0].mxu0 %v1285
  %v4731 = vpop.f32.mrb[0].mxu0
  %v4732 = vadd.f32 0.0, %v4731
  %v4733 = vpop.f32.mrb[0].mxu0
  %v4734 = vpop.f32.mrb[0].mxu0
  %v4735 = vadd.f32 0.0, %v4734
  %v4736 = vpop.f32.mrb[0].mxu0
  %4737 = vmatprep.mubr.bf16.mxu0 0
  %4738 = vmatmul.mubr.bf16.gmra.mrb[0].mxu0 %v1297
  %v4739 = vpop.f32.mrb[0].mxu0
  %v4740 = vadd.f32 0.0, %v4739
  %v4741 = vpop.f32.mrb[0].mxu0
  %v4742 = vpop.f32.mrb[0].mxu0
  %v4743 = vadd.f32 0.0, %v4742
  %v4744 = vpop.f32.mrb[0].mxu0
  %4745 = vmatprep.mubr.bf16.mxu0 0
  %4746 = vmatmul.mubr.bf16.gmra.mrb[0].mxu0 %v1309
  %v4747 = vpop.f32.mrb[0].mxu0
  %v4748 = vadd.f32 0.0, %v4747
  %v4749 = vpop.f32.mrb[0].mxu0
  %v4750 = vpop.f32.mrb[0].mxu0
  %v4751 = vadd.f32 0.0, %v4750
  %v4752 = vpop.f32.mrb[0].mxu0
  %4753 = vmatprep.mubr.bf16.mxu0 0
  %4754 = vmatmul.mubr.bf16.gmra.mrb[0].mxu0 %v1321
  %v4755 = vpop.f32.mrb[0].mxu0
  %v4756 = vadd.f32 0.0, %v4755
  %v4757 = vpop.f32.mrb[0].mxu0
  %v4758 = vpop.f32.mrb[0].mxu0
  %v4759 = vadd.f32 0.0, %v4758
  %v4760 = vpop.f32.mrb[0].mxu0
  %4761 = vmatprep.mubr.bf16.mxu0 0
  %4762 = vmatmul.mubr.bf16.gmra.mrb[0].mxu0 %v1333
  %v4763 = vpop.f32.mrb[0].mxu0
  %v4764 = vadd.f32 0.0, %v4763
  %v4765 = vpop.f32.mrb[0].mxu0
  %v4766 = vpop.f32.mrb[0].mxu0
  %v4767 = vadd.f32 0.0, %v4766
  %v4768 = vpop.f32.mrb[0].mxu0
  %4769 = vmatprep.mubr.bf16.mxu0 0
  %4770 = vmatmul.mubr.bf16.gmra.mrb[0].mxu0 %v1345
  %v4771 = vpop.f32.mrb[0].mxu0
  %v4772 = vadd.f32 0.0, %v4771
  %v4773 = vpop.f32.mrb[0].mxu0
  %v4774 = vpop.f32.mrb[0].mxu0
  %v4775 = vadd.f32 0.0, %v4774
  %v4776 = vpop.f32.mrb[0].mxu0
  %4777 = vmatprep.mubr.bf16.mxu0 0
  %4778 = vmatmul.mubr.bf16.gmra.mrb[0].mxu0 %v1357
  %v4779 = vpop.f32.mrb[0].mxu0
  %v4780 = vadd.f32 0.0, %v4779
  %v4781 = vpop.f32.mrb[0].mxu0
  %v4782 = vpop.f32.mrb[0].mxu0
  %v4783 = vadd.f32 0.0, %v4782
  %v4784 = vpop.f32.mrb[0].mxu0
  %4785 = vmatprep.mubr.bf16.mxu0 0
  %4786 = vmatmul.mubr.bf16.gmra.mrb[0].mxu0 %v1369
  %v4787 = vpop.f32.mrb[0].mxu0
  %v4788 = vadd.f32 0.0, %v4787
  %v4789 = vpop.f32.mrb[0].mxu0
  %v4790 = vpop.f32.mrb[0].mxu0
  %v4791 = vadd.f32 0.0, %v4790
  %v4792 = vpop.f32.mrb[0].mxu0
  %4793 = vmatprep.mubr.bf16.mxu0 0
  %4794 = vmatmul.mubr.bf16.gmra.mrb[0].mxu0 %v1381
  %v4795 = vpop.f32.mrb[0].mxu0
  %v4796 = vadd.f32 0.0, %v4795
  %v4797 = vpop.f32.mrb[0].mxu0
  %v4798 = vpop.f32.mrb[0].mxu0
  %v4799 = vadd.f32 0.0, %v4798
  %v4800 = vpop.f32.mrb[0].mxu0
  %4801 = vmatprep.mubr.bf16.mxu0 0
  %4802 = vmatmul.mubr.bf16.gmra.mrb[0].mxu0 %v1393
  %v4803 = vpop.f32.mrb[0].mxu0
  %v4804 = vadd.f32 0.0, %v4803
  %v4805 = vpop.f32.mrb[0].mxu0
  %v4806 = vpop.f32.mrb[0].mxu0
  %v4807 = vadd.f32 0.0, %v4806
  %v4808 = vpop.f32.mrb[0].mxu0
  %4809 = vmatprep.mubr.bf16.mxu0 0
  %4810 = vmatmul.mubr.bf16.gmra.mrb[0].mxu0 %v1405
  %v4811 = vpop.f32.mrb[0].mxu0
  %v4812 = vadd.f32 0.0, %v4811
  %v4813 = vpop.f32.mrb[0].mxu0
  %v4814 = vpop.f32.mrb[0].mxu0
  %v4815 = vadd.f32 0.0, %v4814
  %v4816 = vpop.f32.mrb[0].mxu0
  %4817 = vmatprep.mubr.bf16.mxu0 0
  %4818 = vmatmul.mubr.bf16.gmra.mrb[0].mxu0 %v1417
  %v4819 = vpop.f32.mrb[0].mxu0
  %v4820 = vadd.f32 0.0, %v4819
  %v4821 = vpop.f32.mrb[0].mxu0
  %v4822 = vpop.f32.mrb[0].mxu0
  %v4823 = vadd.f32 0.0, %v4822
  %v4824 = vpop.f32.mrb[0].mxu0
  %4825 = vmatprep.mubr.bf16.mxu0 0
  %4826 = vmatmul.mubr.bf16.gmra.mrb[0].mxu0 %v3193
  %v4827 = vpop.f32.mrb[0].mxu0
  %v4828 = vadd.f32 0.0, %v4827
  %v4829 = vpop.f32.mrb[0].mxu0
  %v4830 = vpop.f32.mrb[0].mxu0
  %v4831 = vadd.f32 0.0, %v4830
  %v4832 = vpop.f32.mrb[0].mxu0
  %4833 = vmatprep.mubr.bf16.mxu0 0
  %4834 = vmatmul.mubr.bf16.gmra.mrb[0].mxu0 %v4485
  %v4835 = vpop.f32.mrb[0].mxu0
  %v4836 = vadd.f32 0.0, %v4835
  %v4837 = vpop.f32.mrb[0].mxu0
  %v4838 = vpop.f32.mrb[0].mxu0
  %v4839 = vadd.f32 0.0, %v4838
  %v4840 = vpop.f32.mrb[0].mxu0
  %4841 = vdwg.mxu0
  %v4842 = vadd.f32 %v4398, %v4588
  %v4843 = vadd.f32 %v4399, %v4591
  %v4844 = vadd.f32 %v4400, %v4596
  %v4845 = vadd.f32 %v4401, %v4599
  %v4846 = vadd.f32 %v4402, %v4604
  %v4847 = vadd.f32 %v4403, %v4607
  %v4848 = vadd.f32 %v4404, %v4612
  %v4849 = vadd.f32 %v4405, %v4615
  %v4850 = vadd.f32 %v4406, %v4620
  %v4851 = vadd.f32 %v4407, %v4623
  %v4852 = vadd.f32 %v4408, %v4628
  %v4853 = vadd.f32 %v4409, %v4631
  %v4854 = vadd.f32 %v4410, %v4636
  %v4855 = vadd.f32 %v4411, %v4639
  %v4856 = vadd.f32 %v4412, %v4644
  %v4857 = vadd.f32 %v4413, %v4647
  %v4858 = vadd.f32 %v4414, %v4652
  %v4859 = vadd.f32 %v4415, %v4655
  %v4860 = vadd.f32 %v4416, %v4660
  %v4861 = vadd.f32 %v4417, %v4663
  %v4862 = vadd.f32 %v4418, %v4668
  %v4863 = vadd.f32 %v4419, %v4671
  %v4864 = vadd.f32 %v4420, %v4676
  %v4865 = vadd.f32 %v4421, %v4679
  %v4866 = vadd.f32 %v4422, %v4684
  %v4867 = vadd.f32 %v4423, %v4687
  %v4868 = vadd.f32 %v4424, %v4692
  %v4869 = vadd.f32 %v4425, %v4695
  %v4870 = vadd.f32 %v4426, %v4700
  %v4871 = vadd.f32 %v4427, %v4703
  %v4872 = vadd.f32 %v4428, %v4708
  %v4873 = vadd.f32 %v4429, %v4711
  %v4874 = vadd.f32 %v4430, %v4716
  %v4875 = vadd.f32 %v4431, %v4719
  %v4876 = vadd.f32 %v4432, %v4724
  %v4877 = vadd.f32 %v4433, %v4727
  %v4878 = vadd.f32 %v4434, %v4732
  %v4879 = vadd.f32 %v4435, %v4735
  %v4880 = vadd.f32 %v4436, %v4740
  %v4881 = vadd.f32 %v4437, %v4743
  %v4882 = vadd.f32 %v4438, %v4748
  %v4883 = vadd.f32 %v4439, %v4751
  %v4884 = vadd.f32 %v4440, %v4756
  %v4885 = vadd.f32 %v4441, %v4759
  %v4886 = vadd.f32 %v4442, %v4764
  %v4887 = vadd.f32 %v4443, %v4767
  %v4888 = vadd.f32 %v4444, %v4772
  %v4889 = vadd.f32 %v4445, %v4775
  %v4890 = vadd.f32 %v4446, %v4780
  %v4891 = vadd.f32 %v4447, %v4783
  %v4892 = vadd.f32 %v4448, %v4788
  %v4893 = vadd.f32 %v4449, %v4791
  %v4894 = vadd.f32 %v4450, %v4796
  %v4895 = vadd.f32 %v4451, %v4799
  %v4896 = vadd.f32 %v4452, %v4804
  %v4897 = vadd.f32 %v4453, %v4807
  %v4898 = vadd.f32 %v4454, %v4812
  %v4899 = vadd.f32 %v4455, %v4815
  %v4900 = vadd.f32 %v4456, %v4820
  %v4901 = vadd.f32 %v4457, %v4823
  %v4902 = vadd.f32 %v4458, %v4828
  %v4903 = vadd.f32 %v4459, %v4831
  %v4904 = vadd.f32 %v4460, %v4836
  %v4905 = vadd.f32 %v4461, %v4839
  %v4910 = vrot.slane %v979, 1
  %v4911 = vrot.slane %v980, 1
  %v4912 = vsel %vm2205, %v4910, %v4911
  %v4913 = vrot.slane %v1015, 1
  %v4914 = vrot.slane %v1016, 1
  %v4915 = vsel %vm2205, %v4913, %v4914
  %s4918 = scalar_lea.vmem %s4, 512
  %v4919 = vld [vmem:[%s4918] sm:$0xf]
  %v4920 = vld [vmem:[%s4918 + $0x4] sm:$0xf]
  %v4921 = vld [vmem:[%s4918 + $0x8] sm:$0xf]
  %v4922 = vld [vmem:[%s4918 + $0xc] sm:$0xf]
  %v4923 = vld [vmem:[%s4918 + $0x10] sm:$0xf]
  %v4924 = vld [vmem:[%s4918 + $0x14] sm:$0xf]
  %v4925 = vld [vmem:[%s4918 + $0x18] sm:$0xf]
  %v4926 = vld [vmem:[%s4918 + $0x1c] sm:$0xf]
  %v4927 = vld [vmem:[%s4918 + $0x20] sm:$0xf]
  %v4928 = vld [vmem:[%s4918 + $0x24] sm:$0xf]
  %v4929 = vld [vmem:[%s4918 + $0x28] sm:$0xf]
  %v4930 = vld [vmem:[%s4918 + $0x2c] sm:$0xf]
  %v4931 = vld [vmem:[%s4918 + $0x30] sm:$0xf]
  %v4932 = vld [vmem:[%s4918 + $0x34] sm:$0xf]
  %v4933 = vld [vmem:[%s4918 + $0x38] sm:$0xf]
  %v4934 = vld [vmem:[%s4918 + $0x3c] sm:$0xf]
  %v4951 = vunpack.c.l.b16 %v4919
  %v4952 = vunpack.c.l.b16 %v4920
  %v4953 = vunpack.c.l.b16 %v4921
  %v4954 = vunpack.c.l.b16 %v4922
  %v4955 = vunpack.c.l.b16 %v4923
  %v4956 = vunpack.c.l.b16 %v4924
  %v4957 = vunpack.c.l.b16 %v4925
  %v4958 = vunpack.c.l.b16 %v4926
  %v4959 = vunpack.c.l.b16 %v4927
  %v4960 = vunpack.c.l.b16 %v4928
  %v4961 = vunpack.c.l.b16 %v4929
  %v4962 = vunpack.c.l.b16 %v4930
  %v4963 = vunpack.c.l.b16 %v4931
  %v4964 = vunpack.c.l.b16 %v4932
  %v4965 = vunpack.c.l.b16 %v4933
  %v4966 = vunpack.c.l.b16 %v4934
  %v4967 = vpack.c.b16 %v4952, %v4951
  %v4968 = vpack.c.b16 %v4954, %v4953
  %v4969 = vpack.c.b16 %v4956, %v4955
  %v4970 = vpack.c.b16 %v4958, %v4957
  %v4971 = vpack.c.b16 %v4960, %v4959
  %v4972 = vpack.c.b16 %v4962, %v4961
  %v4973 = vpack.c.b16 %v4964, %v4963
  %v4974 = vpack.c.b16 %v4966, %v4965
  %4983 = vmatprep.subr.bf16.mxu0 0
  %4984 = vmatpush1.bf16.msra.mxu0 %v4967
  %4985 = vmatprep.subr.bf16.mxu0 0
  %4986 = vmatpush1.bf16.msra.mxu0 %v4968
  %4987 = vmatprep.subr.bf16.mxu0 0
  %4988 = vmatpush1.bf16.msra.mxu0 %v4969
  %4989 = vmatprep.subr.bf16.mxu0 0
  %4990 = vmatpush1.bf16.msra.mxu0 %v4970
  %4991 = vmatprep.subr.bf16.mxu0 0
  %4992 = vmatpush1.bf16.msra.mxu0 %v4971
  %4993 = vmatprep.subr.bf16.mxu0 0
  %4994 = vmatpush1.bf16.msra.mxu0 %v4972
  %4995 = vmatprep.subr.bf16.mxu0 0
  %4996 = vmatpush1.bf16.msra.mxu0 %v4973
  %4997 = vmatprep.subr.bf16.mxu0 0
  %4998 = vmatpush1.bf16.msra.mxu0 %v4974
  %4999 = vmatprep.subr.bf16.mxu0 0
  %5000 = vmatpush1.bf16.msra.mxu0 0
  %5001 = vmatprep.subr.bf16.mxu0 0
  %5002 = vmatpush1.bf16.msra.mxu0 0
  %5003 = vmatprep.subr.bf16.mxu0 0
  %5004 = vmatpush1.bf16.msra.mxu0 0
  %5005 = vmatprep.subr.bf16.mxu0 0
  %5006 = vmatpush1.bf16.msra.mxu0 0
  %5007 = vmatprep.subr.bf16.mxu0 0
  %5008 = vmatpush1.bf16.msra.mxu0 0
  %5009 = vmatprep.subr.bf16.mxu0 0
  %5010 = vmatpush1.bf16.msra.mxu0 0
  %5011 = vmatprep.subr.bf16.mxu0 0
  %5012 = vmatpush1.bf16.msra.mxu0 0
  %5013 = vmatprep.subr.bf16.mxu0 0
  %5014 = vmatpush1.bf16.msra.mxu0 0
  %5015 = vmatprep.mubr.bf16.mxu0 0
  %5016 = vmatmul.mubr.bf16.gmra.mrb[0].mxu0 %v2214
  %v5017 = vpop.f32.mrb[0].mxu0
  %v5018 = vadd.f32 0.0, %v5017
  %v5019 = vpop.f32.mrb[0].mxu0
  %v5020 = vpop.f32.mrb[0].mxu0
  %v5021 = vadd.f32 0.0, %v5020
  %v5022 = vpop.f32.mrb[0].mxu0
  %5023 = vmatprep.mubr.bf16.mxu0 0
  %5024 = vmatmul.mubr.bf16.gmra.mrb[0].mxu0 %v2217
  %v5025 = vpop.f32.mrb[0].mxu0
  %v5026 = vadd.f32 0.0, %v5025
  %v5027 = vpop.f32.mrb[0].mxu0
  %v5028 = vpop.f32.mrb[0].mxu0
  %v5029 = vadd.f32 0.0, %v5028
  %v5030 = vpop.f32.mrb[0].mxu0
  %5031 = vmatprep.mubr.bf16.mxu0 0
  %5032 = vmatmul.mubr.bf16.gmra.mrb[0].mxu0 %v2220
  %v5033 = vpop.f32.mrb[0].mxu0
  %v5034 = vadd.f32 0.0, %v5033
  %v5035 = vpop.f32.mrb[0].mxu0
  %v5036 = vpop.f32.mrb[0].mxu0
  %v5037 = vadd.f32 0.0, %v5036
  %v5038 = vpop.f32.mrb[0].mxu0
  %5039 = vmatprep.mubr.bf16.mxu0 0
  %5040 = vmatmul.mubr.bf16.gmra.mrb[0].mxu0 %v2223
  %v5041 = vpop.f32.mrb[0].mxu0
  %v5042 = vadd.f32 0.0, %v5041
  %v5043 = vpop.f32.mrb[0].mxu0
  %v5044 = vpop.f32.mrb[0].mxu0
  %v5045 = vadd.f32 0.0, %v5044
  %v5046 = vpop.f32.mrb[0].mxu0
  %5047 = vmatprep.mubr.bf16.mxu0 0
  %5048 = vmatmul.mubr.bf16.gmra.mrb[0].mxu0 %v2226
  %v5049 = vpop.f32.mrb[0].mxu0
  %v5050 = vadd.f32 0.0, %v5049
  %v5051 = vpop.f32.mrb[0].mxu0
  %v5052 = vpop.f32.mrb[0].mxu0
  %v5053 = vadd.f32 0.0, %v5052
  %v5054 = vpop.f32.mrb[0].mxu0
  %5055 = vmatprep.mubr.bf16.mxu0 0
  %5056 = vmatmul.mubr.bf16.gmra.mrb[0].mxu0 %v2229
  %v5057 = vpop.f32.mrb[0].mxu0
  %v5058 = vadd.f32 0.0, %v5057
  %v5059 = vpop.f32.mrb[0].mxu0
  %v5060 = vpop.f32.mrb[0].mxu0
  %v5061 = vadd.f32 0.0, %v5060
  %v5062 = vpop.f32.mrb[0].mxu0
  %5063 = vmatprep.mubr.bf16.mxu0 0
  %5064 = vmatmul.mubr.bf16.gmra.mrb[0].mxu0 %v2232
  %v5065 = vpop.f32.mrb[0].mxu0
  %v5066 = vadd.f32 0.0, %v5065
  %v5067 = vpop.f32.mrb[0].mxu0
  %v5068 = vpop.f32.mrb[0].mxu0
  %v5069 = vadd.f32 0.0, %v5068
  %v5070 = vpop.f32.mrb[0].mxu0
  %5071 = vmatprep.mubr.bf16.mxu0 0
  %5072 = vmatmul.mubr.bf16.gmra.mrb[0].mxu0 %v2235
  %v5073 = vpop.f32.mrb[0].mxu0
  %v5074 = vadd.f32 0.0, %v5073
  %v5075 = vpop.f32.mrb[0].mxu0
  %v5076 = vpop.f32.mrb[0].mxu0
  %v5077 = vadd.f32 0.0, %v5076
  %v5078 = vpop.f32.mrb[0].mxu0
  %5079 = vmatprep.mubr.bf16.mxu0 0
  %5080 = vmatmul.mubr.bf16.gmra.mrb[0].mxu0 %v2238
  %v5081 = vpop.f32.mrb[0].mxu0
  %v5082 = vadd.f32 0.0, %v5081
  %v5083 = vpop.f32.mrb[0].mxu0
  %v5084 = vpop.f32.mrb[0].mxu0
  %v5085 = vadd.f32 0.0, %v5084
  %v5086 = vpop.f32.mrb[0].mxu0
  %5087 = vmatprep.mubr.bf16.mxu0 0
  %5088 = vmatmul.mubr.bf16.gmra.mrb[0].mxu0 %v2241
  %v5089 = vpop.f32.mrb[0].mxu0
  %v5090 = vadd.f32 0.0, %v5089
  %v5091 = vpop.f32.mrb[0].mxu0
  %v5092 = vpop.f32.mrb[0].mxu0
  %v5093 = vadd.f32 0.0, %v5092
  %v5094 = vpop.f32.mrb[0].mxu0
  %5095 = vmatprep.mubr.bf16.mxu0 0
  %5096 = vmatmul.mubr.bf16.gmra.mrb[0].mxu0 %v2244
  %v5097 = vpop.f32.mrb[0].mxu0
  %v5098 = vadd.f32 0.0, %v5097
  %v5099 = vpop.f32.mrb[0].mxu0
  %v5100 = vpop.f32.mrb[0].mxu0
  %v5101 = vadd.f32 0.0, %v5100
  %v5102 = vpop.f32.mrb[0].mxu0
  %5103 = vmatprep.mubr.bf16.mxu0 0
  %5104 = vmatmul.mubr.bf16.gmra.mrb[0].mxu0 %v2247
  %v5105 = vpop.f32.mrb[0].mxu0
  %v5106 = vadd.f32 0.0, %v5105
  %v5107 = vpop.f32.mrb[0].mxu0
  %v5108 = vpop.f32.mrb[0].mxu0
  %v5109 = vadd.f32 0.0, %v5108
  %v5110 = vpop.f32.mrb[0].mxu0
  %5111 = vmatprep.mubr.bf16.mxu0 0
  %5112 = vmatmul.mubr.bf16.gmra.mrb[0].mxu0 %v2250
  %v5113 = vpop.f32.mrb[0].mxu0
  %v5114 = vadd.f32 0.0, %v5113
  %v5115 = vpop.f32.mrb[0].mxu0
  %v5116 = vpop.f32.mrb[0].mxu0
  %v5117 = vadd.f32 0.0, %v5116
  %v5118 = vpop.f32.mrb[0].mxu0
  %5119 = vmatprep.mubr.bf16.mxu0 0
  %5120 = vmatmul.mubr.bf16.gmra.mrb[0].mxu0 %v2253
  %v5121 = vpop.f32.mrb[0].mxu0
  %v5122 = vadd.f32 0.0, %v5121
  %v5123 = vpop.f32.mrb[0].mxu0
  %v5124 = vpop.f32.mrb[0].mxu0
  %v5125 = vadd.f32 0.0, %v5124
  %v5126 = vpop.f32.mrb[0].mxu0
  %5127 = vmatprep.mubr.bf16.mxu0 0
  %5128 = vmatmul.mubr.bf16.gmra.mrb[0].mxu0 %v3620
  %v5129 = vpop.f32.mrb[0].mxu0
  %v5130 = vadd.f32 0.0, %v5129
  %v5131 = vpop.f32.mrb[0].mxu0
  %v5132 = vpop.f32.mrb[0].mxu0
  %v5133 = vadd.f32 0.0, %v5132
  %v5134 = vpop.f32.mrb[0].mxu0
  %5135 = vmatprep.mubr.bf16.mxu0 0
  %5136 = vmatmul.mubr.bf16.gmra.mrb[0].mxu0 %v4912
  %v5137 = vpop.f32.mrb[0].mxu0
  %v5138 = vadd.f32 0.0, %v5137
  %v5139 = vpop.f32.mrb[0].mxu0
  %v5140 = vpop.f32.mrb[0].mxu0
  %v5141 = vadd.f32 0.0, %v5140
  %v5142 = vpop.f32.mrb[0].mxu0
  %5143 = vmatprep.mubr.bf16.mxu0 0
  %5144 = vmatmul.mubr.bf16.gmra.mrb[0].mxu0 %v2262
  %v5145 = vpop.f32.mrb[0].mxu0
  %v5146 = vadd.f32 0.0, %v5145
  %v5147 = vpop.f32.mrb[0].mxu0
  %v5148 = vpop.f32.mrb[0].mxu0
  %v5149 = vadd.f32 0.0, %v5148
  %v5150 = vpop.f32.mrb[0].mxu0
  %5151 = vmatprep.mubr.bf16.mxu0 0
  %5152 = vmatmul.mubr.bf16.gmra.mrb[0].mxu0 %v2265
  %v5153 = vpop.f32.mrb[0].mxu0
  %v5154 = vadd.f32 0.0, %v5153
  %v5155 = vpop.f32.mrb[0].mxu0
  %v5156 = vpop.f32.mrb[0].mxu0
  %v5157 = vadd.f32 0.0, %v5156
  %v5158 = vpop.f32.mrb[0].mxu0
  %5159 = vmatprep.mubr.bf16.mxu0 0
  %5160 = vmatmul.mubr.bf16.gmra.mrb[0].mxu0 %v2268
  %v5161 = vpop.f32.mrb[0].mxu0
  %v5162 = vadd.f32 0.0, %v5161
  %v5163 = vpop.f32.mrb[0].mxu0
  %v5164 = vpop.f32.mrb[0].mxu0
  %v5165 = vadd.f32 0.0, %v5164
  %v5166 = vpop.f32.mrb[0].mxu0
  %5167 = vmatprep.mubr.bf16.mxu0 0
  %5168 = vmatmul.mubr.bf16.gmra.mrb[0].mxu0 %v2271
  %v5169 = vpop.f32.mrb[0].mxu0
  %v5170 = vadd.f32 0.0, %v5169
  %v5171 = vpop.f32.mrb[0].mxu0
  %v5172 = vpop.f32.mrb[0].mxu0
  %v5173 = vadd.f32 0.0, %v5172
  %v5174 = vpop.f32.mrb[0].mxu0
  %5175 = vmatprep.mubr.bf16.mxu0 0
  %5176 = vmatmul.mubr.bf16.gmra.mrb[0].mxu0 %v2274
  %v5177 = vpop.f32.mrb[0].mxu0
  %v5178 = vadd.f32 0.0, %v5177
  %v5179 = vpop.f32.mrb[0].mxu0
  %v5180 = vpop.f32.mrb[0].mxu0
  %v5181 = vadd.f32 0.0, %v5180
  %v5182 = vpop.f32.mrb[0].mxu0
  %5183 = vmatprep.mubr.bf16.mxu0 0
  %5184 = vmatmul.mubr.bf16.gmra.mrb[0].mxu0 %v2277
  %v5185 = vpop.f32.mrb[0].mxu0
  %v5186 = vadd.f32 0.0, %v5185
  %v5187 = vpop.f32.mrb[0].mxu0
  %v5188 = vpop.f32.mrb[0].mxu0
  %v5189 = vadd.f32 0.0, %v5188
  %v5190 = vpop.f32.mrb[0].mxu0
  %5191 = vmatprep.mubr.bf16.mxu0 0
  %5192 = vmatmul.mubr.bf16.gmra.mrb[0].mxu0 %v2280
  %v5193 = vpop.f32.mrb[0].mxu0
  %v5194 = vadd.f32 0.0, %v5193
  %v5195 = vpop.f32.mrb[0].mxu0
  %v5196 = vpop.f32.mrb[0].mxu0
  %v5197 = vadd.f32 0.0, %v5196
  %v5198 = vpop.f32.mrb[0].mxu0
  %5199 = vmatprep.mubr.bf16.mxu0 0
  %5200 = vmatmul.mubr.bf16.gmra.mrb[0].mxu0 %v2283
  %v5201 = vpop.f32.mrb[0].mxu0
  %v5202 = vadd.f32 0.0, %v5201
  %v5203 = vpop.f32.mrb[0].mxu0
  %v5204 = vpop.f32.mrb[0].mxu0
  %v5205 = vadd.f32 0.0, %v5204
  %v5206 = vpop.f32.mrb[0].mxu0
  %5207 = vmatprep.mubr.bf16.mxu0 0
  %5208 = vmatmul.mubr.bf16.gmra.mrb[0].mxu0 %v2286
  %v5209 = vpop.f32.mrb[0].mxu0
  %v5210 = vadd.f32 0.0, %v5209
  %v5211 = vpop.f32.mrb[0].mxu0
  %v5212 = vpop.f32.mrb[0].mxu0
  %v5213 = vadd.f32 0.0, %v5212
  %v5214 = vpop.f32.mrb[0].mxu0
  %5215 = vmatprep.mubr.bf16.mxu0 0
  %5216 = vmatmul.mubr.bf16.gmra.mrb[0].mxu0 %v2289
  %v5217 = vpop.f32.mrb[0].mxu0
  %v5218 = vadd.f32 0.0, %v5217
  %v5219 = vpop.f32.mrb[0].mxu0
  %v5220 = vpop.f32.mrb[0].mxu0
  %v5221 = vadd.f32 0.0, %v5220
  %v5222 = vpop.f32.mrb[0].mxu0
  %5223 = vmatprep.mubr.bf16.mxu0 0
  %5224 = vmatmul.mubr.bf16.gmra.mrb[0].mxu0 %v2292
  %v5225 = vpop.f32.mrb[0].mxu0
  %v5226 = vadd.f32 0.0, %v5225
  %v5227 = vpop.f32.mrb[0].mxu0
  %v5228 = vpop.f32.mrb[0].mxu0
  %v5229 = vadd.f32 0.0, %v5228
  %v5230 = vpop.f32.mrb[0].mxu0
  %5231 = vmatprep.mubr.bf16.mxu0 0
  %5232 = vmatmul.mubr.bf16.gmra.mrb[0].mxu0 %v2295
  %v5233 = vpop.f32.mrb[0].mxu0
  %v5234 = vadd.f32 0.0, %v5233
  %v5235 = vpop.f32.mrb[0].mxu0
  %v5236 = vpop.f32.mrb[0].mxu0
  %v5237 = vadd.f32 0.0, %v5236
  %v5238 = vpop.f32.mrb[0].mxu0
  %5239 = vmatprep.mubr.bf16.mxu0 0
  %5240 = vmatmul.mubr.bf16.gmra.mrb[0].mxu0 %v2298
  %v5241 = vpop.f32.mrb[0].mxu0
  %v5242 = vadd.f32 0.0, %v5241
  %v5243 = vpop.f32.mrb[0].mxu0
  %v5244 = vpop.f32.mrb[0].mxu0
  %v5245 = vadd.f32 0.0, %v5244
  %v5246 = vpop.f32.mrb[0].mxu0
  %5247 = vmatprep.mubr.bf16.mxu0 0
  %5248 = vmatmul.mubr.bf16.gmra.mrb[0].mxu0 %v2301
  %v5249 = vpop.f32.mrb[0].mxu0
  %v5250 = vadd.f32 0.0, %v5249
  %v5251 = vpop.f32.mrb[0].mxu0
  %v5252 = vpop.f32.mrb[0].mxu0
  %v5253 = vadd.f32 0.0, %v5252
  %v5254 = vpop.f32.mrb[0].mxu0
  %5255 = vmatprep.mubr.bf16.mxu0 0
  %5256 = vmatmul.mubr.bf16.gmra.mrb[0].mxu0 %v3623
  %v5257 = vpop.f32.mrb[0].mxu0
  %v5258 = vadd.f32 0.0, %v5257
  %v5259 = vpop.f32.mrb[0].mxu0
  %v5260 = vpop.f32.mrb[0].mxu0
  %v5261 = vadd.f32 0.0, %v5260
  %v5262 = vpop.f32.mrb[0].mxu0
  %5263 = vmatprep.mubr.bf16.mxu0 0
  %5264 = vmatmul.mubr.bf16.gmra.mrb[0].mxu0 %v4915
  %v5265 = vpop.f32.mrb[0].mxu0
  %v5266 = vadd.f32 0.0, %v5265
  %v5267 = vpop.f32.mrb[0].mxu0
  %v5268 = vpop.f32.mrb[0].mxu0
  %v5269 = vadd.f32 0.0, %v5268
  %v5270 = vpop.f32.mrb[0].mxu0
  %5271 = vdwg.mxu0
  %v5272 = vadd.f32 %v4842, %v5018
  %v5273 = vadd.f32 %v4843, %v5021
  %v5274 = vadd.f32 %v4844, %v5026
  %v5275 = vadd.f32 %v4845, %v5029
  %v5276 = vadd.f32 %v4846, %v5034
  %v5277 = vadd.f32 %v4847, %v5037
  %v5278 = vadd.f32 %v4848, %v5042
  %v5279 = vadd.f32 %v4849, %v5045
  %v5280 = vadd.f32 %v4850, %v5050
  %v5281 = vadd.f32 %v4851, %v5053
  %v5282 = vadd.f32 %v4852, %v5058
  %v5283 = vadd.f32 %v4853, %v5061
  %v5284 = vadd.f32 %v4854, %v5066
  %v5285 = vadd.f32 %v4855, %v5069
  %v5286 = vadd.f32 %v4856, %v5074
  %v5287 = vadd.f32 %v4857, %v5077
  %v5288 = vadd.f32 %v4858, %v5082
  %v5289 = vadd.f32 %v4859, %v5085
  %v5290 = vadd.f32 %v4860, %v5090
  %v5291 = vadd.f32 %v4861, %v5093
  %v5292 = vadd.f32 %v4862, %v5098
  %v5293 = vadd.f32 %v4863, %v5101
  %v5294 = vadd.f32 %v4864, %v5106
  %v5295 = vadd.f32 %v4865, %v5109
  %v5296 = vadd.f32 %v4866, %v5114
  %v5297 = vadd.f32 %v4867, %v5117
  %v5298 = vadd.f32 %v4868, %v5122
  %v5299 = vadd.f32 %v4869, %v5125
  %v5300 = vadd.f32 %v4870, %v5130
  %v5301 = vadd.f32 %v4871, %v5133
  %v5302 = vadd.f32 %v4872, %v5138
  %v5303 = vadd.f32 %v4873, %v5141
  %v5304 = vadd.f32 %v4874, %v5146
  %v5305 = vadd.f32 %v4875, %v5149
  %v5306 = vadd.f32 %v4876, %v5154
  %v5307 = vadd.f32 %v4877, %v5157
  %v5308 = vadd.f32 %v4878, %v5162
  %v5309 = vadd.f32 %v4879, %v5165
  %v5310 = vadd.f32 %v4880, %v5170
  %v5311 = vadd.f32 %v4881, %v5173
  %v5312 = vadd.f32 %v4882, %v5178
  %v5313 = vadd.f32 %v4883, %v5181
  %v5314 = vadd.f32 %v4884, %v5186
  %v5315 = vadd.f32 %v4885, %v5189
  %v5316 = vadd.f32 %v4886, %v5194
  %v5317 = vadd.f32 %v4887, %v5197
  %v5318 = vadd.f32 %v4888, %v5202
  %v5319 = vadd.f32 %v4889, %v5205
  %v5320 = vadd.f32 %v4890, %v5210
  %v5321 = vadd.f32 %v4891, %v5213
  %v5322 = vadd.f32 %v4892, %v5218
  %v5323 = vadd.f32 %v4893, %v5221
  %v5324 = vadd.f32 %v4894, %v5226
  %v5325 = vadd.f32 %v4895, %v5229
  %v5326 = vadd.f32 %v4896, %v5234
  %v5327 = vadd.f32 %v4897, %v5237
  %v5328 = vadd.f32 %v4898, %v5242
  %v5329 = vadd.f32 %v4899, %v5245
  %v5330 = vadd.f32 %v4900, %v5250
  %v5331 = vadd.f32 %v4901, %v5253
  %v5332 = vadd.f32 %v4902, %v5258
  %v5333 = vadd.f32 %v4903, %v5261
  %v5334 = vadd.f32 %v4904, %v5266
  %v5335 = vadd.f32 %v4905, %v5269
  %v5336 = vld [vmem:[%s5] sm:$0x1]
  %v5338 = vlaneseq
  %v5339 = vshrl.u32 %v5338, 7
  %v5340 = vsub.s32 0, %v5339
  %v5341 = vrot.slane %v5336, %v5340
  %v5343 = vadd.f32 %v5272, %v5341
  %v5344 = vadd.f32 %v5273, %v5341
  %v5345 = vadd.f32 %v5274, %v5341
  %v5346 = vadd.f32 %v5275, %v5341
  %v5347 = vadd.f32 %v5276, %v5341
  %v5348 = vadd.f32 %v5277, %v5341
  %v5349 = vadd.f32 %v5278, %v5341
  %v5350 = vadd.f32 %v5279, %v5341
  %v5351 = vadd.f32 %v5280, %v5341
  %v5352 = vadd.f32 %v5281, %v5341
  %v5353 = vadd.f32 %v5282, %v5341
  %v5354 = vadd.f32 %v5283, %v5341
  %v5355 = vadd.f32 %v5284, %v5341
  %v5356 = vadd.f32 %v5285, %v5341
  %v5357 = vadd.f32 %v5286, %v5341
  %v5358 = vadd.f32 %v5287, %v5341
  %v5359 = vadd.f32 %v5288, %v5341
  %v5360 = vadd.f32 %v5289, %v5341
  %v5361 = vadd.f32 %v5290, %v5341
  %v5362 = vadd.f32 %v5291, %v5341
  %v5363 = vadd.f32 %v5292, %v5341
  %v5364 = vadd.f32 %v5293, %v5341
  %v5365 = vadd.f32 %v5294, %v5341
  %v5366 = vadd.f32 %v5295, %v5341
  %v5367 = vadd.f32 %v5296, %v5341
  %v5368 = vadd.f32 %v5297, %v5341
  %v5369 = vadd.f32 %v5298, %v5341
  %v5370 = vadd.f32 %v5299, %v5341
  %v5371 = vadd.f32 %v5300, %v5341
  %v5372 = vadd.f32 %v5301, %v5341
  %v5373 = vadd.f32 %v5302, %v5341
  %v5374 = vadd.f32 %v5303, %v5341
  %v5375 = vadd.f32 %v5304, %v5341
  %v5376 = vadd.f32 %v5305, %v5341
  %v5377 = vadd.f32 %v5306, %v5341
  %v5378 = vadd.f32 %v5307, %v5341
  %v5379 = vadd.f32 %v5308, %v5341
  %v5380 = vadd.f32 %v5309, %v5341
  %v5381 = vadd.f32 %v5310, %v5341
  %v5382 = vadd.f32 %v5311, %v5341
  %v5383 = vadd.f32 %v5312, %v5341
  %v5384 = vadd.f32 %v5313, %v5341
  %v5385 = vadd.f32 %v5314, %v5341
  %v5386 = vadd.f32 %v5315, %v5341
  %v5387 = vadd.f32 %v5316, %v5341
  %v5388 = vadd.f32 %v5317, %v5341
  %v5389 = vadd.f32 %v5318, %v5341
  %v5390 = vadd.f32 %v5319, %v5341
  %v5391 = vadd.f32 %v5320, %v5341
  %v5392 = vadd.f32 %v5321, %v5341
  %v5393 = vadd.f32 %v5322, %v5341
  %v5394 = vadd.f32 %v5323, %v5341
  %v5395 = vadd.f32 %v5324, %v5341
  %v5396 = vadd.f32 %v5325, %v5341
  %v5397 = vadd.f32 %v5326, %v5341
  %v5398 = vadd.f32 %v5327, %v5341
  %v5399 = vadd.f32 %v5328, %v5341
  %v5400 = vadd.f32 %v5329, %v5341
  %v5401 = vadd.f32 %v5330, %v5341
  %v5402 = vadd.f32 %v5331, %v5341
  %v5403 = vadd.f32 %v5332, %v5341
  %v5404 = vadd.f32 %v5333, %v5341
  %v5405 = vadd.f32 %v5334, %v5341
  %v5406 = vadd.f32 %v5335, %v5341
  %v5407 = vadd.f32 %v5343, %v5344
  %v5408 = vadd.f32 %v5407, %v5345
  %v5409 = vadd.f32 %v5408, %v5346
  %v5410 = vadd.f32 %v5409, %v5347
  %v5411 = vadd.f32 %v5410, %v5348
  %v5412 = vadd.f32 %v5411, %v5349
  %v5413 = vadd.f32 %v5412, %v5350
  %v5414 = vadd.f32 %v5413, %v5351
  %v5415 = vadd.f32 %v5414, %v5352
  %v5416 = vadd.f32 %v5415, %v5353
  %v5417 = vadd.f32 %v5416, %v5354
  %v5418 = vadd.f32 %v5417, %v5355
  %v5419 = vadd.f32 %v5418, %v5356
  %v5420 = vadd.f32 %v5419, %v5357
  %v5421 = vadd.f32 %v5420, %v5358
  %v5422 = vadd.f32 %v5421, %v5359
  %v5423 = vadd.f32 %v5422, %v5360
  %v5424 = vadd.f32 %v5423, %v5361
  %v5425 = vadd.f32 %v5424, %v5362
  %v5426 = vadd.f32 %v5425, %v5363
  %v5427 = vadd.f32 %v5426, %v5364
  %v5428 = vadd.f32 %v5427, %v5365
  %v5429 = vadd.f32 %v5428, %v5366
  %v5430 = vadd.f32 %v5429, %v5367
  %v5431 = vadd.f32 %v5430, %v5368
  %v5432 = vadd.f32 %v5431, %v5369
  %v5433 = vadd.f32 %v5432, %v5370
  %v5434 = vadd.f32 %v5433, %v5371
  %v5435 = vadd.f32 %v5434, %v5372
  %v5436 = vadd.f32 %v5435, %v5373
  %v5437 = vadd.f32 %v5436, %v5374
  %v5438 = vadd.f32 %v5437, %v5375
  %v5439 = vadd.f32 %v5438, %v5376
  %v5440 = vadd.f32 %v5439, %v5377
  %v5441 = vadd.f32 %v5440, %v5378
  %v5442 = vadd.f32 %v5441, %v5379
  %v5443 = vadd.f32 %v5442, %v5380
  %v5444 = vadd.f32 %v5443, %v5381
  %v5445 = vadd.f32 %v5444, %v5382
  %v5446 = vadd.f32 %v5445, %v5383
  %v5447 = vadd.f32 %v5446, %v5384
  %v5448 = vadd.f32 %v5447, %v5385
  %v5449 = vadd.f32 %v5448, %v5386
  %v5450 = vadd.f32 %v5449, %v5387
  %v5451 = vadd.f32 %v5450, %v5388
  %v5452 = vadd.f32 %v5451, %v5389
  %v5453 = vadd.f32 %v5452, %v5390
  %v5454 = vadd.f32 %v5453, %v5391
  %v5455 = vadd.f32 %v5454, %v5392
  %v5456 = vadd.f32 %v5455, %v5393
  %v5457 = vadd.f32 %v5456, %v5394
  %v5458 = vadd.f32 %v5457, %v5395
  %v5459 = vadd.f32 %v5458, %v5396
  %v5460 = vadd.f32 %v5459, %v5397
  %v5461 = vadd.f32 %v5460, %v5398
  %v5462 = vadd.f32 %v5461, %v5399
  %v5463 = vadd.f32 %v5462, %v5400
  %v5464 = vadd.f32 %v5463, %v5401
  %v5465 = vadd.f32 %v5464, %v5402
  %v5466 = vadd.f32 %v5465, %v5403
  %v5467 = vadd.f32 %v5466, %v5404
  %v5468 = vadd.f32 %v5467, %v5405
  %v5469 = vadd.f32 %v5468, %v5406
  %v5470 = vrot.slane %v5469, 4
  %v5471 = vadd.f32 %v5469, %v5470
  %v5472 = vrot.slane %v5471, 2
  %v5473 = vadd.f32 %v5471, %v5472
  %v5474 = vrot.slane %v5473, 1
  %v5475 = vadd.f32 %v5473, %v5474
  %v5476 = vmul.f32 %v5343, %v5343
  %v5477 = vmul.f32 %v5344, %v5344
  %v5478 = vmul.f32 %v5345, %v5345
  %v5479 = vmul.f32 %v5346, %v5346
  %v5480 = vmul.f32 %v5347, %v5347
  %v5481 = vmul.f32 %v5348, %v5348
  %v5482 = vmul.f32 %v5349, %v5349
  %v5483 = vmul.f32 %v5350, %v5350
  %v5484 = vmul.f32 %v5351, %v5351
  %v5485 = vmul.f32 %v5352, %v5352
  %v5486 = vmul.f32 %v5353, %v5353
  %v5487 = vmul.f32 %v5354, %v5354
  %v5488 = vmul.f32 %v5355, %v5355
  %v5489 = vmul.f32 %v5356, %v5356
  %v5490 = vmul.f32 %v5357, %v5357
  %v5491 = vmul.f32 %v5358, %v5358
  %v5492 = vmul.f32 %v5359, %v5359
  %v5493 = vmul.f32 %v5360, %v5360
  %v5494 = vmul.f32 %v5361, %v5361
  %v5495 = vmul.f32 %v5362, %v5362
  %v5496 = vmul.f32 %v5363, %v5363
  %v5497 = vmul.f32 %v5364, %v5364
  %v5498 = vmul.f32 %v5365, %v5365
  %v5499 = vmul.f32 %v5366, %v5366
  %v5500 = vmul.f32 %v5367, %v5367
  %v5501 = vmul.f32 %v5368, %v5368
  %v5502 = vmul.f32 %v5369, %v5369
  %v5503 = vmul.f32 %v5370, %v5370
  %v5504 = vmul.f32 %v5371, %v5371
  %v5505 = vmul.f32 %v5372, %v5372
  %v5506 = vmul.f32 %v5373, %v5373
  %v5507 = vmul.f32 %v5374, %v5374
  %v5508 = vmul.f32 %v5375, %v5375
  %v5509 = vmul.f32 %v5376, %v5376
  %v5510 = vmul.f32 %v5377, %v5377
  %v5511 = vmul.f32 %v5378, %v5378
  %v5512 = vmul.f32 %v5379, %v5379
  %v5513 = vmul.f32 %v5380, %v5380
  %v5514 = vmul.f32 %v5381, %v5381
  %v5515 = vmul.f32 %v5382, %v5382
  %v5516 = vmul.f32 %v5383, %v5383
  %v5517 = vmul.f32 %v5384, %v5384
  %v5518 = vmul.f32 %v5385, %v5385
  %v5519 = vmul.f32 %v5386, %v5386
  %v5520 = vmul.f32 %v5387, %v5387
  %v5521 = vmul.f32 %v5388, %v5388
  %v5522 = vmul.f32 %v5389, %v5389
  %v5523 = vmul.f32 %v5390, %v5390
  %v5524 = vmul.f32 %v5391, %v5391
  %v5525 = vmul.f32 %v5392, %v5392
  %v5526 = vmul.f32 %v5393, %v5393
  %v5527 = vmul.f32 %v5394, %v5394
  %v5528 = vmul.f32 %v5395, %v5395
  %v5529 = vmul.f32 %v5396, %v5396
  %v5530 = vmul.f32 %v5397, %v5397
  %v5531 = vmul.f32 %v5398, %v5398
  %v5532 = vmul.f32 %v5399, %v5399
  %v5533 = vmul.f32 %v5400, %v5400
  %v5534 = vmul.f32 %v5401, %v5401
  %v5535 = vmul.f32 %v5402, %v5402
  %v5536 = vmul.f32 %v5403, %v5403
  %v5537 = vmul.f32 %v5404, %v5404
  %v5538 = vmul.f32 %v5405, %v5405
  %v5539 = vmul.f32 %v5406, %v5406
  %v5540 = vadd.f32 %v5476, %v5477
  %v5541 = vadd.f32 %v5540, %v5478
  %v5542 = vadd.f32 %v5541, %v5479
  %v5543 = vadd.f32 %v5542, %v5480
  %v5544 = vadd.f32 %v5543, %v5481
  %v5545 = vadd.f32 %v5544, %v5482
  %v5546 = vadd.f32 %v5545, %v5483
  %v5547 = vadd.f32 %v5546, %v5484
  %v5548 = vadd.f32 %v5547, %v5485
  %v5549 = vadd.f32 %v5548, %v5486
  %v5550 = vadd.f32 %v5549, %v5487
  %v5551 = vadd.f32 %v5550, %v5488
  %v5552 = vadd.f32 %v5551, %v5489
  %v5553 = vadd.f32 %v5552, %v5490
  %v5554 = vadd.f32 %v5553, %v5491
  %v5555 = vadd.f32 %v5554, %v5492
  %v5556 = vadd.f32 %v5555, %v5493
  %v5557 = vadd.f32 %v5556, %v5494
  %v5558 = vadd.f32 %v5557, %v5495
  %v5559 = vadd.f32 %v5558, %v5496
  %v5560 = vadd.f32 %v5559, %v5497
  %v5561 = vadd.f32 %v5560, %v5498
  %v5562 = vadd.f32 %v5561, %v5499
  %v5563 = vadd.f32 %v5562, %v5500
  %v5564 = vadd.f32 %v5563, %v5501
  %v5565 = vadd.f32 %v5564, %v5502
  %v5566 = vadd.f32 %v5565, %v5503
  %v5567 = vadd.f32 %v5566, %v5504
  %v5568 = vadd.f32 %v5567, %v5505
  %v5569 = vadd.f32 %v5568, %v5506
  %v5570 = vadd.f32 %v5569, %v5507
  %v5571 = vadd.f32 %v5570, %v5508
  %v5572 = vadd.f32 %v5571, %v5509
  %v5573 = vadd.f32 %v5572, %v5510
  %v5574 = vadd.f32 %v5573, %v5511
  %v5575 = vadd.f32 %v5574, %v5512
  %v5576 = vadd.f32 %v5575, %v5513
  %v5577 = vadd.f32 %v5576, %v5514
  %v5578 = vadd.f32 %v5577, %v5515
  %v5579 = vadd.f32 %v5578, %v5516
  %v5580 = vadd.f32 %v5579, %v5517
  %v5581 = vadd.f32 %v5580, %v5518
  %v5582 = vadd.f32 %v5581, %v5519
  %v5583 = vadd.f32 %v5582, %v5520
  %v5584 = vadd.f32 %v5583, %v5521
  %v5585 = vadd.f32 %v5584, %v5522
  %v5586 = vadd.f32 %v5585, %v5523
  %v5587 = vadd.f32 %v5586, %v5524
  %v5588 = vadd.f32 %v5587, %v5525
  %v5589 = vadd.f32 %v5588, %v5526
  %v5590 = vadd.f32 %v5589, %v5527
  %v5591 = vadd.f32 %v5590, %v5528
  %v5592 = vadd.f32 %v5591, %v5529
  %v5593 = vadd.f32 %v5592, %v5530
  %v5594 = vadd.f32 %v5593, %v5531
  %v5595 = vadd.f32 %v5594, %v5532
  %v5596 = vadd.f32 %v5595, %v5533
  %v5597 = vadd.f32 %v5596, %v5534
  %v5598 = vadd.f32 %v5597, %v5535
  %v5599 = vadd.f32 %v5598, %v5536
  %v5600 = vadd.f32 %v5599, %v5537
  %v5601 = vadd.f32 %v5600, %v5538
  %v5602 = vadd.f32 %v5601, %v5539
  %v5603 = vrot.slane %v5602, 4
  %v5604 = vadd.f32 %v5602, %v5603
  %v5605 = vrot.slane %v5604, 2
  %v5606 = vadd.f32 %v5604, %v5605
  %v5607 = vrot.slane %v5606, 1
  %v5608 = vadd.f32 %v5606, %v5607
  %vm5609 = vcmask 1040384
  %v5610 = vsel %vm5609, %v5475, %v5608
  %5611 = vst [vmem:[%s7] sm:$0x3] %v5610
  %v5612 = vpack.c.bf16 %v5344, %v5343
  %v5613 = vpack.c.bf16 %v5346, %v5345
  %v5614 = vpack.c.bf16 %v5348, %v5347
  %v5615 = vpack.c.bf16 %v5350, %v5349
  %v5616 = vpack.c.bf16 %v5352, %v5351
  %v5617 = vpack.c.bf16 %v5354, %v5353
  %v5618 = vpack.c.bf16 %v5356, %v5355
  %v5619 = vpack.c.bf16 %v5358, %v5357
  %v5620 = vpack.c.bf16 %v5360, %v5359
  %v5621 = vpack.c.bf16 %v5362, %v5361
  %v5622 = vpack.c.bf16 %v5364, %v5363
  %v5623 = vpack.c.bf16 %v5366, %v5365
  %v5624 = vpack.c.bf16 %v5368, %v5367
  %v5625 = vpack.c.bf16 %v5370, %v5369
  %v5626 = vpack.c.bf16 %v5372, %v5371
  %v5627 = vpack.c.bf16 %v5374, %v5373
  %v5628 = vpack.c.bf16 %v5376, %v5375
  %v5629 = vpack.c.bf16 %v5378, %v5377
  %v5630 = vpack.c.bf16 %v5380, %v5379
  %v5631 = vpack.c.bf16 %v5382, %v5381
  %v5632 = vpack.c.bf16 %v5384, %v5383
  %v5633 = vpack.c.bf16 %v5386, %v5385
  %v5634 = vpack.c.bf16 %v5388, %v5387
  %v5635 = vpack.c.bf16 %v5390, %v5389
  %v5636 = vpack.c.bf16 %v5392, %v5391
  %v5637 = vpack.c.bf16 %v5394, %v5393
  %v5638 = vpack.c.bf16 %v5396, %v5395
  %v5639 = vpack.c.bf16 %v5398, %v5397
  %v5640 = vpack.c.bf16 %v5400, %v5399
  %v5641 = vpack.c.bf16 %v5402, %v5401
  %v5642 = vpack.c.bf16 %v5404, %v5403
  %v5643 = vpack.c.bf16 %v5406, %v5405
  %v5676 = vunpack.c.l.b16 %v5612
  %v5677 = vunpack.c.h.b16 %v5612
  %v5678 = vunpack.c.l.b16 %v5613
  %v5679 = vunpack.c.h.b16 %v5613
  %v5680 = vunpack.c.l.b16 %v5614
  %v5681 = vunpack.c.h.b16 %v5614
  %v5682 = vunpack.c.l.b16 %v5615
  %v5683 = vunpack.c.h.b16 %v5615
  %v5684 = vunpack.c.l.b16 %v5616
  %v5685 = vunpack.c.h.b16 %v5616
  %v5686 = vunpack.c.l.b16 %v5617
  %v5687 = vunpack.c.h.b16 %v5617
  %v5688 = vunpack.c.l.b16 %v5618
  %v5689 = vunpack.c.h.b16 %v5618
  %v5690 = vunpack.c.l.b16 %v5619
  %v5691 = vunpack.c.h.b16 %v5619
  %v5692 = vunpack.c.l.b16 %v5620
  %v5693 = vunpack.c.h.b16 %v5620
  %v5694 = vunpack.c.l.b16 %v5621
  %v5695 = vunpack.c.h.b16 %v5621
  %v5696 = vunpack.c.l.b16 %v5622
  %v5697 = vunpack.c.h.b16 %v5622
  %v5698 = vunpack.c.l.b16 %v5623
  %v5699 = vunpack.c.h.b16 %v5623
  %v5700 = vunpack.c.l.b16 %v5624
  %v5701 = vunpack.c.h.b16 %v5624
  %v5702 = vunpack.c.l.b16 %v5625
  %v5703 = vunpack.c.h.b16 %v5625
  %v5704 = vunpack.c.l.b16 %v5626
  %v5705 = vunpack.c.h.b16 %v5626
  %v5706 = vunpack.c.l.b16 %v5627
  %v5707 = vunpack.c.h.b16 %v5627
  %v5708 = vunpack.c.l.b16 %v5628
  %v5709 = vunpack.c.h.b16 %v5628
  %v5710 = vunpack.c.l.b16 %v5629
  %v5711 = vunpack.c.h.b16 %v5629
  %v5712 = vunpack.c.l.b16 %v5630
  %v5713 = vunpack.c.h.b16 %v5630
  %v5714 = vunpack.c.l.b16 %v5631
  %v5715 = vunpack.c.h.b16 %v5631
  %v5716 = vunpack.c.l.b16 %v5632
  %v5717 = vunpack.c.h.b16 %v5632
  %v5718 = vunpack.c.l.b16 %v5633
  %v5719 = vunpack.c.h.b16 %v5633
  %v5720 = vunpack.c.l.b16 %v5634
  %v5721 = vunpack.c.h.b16 %v5634
  %v5722 = vunpack.c.l.b16 %v5635
  %v5723 = vunpack.c.h.b16 %v5635
  %v5724 = vunpack.c.l.b16 %v5636
  %v5725 = vunpack.c.h.b16 %v5636
  %v5726 = vunpack.c.l.b16 %v5637
  %v5727 = vunpack.c.h.b16 %v5637
  %v5728 = vunpack.c.l.b16 %v5638
  %v5729 = vunpack.c.h.b16 %v5638
  %v5730 = vunpack.c.l.b16 %v5639
  %v5731 = vunpack.c.h.b16 %v5639
  %v5732 = vunpack.c.l.b16 %v5640
  %v5733 = vunpack.c.h.b16 %v5640
  %v5734 = vunpack.c.l.b16 %v5641
  %v5735 = vunpack.c.h.b16 %v5641
  %v5736 = vunpack.c.l.b16 %v5642
  %v5737 = vunpack.c.h.b16 %v5642
  %v5738 = vunpack.c.l.b16 %v5643
  %v5739 = vunpack.c.h.b16 %v5643
  %v5740 = vpack.c.b16 %v5676, %v5676
  %v5741 = vpack.c.b16 %v5677, %v5677
  %v5742 = vpack.c.b16 %v5678, %v5678
  %v5743 = vpack.c.b16 %v5679, %v5679
  %v5744 = vpack.c.b16 %v5680, %v5680
  %v5745 = vpack.c.b16 %v5681, %v5681
  %v5746 = vpack.c.b16 %v5682, %v5682
  %v5747 = vpack.c.b16 %v5683, %v5683
  %v5748 = vpack.c.b16 %v5684, %v5684
  %v5749 = vpack.c.b16 %v5685, %v5685
  %v5750 = vpack.c.b16 %v5686, %v5686
  %v5751 = vpack.c.b16 %v5687, %v5687
  %v5752 = vpack.c.b16 %v5688, %v5688
  %v5753 = vpack.c.b16 %v5689, %v5689
  %v5754 = vpack.c.b16 %v5690, %v5690
  %v5755 = vpack.c.b16 %v5691, %v5691
  %v5756 = vpack.c.b16 %v5692, %v5692
  %v5757 = vpack.c.b16 %v5693, %v5693
  %v5758 = vpack.c.b16 %v5694, %v5694
  %v5759 = vpack.c.b16 %v5695, %v5695
  %v5760 = vpack.c.b16 %v5696, %v5696
  %v5761 = vpack.c.b16 %v5697, %v5697
  %v5762 = vpack.c.b16 %v5698, %v5698
  %v5763 = vpack.c.b16 %v5699, %v5699
  %v5764 = vpack.c.b16 %v5700, %v5700
  %v5765 = vpack.c.b16 %v5701, %v5701
  %v5766 = vpack.c.b16 %v5702, %v5702
  %v5767 = vpack.c.b16 %v5703, %v5703
  %v5768 = vpack.c.b16 %v5704, %v5704
  %v5769 = vpack.c.b16 %v5705, %v5705
  %v5770 = vpack.c.b16 %v5706, %v5706
  %v5771 = vpack.c.b16 %v5707, %v5707
  %v5772 = vpack.c.b16 %v5708, %v5708
  %v5773 = vpack.c.b16 %v5709, %v5709
  %v5774 = vpack.c.b16 %v5710, %v5710
  %v5775 = vpack.c.b16 %v5711, %v5711
  %v5776 = vpack.c.b16 %v5712, %v5712
  %v5777 = vpack.c.b16 %v5713, %v5713
  %v5778 = vpack.c.b16 %v5714, %v5714
  %v5779 = vpack.c.b16 %v5715, %v5715
  %v5780 = vpack.c.b16 %v5716, %v5716
  %v5781 = vpack.c.b16 %v5717, %v5717
  %v5782 = vpack.c.b16 %v5718, %v5718
  %v5783 = vpack.c.b16 %v5719, %v5719
  %v5784 = vpack.c.b16 %v5720, %v5720
  %v5785 = vpack.c.b16 %v5721, %v5721
  %v5786 = vpack.c.b16 %v5722, %v5722
  %v5787 = vpack.c.b16 %v5723, %v5723
  %v5788 = vpack.c.b16 %v5724, %v5724
  %v5789 = vpack.c.b16 %v5725, %v5725
  %v5790 = vpack.c.b16 %v5726, %v5726
  %v5791 = vpack.c.b16 %v5727, %v5727
  %v5792 = vpack.c.b16 %v5728, %v5728
  %v5793 = vpack.c.b16 %v5729, %v5729
  %v5794 = vpack.c.b16 %v5730, %v5730
  %v5795 = vpack.c.b16 %v5731, %v5731
  %v5796 = vpack.c.b16 %v5732, %v5732
  %v5797 = vpack.c.b16 %v5733, %v5733
  %v5798 = vpack.c.b16 %v5734, %v5734
  %v5799 = vpack.c.b16 %v5735, %v5735
  %v5800 = vpack.c.b16 %v5736, %v5736
  %v5801 = vpack.c.b16 %v5737, %v5737
  %v5802 = vpack.c.b16 %v5738, %v5738
  %v5803 = vpack.c.b16 %v5739, %v5739
  %5868 = vst [vmem:[%s6] sm:$0xf] %v5740
  %5869 = vst [vmem:[%s6 + $0x4] sm:$0xf] %v5741
  %5870 = vst [vmem:[%s6 + $0x8] sm:$0xf] %v5742
  %5871 = vst [vmem:[%s6 + $0xc] sm:$0xf] %v5743
  %5872 = vst [vmem:[%s6 + $0x10] sm:$0xf] %v5744
  %5873 = vst [vmem:[%s6 + $0x14] sm:$0xf] %v5745
  %5874 = vst [vmem:[%s6 + $0x18] sm:$0xf] %v5746
  %5875 = vst [vmem:[%s6 + $0x1c] sm:$0xf] %v5747
  %5876 = vst [vmem:[%s6 + $0x20] sm:$0xf] %v5748
  %5877 = vst [vmem:[%s6 + $0x24] sm:$0xf] %v5749
  %5878 = vst [vmem:[%s6 + $0x28] sm:$0xf] %v5750
  %5879 = vst [vmem:[%s6 + $0x2c] sm:$0xf] %v5751
  %5880 = vst [vmem:[%s6 + $0x30] sm:$0xf] %v5752
  %5881 = vst [vmem:[%s6 + $0x34] sm:$0xf] %v5753
  %5882 = vst [vmem:[%s6 + $0x38] sm:$0xf] %v5754
  %5883 = vst [vmem:[%s6 + $0x3c] sm:$0xf] %v5755
  %5884 = vst [vmem:[%s6 + $0x40] sm:$0xf] %v5756
  %5885 = vst [vmem:[%s6 + $0x44] sm:$0xf] %v5757
  %5886 = vst [vmem:[%s6 + $0x48] sm:$0xf] %v5758
  %5887 = vst [vmem:[%s6 + $0x4c] sm:$0xf] %v5759
  %5888 = vst [vmem:[%s6 + $0x50] sm:$0xf] %v5760
  %5889 = vst [vmem:[%s6 + $0x54] sm:$0xf] %v5761
  %5890 = vst [vmem:[%s6 + $0x58] sm:$0xf] %v5762
  %5891 = vst [vmem:[%s6 + $0x5c] sm:$0xf] %v5763
  %5892 = vst [vmem:[%s6 + $0x60] sm:$0xf] %v5764
  %5893 = vst [vmem:[%s6 + $0x64] sm:$0xf] %v5765
  %5894 = vst [vmem:[%s6 + $0x68] sm:$0xf] %v5766
  %5895 = vst [vmem:[%s6 + $0x6c] sm:$0xf] %v5767
  %5896 = vst [vmem:[%s6 + $0x70] sm:$0xf] %v5768
  %5897 = vst [vmem:[%s6 + $0x74] sm:$0xf] %v5769
  %5898 = vst [vmem:[%s6 + $0x78] sm:$0xf] %v5770
  %5899 = vst [vmem:[%s6 + $0x7c] sm:$0xf] %v5771
  %5900 = vst [vmem:[%s6 + $0x80] sm:$0xf] %v5772
  %5901 = vst [vmem:[%s6 + $0x84] sm:$0xf] %v5773
  %5902 = vst [vmem:[%s6 + $0x88] sm:$0xf] %v5774
  %5903 = vst [vmem:[%s6 + $0x8c] sm:$0xf] %v5775
  %5904 = vst [vmem:[%s6 + $0x90] sm:$0xf] %v5776
  %5905 = vst [vmem:[%s6 + $0x94] sm:$0xf] %v5777
  %5906 = vst [vmem:[%s6 + $0x98] sm:$0xf] %v5778
  %5907 = vst [vmem:[%s6 + $0x9c] sm:$0xf] %v5779
  %5908 = vst [vmem:[%s6 + $0xa0] sm:$0xf] %v5780
  %5909 = vst [vmem:[%s6 + $0xa4] sm:$0xf] %v5781
  %5910 = vst [vmem:[%s6 + $0xa8] sm:$0xf] %v5782
  %5911 = vst [vmem:[%s6 + $0xac] sm:$0xf] %v5783
  %5912 = vst [vmem:[%s6 + $0xb0] sm:$0xf] %v5784
  %5913 = vst [vmem:[%s6 + $0xb4] sm:$0xf] %v5785
  %5914 = vst [vmem:[%s6 + $0xb8] sm:$0xf] %v5786
  %5915 = vst [vmem:[%s6 + $0xbc] sm:$0xf] %v5787
  %5916 = vst [vmem:[%s6 + $0xc0] sm:$0xf] %v5788
  %5917 = vst [vmem:[%s6 + $0xc4] sm:$0xf] %v5789
  %5918 = vst [vmem:[%s6 + $0xc8] sm:$0xf] %v5790
  %5919 = vst [vmem:[%s6 + $0xcc] sm:$0xf] %v5791
  %5920 = vst [vmem:[%s6 + $0xd0] sm:$0xf] %v5792
  %5921 = vst [vmem:[%s6 + $0xd4] sm:$0xf] %v5793
  %5922 = vst [vmem:[%s6 + $0xd8] sm:$0xf] %v5794
  %5923 = vst [vmem:[%s6 + $0xdc] sm:$0xf] %v5795
  %5924 = vst [vmem:[%s6 + $0xe0] sm:$0xf] %v5796
  %5925 = vst [vmem:[%s6 + $0xe4] sm:$0xf] %v5797
  %5926 = vst [vmem:[%s6 + $0xe8] sm:$0xf] %v5798
  %5927 = vst [vmem:[%s6 + $0xec] sm:$0xf] %v5799
  %5928 = vst [vmem:[%s6 + $0xf0] sm:$0xf] %v5800
  %5929 = vst [vmem:[%s6 + $0xf4] sm:$0xf] %v5801
  %5930 = vst [vmem:[%s6 + $0xf8] sm:$0xf] %v5802
  %5931 = vst [vmem:[%s6 + $0xfc] sm:$0xf] %v5803
  // Predicated region
  $region26: #{residual_block.4} parent=0 // pred_check
    _
  $region27: #{residual_block.4} parent=0 // pred_check_branch
    %5933 = sbr.rel (0) target = $region29
  $region28: #{residual_block.4} parent=0 // pred_region
    _
  $region29: #{residual_block.4} parent=0 // pred_fallthru
    _
  // Predicated region
  $region30: #{residual_block.4} parent=0 // pred_check
    _
  $region31: #{residual_block.4} parent=0 // pred_check_branch
    %5935 = sbr.rel (0) target = $region33
  $region32: #{residual_block.4} parent=0 // pred_region
    _
  $region33: #{residual_block.4} parent=0 // pred_fallthru
    _
  // Predicated region
  $region34: #{residual_block.4} parent=0 // pred_check
    _
  $region35: #{residual_block.4} parent=0 // pred_check_branch
    %5937 = sbr.rel (0) target = $region37
  $region36: #{residual_block.4} parent=0 // pred_region
    _
  $region37: #{residual_block.4} parent=0 // pred_fallthru
    _
  // Predicated region
  $region38: #{residual_block.4} parent=0 // pred_check
    _
  $region39: #{residual_block.4} parent=0 // pred_check_branch
    %5939 = sbr.rel (0) target = $region41
  $region40: #{residual_block.4} parent=0 // pred_region
    _
  $region41: #{residual_block.4} parent=0 // pred_fallthru
    _

// kernel: residual_block.3
$region0: #{residual_block.3}
  #allocation0 [shape = 'u32[]', space=smem, size = 0x4, offset = 0x4, fixed_abs, tag = 'smem constant byte address 0x4 - core index']
  #allocation1 [shape = 'u32[144,128]{1,0:T(1,128)}', space=vmem, size = 0x12000, scoped, tag = 'internal scratch']
  %s0 = inlined_call_operand.vmem [shape: bf16[2,18,18,128], index: 0, kind: input, shape index: {}]
  %s1 = inlined_call_operand.vmem [shape: bf16[9,128,128], index: 1, kind: input, shape index: {}]
  %s2 = inlined_call_operand.vmem [shape: f32[1,128], index: 2, kind: input, shape index: {}]
  %s3 = inlined_call_operand.vmem [shape: bf16[2,18,18,128], index: 3, kind: output, shape index: {0}]
  %s4 = inlined_call_operand.vmem [shape: f32[1,2,128], index: 4, kind: output, shape index: {1}]
  %5 = xla_tuple %s3, %s4
  %s6 = sld [smem:[#allocation0]]
  $region30: #{residual_block.3} parent=0
    _
  %s8 = ssub.s32 1, %s6
  %s9 = scalar_select 0, %s8, %s6
  // Predicated region
  $region2: #{residual_block.3} parent=0 // pred_check
    _
  $region3: #{residual_block.3} parent=0 // pred_check_branch
    %11 = sbr.rel (0) target = $region5
  $region4: #{residual_block.3} parent=0 // pred_region
    _
  $region5: #{residual_block.3} parent=0 // pred_fallthru
    _
  // Predicated region
  $region6: #{residual_block.3} parent=0 // pred_check
    _
  $region7: #{residual_block.3} parent=0 // pred_check_branch
    %13 = sbr.rel (0) target = $region9
  $region8: #{residual_block.3} parent=0 // pred_region
    _
  $region9: #{residual_block.3} parent=0 // pred_fallthru
    _
  // Predicated region
  $region10: #{residual_block.3} parent=0 // pred_check
    _
  $region11: #{residual_block.3} parent=0 // pred_check_branch
    %15 = sbr.rel (0) target = $region13
  $region12: #{residual_block.3} parent=0 // pred_region
    _
  $region13: #{residual_block.3} parent=0 // pred_fallthru
    _
  %v17 = vld [vmem:[%s0] sm:$0xf]
  %v18 = vld [vmem:[%s0 + $0x4] sm:$0xf]
  %v19 = vld [vmem:[%s0 + $0x8] sm:$0x1]
  %v20 = vld [vmem:[%s0 + $0xc] sm:$0xf]
  %v21 = vld [vmem:[%s0 + $0x10] sm:$0xf]
  %v22 = vld [vmem:[%s0 + $0x14] sm:$0x1]
  %v23 = vld [vmem:[%s0 + $0x18] sm:$0xf]
  %v24 = vld [vmem:[%s0 + $0x1c] sm:$0xf]
  %v25 = vld [vmem:[%s0 + $0x20] sm:$0x1]
  %v26 = vld [vmem:[%s0 + $0x24] sm:$0xf]
  %v27 = vld [vmem:[%s0 + $0x28] sm:$0xf]
  %v28 = vld [vmem:[%s0 + $0x2c] sm:$0x1]
  %v29 = vld [vmem:[%s0 + $0x30] sm:$0xf]
  %v30 = vld [vmem:[%s0 + $0x34] sm:$0xf]
  %v31 = vld [vmem:[%s0 + $0x38] sm:$0x1]
  %v32 = vld [vmem:[%s0 + $0x3c] sm:$0xf]
  %v33 = vld [vmem:[%s0 + $0x40] sm:$0xf]
  %v34 = vld [vmem:[%s0 + $0x44] sm:$0x1]
  %v35 = vld [vmem:[%s0 + $0x48] sm:$0xf]
  %v36 = vld [vmem:[%s0 + $0x4c] sm:$0xf]
  %v37 = vld [vmem:[%s0 + $0x50] sm:$0x1]
  %v38 = vld [vmem:[%s0 + $0x54] sm:$0xf]
  %v39 = vld [vmem:[%s0 + $0x58] sm:$0xf]
  %v40 = vld [vmem:[%s0 + $0x5c] sm:$0x1]
  %v41 = vld [vmem:[%s0 + $0x60] sm:$0xf]
  %v42 = vld [vmem:[%s0 + $0x64] sm:$0xf]
  %v43 = vld [vmem:[%s0 + $0x68] sm:$0x1]
  %v44 = vld [vmem:[%s0 + $0x6c] sm:$0xf]
  %v45 = vld [vmem:[%s0 + $0x70] sm:$0xf]
  %v46 = vld [vmem:[%s0 + $0x74] sm:$0x1]
  %v47 = vld [vmem:[%s0 + $0x78] sm:$0xf]
  %v48 = vld [vmem:[%s0 + $0x7c] sm:$0xf]
  %v49 = vld [vmem:[%s0 + $0x80] sm:$0x1]
  %v50 = vld [vmem:[%s0 + $0x84] sm:$0xf]
  %v51 = vld [vmem:[%s0 + $0x88] sm:$0xf]
  %v52 = vld [vmem:[%s0 + $0x8c] sm:$0x1]
  %v53 = vld [vmem:[%s0 + $0x90] sm:$0xf]
  %v54 = vld [vmem:[%s0 + $0x94] sm:$0xf]
  %v55 = vld [vmem:[%s0 + $0x98] sm:$0x1]
  %v56 = vld [vmem:[%s0 + $0x9c] sm:$0xf]
  %v57 = vld [vmem:[%s0 + $0xa0] sm:$0xf]
  %v58 = vld [vmem:[%s0 + $0xa4] sm:$0x1]
  %v59 = vld [vmem:[%s0 + $0xa8] sm:$0xf]
  %v60 = vld [vmem:[%s0 + $0xac] sm:$0xf]
  %v61 = vld [vmem:[%s0 + $0xb0] sm:$0x1]
  %v62 = vld [vmem:[%s0 + $0xb4] sm:$0xf]
  %v63 = vld [vmem:[%s0 + $0xb8] sm:$0xf]
  %v64 = vld [vmem:[%s0 + $0xbc] sm:$0x1]
  %v65 = vld [vmem:[%s0 + $0xc0] sm:$0xf]
  %v66 = vld [vmem:[%s0 + $0xc4] sm:$0xf]
  %v67 = vld [vmem:[%s0 + $0xc8] sm:$0x1]
  %v68 = vld [vmem:[%s0 + $0xcc] sm:$0xf]
  %v69 = vld [vmem:[%s0 + $0xd0] sm:$0xf]
  %v70 = vld [vmem:[%s0 + $0xd4] sm:$0x1]
  %v71 = vld [vmem:[%s0 + $0xd8] sm:$0xf]
  %v72 = vld [vmem:[%s0 + $0xdc] sm:$0xf]
  %v73 = vld [vmem:[%s0 + $0xe0] sm:$0x1]
  %v74 = vld [vmem:[%s0 + $0xe4] sm:$0xf]
  %v75 = vld [vmem:[%s0 + $0xe8] sm:$0xf]
  %v76 = vld [vmem:[%s0 + $0xec] sm:$0x1]
  %v77 = vld [vmem:[%s0 + $0xf0] sm:$0xf]
  %v78 = vld [vmem:[%s0 + $0xf4] sm:$0xf]
  %v79 = vld [vmem:[%s0 + $0xf8] sm:$0x1]
  %v80 = vld [vmem:[%s0 + $0xfc] sm:$0xf]
  %v81 = vld [vmem:[%s0 + $0x100] sm:$0xf]
  %v82 = vld [vmem:[%s0 + $0x104] sm:$0x1]
  %v83 = vld [vmem:[%s0 + $0x108] sm:$0xf]
  %v84 = vld [vmem:[%s0 + $0x10c] sm:$0xf]
  %v85 = vld [vmem:[%s0 + $0x110] sm:$0x1]
  %v86 = vld [vmem:[%s0 + $0x114] sm:$0xf]
  %v87 = vld [vmem:[%s0 + $0x118] sm:$0xf]
  %v88 = vld [vmem:[%s0 + $0x11c] sm:$0x1]
  %v89 = vld [vmem:[%s0 + $0x120] sm:$0xf]
  %v90 = vld [vmem:[%s0 + $0x124] sm:$0xf]
  %v91 = vld [vmem:[%s0 + $0x128] sm:$0x1]
  %v92 = vld [vmem:[%s0 + $0x12c] sm:$0xf]
  %v93 = vld [vmem:[%s0 + $0x130] sm:$0xf]
  %v94 = vld [vmem:[%s0 + $0x134] sm:$0x1]
  %v95 = vld [vmem:[%s0 + $0x138] sm:$0xf]
  %v96 = vld [vmem:[%s0 + $0x13c] sm:$0xf]
  %v97 = vld [vmem:[%s0 + $0x140] sm:$0x1]
  %v98 = vld [vmem:[%s0 + $0x144] sm:$0xf]
  %v99 = vld [vmem:[%s0 + $0x148] sm:$0xf]
  %v100 = vld [vmem:[%s0 + $0x14c] sm:$0x1]
  %v101 = vld [vmem:[%s0 + $0x150] sm:$0xf]
  %v102 = vld [vmem:[%s0 + $0x154] sm:$0xf]
  %v103 = vld [vmem:[%s0 + $0x158] sm:$0x1]
  %v104 = vld [vmem:[%s0 + $0x15c] sm:$0xf]
  %v105 = vld [vmem:[%s0 + $0x160] sm:$0xf]
  %v106 = vld [vmem:[%s0 + $0x164] sm:$0x1]
  %v107 = vld [vmem:[%s0 + $0x168] sm:$0xf]
  %v108 = vld [vmem:[%s0 + $0x16c] sm:$0xf]
  %v109 = vld [vmem:[%s0 + $0x170] sm:$0x1]
  %v110 = vld [vmem:[%s0 + $0x174] sm:$0xf]
  %v111 = vld [vmem:[%s0 + $0x178] sm:$0xf]
  %v112 = vld [vmem:[%s0 + $0x17c] sm:$0x1]
  %v113 = vld [vmem:[%s0 + $0x180] sm:$0xf]
  %v114 = vld [vmem:[%s0 + $0x184] sm:$0xf]
  %v115 = vld [vmem:[%s0 + $0x188] sm:$0x1]
  %v116 = vld [vmem:[%s0 + $0x18c] sm:$0xf]
  %v117 = vld [vmem:[%s0 + $0x190] sm:$0xf]
  %v118 = vld [vmem:[%s0 + $0x194] sm:$0x1]
  %v119 = vld [vmem:[%s0 + $0x198] sm:$0xf]
  %v120 = vld [vmem:[%s0 + $0x19c] sm:$0xf]
  %v121 = vld [vmem:[%s0 + $0x1a0] sm:$0x1]
  %v122 = vld [vmem:[%s0 + $0x1a4] sm:$0xf]
  %v123 = vld [vmem:[%s0 + $0x1a8] sm:$0xf]
  %v124 = vld [vmem:[%s0 + $0x1ac] sm:$0x1]
  %v125 = vld [vmem:[%s1] sm:$0xf]
  %v126 = vld [vmem:[%s1 + $0x4] sm:$0xf]
  %v127 = vld [vmem:[%s1 + $0x8] sm:$0xf]
  %v128 = vld [vmem:[%s1 + $0xc] sm:$0xf]
  %v129 = vld [vmem:[%s1 + $0x10] sm:$0xf]
  %v130 = vld [vmem:[%s1 + $0x14] sm:$0xf]
  %v131 = vld [vmem:[%s1 + $0x18] sm:$0xf]
  %v132 = vld [vmem:[%s1 + $0x1c] sm:$0xf]
  %v133 = vld [vmem:[%s1 + $0x20] sm:$0xf]
  %v134 = vld [vmem:[%s1 + $0x24] sm:$0xf]
  %v135 = vld [vmem:[%s1 + $0x28] sm:$0xf]
  %v136 = vld [vmem:[%s1 + $0x2c] sm:$0xf]
  %v137 = vld [vmem:[%s1 + $0x30] sm:$0xf]
  %v138 = vld [vmem:[%s1 + $0x34] sm:$0xf]
  %v139 = vld [vmem:[%s1 + $0x38] sm:$0xf]
  %v140 = vld [vmem:[%s1 + $0x3c] sm:$0xf]
  %vm141 = vsmask.f32 3328
  %vm142 = vsmask.f32 7440
  %vm143 = vmor %vm141, %vm142
  %v145 = vshrl.u32 %v17, 16
  %v147 = vrot.slane %v145, 4
  %v148 = vshll.u32 %v17, 16
  %v150 = vrot.slane %v148, 5
  %v151 = vor.u32 %v147, %v150
  %v152 = vrot.slane %v151, 4
  %v154 = vshll.u32 %v18, 16
  %v156 = vrot.slane %v154, 5
  %v157 = vsel %vm143, %v152, %v156
  %v158 = vshrl.u32 %v18, 16
  %v160 = vrot.slane %v158, 4
  %v161 = vor.u32 %v160, %v156
  %v162 = vrot.slane %v161, 4
  %v164 = vshll.u32 %v19, 16
  %v166 = vrot.slane %v164, 5
  %v167 = vsel %vm143, %v162, %v166
  %v169 = vshrl.u32 %v20, 16
  %v171 = vrot.slane %v169, 4
  %v172 = vshll.u32 %v20, 16
  %v174 = vrot.slane %v172, 5
  %v175 = vor.u32 %v171, %v174
  %v176 = vrot.slane %v175, 4
  %v178 = vshll.u32 %v21, 16
  %v180 = vrot.slane %v178, 5
  %v181 = vsel %vm143, %v176, %v180
  %v182 = vshrl.u32 %v21, 16
  %v184 = vrot.slane %v182, 4
  %v185 = vor.u32 %v184, %v180
  %v186 = vrot.slane %v185, 4
  %v188 = vshll.u32 %v22, 16
  %v190 = vrot.slane %v188, 5
  %v191 = vsel %vm143, %v186, %v190
  %v193 = vshrl.u32 %v23, 16
  %v195 = vrot.slane %v193, 4
  %v196 = vshll.u32 %v23, 16
  %v198 = vrot.slane %v196, 5
  %v199 = vor.u32 %v195, %v198
  %v200 = vrot.slane %v199, 4
  %v202 = vshll.u32 %v24, 16
  %v204 = vrot.slane %v202, 5
  %v205 = vsel %vm143, %v200, %v204
  %v206 = vshrl.u32 %v24, 16
  %v208 = vrot.slane %v206, 4
  %v209 = vor.u32 %v208, %v204
  %v210 = vrot.slane %v209, 4
  %v212 = vshll.u32 %v25, 16
  %v214 = vrot.slane %v212, 5
  %v215 = vsel %vm143, %v210, %v214
  %v217 = vshrl.u32 %v26, 16
  %v219 = vrot.slane %v217, 4
  %v220 = vshll.u32 %v26, 16
  %v222 = vrot.slane %v220, 5
  %v223 = vor.u32 %v219, %v222
  %v224 = vrot.slane %v223, 4
  %v226 = vshll.u32 %v27, 16
  %v228 = vrot.slane %v226, 5
  %v229 = vsel %vm143, %v224, %v228
  %v230 = vshrl.u32 %v27, 16
  %v232 = vrot.slane %v230, 4
  %v233 = vor.u32 %v232, %v228
  %v234 = vrot.slane %v233, 4
  %v236 = vshll.u32 %v28, 16
  %v238 = vrot.slane %v236, 5
  %v239 = vsel %vm143, %v234, %v238
  %v241 = vshrl.u32 %v29, 16
  %v243 = vrot.slane %v241, 4
  %v244 = vshll.u32 %v29, 16
  %v246 = vrot.slane %v244, 5
  %v247 = vor.u32 %v243, %v246
  %v248 = vrot.slane %v247, 4
  %v250 = vshll.u32 %v30, 16
  %v252 = vrot.slane %v250, 5
  %v253 = vsel %vm143, %v248, %v252
  %v254 = vshrl.u32 %v30, 16
  %v256 = vrot.slane %v254, 4
  %v257 = vor.u32 %v256, %v252
  %v258 = vrot.slane %v257, 4
  %v260 = vshll.u32 %v31, 16
  %v262 = vrot.slane %v260, 5
  %v263 = vsel %vm143, %v258, %v262
  %v265 = vshrl.u32 %v32, 16
  %v267 = vrot.slane %v265, 4
  %v268 = vshll.u32 %v32, 16
  %v270 = vrot.slane %v268, 5
  %v271 = vor.u32 %v267, %v270
  %v272 = vrot.slane %v271, 4
  %v274 = vshll.u32 %v33, 16
  %v276 = vrot.slane %v274, 5
  %v277 = vsel %vm143, %v272, %v276
  %v278 = vshrl.u32 %v33, 16
  %v280 = vrot.slane %v278, 4
  %v281 = vor.u32 %v280, %v276
  %v282 = vrot.slane %v281, 4
  %v284 = vshll.u32 %v34, 16
  %v286 = vrot.slane %v284, 5
  %v287 = vsel %vm143, %v282, %v286
  %v289 = vshrl.u32 %v35, 16
  %v291 = vrot.slane %v289, 4
  %v292 = vshll.u32 %v35, 16
  %v294 = vrot.slane %v292, 5
  %v295 = vor.u32 %v291, %v294
  %v296 = vrot.slane %v295, 4
  %v298 = vshll.u32 %v36, 16
  %v300 = vrot.slane %v298, 5
  %v301 = vsel %vm143, %v296, %v300
  %v302 = vshrl.u32 %v36, 16
  %v304 = vrot.slane %v302, 4
  %v305 = vor.u32 %v304, %v300
  %v306 = vrot.slane %v305, 4
  %v308 = vshll.u32 %v37, 16
  %v310 = vrot.slane %v308, 5
  %v311 = vsel %vm143, %v306, %v310
  %v313 = vshrl.u32 %v38, 16
  %v315 = vrot.slane %v313, 4
  %v316 = vshll.u32 %v38, 16
  %v318 = vrot.slane %v316, 5
  %v319 = vor.u32 %v315, %v318
  %v320 = vrot.slane %v319, 4
  %v322 = vshll.u32 %v39, 16
  %v324 = vrot.slane %v322, 5
  %v325 = vsel %vm143, %v320, %v324
  %v326 = vshrl.u32 %v39, 16
  %v328 = vrot.slane %v326, 4
  %v329 = vor.u32 %v328, %v324
  %v330 = vrot.slane %v329, 4
  %v332 = vshll.u32 %v40, 16
  %v334 = vrot.slane %v332, 5
  %v335 = vsel %vm143, %v330, %v334
  %v337 = vshrl.u32 %v41, 16
  %v339 = vrot.slane %v337, 4
  %v340 = vshll.u32 %v41, 16
  %v342 = vrot.slane %v340, 5
  %v343 = vor.u32 %v339, %v342
  %v344 = vrot.slane %v343, 4
  %v346 = vshll.u32 %v42, 16
  %v348 = vrot.slane %v346, 5
  %v349 = vsel %vm143, %v344, %v348
  %v350 = vshrl.u32 %v42, 16
  %v352 = vrot.slane %v350, 4
  %v353 = vor.u32 %v352, %v348
  %v354 = vrot.slane %v353, 4
  %v356 = vshll.u32 %v43, 16
  %v358 = vrot.slane %v356, 5
  %v359 = vsel %vm143, %v354, %v358
  %v361 = vshrl.u32 %v44, 16
  %v363 = vrot.slane %v361, 4
  %v364 = vshll.u32 %v44, 16
  %v366 = vrot.slane %v364, 5
  %v367 = vor.u32 %v363, %v366
  %v368 = vrot.slane %v367, 4
  %v370 = vshll.u32 %v45, 16
  %v372 = vrot.slane %v370, 5
  %v373 = vsel %vm143, %v368, %v372
  %v374 = vshrl.u32 %v45, 16
  %v376 = vrot.slane %v374, 4
  %v377 = vor.u32 %v376, %v372
  %v378 = vrot.slane %v377, 4
  %v380 = vshll.u32 %v46, 16
  %v382 = vrot.slane %v380, 5
  %v383 = vsel %vm143, %v378, %v382
  %v385 = vshrl.u32 %v47, 16
  %v387 = vrot.slane %v385, 4
  %v388 = vshll.u32 %v47, 16
  %v390 = vrot.slane %v388, 5
  %v391 = vor.u32 %v387, %v390
  %v392 = vrot.slane %v391, 4
  %v394 = vshll.u32 %v48, 16
  %v396 = vrot.slane %v394, 5
  %v397 = vsel %vm143, %v392, %v396
  %v398 = vshrl.u32 %v48, 16
  %v400 = vrot.slane %v398, 4
  %v401 = vor.u32 %v400, %v396
  %v402 = vrot.slane %v401, 4
  %v404 = vshll.u32 %v49, 16
  %v406 = vrot.slane %v404, 5
  %v407 = vsel %vm143, %v402, %v406
  %v409 = vshrl.u32 %v50, 16
  %v411 = vrot.slane %v409, 4
  %v412 = vshll.u32 %v50, 16
  %v414 = vrot.slane %v412, 5
  %v415 = vor.u32 %v411, %v414
  %v416 = vrot.slane %v415, 4
  %v418 = vshll.u32 %v51, 16
  %v420 = vrot.slane %v418, 5
  %v421 = vsel %vm143, %v416, %v420
  %v422 = vshrl.u32 %v51, 16
  %v424 = vrot.slane %v422, 4
  %v425 = vor.u32 %v424, %v420
  %v426 = vrot.slane %v425, 4
  %v428 = vshll.u32 %v52, 16
  %v430 = vrot.slane %v428, 5
  %v431 = vsel %vm143, %v426, %v430
  %v433 = vshrl.u32 %v53, 16
  %v435 = vrot.slane %v433, 4
  %v436 = vshll.u32 %v53, 16
  %v438 = vrot.slane %v436, 5
  %v439 = vor.u32 %v435, %v438
  %v440 = vrot.slane %v439, 4
  %v442 = vshll.u32 %v54, 16
  %v444 = vrot.slane %v442, 5
  %v445 = vsel %vm143, %v440, %v444
  %v446 = vshrl.u32 %v54, 16
  %v448 = vrot.slane %v446, 4
  %v449 = vor.u32 %v448, %v444
  %v450 = vrot.slane %v449, 4
  %v452 = vshll.u32 %v55, 16
  %v454 = vrot.slane %v452, 5
  %v455 = vsel %vm143, %v450, %v454
  %v457 = vshrl.u32 %v56, 16
  %v459 = vrot.slane %v457, 4
  %v460 = vshll.u32 %v56, 16
  %v462 = vrot.slane %v460, 5
  %v463 = vor.u32 %v459, %v462
  %v464 = vrot.slane %v463, 4
  %v466 = vshll.u32 %v57, 16
  %v468 = vrot.slane %v466, 5
  %v469 = vsel %vm143, %v464, %v468
  %v470 = vshrl.u32 %v57, 16
  %v472 = vrot.slane %v470, 4
  %v473 = vor.u32 %v472, %v468
  %v474 = vrot.slane %v473, 4
  %v476 = vshll.u32 %v58, 16
  %v478 = vrot.slane %v476, 5
  %v479 = vsel %vm143, %v474, %v478
  %v481 = vshrl.u32 %v59, 16
  %v483 = vrot.slane %v481, 4
  %v484 = vshll.u32 %v59, 16
  %v486 = vrot.slane %v484, 5
  %v487 = vor.u32 %v483, %v486
  %v488 = vrot.slane %v487, 4
  %v490 = vshll.u32 %v60, 16
  %v492 = vrot.slane %v490, 5
  %v493 = vsel %vm143, %v488, %v492
  %v494 = vshrl.u32 %v60, 16
  %v496 = vrot.slane %v494, 4
  %v497 = vor.u32 %v496, %v492
  %v498 = vrot.slane %v497, 4
  %v500 = vshll.u32 %v61, 16
  %v502 = vrot.slane %v500, 5
  %v503 = vsel %vm143, %v498, %v502
  %v505 = vshrl.u32 %v62, 16
  %v507 = vrot.slane %v505, 4
  %v508 = vshll.u32 %v62, 16
  %v510 = vrot.slane %v508, 5
  %v511 = vor.u32 %v507, %v510
  %v512 = vrot.slane %v511, 4
  %v514 = vshll.u32 %v63, 16
  %v516 = vrot.slane %v514, 5
  %v517 = vsel %vm143, %v512, %v516
  %v518 = vshrl.u32 %v63, 16
  %v520 = vrot.slane %v518, 4
  %v521 = vor.u32 %v520, %v516
  %v522 = vrot.slane %v521, 4
  %v524 = vshll.u32 %v64, 16
  %v526 = vrot.slane %v524, 5
  %v527 = vsel %vm143, %v522, %v526
  %v529 = vshrl.u32 %v71, 16
  %v531 = vrot.slane %v529, 4
  %v532 = vshll.u32 %v71, 16
  %v534 = vrot.slane %v532, 5
  %v535 = vor.u32 %v531, %v534
  %v536 = vrot.slane %v535, 4
  %v538 = vshll.u32 %v72, 16
  %v540 = vrot.slane %v538, 5
  %v541 = vsel %vm143, %v536, %v540
  %v542 = vshrl.u32 %v72, 16
  %v544 = vrot.slane %v542, 4
  %v545 = vor.u32 %v544, %v540
  %v546 = vrot.slane %v545, 4
  %v548 = vshll.u32 %v73, 16
  %v550 = vrot.slane %v548, 5
  %v551 = vsel %vm143, %v546, %v550
  %v553 = vshrl.u32 %v74, 16
  %v555 = vrot.slane %v553, 4
  %v556 = vshll.u32 %v74, 16
  %v558 = vrot.slane %v556, 5
  %v559 = vor.u32 %v555, %v558
  %v560 = vrot.slane %v559, 4
  %v562 = vshll.u32 %v75, 16
  %v564 = vrot.slane %v562, 5
  %v565 = vsel %vm143, %v560, %v564
  %v566 = vshrl.u32 %v75, 16
  %v568 = vrot.slane %v566, 4
  %v569 = vor.u32 %v568, %v564
  %v570 = vrot.slane %v569, 4
  %v572 = vshll.u32 %v76, 16
  %v574 = vrot.slane %v572, 5
  %v575 = vsel %vm143, %v570, %v574
  %v577 = vshrl.u32 %v77, 16
  %v579 = vrot.slane %v577, 4
  %v580 = vshll.u32 %v77, 16
  %v582 = vrot.slane %v580, 5
  %v583 = vor.u32 %v579, %v582
  %v584 = vrot.slane %v583, 4
  %v586 = vshll.u32 %v78, 16
  %v588 = vrot.slane %v586, 5
  %v589 = vsel %vm143, %v584, %v588
  %v590 = vshrl.u32 %v78, 16
  %v592 = vrot.slane %v590, 4
  %v593 = vor.u32 %v592, %v588
  %v594 = vrot.slane %v593, 4
  %v596 = vshll.u32 %v79, 16
  %v598 = vrot.slane %v596, 5
  %v599 = vsel %vm143, %v594, %v598
  %v601 = vshrl.u32 %v80, 16
  %v603 = vrot.slane %v601, 4
  %v604 = vshll.u32 %v80, 16
  %v606 = vrot.slane %v604, 5
  %v607 = vor.u32 %v603, %v606
  %v608 = vrot.slane %v607, 4
  %v610 = vshll.u32 %v81, 16
  %v612 = vrot.slane %v610, 5
  %v613 = vsel %vm143, %v608, %v612
  %v614 = vshrl.u32 %v81, 16
  %v616 = vrot.slane %v614, 4
  %v617 = vor.u32 %v616, %v612
  %v618 = vrot.slane %v617, 4
  %v620 = vshll.u32 %v82, 16
  %v622 = vrot.slane %v620, 5
  %v623 = vsel %vm143, %v618, %v622
  %v625 = vshrl.u32 %v83, 16
  %v627 = vrot.slane %v625, 4
  %v628 = vshll.u32 %v83, 16
  %v630 = vrot.slane %v628, 5
  %v631 = vor.u32 %v627, %v630
  %v632 = vrot.slane %v631, 4
  %v634 = vshll.u32 %v84, 16
  %v636 = vrot.slane %v634, 5
  %v637 = vsel %vm143, %v632, %v636
  %v638 = vshrl.u32 %v84, 16
  %v640 = vrot.slane %v638, 4
  %v641 = vor.u32 %v640, %v636
  %v642 = vrot.slane %v641, 4
  %v644 = vshll.u32 %v85, 16
  %v646 = vrot.slane %v644, 5
  %v647 = vsel %vm143, %v642, %v646
  %v649 = vshrl.u32 %v86, 16
  %v651 = vrot.slane %v649, 4
  %v652 = vshll.u32 %v86, 16
  %v654 = vrot.slane %v652, 5
  %v655 = vor.u32 %v651, %v654
  %v656 = vrot.slane %v655, 4
  %v658 = vshll.u32 %v87, 16
  %v660 = vrot.slane %v658, 5
  %v661 = vsel %vm143, %v656, %v660
  %v662 = vshrl.u32 %v87, 16
  %v664 = vrot.slane %v662, 4
  %v665 = vor.u32 %v664, %v660
  %v666 = vrot.slane %v665, 4
  %v668 = vshll.u32 %v88, 16
  %v670 = vrot.slane %v668, 5
  %v671 = vsel %vm143, %v666, %v670
  %v673 = vshrl.u32 %v89, 16
  %v675 = vrot.slane %v673, 4
  %v676 = vshll.u32 %v89, 16
  %v678 = vrot.slane %v676, 5
  %v679 = vor.u32 %v675, %v678
  %v680 = vrot.slane %v679, 4
  %v682 = vshll.u32 %v90, 16
  %v684 = vrot.slane %v682, 5
  %v685 = vsel %vm143, %v680, %v684
  %v686 = vshrl.u32 %v90, 16
  %v688 = vrot.slane %v686, 4
  %v689 = vor.u32 %v688, %v684
  %v690 = vrot.slane %v689, 4
  %v692 = vshll.u32 %v91, 16
  %v694 = vrot.slane %v692, 5
  %v695 = vsel %vm143, %v690, %v694
  %v697 = vshrl.u32 %v92, 16
  %v699 = vrot.slane %v697, 4
  %v700 = vshll.u32 %v92, 16
  %v702 = vrot.slane %v700, 5
  %v703 = vor.u32 %v699, %v702
  %v704 = vrot.slane %v703, 4
  %v706 = vshll.u32 %v93, 16
  %v708 = vrot.slane %v706, 5
  %v709 = vsel %vm143, %v704, %v708
  %v710 = vshrl.u32 %v93, 16
  %v712 = vrot.slane %v710, 4
  %v713 = vor.u32 %v712, %v708
  %v714 = vrot.slane %v713, 4
  %v716 = vshll.u32 %v94, 16
  %v718 = vrot.slane %v716, 5
  %v719 = vsel %vm143, %v714, %v718
  %v721 = vshrl.u32 %v95, 16
  %v723 = vrot.slane %v721, 4
  %v724 = vshll.u32 %v95, 16
  %v726 = vrot.slane %v724, 5
  %v727 = vor.u32 %v723, %v726
  %v728 = vrot.slane %v727, 4
  %v730 = vshll.u32 %v96, 16
  %v732 = vrot.slane %v730, 5
  %v733 = vsel %vm143, %v728, %v732
  %v734 = vshrl.u32 %v96, 16
  %v736 = vrot.slane %v734, 4
  %v737 = vor.u32 %v736, %v732
  %v738 = vrot.slane %v737, 4
  %v740 = vshll.u32 %v97, 16
  %v742 = vrot.slane %v740, 5
  %v743 = vsel %vm143, %v738, %v742
  %v745 = vshrl.u32 %v98, 16
  %v747 = vrot.slane %v745, 4
  %v748 = vshll.u32 %v98, 16
  %v750 = vrot.slane %v748, 5
  %v751 = vor.u32 %v747, %v750
  %v752 = vrot.slane %v751, 4
  %v754 = vshll.u32 %v99, 16
  %v756 = vrot.slane %v754, 5
  %v757 = vsel %vm143, %v752, %v756
  %v758 = vshrl.u32 %v99, 16
  %v760 = vrot.slane %v758, 4
  %v761 = vor.u32 %v760, %v756
  %v762 = vrot.slane %v761, 4
  %v764 = vshll.u32 %v100, 16
  %v766 = vrot.slane %v764, 5
  %v767 = vsel %vm143, %v762, %v766
  %v769 = vshrl.u32 %v101, 16
  %v771 = vrot.slane %v769, 4
  %v772 = vshll.u32 %v101, 16
  %v774 = vrot.slane %v772, 5
  %v775 = vor.u32 %v771, %v774
  %v776 = vrot.slane %v775, 4
  %v778 = vshll.u32 %v102, 16
  %v780 = vrot.slane %v778, 5
  %v781 = vsel %vm143, %v776, %v780
  %v782 = vshrl.u32 %v102, 16
  %v784 = vrot.slane %v782, 4
  %v785 = vor.u32 %v784, %v780
  %v786 = vrot.slane %v785, 4
  %v788 = vshll.u32 %v103, 16
  %v790 = vrot.slane %v788, 5
  %v791 = vsel %vm143, %v786, %v790
  %v793 = vshrl.u32 %v104, 16
  %v795 = vrot.slane %v793, 4
  %v796 = vshll.u32 %v104, 16
  %v798 = vrot.slane %v796, 5
  %v799 = vor.u32 %v795, %v798
  %v800 = vrot.slane %v799, 4
  %v802 = vshll.u32 %v105, 16
  %v804 = vrot.slane %v802, 5
  %v805 = vsel %vm143, %v800, %v804
  %v806 = vshrl.u32 %v105, 16
  %v808 = vrot.slane %v806, 4
  %v809 = vor.u32 %v808, %v804
  %v810 = vrot.slane %v809, 4
  %v812 = vshll.u32 %v106, 16
  %v814 = vrot.slane %v812, 5
  %v815 = vsel %vm143, %v810, %v814
  %v817 = vshrl.u32 %v107, 16
  %v819 = vrot.slane %v817, 4
  %v820 = vshll.u32 %v107, 16
  %v822 = vrot.slane %v820, 5
  %v823 = vor.u32 %v819, %v822
  %v824 = vrot.slane %v823, 4
  %v826 = vshll.u32 %v108, 16
  %v828 = vrot.slane %v826, 5
  %v829 = vsel %vm143, %v824, %v828
  %v830 = vshrl.u32 %v108, 16
  %v832 = vrot.slane %v830, 4
  %v833 = vor.u32 %v832, %v828
  %v834 = vrot.slane %v833, 4
  %v836 = vshll.u32 %v109, 16
  %v838 = vrot.slane %v836, 5
  %v839 = vsel %vm143, %v834, %v838
  %v841 = vshrl.u32 %v110, 16
  %v843 = vrot.slane %v841, 4
  %v844 = vshll.u32 %v110, 16
  %v846 = vrot.slane %v844, 5
  %v847 = vor.u32 %v843, %v846
  %v848 = vrot.slane %v847, 4
  %v850 = vshll.u32 %v111, 16
  %v852 = vrot.slane %v850, 5
  %v853 = vsel %vm143, %v848, %v852
  %v854 = vshrl.u32 %v111, 16
  %v856 = vrot.slane %v854, 4
  %v857 = vor.u32 %v856, %v852
  %v858 = vrot.slane %v857, 4
  %v860 = vshll.u32 %v112, 16
  %v862 = vrot.slane %v860, 5
  %v863 = vsel %vm143, %v858, %v862
  %v865 = vshrl.u32 %v113, 16
  %v867 = vrot.slane %v865, 4
  %v868 = vshll.u32 %v113, 16
  %v870 = vrot.slane %v868, 5
  %v871 = vor.u32 %v867, %v870
  %v872 = vrot.slane %v871, 4
  %v874 = vshll.u32 %v114, 16
  %v876 = vrot.slane %v874, 5
  %v877 = vsel %vm143, %v872, %v876
  %v878 = vshrl.u32 %v114, 16
  %v880 = vrot.slane %v878, 4
  %v881 = vor.u32 %v880, %v876
  %v882 = vrot.slane %v881, 4
  %v884 = vshll.u32 %v115, 16
  %v886 = vrot.slane %v884, 5
  %v887 = vsel %vm143, %v882, %v886
  %v889 = vshrl.u32 %v116, 16
  %v891 = vrot.slane %v889, 4
  %v892 = vshll.u32 %v116, 16
  %v894 = vrot.slane %v892, 5
  %v895 = vor.u32 %v891, %v894
  %v896 = vrot.slane %v895, 4
  %v898 = vshll.u32 %v117, 16
  %v900 = vrot.slane %v898, 5
  %v901 = vsel %vm143, %v896, %v900
  %v902 = vshrl.u32 %v117, 16
  %v904 = vrot.slane %v902, 4
  %v905 = vor.u32 %v904, %v900
  %v906 = vrot.slane %v905, 4
  %v908 = vshll.u32 %v118, 16
  %v910 = vrot.slane %v908, 5
  %v911 = vsel %vm143, %v906, %v910
  %s912 = scalar_lea.vmem %s1, 64
  %v913 = vld [vmem:[%s912] sm:$0xf]
  %v914 = vld [vmem:[%s912 + $0x4] sm:$0xf]
  %v915 = vld [vmem:[%s912 + $0x8] sm:$0xf]
  %v916 = vld [vmem:[%s912 + $0xc] sm:$0xf]
  %v917 = vld [vmem:[%s912 + $0x10] sm:$0xf]
  %v918 = vld [vmem:[%s912 + $0x14] sm:$0xf]
  %v919 = vld [vmem:[%s912 + $0x18] sm:$0xf]
  %v920 = vld [vmem:[%s912 + $0x1c] sm:$0xf]
  %v921 = vld [vmem:[%s912 + $0x20] sm:$0xf]
  %v922 = vld [vmem:[%s912 + $0x24] sm:$0xf]
  %v923 = vld [vmem:[%s912 + $0x28] sm:$0xf]
  %v924 = vld [vmem:[%s912 + $0x2c] sm:$0xf]
  %v925 = vld [vmem:[%s912 + $0x30] sm:$0xf]
  %v926 = vld [vmem:[%s912 + $0x34] sm:$0xf]
  %v927 = vld [vmem:[%s912 + $0x38] sm:$0xf]
  %v928 = vld [vmem:[%s912 + $0x3c] sm:$0xf]
  %v929 = vunpack.c.l.b16 %v157
  %v930 = vunpack.c.l.b16 %v167
  %v931 = vunpack.c.l.b16 %v181
  %v932 = vunpack.c.l.b16 %v191
  %v933 = vunpack.c.l.b16 %v205
  %v934 = vunpack.c.l.b16 %v215
  %v935 = vunpack.c.l.b16 %v229
  %v936 = vunpack.c.l.b16 %v239
  %v937 = vunpack.c.l.b16 %v253
  %v938 = vunpack.c.l.b16 %v263
  %v939 = vunpack.c.l.b16 %v277
  %v940 = vunpack.c.l.b16 %v287
  %v941 = vunpack.c.l.b16 %v301
  %v942 = vunpack.c.l.b16 %v311
  %v943 = vunpack.c.l.b16 %v325
  %v944 = vunpack.c.l.b16 %v335
  %v945 = vunpack.c.l.b16 %v349
  %v946 = vunpack.c.l.b16 %v359
  %v947 = vunpack.c.l.b16 %v373
  %v948 = vunpack.c.l.b16 %v383
  %v949 = vunpack.c.l.b16 %v397
  %v950 = vunpack.c.l.b16 %v407
  %v951 = vunpack.c.l.b16 %v421
  %v952 = vunpack.c.l.b16 %v431
  %v953 = vunpack.c.l.b16 %v445
  %v954 = vunpack.c.l.b16 %v455
  %v955 = vunpack.c.l.b16 %v469
  %v956 = vunpack.c.l.b16 %v479
  %v957 = vunpack.c.l.b16 %v493
  %v958 = vunpack.c.l.b16 %v503
  %v959 = vunpack.c.l.b16 %v517
  %v960 = vunpack.c.l.b16 %v527
  %v961 = vunpack.c.l.b16 %v541
  %v962 = vunpack.c.l.b16 %v551
  %v963 = vunpack.c.l.b16 %v565
  %v964 = vunpack.c.l.b16 %v575
  %v965 = vunpack.c.l.b16 %v589
  %v966 = vunpack.c.l.b16 %v599
  %v967 = vunpack.c.l.b16 %v613
  %v968 = vunpack.c.l.b16 %v623
  %v969 = vunpack.c.l.b16 %v637
  %v970 = vunpack.c.l.b16 %v647
  %v971 = vunpack.c.l.b16 %v661
  %v972 = vunpack.c.l.b16 %v671
  %v973 = vunpack.c.l.b16 %v685
  %v974 = vunpack.c.l.b16 %v695
  %v975 = vunpack.c.l.b16 %v709
  %v976 = vunpack.c.l.b16 %v719
  %v977 = vunpack.c.l.b16 %v733
  %v978 = vunpack.c.l.b16 %v743
  %v979 = vunpack.c.l.b16 %v757
  %v980 = vunpack.c.l.b16 %v767
  %v981 = vunpack.c.l.b16 %v781
  %v982 = vunpack.c.l.b16 %v791
  %v983 = vunpack.c.l.b16 %v805
  %v984 = vunpack.c.l.b16 %v815
  %v985 = vunpack.c.l.b16 %v829
  %v986 = vunpack.c.l.b16 %v839
  %v987 = vunpack.c.l.b16 %v853
  %v988 = vunpack.c.l.b16 %v863
  %v989 = vunpack.c.l.b16 %v877
  %v990 = vunpack.c.l.b16 %v887
  %v991 = vunpack.c.l.b16 %v901
  %v992 = vunpack.c.l.b16 %v911
  %v993 = vpack.c.b16 %v930, %v929
  %v994 = vpack.c.b16 %v932, %v931
  %v995 = vpack.c.b16 %v934, %v933
  %v996 = vpack.c.b16 %v936, %v935
  %v997 = vpack.c.b16 %v938, %v937
  %v998 = vpack.c.b16 %v940, %v939
  %v999 = vpack.c.b16 %v942, %v941
  %v1000 = vpack.c.b16 %v944, %v943
  %v1001 = vpack.c.b16 %v946, %v945
  %v1002 = vpack.c.b16 %v948, %v947
  %v1003 = vpack.c.b16 %v950, %v949
  %v1004 = vpack.c.b16 %v952, %v951
  %v1005 = vpack.c.b16 %v954, %v953
  %v1006 = vpack.c.b16 %v956, %v955
  %v1007 = vpack.c.b16 %v958, %v957
  %v1008 = vpack.c.b16 %v960, %v959
  %v1009 = vpack.c.b16 %v962, %v961
  %v1010 = vpack.c.b16 %v964, %v963
  %v1011 = vpack.c.b16 %v966, %v965
  %v1012 = vpack.c.b16 %v968, %v967
  %v1013 = vpack.c.b16 %v970, %v969
  %v1014 = vpack.c.b16 %v972, %v971
  %v1015 = vpack.c.b16 %v974, %v973
  %v1016 = vpack.c.b16 %v976, %v975
  %v1017 = vpack.c.b16 %v978, %v977
  %v1018 = vpack.c.b16 %v980, %v979
  %v1019 = vpack.c.b16 %v982, %v981
  %v1020 = vpack.c.b16 %v984, %v983
  %v1021 = vpack.c.b16 %v986, %v985
  %v1022 = vpack.c.b16 %v988, %v987
  %v1023 = vpack.c.b16 %v990, %v989
  %v1024 = vpack.c.b16 %v992, %v991
  %v1073 = vunpack.c.l.b16 %v913
  %v1074 = vunpack.c.l.b16 %v914
  %v1075 = vunpack.c.l.b16 %v915
  %v1076 = vunpack.c.l.b16 %v916
  %v1077 = vunpack.c.l.b16 %v917
  %v1078 = vunpack.c.l.b16 %v918
  %v1079 = vunpack.c.l.b16 %v919
  %v1080 = vunpack.c.l.b16 %v920
  %v1081 = vunpack.c.l.b16 %v921
  %v1082 = vunpack.c.l.b16 %v922
  %v1083 = vunpack.c.l.b16 %v923
  %v1084 = vunpack.c.l.b16 %v924
  %v1085 = vunpack.c.l.b16 %v925
  %v1086 = vunpack.c.l.b16 %v926
  %v1087 = vunpack.c.l.b16 %v927
  %v1088 = vunpack.c.l.b16 %v928
  %v1089 = vpack.c.b16 %v1074, %v1073
  %v1090 = vpack.c.b16 %v1076, %v1075
  %v1091 = vpack.c.b16 %v1078, %v1077
  %v1092 = vpack.c.b16 %v1080, %v1079
  %v1093 = vpack.c.b16 %v1082, %v1081
  %v1094 = vpack.c.b16 %v1084, %v1083
  %v1095 = vpack.c.b16 %v1086, %v1085
  %v1096 = vpack.c.b16 %v1088, %v1087
  %1105 = vmatprep.subr.bf16.mxu0 0
  %1106 = vmatpush1.bf16.msra.mxu0 %v1089
  %1107 = vmatprep.subr.bf16.mxu0 0
  %1108 = vmatpush1.bf16.msra.mxu0 %v1090
  %1109 = vmatprep.subr.bf16.mxu0 0
  %1110 = vmatpush1.bf16.msra.mxu0 %v1091
  %1111 = vmatprep.subr.bf16.mxu0 0
  %1112 = vmatpush1.bf16.msra.mxu0 %v1092
  %1113 = vmatprep.subr.bf16.mxu0 0
  %1114 = vmatpush1.bf16.msra.mxu0 %v1093
  %1115 = vmatprep.subr.bf16.mxu0 0
  %1116 = vmatpush1.bf16.msra.mxu0 %v1094
  %1117 = vmatprep.subr.bf16.mxu0 0
  %1118 = vmatpush1.bf16.msra.mxu0 %v1095
  %1119 = vmatprep.subr.bf16.mxu0 0
  %1120 = vmatpush1.bf16.msra.mxu0 %v1096
  %1121 = vmatprep.subr.bf16.mxu0 0
  %1122 = vmatpush1.bf16.msra.mxu0 0
  %1123 = vmatprep.subr.bf16.mxu0 0
  %1124 = vmatpush1.bf16.msra.mxu0 0
  %1125 = vmatprep.subr.bf16.mxu0 0
  %1126 = vmatpush1.bf16.msra.mxu0 0
  %1127 = vmatprep.subr.bf16.mxu0 0
  %1128 = vmatpush1.bf16.msra.mxu0 0
  %1129 = vmatprep.subr.bf16.mxu0 0
  %1130 = vmatpush1.bf16.msra.mxu0 0
  %1131 = vmatprep.subr.bf16.mxu0 0
  %1132 = vmatpush1.bf16.msra.mxu0 0
  %1133 = vmatprep.subr.bf16.mxu0 0
  %1134 = vmatpush1.bf16.msra.mxu0 0
  %1135 = vmatprep.subr.bf16.mxu0 0
  %1136 = vmatpush1.bf16.msra.mxu0 0
  %1137 = vmatprep.mubr.bf16.mxu0 0
  %1138 = vmatmul.mubr.bf16.gmra.mrb[0].mxu0 %v993
  %v1139 = vpop.f32.mrb[0].mxu0
  %v1140 = vadd.f32 0.0, %v1139
  %v1141 = vpop.f32.mrb[0].mxu0
  %v1142 = vpop.f32.mrb[0].mxu0
  %v1143 = vadd.f32 0.0, %v1142
  %v1144 = vpop.f32.mrb[0].mxu0
  %1145 = vmatprep.mubr.bf16.mxu0 0
  %1146 = vmatmul.mubr.bf16.gmra.mrb[0].mxu0 %v994
  %v1147 = vpop.f32.mrb[0].mxu0
  %v1148 = vadd.f32 0.0, %v1147
  %v1149 = vpop.f32.mrb[0].mxu0
  %v1150 = vpop.f32.mrb[0].mxu0
  %v1151 = vadd.f32 0.0, %v1150
  %v1152 = vpop.f32.mrb[0].mxu0
  %1153 = vmatprep.mubr.bf16.mxu0 0
  %1154 = vmatmul.mubr.bf16.gmra.mrb[0].mxu0 %v995
  %v1155 = vpop.f32.mrb[0].mxu0
  %v1156 = vadd.f32 0.0, %v1155
  %v1157 = vpop.f32.mrb[0].mxu0
  %v1158 = vpop.f32.mrb[0].mxu0
  %v1159 = vadd.f32 0.0, %v1158
  %v1160 = vpop.f32.mrb[0].mxu0
  %1161 = vmatprep.mubr.bf16.mxu0 0
  %1162 = vmatmul.mubr.bf16.gmra.mrb[0].mxu0 %v996
  %v1163 = vpop.f32.mrb[0].mxu0
  %v1164 = vadd.f32 0.0, %v1163
  %v1165 = vpop.f32.mrb[0].mxu0
  %v1166 = vpop.f32.mrb[0].mxu0
  %v1167 = vadd.f32 0.0, %v1166
  %v1168 = vpop.f32.mrb[0].mxu0
  %1169 = vmatprep.mubr.bf16.mxu0 0
  %1170 = vmatmul.mubr.bf16.gmra.mrb[0].mxu0 %v997
  %v1171 = vpop.f32.mrb[0].mxu0
  %v1172 = vadd.f32 0.0, %v1171
  %v1173 = vpop.f32.mrb[0].mxu0
  %v1174 = vpop.f32.mrb[0].mxu0
  %v1175 = vadd.f32 0.0, %v1174
  %v1176 = vpop.f32.mrb[0].mxu0
  %1177 = vmatprep.mubr.bf16.mxu0 0
  %1178 = vmatmul.mubr.bf16.gmra.mrb[0].mxu0 %v998
  %v1179 = vpop.f32.mrb[0].mxu0
  %v1180 = vadd.f32 0.0, %v1179
  %v1181 = vpop.f32.mrb[0].mxu0
  %v1182 = vpop.f32.mrb[0].mxu0
  %v1183 = vadd.f32 0.0, %v1182
  %v1184 = vpop.f32.mrb[0].mxu0
  %1185 = vmatprep.mubr.bf16.mxu0 0
  %1186 = vmatmul.mubr.bf16.gmra.mrb[0].mxu0 %v999
  %v1187 = vpop.f32.mrb[0].mxu0
  %v1188 = vadd.f32 0.0, %v1187
  %v1189 = vpop.f32.mrb[0].mxu0
  %v1190 = vpop.f32.mrb[0].mxu0
  %v1191 = vadd.f32 0.0, %v1190
  %v1192 = vpop.f32.mrb[0].mxu0
  %1193 = vmatprep.mubr.bf16.mxu0 0
  %1194 = vmatmul.mubr.bf16.gmra.mrb[0].mxu0 %v1000
  %v1195 = vpop.f32.mrb[0].mxu0
  %v1196 = vadd.f32 0.0, %v1195
  %v1197 = vpop.f32.mrb[0].mxu0
  %v1198 = vpop.f32.mrb[0].mxu0
  %v1199 = vadd.f32 0.0, %v1198
  %v1200 = vpop.f32.mrb[0].mxu0
  %1201 = vmatprep.mubr.bf16.mxu0 0
  %1202 = vmatmul.mubr.bf16.gmra.mrb[0].mxu0 %v1001
  %v1203 = vpop.f32.mrb[0].mxu0
  %v1204 = vadd.f32 0.0, %v1203
  %v1205 = vpop.f32.mrb[0].mxu0
  %v1206 = vpop.f32.mrb[0].mxu0
  %v1207 = vadd.f32 0.0, %v1206
  %v1208 = vpop.f32.mrb[0].mxu0
  %1209 = vmatprep.mubr.bf16.mxu0 0
  %1210 = vmatmul.mubr.bf16.gmra.mrb[0].mxu0 %v1002
  %v1211 = vpop.f32.mrb[0].mxu0
  %v1212 = vadd.f32 0.0, %v1211
  %v1213 = vpop.f32.mrb[0].mxu0
  %v1214 = vpop.f32.mrb[0].mxu0
  %v1215 = vadd.f32 0.0, %v1214
  %v1216 = vpop.f32.mrb[0].mxu0
  %1217 = vmatprep.mubr.bf16.mxu0 0
  %1218 = vmatmul.mubr.bf16.gmra.mrb[0].mxu0 %v1003
  %v1219 = vpop.f32.mrb[0].mxu0
  %v1220 = vadd.f32 0.0, %v1219
  %v1221 = vpop.f32.mrb[0].mxu0
  %v1222 = vpop.f32.mrb[0].mxu0
  %v1223 = vadd.f32 0.0, %v1222
  %v1224 = vpop.f32.mrb[0].mxu0
  %1225 = vmatprep.mubr.bf16.mxu0 0
  %1226 = vmatmul.mubr.bf16.gmra.mrb[0].mxu0 %v1004
  %v1227 = vpop.f32.mrb[0].mxu0
  %v1228 = vadd.f32 0.0, %v1227
  %v1229 = vpop.f32.mrb[0].mxu0
  %v1230 = vpop.f32.mrb[0].mxu0
  %v1231 = vadd.f32 0.0, %v1230
  %v1232 = vpop.f32.mrb[0].mxu0
  %1233 = vmatprep.mubr.bf16.mxu0 0
  %1234 = vmatmul.mubr.bf16.gmra.mrb[0].mxu0 %v1005
  %v1235 = vpop.f32.mrb[0].mxu0
  %v1236 = vadd.f32 0.0, %v1235
  %v1237 = vpop.f32.mrb[0].mxu0
  %v1238 = vpop.f32.mrb[0].mxu0
  %v1239 = vadd.f32 0.0, %v1238
  %v1240 = vpop.f32.mrb[0].mxu0
  %1241 = vmatprep.mubr.bf16.mxu0 0
  %1242 = vmatmul.mubr.bf16.gmra.mrb[0].mxu0 %v1006
  %v1243 = vpop.f32.mrb[0].mxu0
  %v1244 = vadd.f32 0.0, %v1243
  %v1245 = vpop.f32.mrb[0].mxu0
  %v1246 = vpop.f32.mrb[0].mxu0
  %v1247 = vadd.f32 0.0, %v1246
  %v1248 = vpop.f32.mrb[0].mxu0
  %1249 = vmatprep.mubr.bf16.mxu0 0
  %1250 = vmatmul.mubr.bf16.gmra.mrb[0].mxu0 %v1007
  %v1251 = vpop.f32.mrb[0].mxu0
  %v1252 = vadd.f32 0.0, %v1251
  %v1253 = vpop.f32.mrb[0].mxu0
  %v1254 = vpop.f32.mrb[0].mxu0
  %v1255 = vadd.f32 0.0, %v1254
  %v1256 = vpop.f32.mrb[0].mxu0
  %1257 = vmatprep.mubr.bf16.mxu0 0
  %1258 = vmatmul.mubr.bf16.gmra.mrb[0].mxu0 %v1008
  %v1259 = vpop.f32.mrb[0].mxu0
  %v1260 = vadd.f32 0.0, %v1259
  %v1261 = vpop.f32.mrb[0].mxu0
  %v1262 = vpop.f32.mrb[0].mxu0
  %v1263 = vadd.f32 0.0, %v1262
  %v1264 = vpop.f32.mrb[0].mxu0
  %1265 = vmatprep.mubr.bf16.mxu0 0
  %1266 = vmatmul.mubr.bf16.gmra.mrb[0].mxu0 %v1009
  %v1267 = vpop.f32.mrb[0].mxu0
  %v1268 = vadd.f32 0.0, %v1267
  %v1269 = vpop.f32.mrb[0].mxu0
  %v1270 = vpop.f32.mrb[0].mxu0
  %v1271 = vadd.f32 0.0, %v1270
  %v1272 = vpop.f32.mrb[0].mxu0
  %1273 = vmatprep.mubr.bf16.mxu0 0
  %1274 = vmatmul.mubr.bf16.gmra.mrb[0].mxu0 %v1010
  %v1275 = vpop.f32.mrb[0].mxu0
  %v1276 = vadd.f32 0.0, %v1275
  %v1277 = vpop.f32.mrb[0].mxu0
  %v1278 = vpop.f32.mrb[0].mxu0
  %v1279 = vadd.f32 0.0, %v1278
  %v1280 = vpop.f32.mrb[0].mxu0
  %1281 = vmatprep.mubr.bf16.mxu0 0
  %1282 = vmatmul.mubr.bf16.gmra.mrb[0].mxu0 %v1011
  %v1283 = vpop.f32.mrb[0].mxu0
  %v1284 = vadd.f32 0.0, %v1283
  %v1285 = vpop.f32.mrb[0].mxu0
  %v1286 = vpop.f32.mrb[0].mxu0
  %v1287 = vadd.f32 0.0, %v1286
  %v1288 = vpop.f32.mrb[0].mxu0
  %1289 = vmatprep.mubr.bf16.mxu0 0
  %1290 = vmatmul.mubr.bf16.gmra.mrb[0].mxu0 %v1012
  %v1291 = vpop.f32.mrb[0].mxu0
  %v1292 = vadd.f32 0.0, %v1291
  %v1293 = vpop.f32.mrb[0].mxu0
  %v1294 = vpop.f32.mrb[0].mxu0
  %v1295 = vadd.f32 0.0, %v1294
  %v1296 = vpop.f32.mrb[0].mxu0
  %1297 = vmatprep.mubr.bf16.mxu0 0
  %1298 = vmatmul.mubr.bf16.gmra.mrb[0].mxu0 %v1013
  %v1299 = vpop.f32.mrb[0].mxu0
  %v1300 = vadd.f32 0.0, %v1299
  %v1301 = vpop.f32.mrb[0].mxu0
  %v1302 = vpop.f32.mrb[0].mxu0
  %v1303 = vadd.f32 0.0, %v1302
  %v1304 = vpop.f32.mrb[0].mxu0
  %1305 = vmatprep.mubr.bf16.mxu0 0
  %1306 = vmatmul.mubr.bf16.gmra.mrb[0].mxu0 %v1014
  %v1307 = vpop.f32.mrb[0].mxu0
  %v1308 = vadd.f32 0.0, %v1307
  %v1309 = vpop.f32.mrb[0].mxu0
  %v1310 = vpop.f32.mrb[0].mxu0
  %v1311 = vadd.f32 0.0, %v1310
  %v1312 = vpop.f32.mrb[0].mxu0
  %1313 = vmatprep.mubr.bf16.mxu0 0
  %1314 = vmatmul.mubr.bf16.gmra.mrb[0].mxu0 %v1015
  %v1315 = vpop.f32.mrb[0].mxu0
  %v1316 = vadd.f32 0.0, %v1315
  %v1317 = vpop.f32.mrb[0].mxu0
  %v1318 = vpop.f32.mrb[0].mxu0
  %v1319 = vadd.f32 0.0, %v1318
  %v1320 = vpop.f32.mrb[0].mxu0
  %1321 = vmatprep.mubr.bf16.mxu0 0
  %1322 = vmatmul.mubr.bf16.gmra.mrb[0].mxu0 %v1016
  %v1323 = vpop.f32.mrb[0].mxu0
  %v1324 = vadd.f32 0.0, %v1323
  %v1325 = vpop.f32.mrb[0].mxu0
  %v1326 = vpop.f32.mrb[0].mxu0
  %v1327 = vadd.f32 0.0, %v1326
  %v1328 = vpop.f32.mrb[0].mxu0
  %1329 = vmatprep.mubr.bf16.mxu0 0
  %1330 = vmatmul.mubr.bf16.gmra.mrb[0].mxu0 %v1017
  %v1331 = vpop.f32.mrb[0].mxu0
  %v1332 = vadd.f32 0.0, %v1331
  %v1333 = vpop.f32.mrb[0].mxu0
  %v1334 = vpop.f32.mrb[0].mxu0
  %v1335 = vadd.f32 0.0, %v1334
  %v1336 = vpop.f32.mrb[0].mxu0
  %1337 = vmatprep.mubr.bf16.mxu0 0
  %1338 = vmatmul.mubr.bf16.gmra.mrb[0].mxu0 %v1018
  %v1339 = vpop.f32.mrb[0].mxu0
  %v1340 = vadd.f32 0.0, %v1339
  %v1341 = vpop.f32.mrb[0].mxu0
  %v1342 = vpop.f32.mrb[0].mxu0
  %v1343 = vadd.f32 0.0, %v1342
  %v1344 = vpop.f32.mrb[0].mxu0
  %1345 = vmatprep.mubr.bf16.mxu0 0
  %1346 = vmatmul.mubr.bf16.gmra.mrb[0].mxu0 %v1019
  %v1347 = vpop.f32.mrb[0].mxu0
  %v1348 = vadd.f32 0.0, %v1347
  %v1349 = vpop.f32.mrb[0].mxu0
  %v1350 = vpop.f32.mrb[0].mxu0
  %v1351 = vadd.f32 0.0, %v1350
  %v1352 = vpop.f32.mrb[0].mxu0
  %1353 = vmatprep.mubr.bf16.mxu0 0
  %1354 = vmatmul.mubr.bf16.gmra.mrb[0].mxu0 %v1020
  %v1355 = vpop.f32.mrb[0].mxu0
  %v1356 = vadd.f32 0.0, %v1355
  %v1357 = vpop.f32.mrb[0].mxu0
  %v1358 = vpop.f32.mrb[0].mxu0
  %v1359 = vadd.f32 0.0, %v1358
  %v1360 = vpop.f32.mrb[0].mxu0
  %1361 = vmatprep.mubr.bf16.mxu0 0
  %1362 = vmatmul.mubr.bf16.gmra.mrb[0].mxu0 %v1021
  %v1363 = vpop.f32.mrb[0].mxu0
  %v1364 = vadd.f32 0.0, %v1363
  %v1365 = vpop.f32.mrb[0].mxu0
  %v1366 = vpop.f32.mrb[0].mxu0
  %v1367 = vadd.f32 0.0, %v1366
  %v1368 = vpop.f32.mrb[0].mxu0
  %1369 = vmatprep.mubr.bf16.mxu0 0
  %1370 = vmatmul.mubr.bf16.gmra.mrb[0].mxu0 %v1022
  %v1371 = vpop.f32.mrb[0].mxu0
  %v1372 = vadd.f32 0.0, %v1371
  %v1373 = vpop.f32.mrb[0].mxu0
  %v1374 = vpop.f32.mrb[0].mxu0
  %v1375 = vadd.f32 0.0, %v1374
  %v1376 = vpop.f32.mrb[0].mxu0
  %1377 = vmatprep.mubr.bf16.mxu0 0
  %1378 = vmatmul.mubr.bf16.gmra.mrb[0].mxu0 %v1023
  %v1379 = vpop.f32.mrb[0].mxu0
  %v1380 = vadd.f32 0.0, %v1379
  %v1381 = vpop.f32.mrb[0].mxu0
  %v1382 = vpop.f32.mrb[0].mxu0
  %v1383 = vadd.f32 0.0, %v1382
  %v1384 = vpop.f32.mrb[0].mxu0
  %1385 = vmatprep.mubr.bf16.mxu0 0
  %1386 = vmatmul.mubr.bf16.gmra.mrb[0].mxu0 %v1024
  %v1387 = vpop.f32.mrb[0].mxu0
  %v1388 = vadd.f32 0.0, %v1387
  %v1389 = vpop.f32.mrb[0].mxu0
  %v1390 = vpop.f32.mrb[0].mxu0
  %v1391 = vadd.f32 0.0, %v1390
  %v1392 = vpop.f32.mrb[0].mxu0
  %1393 = vdwg.mxu0
  %v1458 = vunpack.c.l.b16 %v17
  %v1459 = vunpack.c.l.b16 %v18
  %v1460 = vunpack.c.l.b16 %v20
  %v1461 = vunpack.c.l.b16 %v21
  %v1462 = vunpack.c.l.b16 %v23
  %v1463 = vunpack.c.l.b16 %v24
  %v1464 = vunpack.c.l.b16 %v26
  %v1465 = vunpack.c.l.b16 %v27
  %v1466 = vunpack.c.l.b16 %v29
  %v1467 = vunpack.c.l.b16 %v30
  %v1468 = vunpack.c.l.b16 %v32
  %v1469 = vunpack.c.l.b16 %v33
  %v1470 = vunpack.c.l.b16 %v35
  %v1471 = vunpack.c.l.b16 %v36
  %v1472 = vunpack.c.l.b16 %v38
  %v1473 = vunpack.c.l.b16 %v39
  %v1474 = vunpack.c.l.b16 %v41
  %v1475 = vunpack.c.l.b16 %v42
  %v1476 = vunpack.c.l.b16 %v44
  %v1477 = vunpack.c.l.b16 %v45
  %v1478 = vunpack.c.l.b16 %v47
  %v1479 = vunpack.c.l.b16 %v48
  %v1480 = vunpack.c.l.b16 %v50
  %v1481 = vunpack.c.l.b16 %v51
  %v1482 = vunpack.c.l.b16 %v53
  %v1483 = vunpack.c.l.b16 %v54
  %v1484 = vunpack.c.l.b16 %v56
  %v1485 = vunpack.c.l.b16 %v57
  %v1486 = vunpack.c.l.b16 %v59
  %v1487 = vunpack.c.l.b16 %v60
  %v1488 = vunpack.c.l.b16 %v62
  %v1489 = vunpack.c.l.b16 %v63
  %v1490 = vunpack.c.l.b16 %v71
  %v1491 = vunpack.c.l.b16 %v72
  %v1492 = vunpack.c.l.b16 %v74
  %v1493 = vunpack.c.l.b16 %v75
  %v1494 = vunpack.c.l.b16 %v77
  %v1495 = vunpack.c.l.b16 %v78
  %v1496 = vunpack.c.l.b16 %v80
  %v1497 = vunpack.c.l.b16 %v81
  %v1498 = vunpack.c.l.b16 %v83
  %v1499 = vunpack.c.l.b16 %v84
  %v1500 = vunpack.c.l.b16 %v86
  %v1501 = vunpack.c.l.b16 %v87
  %v1502 = vunpack.c.l.b16 %v89
  %v1503 = vunpack.c.l.b16 %v90
  %v1504 = vunpack.c.l.b16 %v92
  %v1505 = vunpack.c.l.b16 %v93
  %v1506 = vunpack.c.l.b16 %v95
  %v1507 = vunpack.c.l.b16 %v96
  %v1508 = vunpack.c.l.b16 %v98
  %v1509 = vunpack.c.l.b16 %v99
  %v1510 = vunpack.c.l.b16 %v101
  %v1511 = vunpack.c.l.b16 %v102
  %v1512 = vunpack.c.l.b16 %v104
  %v1513 = vunpack.c.l.b16 %v105
  %v1514 = vunpack.c.l.b16 %v107
  %v1515 = vunpack.c.l.b16 %v108
  %v1516 = vunpack.c.l.b16 %v110
  %v1517 = vunpack.c.l.b16 %v111
  %v1518 = vunpack.c.l.b16 %v113
  %v1519 = vunpack.c.l.b16 %v114
  %v1520 = vunpack.c.l.b16 %v116
  %v1521 = vunpack.c.l.b16 %v117
  %v1522 = vpack.c.b16 %v1459, %v1458
  %v1523 = vpack.c.b16 %v1461, %v1460
  %v1524 = vpack.c.b16 %v1463, %v1462
  %v1525 = vpack.c.b16 %v1465, %v1464
  %v1526 = vpack.c.b16 %v1467, %v1466
  %v1527 = vpack.c.b16 %v1469, %v1468
  %v1528 = vpack.c.b16 %v1471, %v1470
  %v1529 = vpack.c.b16 %v1473, %v1472
  %v1530 = vpack.c.b16 %v1475, %v1474
  %v1531 = vpack.c.b16 %v1477, %v1476
  %v1532 = vpack.c.b16 %v1479, %v1478
  %v1533 = vpack.c.b16 %v1481, %v1480
  %v1534 = vpack.c.b16 %v1483, %v1482
  %v1535 = vpack.c.b16 %v1485, %v1484
  %v1536 = vpack.c.b16 %v1487, %v1486
  %v1537 = vpack.c.b16 %v1489, %v1488
  %v1538 = vpack.c.b16 %v1491, %v1490
  %v1539 = vpack.c.b16 %v1493, %v1492
  %v1540 = vpack.c.b16 %v1495, %v1494
  %v1541 = vpack.c.b16 %v1497, %v1496
  %v1542 = vpack.c.b16 %v1499, %v1498
  %v1543 = vpack.c.b16 %v1501, %v1500
  %v1544 = vpack.c.b16 %v1503, %v1502
  %v1545 = vpack.c.b16 %v1505, %v1504
  %v1546 = vpack.c.b16 %v1507, %v1506
  %v1547 = vpack.c.b16 %v1509, %v1508
  %v1548 = vpack.c.b16 %v1511, %v1510
  %v1549 = vpack.c.b16 %v1513, %v1512
  %v1550 = vpack.c.b16 %v1515, %v1514
  %v1551 = vpack.c.b16 %v1517, %v1516
  %v1552 = vpack.c.b16 %v1519, %v1518
  %v1553 = vpack.c.b16 %v1521, %v1520
  %v1602 = vunpack.c.l.b16 %v125
  %v1603 = vunpack.c.l.b16 %v126
  %v1604 = vunpack.c.l.b16 %v127
  %v1605 = vunpack.c.l.b16 %v128
  %v1606 = vunpack.c.l.b16 %v129
  %v1607 = vunpack.c.l.b16 %v130
  %v1608 = vunpack.c.l.b16 %v131
  %v1609 = vunpack.c.l.b16 %v132
  %v1610 = vunpack.c.l.b16 %v133
  %v1611 = vunpack.c.l.b16 %v134
  %v1612 = vunpack.c.l.b16 %v135
  %v1613 = vunpack.c.l.b16 %v136
  %v1614 = vunpack.c.l.b16 %v137
  %v1615 = vunpack.c.l.b16 %v138
  %v1616 = vunpack.c.l.b16 %v139
  %v1617 = vunpack.c.l.b16 %v140
  %v1618 = vpack.c.b16 %v1603, %v1602
  %v1619 = vpack.c.b16 %v1605, %v1604
  %v1620 = vpack.c.b16 %v1607, %v1606
  %v1621 = vpack.c.b16 %v1609, %v1608
  %v1622 = vpack.c.b16 %v1611, %v1610
  %v1623 = vpack.c.b16 %v1613, %v1612
  %v1624 = vpack.c.b16 %v1615, %v1614
  %v1625 = vpack.c.b16 %v1617, %v1616
  %1634 = vmatprep.subr.bf16.mxu0 0
  %1635 = vmatpush1.bf16.msra.mxu0 %v1618
  %1636 = vmatprep.subr.bf16.mxu0 0
  %1637 = vmatpush1.bf16.msra.mxu0 %v1619
  %1638 = vmatprep.subr.bf16.mxu0 0
  %1639 = vmatpush1.bf16.msra.mxu0 %v1620
  %1640 = vmatprep.subr.bf16.mxu0 0
  %1641 = vmatpush1.bf16.msra.mxu0 %v1621
  %1642 = vmatprep.subr.bf16.mxu0 0
  %1643 = vmatpush1.bf16.msra.mxu0 %v1622
  %1644 = vmatprep.subr.bf16.mxu0 0
  %1645 = vmatpush1.bf16.msra.mxu0 %v1623
  %1646 = vmatprep.subr.bf16.mxu0 0
  %1647 = vmatpush1.bf16.msra.mxu0 %v1624
  %1648 = vmatprep.subr.bf16.mxu0 0
  %1649 = vmatpush1.bf16.msra.mxu0 %v1625
  %1650 = vmatprep.subr.bf16.mxu0 0
  %1651 = vmatpush1.bf16.msra.mxu0 0
  %1652 = vmatprep.subr.bf16.mxu0 0
  %1653 = vmatpush1.bf16.msra.mxu0 0
  %1654 = vmatprep.subr.bf16.mxu0 0
  %1655 = vmatpush1.bf16.msra.mxu0 0
  %1656 = vmatprep.subr.bf16.mxu0 0
  %1657 = vmatpush1.bf16.msra.mxu0 0
  %1658 = vmatprep.subr.bf16.mxu0 0
  %1659 = vmatpush1.bf16.msra.mxu0 0
  %1660 = vmatprep.subr.bf16.mxu0 0
  %1661 = vmatpush1.bf16.msra.mxu0 0
  %1662 = vmatprep.subr.bf16.mxu0 0
  %1663 = vmatpush1.bf16.msra.mxu0 0
  %1664 = vmatprep.subr.bf16.mxu0 0
  %1665 = vmatpush1.bf16.msra.mxu0 0
  %1666 = vmatprep.mubr.bf16.mxu0 0
  %1667 = vmatmul.mubr.bf16.gmra.mrb[0].mxu0 %v1522
  %v1668 = vpop.f32.mrb[0].mxu0
  %v1669 = vadd.f32 %v1140, %v1668
  %v1670 = vpop.f32.mrb[0].mxu0
  %v1671 = vpop.f32.mrb[0].mxu0
  %v1672 = vadd.f32 %v1143, %v1671
  %v1673 = vpop.f32.mrb[0].mxu0
  %1674 = vmatprep.mubr.bf16.mxu0 0
  %1675 = vmatmul.mubr.bf16.gmra.mrb[0].mxu0 %v1523
  %v1676 = vpop.f32.mrb[0].mxu0
  %v1677 = vadd.f32 %v1148, %v1676
  %v1678 = vpop.f32.mrb[0].mxu0
  %v1679 = vpop.f32.mrb[0].mxu0
  %v1680 = vadd.f32 %v1151, %v1679
  %v1681 = vpop.f32.mrb[0].mxu0
  %1682 = vmatprep.mubr.bf16.mxu0 0
  %1683 = vmatmul.mubr.bf16.gmra.mrb[0].mxu0 %v1524
  %v1684 = vpop.f32.mrb[0].mxu0
  %v1685 = vadd.f32 %v1156, %v1684
  %v1686 = vpop.f32.mrb[0].mxu0
  %v1687 = vpop.f32.mrb[0].mxu0
  %v1688 = vadd.f32 %v1159, %v1687
  %v1689 = vpop.f32.mrb[0].mxu0
  %1690 = vmatprep.mubr.bf16.mxu0 0
  %1691 = vmatmul.mubr.bf16.gmra.mrb[0].mxu0 %v1525
  %v1692 = vpop.f32.mrb[0].mxu0
  %v1693 = vadd.f32 %v1164, %v1692
  %v1694 = vpop.f32.mrb[0].mxu0
  %v1695 = vpop.f32.mrb[0].mxu0
  %v1696 = vadd.f32 %v1167, %v1695
  %v1697 = vpop.f32.mrb[0].mxu0
  %1698 = vmatprep.mubr.bf16.mxu0 0
  %1699 = vmatmul.mubr.bf16.gmra.mrb[0].mxu0 %v1526
  %v1700 = vpop.f32.mrb[0].mxu0
  %v1701 = vadd.f32 %v1172, %v1700
  %v1702 = vpop.f32.mrb[0].mxu0
  %v1703 = vpop.f32.mrb[0].mxu0
  %v1704 = vadd.f32 %v1175, %v1703
  %v1705 = vpop.f32.mrb[0].mxu0
  %1706 = vmatprep.mubr.bf16.mxu0 0
  %1707 = vmatmul.mubr.bf16.gmra.mrb[0].mxu0 %v1527
  %v1708 = vpop.f32.mrb[0].mxu0
  %v1709 = vadd.f32 %v1180, %v1708
  %v1710 = vpop.f32.mrb[0].mxu0
  %v1711 = vpop.f32.mrb[0].mxu0
  %v1712 = vadd.f32 %v1183, %v1711
  %v1713 = vpop.f32.mrb[0].mxu0
  %1714 = vmatprep.mubr.bf16.mxu0 0
  %1715 = vmatmul.mubr.bf16.gmra.mrb[0].mxu0 %v1528
  %v1716 = vpop.f32.mrb[0].mxu0
  %v1717 = vadd.f32 %v1188, %v1716
  %v1718 = vpop.f32.mrb[0].mxu0
  %v1719 = vpop.f32.mrb[0].mxu0
  %v1720 = vadd.f32 %v1191, %v1719
  %v1721 = vpop.f32.mrb[0].mxu0
  %1722 = vmatprep.mubr.bf16.mxu0 0
  %1723 = vmatmul.mubr.bf16.gmra.mrb[0].mxu0 %v1529
  %v1724 = vpop.f32.mrb[0].mxu0
  %v1725 = vadd.f32 %v1196, %v1724
  %v1726 = vpop.f32.mrb[0].mxu0
  %v1727 = vpop.f32.mrb[0].mxu0
  %v1728 = vadd.f32 %v1199, %v1727
  %v1729 = vpop.f32.mrb[0].mxu0
  %1730 = vmatprep.mubr.bf16.mxu0 0
  %1731 = vmatmul.mubr.bf16.gmra.mrb[0].mxu0 %v1530
  %v1732 = vpop.f32.mrb[0].mxu0
  %v1733 = vadd.f32 %v1204, %v1732
  %v1734 = vpop.f32.mrb[0].mxu0
  %v1735 = vpop.f32.mrb[0].mxu0
  %v1736 = vadd.f32 %v1207, %v1735
  %v1737 = vpop.f32.mrb[0].mxu0
  %1738 = vmatprep.mubr.bf16.mxu0 0
  %1739 = vmatmul.mubr.bf16.gmra.mrb[0].mxu0 %v1531
  %v1740 = vpop.f32.mrb[0].mxu0
  %v1741 = vadd.f32 %v1212, %v1740
  %v1742 = vpop.f32.mrb[0].mxu0
  %v1743 = vpop.f32.mrb[0].mxu0
  %v1744 = vadd.f32 %v1215, %v1743
  %v1745 = vpop.f32.mrb[0].mxu0
  %1746 = vmatprep.mubr.bf16.mxu0 0
  %1747 = vmatmul.mubr.bf16.gmra.mrb[0].mxu0 %v1532
  %v1748 = vpop.f32.mrb[0].mxu0
  %v1749 = vadd.f32 %v1220, %v1748
  %v1750 = vpop.f32.mrb[0].mxu0
  %v1751 = vpop.f32.mrb[0].mxu0
  %v1752 = vadd.f32 %v1223, %v1751
  %v1753 = vpop.f32.mrb[0].mxu0
  %1754 = vmatprep.mubr.bf16.mxu0 0
  %1755 = vmatmul.mubr.bf16.gmra.mrb[0].mxu0 %v1533
  %v1756 = vpop.f32.mrb[0].mxu0
  %v1757 = vadd.f32 %v1228, %v1756
  %v1758 = vpop.f32.mrb[0].mxu0
  %v1759 = vpop.f32.mrb[0].mxu0
  %v1760 = vadd.f32 %v1231, %v1759
  %v1761 = vpop.f32.mrb[0].mxu0
  %1762 = vmatprep.mubr.bf16.mxu0 0
  %1763 = vmatmul.mubr.bf16.gmra.mrb[0].mxu0 %v1534
  %v1764 = vpop.f32.mrb[0].mxu0
  %v1765 = vadd.f32 %v1236, %v1764
  %v1766 = vpop.f32.mrb[0].mxu0
  %v1767 = vpop.f32.mrb[0].mxu0
  %v1768 = vadd.f32 %v1239, %v1767
  %v1769 = vpop.f32.mrb[0].mxu0
  %1770 = vmatprep.mubr.bf16.mxu0 0
  %1771 = vmatmul.mubr.bf16.gmra.mrb[0].mxu0 %v1535
  %v1772 = vpop.f32.mrb[0].mxu0
  %v1773 = vadd.f32 %v1244, %v1772
  %v1774 = vpop.f32.mrb[0].mxu0
  %v1775 = vpop.f32.mrb[0].mxu0
  %v1776 = vadd.f32 %v1247, %v1775
  %v1777 = vpop.f32.mrb[0].mxu0
  %1778 = vmatprep.mubr.bf16.mxu0 0
  %1779 = vmatmul.mubr.bf16.gmra.mrb[0].mxu0 %v1536
  %v1780 = vpop.f32.mrb[0].mxu0
  %v1781 = vadd.f32 %v1252, %v1780
  %v1782 = vpop.f32.mrb[0].mxu0
  %v1783 = vpop.f32.mrb[0].mxu0
  %v1784 = vadd.f32 %v1255, %v1783
  %v1785 = vpop.f32.mrb[0].mxu0
  %1786 = vmatprep.mubr.bf16.mxu0 0
  %1787 = vmatmul.mubr.bf16.gmra.mrb[0].mxu0 %v1537
  %v1788 = vpop.f32.mrb[0].mxu0
  %v1789 = vadd.f32 %v1260, %v1788
  %v1790 = vpop.f32.mrb[0].mxu0
  %v1791 = vpop.f32.mrb[0].mxu0
  %v1792 = vadd.f32 %v1263, %v1791
  %v1793 = vpop.f32.mrb[0].mxu0
  %1794 = vmatprep.mubr.bf16.mxu0 0
  %1795 = vmatmul.mubr.bf16.gmra.mrb[0].mxu0 %v1538
  %v1796 = vpop.f32.mrb[0].mxu0
  %v1797 = vadd.f32 %v1268, %v1796
  %v1798 = vpop.f32.mrb[0].mxu0
  %v1799 = vpop.f32.mrb[0].mxu0
  %v1800 = vadd.f32 %v1271, %v1799
  %v1801 = vpop.f32.mrb[0].mxu0
  %1802 = vmatprep.mubr.bf16.mxu0 0
  %1803 = vmatmul.mubr.bf16.gmra.mrb[0].mxu0 %v1539
  %v1804 = vpop.f32.mrb[0].mxu0
  %v1805 = vadd.f32 %v1276, %v1804
  %v1806 = vpop.f32.mrb[0].mxu0
  %v1807 = vpop.f32.mrb[0].mxu0
  %v1808 = vadd.f32 %v1279, %v1807
  %v1809 = vpop.f32.mrb[0].mxu0
  %1810 = vmatprep.mubr.bf16.mxu0 0
  %1811 = vmatmul.mubr.bf16.gmra.mrb[0].mxu0 %v1540
  %v1812 = vpop.f32.mrb[0].mxu0
  %v1813 = vadd.f32 %v1284, %v1812
  %v1814 = vpop.f32.mrb[0].mxu0
  %v1815 = vpop.f32.mrb[0].mxu0
  %v1816 = vadd.f32 %v1287, %v1815
  %v1817 = vpop.f32.mrb[0].mxu0
  %1818 = vmatprep.mubr.bf16.mxu0 0
  %1819 = vmatmul.mubr.bf16.gmra.mrb[0].mxu0 %v1541
  %v1820 = vpop.f32.mrb[0].mxu0
  %v1821 = vadd.f32 %v1292, %v1820
  %v1822 = vpop.f32.mrb[0].mxu0
  %v1823 = vpop.f32.mrb[0].mxu0
  %v1824 = vadd.f32 %v1295, %v1823
  %v1825 = vpop.f32.mrb[0].mxu0
  %1826 = vmatprep.mubr.bf16.mxu0 0
  %1827 = vmatmul.mubr.bf16.gmra.mrb[0].mxu0 %v1542
  %v1828 = vpop.f32.mrb[0].mxu0
  %v1829 = vadd.f32 %v1300, %v1828
  %v1830 = vpop.f32.mrb[0].mxu0
  %v1831 = vpop.f32.mrb[0].mxu0
  %v1832 = vadd.f32 %v1303, %v1831
  %v1833 = vpop.f32.mrb[0].mxu0
  %1834 = vmatprep.mubr.bf16.mxu0 0
  %1835 = vmatmul.mubr.bf16.gmra.mrb[0].mxu0 %v1543
  %v1836 = vpop.f32.mrb[0].mxu0
  %v1837 = vadd.f32 %v1308, %v1836
  %v1838 = vpop.f32.mrb[0].mxu0
  %v1839 = vpop.f32.mrb[0].mxu0
  %v1840 = vadd.f32 %v1311, %v1839
  %v1841 = vpop.f32.mrb[0].mxu0
  %1842 = vmatprep.mubr.bf16.mxu0 0
  %1843 = vmatmul.mubr.bf16.gmra.mrb[0].mxu0 %v1544
  %v1844 = vpop.f32.mrb[0].mxu0
  %v1845 = vadd.f32 %v1316, %v1844
  %v1846 = vpop.f32.mrb[0].mxu0
  %v1847 = vpop.f32.mrb[0].mxu0
  %v1848 = vadd.f32 %v1319, %v1847
  %v1849 = vpop.f32.mrb[0].mxu0
  %1850 = vmatprep.mubr.bf16.mxu0 0
  %1851 = vmatmul.mubr.bf16.gmra.mrb[0].mxu0 %v1545
  %v1852 = vpop.f32.mrb[0].mxu0
  %v1853 = vadd.f32 %v1324, %v1852
  %v1854 = vpop.f32.mrb[0].mxu0
  %v1855 = vpop.f32.mrb[0].mxu0
  %v1856 = vadd.f32 %v1327, %v1855
  %v1857 = vpop.f32.mrb[0].mxu0
  %1858 = vmatprep.mubr.bf16.mxu0 0
  %1859 = vmatmul.mubr.bf16.gmra.mrb[0].mxu0 %v1546
  %v1860 = vpop.f32.mrb[0].mxu0
  %v1861 = vadd.f32 %v1332, %v1860
  %v1862 = vpop.f32.mrb[0].mxu0
  %v1863 = vpop.f32.mrb[0].mxu0
  %v1864 = vadd.f32 %v1335, %v1863
  %v1865 = vpop.f32.mrb[0].mxu0
  %1866 = vmatprep.mubr.bf16.mxu0 0
  %1867 = vmatmul.mubr.bf16.gmra.mrb[0].mxu0 %v1547
  %v1868 = vpop.f32.mrb[0].mxu0
  %v1869 = vadd.f32 %v1340, %v1868
  %v1870 = vpop.f32.mrb[0].mxu0
  %v1871 = vpop.f32.mrb[0].mxu0
  %v1872 = vadd.f32 %v1343, %v1871
  %v1873 = vpop.f32.mrb[0].mxu0
  %1874 = vmatprep.mubr.bf16.mxu0 0
  %1875 = vmatmul.mubr.bf16.gmra.mrb[0].mxu0 %v1548
  %v1876 = vpop.f32.mrb[0].mxu0
  %v1877 = vadd.f32 %v1348, %v1876
  %v1878 = vpop.f32.mrb[0].mxu0
  %v1879 = vpop.f32.mrb[0].mxu0
  %v1880 = vadd.f32 %v1351, %v1879
  %v1881 = vpop.f32.mrb[0].mxu0
  %1882 = vmatprep.mubr.bf16.mxu0 0
  %1883 = vmatmul.mubr.bf16.gmra.mrb[0].mxu0 %v1549
  %v1884 = vpop.f32.mrb[0].mxu0
  %v1885 = vadd.f32 %v1356, %v1884
  %v1886 = vpop.f32.mrb[0].mxu0
  %v1887 = vpop.f32.mrb[0].mxu0
  %v1888 = vadd.f32 %v1359, %v1887
  %v1889 = vpop.f32.mrb[0].mxu0
  %1890 = vmatprep.mubr.bf16.mxu0 0
  %1891 = vmatmul.mubr.bf16.gmra.mrb[0].mxu0 %v1550
  %v1892 = vpop.f32.mrb[0].mxu0
  %v1893 = vadd.f32 %v1364, %v1892
  %v1894 = vpop.f32.mrb[0].mxu0
  %v1895 = vpop.f32.mrb[0].mxu0
  %v1896 = vadd.f32 %v1367, %v1895
  %v1897 = vpop.f32.mrb[0].mxu0
  %1898 = vmatprep.mubr.bf16.mxu0 0
  %1899 = vmatmul.mubr.bf16.gmra.mrb[0].mxu0 %v1551
  %v1900 = vpop.f32.mrb[0].mxu0
  %v1901 = vadd.f32 %v1372, %v1900
  %v1902 = vpop.f32.mrb[0].mxu0
  %v1903 = vpop.f32.mrb[0].mxu0
  %v1904 = vadd.f32 %v1375, %v1903
  %v1905 = vpop.f32.mrb[0].mxu0
  %1906 = vmatprep.mubr.bf16.mxu0 0
  %1907 = vmatmul.mubr.bf16.gmra.mrb[0].mxu0 %v1552
  %v1908 = vpop.f32.mrb[0].mxu0
  %v1909 = vadd.f32 %v1380, %v1908
  %v1910 = vpop.f32.mrb[0].mxu0
  %v1911 = vpop.f32.mrb[0].mxu0
  %v1912 = vadd.f32 %v1383, %v1911
  %v1913 = vpop.f32.mrb[0].mxu0
  %1914 = vmatprep.mubr.bf16.mxu0 0
  %1915 = vmatmul.mubr.bf16.gmra.mrb[0].mxu0 %v1553
  %v1916 = vpop.f32.mrb[0].mxu0
  %v1917 = vadd.f32 %v1388, %v1916
  %v1918 = vpop.f32.mrb[0].mxu0
  %v1919 = vpop.f32.mrb[0].mxu0
  %v1920 = vadd.f32 %v1391, %v1919
  %v1921 = vpop.f32.mrb[0].mxu0
  %1922 = vdwg.mxu0
  %vm1955 = vcmask 1042432
  %vm1956 = vcmask 1046532
  %vm1957 = vmor %vm1955, %vm1956
  %v1958 = vrot.slane %v17, 5
  %v1959 = vrot.slane %v1958, 4
  %v1960 = vrot.slane %v18, 5
  %v1961 = vsel %vm1957, %v1959, %v1960
  %v1962 = vrot.slane %v1960, 4
  %v1963 = vrot.slane %v19, 5
  %v1964 = vsel %vm1957, %v1962, %v1963
  %v1965 = vrot.slane %v20, 5
  %v1966 = vrot.slane %v1965, 4
  %v1967 = vrot.slane %v21, 5
  %v1968 = vsel %vm1957, %v1966, %v1967
  %v1969 = vrot.slane %v1967, 4
  %v1970 = vrot.slane %v22, 5
  %v1971 = vsel %vm1957, %v1969, %v1970
  %v1972 = vrot.slane %v23, 5
  %v1973 = vrot.slane %v1972, 4
  %v1974 = vrot.slane %v24, 5
  %v1975 = vsel %vm1957, %v1973, %v1974
  %v1976 = vrot.slane %v1974, 4
  %v1977 = vrot.slane %v25, 5
  %v1978 = vsel %vm1957, %v1976, %v1977
  %v1979 = vrot.slane %v26, 5
  %v1980 = vrot.slane %v1979, 4
  %v1981 = vrot.slane %v27, 5
  %v1982 = vsel %vm1957, %v1980, %v1981
  %v1983 = vrot.slane %v1981, 4
  %v1984 = vrot.slane %v28, 5
  %v1985 = vsel %vm1957, %v1983, %v1984
  %v1986 = vrot.slane %v29, 5
  %v1987 = vrot.slane %v1986, 4
  %v1988 = vrot.slane %v30, 5
  %v1989 = vsel %vm1957, %v1987, %v1988
  %v1990 = vrot.slane %v1988, 4
  %v1991 = vrot.slane %v31, 5
  %v1992 = vsel %vm1957, %v1990, %v1991
  %v1993 = vrot.slane %v32, 5
  %v1994 = vrot.slane %v1993, 4
  %v1995 = vrot.slane %v33, 5
  %v1996 = vsel %vm1957, %v1994, %v1995
  %v1997 = vrot.slane %v1995, 4
  %v1998 = vrot.slane %v34, 5
  %v1999 = vsel %vm1957, %v1997, %v1998
  %v2000 = vrot.slane %v35, 5
  %v2001 = vrot.slane %v2000, 4
  %v2002 = vrot.slane %v36, 5
  %v2003 = vsel %vm1957, %v2001, %v2002
  %v2004 = vrot.slane %v2002, 4
  %v2005 = vrot.slane %v37, 5
  %v2006 = vsel %vm1957, %v2004, %v2005
  %v2007 = vrot.slane %v38, 5
  %v2008 = vrot.slane %v2007, 4
  %v2009 = vrot.slane %v39, 5
  %v2010 = vsel %vm1957, %v2008, %v2009
  %v2011 = vrot.slane %v2009, 4
  %v2012 = vrot.slane %v40, 5
  %v2013 = vsel %vm1957, %v2011, %v2012
  %v2014 = vrot.slane %v41, 5
  %v2015 = vrot.slane %v2014, 4
  %v2016 = vrot.slane %v42, 5
  %v2017 = vsel %vm1957, %v2015, %v2016
  %v2018 = vrot.slane %v2016, 4
  %v2019 = vrot.slane %v43, 5
  %v2020 = vsel %vm1957, %v2018, %v2019
  %v2021 = vrot.slane %v44, 5
  %v2022 = vrot.slane %v2021, 4
  %v2023 = vrot.slane %v45, 5
  %v2024 = vsel %vm1957, %v2022, %v2023
  %v2025 = vrot.slane %v2023, 4
  %v2026 = vrot.slane %v46, 5
  %v2027 = vsel %vm1957, %v2025, %v2026
  %v2028 = vrot.slane %v47, 5
  %v2029 = vrot.slane %v2028, 4
  %v2030 = vrot.slane %v48, 5
  %v2031 = vsel %vm1957, %v2029, %v2030
  %v2032 = vrot.slane %v2030, 4
  %v2033 = vrot.slane %v49, 5
  %v2034 = vsel %vm1957, %v2032, %v2033
  %v2035 = vrot.slane %v50, 5
  %v2036 = vrot.slane %v2035, 4
  %v2037 = vrot.slane %v51, 5
  %v2038 = vsel %vm1957, %v2036, %v2037
  %v2039 = vrot.slane %v2037, 4
  %v2040 = vrot.slane %v52, 5
  %v2041 = vsel %vm1957, %v2039, %v2040
  %v2042 = vrot.slane %v53, 5
  %v2043 = vrot.slane %v2042, 4
  %v2044 = vrot.slane %v54, 5
  %v2045 = vsel %vm1957, %v2043, %v2044
  %v2046 = vrot.slane %v2044, 4
  %v2047 = vrot.slane %v55, 5
  %v2048 = vsel %vm1957, %v2046, %v2047
  %v2049 = vrot.slane %v56, 5
  %v2050 = vrot.slane %v2049, 4
  %v2051 = vrot.slane %v57, 5
  %v2052 = vsel %vm1957, %v2050, %v2051
  %v2053 = vrot.slane %v2051, 4
  %v2054 = vrot.slane %v58, 5
  %v2055 = vsel %vm1957, %v2053, %v2054
  %v2056 = vrot.slane %v59, 5
  %v2057 = vrot.slane %v2056, 4
  %v2058 = vrot.slane %v60, 5
  %v2059 = vsel %vm1957, %v2057, %v2058
  %v2060 = vrot.slane %v2058, 4
  %v2061 = vrot.slane %v61, 5
  %v2062 = vsel %vm1957, %v2060, %v2061
  %v2063 = vrot.slane %v62, 5
  %v2064 = vrot.slane %v2063, 4
  %v2065 = vrot.slane %v63, 5
  %v2066 = vsel %vm1957, %v2064, %v2065
  %v2067 = vrot.slane %v2065, 4
  %v2068 = vrot.slane %v64, 5
  %v2069 = vsel %vm1957, %v2067, %v2068
  %v2070 = vrot.slane %v71, 5
  %v2071 = vrot.slane %v2070, 4
  %v2072 = vrot.slane %v72, 5
  %v2073 = vsel %vm1957, %v2071, %v2072
  %v2074 = vrot.slane %v2072, 4
  %v2075 = vrot.slane %v73, 5
  %v2076 = vsel %vm1957, %v2074, %v2075
  %v2077 = vrot.slane %v74, 5
  %v2078 = vrot.slane %v2077, 4
  %v2079 = vrot.slane %v75, 5
  %v2080 = vsel %vm1957, %v2078, %v2079
  %v2081 = vrot.slane %v2079, 4
  %v2082 = vrot.slane %v76, 5
  %v2083 = vsel %vm1957, %v2081, %v2082
  %v2084 = vrot.slane %v77, 5
  %v2085 = vrot.slane %v2084, 4
  %v2086 = vrot.slane %v78, 5
  %v2087 = vsel %vm1957, %v2085, %v2086
  %v2088 = vrot.slane %v2086, 4
  %v2089 = vrot.slane %v79, 5
  %v2090 = vsel %vm1957, %v2088, %v2089
  %v2091 = vrot.slane %v80, 5
  %v2092 = vrot.slane %v2091, 4
  %v2093 = vrot.slane %v81, 5
  %v2094 = vsel %vm1957, %v2092, %v2093
  %v2095 = vrot.slane %v2093, 4
  %v2096 = vrot.slane %v82, 5
  %v2097 = vsel %vm1957, %v2095, %v2096
  %v2098 = vrot.slane %v83, 5
  %v2099 = vrot.slane %v2098, 4
  %v2100 = vrot.slane %v84, 5
  %v2101 = vsel %vm1957, %v2099, %v2100
  %v2102 = vrot.slane %v2100, 4
  %v2103 = vrot.slane %v85, 5
  %v2104 = vsel %vm1957, %v2102, %v2103
  %v2105 = vrot.slane %v86, 5
  %v2106 = vrot.slane %v2105, 4
  %v2107 = vrot.slane %v87, 5
  %v2108 = vsel %vm1957, %v2106, %v2107
  %v2109 = vrot.slane %v2107, 4
  %v2110 = vrot.slane %v88, 5
  %v2111 = vsel %vm1957, %v2109, %v2110
  %v2112 = vrot.slane %v89, 5
  %v2113 = vrot.slane %v2112, 4
  %v2114 = vrot.slane %v90, 5
  %v2115 = vsel %vm1957, %v2113, %v2114
  %v2116 = vrot.slane %v2114, 4
  %v2117 = vrot.slane %v91, 5
  %v2118 = vsel %vm1957, %v2116, %v2117
  %v2119 = vrot.slane %v92, 5
  %v2120 = vrot.slane %v2119, 4
  %v2121 = vrot.slane %v93, 5
  %v2122 = vsel %vm1957, %v2120, %v2121
  %v2123 = vrot.slane %v2121, 4
  %v2124 = vrot.slane %v94, 5
  %v2125 = vsel %vm1957, %v2123, %v2124
  %v2126 = vrot.slane %v95, 5
  %v2127 = vrot.slane %v2126, 4
  %v2128 = vrot.slane %v96, 5
  %v2129 = vsel %vm1957, %v2127, %v2128
  %v2130 = vrot.slane %v2128, 4
  %v2131 = vrot.slane %v97, 5
  %v2132 = vsel %vm1957, %v2130, %v2131
  %v2133 = vrot.slane %v98, 5
  %v2134 = vrot.slane %v2133, 4
  %v2135 = vrot.slane %v99, 5
  %v2136 = vsel %vm1957, %v2134, %v2135
  %v2137 = vrot.slane %v2135, 4
  %v2138 = vrot.slane %v100, 5
  %v2139 = vsel %vm1957, %v2137, %v2138
  %v2140 = vrot.slane %v101, 5
  %v2141 = vrot.slane %v2140, 4
  %v2142 = vrot.slane %v102, 5
  %v2143 = vsel %vm1957, %v2141, %v2142
  %v2144 = vrot.slane %v2142, 4
  %v2145 = vrot.slane %v103, 5
  %v2146 = vsel %vm1957, %v2144, %v2145
  %v2147 = vrot.slane %v104, 5
  %v2148 = vrot.slane %v2147, 4
  %v2149 = vrot.slane %v105, 5
  %v2150 = vsel %vm1957, %v2148, %v2149
  %v2151 = vrot.slane %v2149, 4
  %v2152 = vrot.slane %v106, 5
  %v2153 = vsel %vm1957, %v2151, %v2152
  %v2154 = vrot.slane %v107, 5
  %v2155 = vrot.slane %v2154, 4
  %v2156 = vrot.slane %v108, 5
  %v2157 = vsel %vm1957, %v2155, %v2156
  %v2158 = vrot.slane %v2156, 4
  %v2159 = vrot.slane %v109, 5
  %v2160 = vsel %vm1957, %v2158, %v2159
  %v2161 = vrot.slane %v110, 5
  %v2162 = vrot.slane %v2161, 4
  %v2163 = vrot.slane %v111, 5
  %v2164 = vsel %vm1957, %v2162, %v2163
  %v2165 = vrot.slane %v2163, 4
  %v2166 = vrot.slane %v112, 5
  %v2167 = vsel %vm1957, %v2165, %v2166
  %v2168 = vrot.slane %v113, 5
  %v2169 = vrot.slane %v2168, 4
  %v2170 = vrot.slane %v114, 5
  %v2171 = vsel %vm1957, %v2169, %v2170
  %v2172 = vrot.slane %v2170, 4
  %v2173 = vrot.slane %v115, 5
  %v2174 = vsel %vm1957, %v2172, %v2173
  %v2175 = vrot.slane %v116, 5
  %v2176 = vrot.slane %v2175, 4
  %v2177 = vrot.slane %v117, 5
  %v2178 = vsel %vm1957, %v2176, %v2177
  %v2179 = vrot.slane %v2177, 4
  %v2180 = vrot.slane %v118, 5
  %v2181 = vsel %vm1957, %v2179, %v2180
  %s2182 = scalar_lea.vmem %s1, 128
  %v2183 = vld [vmem:[%s2182] sm:$0xf]
  %v2184 = vld [vmem:[%s2182 + $0x4] sm:$0xf]
  %v2185 = vld [vmem:[%s2182 + $0x8] sm:$0xf]
  %v2186 = vld [vmem:[%s2182 + $0xc] sm:$0xf]
  %v2187 = vld [vmem:[%s2182 + $0x10] sm:$0xf]
  %v2188 = vld [vmem:[%s2182 + $0x14] sm:$0xf]
  %v2189 = vld [vmem:[%s2182 + $0x18] sm:$0xf]
  %v2190 = vld [vmem:[%s2182 + $0x1c] sm:$0xf]
  %v2191 = vld [vmem:[%s2182 + $0x20] sm:$0xf]
  %v2192 = vld [vmem:[%s2182 + $0x24] sm:$0xf]
  %v2193 = vld [vmem:[%s2182 + $0x28] sm:$0xf]
  %v2194 = vld [vmem:[%s2182 + $0x2c] sm:$0xf]
  %v2195 = vld [vmem:[%s2182 + $0x30] sm:$0xf]
  %v2196 = vld [vmem:[%s2182 + $0x34] sm:$0xf]
  %v2197 = vld [vmem:[%s2182 + $0x38] sm:$0xf]
  %v2198 = vld [vmem:[%s2182 + $0x3c] sm:$0xf]
  %v2199 = vunpack.c.l.b16 %v1961
  %v2200 = vunpack.c.l.b16 %v1964
  %v2201 = vunpack.c.l.b16 %v1968
  %v2202 = vunpack.c.l.b16 %v1971
  %v2203 = vunpack.c.l.b16 %v1975
  %v2204 = vunpack.c.l.b16 %v1978
  %v2205 = vunpack.c.l.b16 %v1982
  %v2206 = vunpack.c.l.b16 %v1985
  %v2207 = vunpack.c.l.b16 %v1989
  %v2208 = vunpack.c.l.b16 %v1992
  %v2209 = vunpack.c.l.b16 %v1996
  %v2210 = vunpack.c.l.b16 %v1999
  %v2211 = vunpack.c.l.b16 %v2003
  %v2212 = vunpack.c.l.b16 %v2006
  %v2213 = vunpack.c.l.b16 %v2010
  %v2214 = vunpack.c.l.b16 %v2013
  %v2215 = vunpack.c.l.b16 %v2017
  %v2216 = vunpack.c.l.b16 %v2020
  %v2217 = vunpack.c.l.b16 %v2024
  %v2218 = vunpack.c.l.b16 %v2027
  %v2219 = vunpack.c.l.b16 %v2031
  %v2220 = vunpack.c.l.b16 %v2034
  %v2221 = vunpack.c.l.b16 %v2038
  %v2222 = vunpack.c.l.b16 %v2041
  %v2223 = vunpack.c.l.b16 %v2045
  %v2224 = vunpack.c.l.b16 %v2048
  %v2225 = vunpack.c.l.b16 %v2052
  %v2226 = vunpack.c.l.b16 %v2055
  %v2227 = vunpack.c.l.b16 %v2059
  %v2228 = vunpack.c.l.b16 %v2062
  %v2229 = vunpack.c.l.b16 %v2066
  %v2230 = vunpack.c.l.b16 %v2069
  %v2231 = vunpack.c.l.b16 %v2073
  %v2232 = vunpack.c.l.b16 %v2076
  %v2233 = vunpack.c.l.b16 %v2080
  %v2234 = vunpack.c.l.b16 %v2083
  %v2235 = vunpack.c.l.b16 %v2087
  %v2236 = vunpack.c.l.b16 %v2090
  %v2237 = vunpack.c.l.b16 %v2094
  %v2238 = vunpack.c.l.b16 %v2097
  %v2239 = vunpack.c.l.b16 %v2101
  %v2240 = vunpack.c.l.b16 %v2104
  %v2241 = vunpack.c.l.b16 %v2108
  %v2242 = vunpack.c.l.b16 %v2111
  %v2243 = vunpack.c.l.b16 %v2115
  %v2244 = vunpack.c.l.b16 %v2118
  %v2245 = vunpack.c.l.b16 %v2122
  %v2246 = vunpack.c.l.b16 %v2125
  %v2247 = vunpack.c.l.b16 %v2129
  %v2248 = vunpack.c.l.b16 %v2132
  %v2249 = vunpack.c.l.b16 %v2136
  %v2250 = vunpack.c.l.b16 %v2139
  %v2251 = vunpack.c.l.b16 %v2143
  %v2252 = vunpack.c.l.b16 %v2146
  %v2253 = vunpack.c.l.b16 %v2150
  %v2254 = vunpack.c.l.b16 %v2153
  %v2255 = vunpack.c.l.b16 %v2157
  %v2256 = vunpack.c.l.b16 %v2160
  %v2257 = vunpack.c.l.b16 %v2164
  %v2258 = vunpack.c.l.b16 %v2167
  %v2259 = vunpack.c.l.b16 %v2171
  %v2260 = vunpack.c.l.b16 %v2174
  %v2261 = vunpack.c.l.b16 %v2178
  %v2262 = vunpack.c.l.b16 %v2181
  %v2263 = vpack.c.b16 %v2200, %v2199
  %v2264 = vpack.c.b16 %v2202, %v2201
  %v2265 = vpack.c.b16 %v2204, %v2203
  %v2266 = vpack.c.b16 %v2206, %v2205
  %v2267 = vpack.c.b16 %v2208, %v2207
  %v2268 = vpack.c.b16 %v2210, %v2209
  %v2269 = vpack.c.b16 %v2212, %v2211
  %v2270 = vpack.c.b16 %v2214, %v2213
  %v2271 = vpack.c.b16 %v2216, %v2215
  %v2272 = vpack.c.b16 %v2218, %v2217
  %v2273 = vpack.c.b16 %v2220, %v2219
  %v2274 = vpack.c.b16 %v2222, %v2221
  %v2275 = vpack.c.b16 %v2224, %v2223
  %v2276 = vpack.c.b16 %v2226, %v2225
  %v2277 = vpack.c.b16 %v2228, %v2227
  %v2278 = vpack.c.b16 %v2230, %v2229
  %v2279 = vpack.c.b16 %v2232, %v2231
  %v2280 = vpack.c.b16 %v2234, %v2233
  %v2281 = vpack.c.b16 %v2236, %v2235
  %v2282 = vpack.c.b16 %v2238, %v2237
  %v2283 = vpack.c.b16 %v2240, %v2239
  %v2284 = vpack.c.b16 %v2242, %v2241
  %v2285 = vpack.c.b16 %v2244, %v2243
  %v2286 = vpack.c.b16 %v2246, %v2245
  %v2287 = vpack.c.b16 %v2248, %v2247
  %v2288 = vpack.c.b16 %v2250, %v2249
  %v2289 = vpack.c.b16 %v2252, %v2251
  %v2290 = vpack.c.b16 %v2254, %v2253
  %v2291 = vpack.c.b16 %v2256, %v2255
  %v2292 = vpack.c.b16 %v2258, %v2257
  %v2293 = vpack.c.b16 %v2260, %v2259
  %v2294 = vpack.c.b16 %v2262, %v2261
  %v2343 = vunpack.c.l.b16 %v2183
  %v2344 = vunpack.c.l.b16 %v2184
  %v2345 = vunpack.c.l.b16 %v2185
  %v2346 = vunpack.c.l.b16 %v2186
  %v2347 = vunpack.c.l.b16 %v2187
  %v2348 = vunpack.c.l.b16 %v2188
  %v2349 = vunpack.c.l.b16 %v2189
  %v2350 = vunpack.c.l.b16 %v2190
  %v2351 = vunpack.c.l.b16 %v2191
  %v2352 = vunpack.c.l.b16 %v2192
  %v2353 = vunpack.c.l.b16 %v2193
  %v2354 = vunpack.c.l.b16 %v2194
  %v2355 = vunpack.c.l.b16 %v2195
  %v2356 = vunpack.c.l.b16 %v2196
  %v2357 = vunpack.c.l.b16 %v2197
  %v2358 = vunpack.c.l.b16 %v2198
  %v2359 = vpack.c.b16 %v2344, %v2343
  %v2360 = vpack.c.b16 %v2346, %v2345
  %v2361 = vpack.c.b16 %v2348, %v2347
  %v2362 = vpack.c.b16 %v2350, %v2349
  %v2363 = vpack.c.b16 %v2352, %v2351
  %v2364 = vpack.c.b16 %v2354, %v2353
  %v2365 = vpack.c.b16 %v2356, %v2355
  %v2366 = vpack.c.b16 %v2358, %v2357
  %2375 = vmatprep.subr.bf16.mxu0 0
  %2376 = vmatpush1.bf16.msra.mxu0 %v2359
  %2377 = vmatprep.subr.bf16.mxu0 0
  %2378 = vmatpush1.bf16.msra.mxu0 %v2360
  %2379 = vmatprep.subr.bf16.mxu0 0
  %2380 = vmatpush1.bf16.msra.mxu0 %v2361
  %2381 = vmatprep.subr.bf16.mxu0 0
  %2382 = vmatpush1.bf16.msra.mxu0 %v2362
  %2383 = vmatprep.subr.bf16.mxu0 0
  %2384 = vmatpush1.bf16.msra.mxu0 %v2363
  %2385 = vmatprep.subr.bf16.mxu0 0
  %2386 = vmatpush1.bf16.msra.mxu0 %v2364
  %2387 = vmatprep.subr.bf16.mxu0 0
  %2388 = vmatpush1.bf16.msra.mxu0 %v2365
  %2389 = vmatprep.subr.bf16.mxu0 0
  %2390 = vmatpush1.bf16.msra.mxu0 %v2366
  %2391 = vmatprep.subr.bf16.mxu0 0
  %2392 = vmatpush1.bf16.msra.mxu0 0
  %2393 = vmatprep.subr.bf16.mxu0 0
  %2394 = vmatpush1.bf16.msra.mxu0 0
  %2395 = vmatprep.subr.bf16.mxu0 0
  %2396 = vmatpush1.bf16.msra.mxu0 0
  %2397 = vmatprep.subr.bf16.mxu0 0
  %2398 = vmatpush1.bf16.msra.mxu0 0
  %2399 = vmatprep.subr.bf16.mxu0 0
  %2400 = vmatpush1.bf16.msra.mxu0 0
  %2401 = vmatprep.subr.bf16.mxu0 0
  %2402 = vmatpush1.bf16.msra.mxu0 0
  %2403 = vmatprep.subr.bf16.mxu0 0
  %2404 = vmatpush1.bf16.msra.mxu0 0
  %2405 = vmatprep.subr.bf16.mxu0 0
  %2406 = vmatpush1.bf16.msra.mxu0 0
  %2407 = vmatprep.mubr.bf16.mxu0 0
  %2408 = vmatmul.mubr.bf16.gmra.mrb[0].mxu0 %v2263
  %v2409 = vpop.f32.mrb[0].mxu0
  %v2410 = vadd.f32 0.0, %v2409
  %v2411 = vpop.f32.mrb[0].mxu0
  %v2412 = vpop.f32.mrb[0].mxu0
  %v2413 = vadd.f32 0.0, %v2412
  %v2414 = vpop.f32.mrb[0].mxu0
  %2415 = vmatprep.mubr.bf16.mxu0 0
  %2416 = vmatmul.mubr.bf16.gmra.mrb[0].mxu0 %v2264
  %v2417 = vpop.f32.mrb[0].mxu0
  %v2418 = vadd.f32 0.0, %v2417
  %v2419 = vpop.f32.mrb[0].mxu0
  %v2420 = vpop.f32.mrb[0].mxu0
  %v2421 = vadd.f32 0.0, %v2420
  %v2422 = vpop.f32.mrb[0].mxu0
  %2423 = vmatprep.mubr.bf16.mxu0 0
  %2424 = vmatmul.mubr.bf16.gmra.mrb[0].mxu0 %v2265
  %v2425 = vpop.f32.mrb[0].mxu0
  %v2426 = vadd.f32 0.0, %v2425
  %v2427 = vpop.f32.mrb[0].mxu0
  %v2428 = vpop.f32.mrb[0].mxu0
  %v2429 = vadd.f32 0.0, %v2428
  %v2430 = vpop.f32.mrb[0].mxu0
  %2431 = vmatprep.mubr.bf16.mxu0 0
  %2432 = vmatmul.mubr.bf16.gmra.mrb[0].mxu0 %v2266
  %v2433 = vpop.f32.mrb[0].mxu0
  %v2434 = vadd.f32 0.0, %v2433
  %v2435 = vpop.f32.mrb[0].mxu0
  %v2436 = vpop.f32.mrb[0].mxu0
  %v2437 = vadd.f32 0.0, %v2436
  %v2438 = vpop.f32.mrb[0].mxu0
  %2439 = vmatprep.mubr.bf16.mxu0 0
  %2440 = vmatmul.mubr.bf16.gmra.mrb[0].mxu0 %v2267
  %v2441 = vpop.f32.mrb[0].mxu0
  %v2442 = vadd.f32 0.0, %v2441
  %v2443 = vpop.f32.mrb[0].mxu0
  %v2444 = vpop.f32.mrb[0].mxu0
  %v2445 = vadd.f32 0.0, %v2444
  %v2446 = vpop.f32.mrb[0].mxu0
  %2447 = vmatprep.mubr.bf16.mxu0 0
  %2448 = vmatmul.mubr.bf16.gmra.mrb[0].mxu0 %v2268
  %v2449 = vpop.f32.mrb[0].mxu0
  %v2450 = vadd.f32 0.0, %v2449
  %v2451 = vpop.f32.mrb[0].mxu0
  %v2452 = vpop.f32.mrb[0].mxu0
  %v2453 = vadd.f32 0.0, %v2452
  %v2454 = vpop.f32.mrb[0].mxu0
  %2455 = vmatprep.mubr.bf16.mxu0 0
  %2456 = vmatmul.mubr.bf16.gmra.mrb[0].mxu0 %v2269
  %v2457 = vpop.f32.mrb[0].mxu0
  %v2458 = vadd.f32 0.0, %v2457
  %v2459 = vpop.f32.mrb[0].mxu0
  %v2460 = vpop.f32.mrb[0].mxu0
  %v2461 = vadd.f32 0.0, %v2460
  %v2462 = vpop.f32.mrb[0].mxu0
  %2463 = vmatprep.mubr.bf16.mxu0 0
  %2464 = vmatmul.mubr.bf16.gmra.mrb[0].mxu0 %v2270
  %v2465 = vpop.f32.mrb[0].mxu0
  %v2466 = vadd.f32 0.0, %v2465
  %v2467 = vpop.f32.mrb[0].mxu0
  %v2468 = vpop.f32.mrb[0].mxu0
  %v2469 = vadd.f32 0.0, %v2468
  %v2470 = vpop.f32.mrb[0].mxu0
  %2471 = vmatprep.mubr.bf16.mxu0 0
  %2472 = vmatmul.mubr.bf16.gmra.mrb[0].mxu0 %v2271
  %v2473 = vpop.f32.mrb[0].mxu0
  %v2474 = vadd.f32 0.0, %v2473
  %v2475 = vpop.f32.mrb[0].mxu0
  %v2476 = vpop.f32.mrb[0].mxu0
  %v2477 = vadd.f32 0.0, %v2476
  %v2478 = vpop.f32.mrb[0].mxu0
  %2479 = vmatprep.mubr.bf16.mxu0 0
  %2480 = vmatmul.mubr.bf16.gmra.mrb[0].mxu0 %v2272
  %v2481 = vpop.f32.mrb[0].mxu0
  %v2482 = vadd.f32 0.0, %v2481
  %v2483 = vpop.f32.mrb[0].mxu0
  %v2484 = vpop.f32.mrb[0].mxu0
  %v2485 = vadd.f32 0.0, %v2484
  %v2486 = vpop.f32.mrb[0].mxu0
  %2487 = vmatprep.mubr.bf16.mxu0 0
  %2488 = vmatmul.mubr.bf16.gmra.mrb[0].mxu0 %v2273
  %v2489 = vpop.f32.mrb[0].mxu0
  %v2490 = vadd.f32 0.0, %v2489
  %v2491 = vpop.f32.mrb[0].mxu0
  %v2492 = vpop.f32.mrb[0].mxu0
  %v2493 = vadd.f32 0.0, %v2492
  %v2494 = vpop.f32.mrb[0].mxu0
  %2495 = vmatprep.mubr.bf16.mxu0 0
  %2496 = vmatmul.mubr.bf16.gmra.mrb[0].mxu0 %v2274
  %v2497 = vpop.f32.mrb[0].mxu0
  %v2498 = vadd.f32 0.0, %v2497
  %v2499 = vpop.f32.mrb[0].mxu0
  %v2500 = vpop.f32.mrb[0].mxu0
  %v2501 = vadd.f32 0.0, %v2500
  %v2502 = vpop.f32.mrb[0].mxu0
  %2503 = vmatprep.mubr.bf16.mxu0 0
  %2504 = vmatmul.mubr.bf16.gmra.mrb[0].mxu0 %v2275
  %v2505 = vpop.f32.mrb[0].mxu0
  %v2506 = vadd.f32 0.0, %v2505
  %v2507 = vpop.f32.mrb[0].mxu0
  %v2508 = vpop.f32.mrb[0].mxu0
  %v2509 = vadd.f32 0.0, %v2508
  %v2510 = vpop.f32.mrb[0].mxu0
  %2511 = vmatprep.mubr.bf16.mxu0 0
  %2512 = vmatmul.mubr.bf16.gmra.mrb[0].mxu0 %v2276
  %v2513 = vpop.f32.mrb[0].mxu0
  %v2514 = vadd.f32 0.0, %v2513
  %v2515 = vpop.f32.mrb[0].mxu0
  %v2516 = vpop.f32.mrb[0].mxu0
  %v2517 = vadd.f32 0.0, %v2516
  %v2518 = vpop.f32.mrb[0].mxu0
  %2519 = vmatprep.mubr.bf16.mxu0 0
  %2520 = vmatmul.mubr.bf16.gmra.mrb[0].mxu0 %v2277
  %v2521 = vpop.f32.mrb[0].mxu0
  %v2522 = vadd.f32 0.0, %v2521
  %v2523 = vpop.f32.mrb[0].mxu0
  %v2524 = vpop.f32.mrb[0].mxu0
  %v2525 = vadd.f32 0.0, %v2524
  %v2526 = vpop.f32.mrb[0].mxu0
  %2527 = vmatprep.mubr.bf16.mxu0 0
  %2528 = vmatmul.mubr.bf16.gmra.mrb[0].mxu0 %v2278
  %v2529 = vpop.f32.mrb[0].mxu0
  %v2530 = vadd.f32 0.0, %v2529
  %v2531 = vpop.f32.mrb[0].mxu0
  %v2532 = vpop.f32.mrb[0].mxu0
  %v2533 = vadd.f32 0.0, %v2532
  %v2534 = vpop.f32.mrb[0].mxu0
  %2535 = vmatprep.mubr.bf16.mxu0 0
  %2536 = vmatmul.mubr.bf16.gmra.mrb[0].mxu0 %v2279
  %v2537 = vpop.f32.mrb[0].mxu0
  %v2538 = vadd.f32 0.0, %v2537
  %v2539 = vpop.f32.mrb[0].mxu0
  %v2540 = vpop.f32.mrb[0].mxu0
  %v2541 = vadd.f32 0.0, %v2540
  %v2542 = vpop.f32.mrb[0].mxu0
  %2543 = vmatprep.mubr.bf16.mxu0 0
  %2544 = vmatmul.mubr.bf16.gmra.mrb[0].mxu0 %v2280
  %v2545 = vpop.f32.mrb[0].mxu0
  %v2546 = vadd.f32 0.0, %v2545
  %v2547 = vpop.f32.mrb[0].mxu0
  %v2548 = vpop.f32.mrb[0].mxu0
  %v2549 = vadd.f32 0.0, %v2548
  %v2550 = vpop.f32.mrb[0].mxu0
  %2551 = vmatprep.mubr.bf16.mxu0 0
  %2552 = vmatmul.mubr.bf16.gmra.mrb[0].mxu0 %v2281
  %v2553 = vpop.f32.mrb[0].mxu0
  %v2554 = vadd.f32 0.0, %v2553
  %v2555 = vpop.f32.mrb[0].mxu0
  %v2556 = vpop.f32.mrb[0].mxu0
  %v2557 = vadd.f32 0.0, %v2556
  %v2558 = vpop.f32.mrb[0].mxu0
  %2559 = vmatprep.mubr.bf16.mxu0 0
  %2560 = vmatmul.mubr.bf16.gmra.mrb[0].mxu0 %v2282
  %v2561 = vpop.f32.mrb[0].mxu0
  %v2562 = vadd.f32 0.0, %v2561
  %v2563 = vpop.f32.mrb[0].mxu0
  %v2564 = vpop.f32.mrb[0].mxu0
  %v2565 = vadd.f32 0.0, %v2564
  %v2566 = vpop.f32.mrb[0].mxu0
  %2567 = vmatprep.mubr.bf16.mxu0 0
  %2568 = vmatmul.mubr.bf16.gmra.mrb[0].mxu0 %v2283
  %v2569 = vpop.f32.mrb[0].mxu0
  %v2570 = vadd.f32 0.0, %v2569
  %v2571 = vpop.f32.mrb[0].mxu0
  %v2572 = vpop.f32.mrb[0].mxu0
  %v2573 = vadd.f32 0.0, %v2572
  %v2574 = vpop.f32.mrb[0].mxu0
  %2575 = vmatprep.mubr.bf16.mxu0 0
  %2576 = vmatmul.mubr.bf16.gmra.mrb[0].mxu0 %v2284
  %v2577 = vpop.f32.mrb[0].mxu0
  %v2578 = vadd.f32 0.0, %v2577
  %v2579 = vpop.f32.mrb[0].mxu0
  %v2580 = vpop.f32.mrb[0].mxu0
  %v2581 = vadd.f32 0.0, %v2580
  %v2582 = vpop.f32.mrb[0].mxu0
  %2583 = vmatprep.mubr.bf16.mxu0 0
  %2584 = vmatmul.mubr.bf16.gmra.mrb[0].mxu0 %v2285
  %v2585 = vpop.f32.mrb[0].mxu0
  %v2586 = vadd.f32 0.0, %v2585
  %v2587 = vpop.f32.mrb[0].mxu0
  %v2588 = vpop.f32.mrb[0].mxu0
  %v2589 = vadd.f32 0.0, %v2588
  %v2590 = vpop.f32.mrb[0].mxu0
  %2591 = vmatprep.mubr.bf16.mxu0 0
  %2592 = vmatmul.mubr.bf16.gmra.mrb[0].mxu0 %v2286
  %v2593 = vpop.f32.mrb[0].mxu0
  %v2594 = vadd.f32 0.0, %v2593
  %v2595 = vpop.f32.mrb[0].mxu0
  %v2596 = vpop.f32.mrb[0].mxu0
  %v2597 = vadd.f32 0.0, %v2596
  %v2598 = vpop.f32.mrb[0].mxu0
  %2599 = vmatprep.mubr.bf16.mxu0 0
  %2600 = vmatmul.mubr.bf16.gmra.mrb[0].mxu0 %v2287
  %v2601 = vpop.f32.mrb[0].mxu0
  %v2602 = vadd.f32 0.0, %v2601
  %v2603 = vpop.f32.mrb[0].mxu0
  %v2604 = vpop.f32.mrb[0].mxu0
  %v2605 = vadd.f32 0.0, %v2604
  %v2606 = vpop.f32.mrb[0].mxu0
  %2607 = vmatprep.mubr.bf16.mxu0 0
  %2608 = vmatmul.mubr.bf16.gmra.mrb[0].mxu0 %v2288
  %v2609 = vpop.f32.mrb[0].mxu0
  %v2610 = vadd.f32 0.0, %v2609
  %v2611 = vpop.f32.mrb[0].mxu0
  %v2612 = vpop.f32.mrb[0].mxu0
  %v2613 = vadd.f32 0.0, %v2612
  %v2614 = vpop.f32.mrb[0].mxu0
  %2615 = vmatprep.mubr.bf16.mxu0 0
  %2616 = vmatmul.mubr.bf16.gmra.mrb[0].mxu0 %v2289
  %v2617 = vpop.f32.mrb[0].mxu0
  %v2618 = vadd.f32 0.0, %v2617
  %v2619 = vpop.f32.mrb[0].mxu0
  %v2620 = vpop.f32.mrb[0].mxu0
  %v2621 = vadd.f32 0.0, %v2620
  %v2622 = vpop.f32.mrb[0].mxu0
  %2623 = vmatprep.mubr.bf16.mxu0 0
  %2624 = vmatmul.mubr.bf16.gmra.mrb[0].mxu0 %v2290
  %v2625 = vpop.f32.mrb[0].mxu0
  %v2626 = vadd.f32 0.0, %v2625
  %v2627 = vpop.f32.mrb[0].mxu0
  %v2628 = vpop.f32.mrb[0].mxu0
  %v2629 = vadd.f32 0.0, %v2628
  %v2630 = vpop.f32.mrb[0].mxu0
  %2631 = vmatprep.mubr.bf16.mxu0 0
  %2632 = vmatmul.mubr.bf16.gmra.mrb[0].mxu0 %v2291
  %v2633 = vpop.f32.mrb[0].mxu0
  %v2634 = vadd.f32 0.0, %v2633
  %v2635 = vpop.f32.mrb[0].mxu0
  %v2636 = vpop.f32.mrb[0].mxu0
  %v2637 = vadd.f32 0.0, %v2636
  %v2638 = vpop.f32.mrb[0].mxu0
  %2639 = vmatprep.mubr.bf16.mxu0 0
  %2640 = vmatmul.mubr.bf16.gmra.mrb[0].mxu0 %v2292
  %v2641 = vpop.f32.mrb[0].mxu0
  %v2642 = vadd.f32 0.0, %v2641
  %v2643 = vpop.f32.mrb[0].mxu0
  %v2644 = vpop.f32.mrb[0].mxu0
  %v2645 = vadd.f32 0.0, %v2644
  %v2646 = vpop.f32.mrb[0].mxu0
  %2647 = vmatprep.mubr.bf16.mxu0 0
  %2648 = vmatmul.mubr.bf16.gmra.mrb[0].mxu0 %v2293
  %v2649 = vpop.f32.mrb[0].mxu0
  %v2650 = vadd.f32 0.0, %v2649
  %v2651 = vpop.f32.mrb[0].mxu0
  %v2652 = vpop.f32.mrb[0].mxu0
  %v2653 = vadd.f32 0.0, %v2652
  %v2654 = vpop.f32.mrb[0].mxu0
  %2655 = vmatprep.mubr.bf16.mxu0 0
  %2656 = vmatmul.mubr.bf16.gmra.mrb[0].mxu0 %v2294
  %v2657 = vpop.f32.mrb[0].mxu0
  %v2658 = vadd.f32 0.0, %v2657
  %v2659 = vpop.f32.mrb[0].mxu0
  %v2660 = vpop.f32.mrb[0].mxu0
  %v2661 = vadd.f32 0.0, %v2660
  %v2662 = vpop.f32.mrb[0].mxu0
  %2663 = vdwg.mxu0
  %v2664 = vadd.f32 %v1669, %v2410
  %v2665 = vadd.f32 %v1672, %v2413
  %v2666 = vadd.f32 %v1677, %v2418
  %v2667 = vadd.f32 %v1680, %v2421
  %v2668 = vadd.f32 %v1685, %v2426
  %v2669 = vadd.f32 %v1688, %v2429
  %v2670 = vadd.f32 %v1693, %v2434
  %v2671 = vadd.f32 %v1696, %v2437
  %v2672 = vadd.f32 %v1701, %v2442
  %v2673 = vadd.f32 %v1704, %v2445
  %v2674 = vadd.f32 %v1709, %v2450
  %v2675 = vadd.f32 %v1712, %v2453
  %v2676 = vadd.f32 %v1717, %v2458
  %v2677 = vadd.f32 %v1720, %v2461
  %v2678 = vadd.f32 %v1725, %v2466
  %v2679 = vadd.f32 %v1728, %v2469
  %v2680 = vadd.f32 %v1733, %v2474
  %v2681 = vadd.f32 %v1736, %v2477
  %v2682 = vadd.f32 %v1741, %v2482
  %v2683 = vadd.f32 %v1744, %v2485
  %v2684 = vadd.f32 %v1749, %v2490
  %v2685 = vadd.f32 %v1752, %v2493
  %v2686 = vadd.f32 %v1757, %v2498
  %v2687 = vadd.f32 %v1760, %v2501
  %v2688 = vadd.f32 %v1765, %v2506
  %v2689 = vadd.f32 %v1768, %v2509
  %v2690 = vadd.f32 %v1773, %v2514
  %v2691 = vadd.f32 %v1776, %v2517
  %v2692 = vadd.f32 %v1781, %v2522
  %v2693 = vadd.f32 %v1784, %v2525
  %v2694 = vadd.f32 %v1789, %v2530
  %v2695 = vadd.f32 %v1792, %v2533
  %v2696 = vadd.f32 %v1797, %v2538
  %v2697 = vadd.f32 %v1800, %v2541
  %v2698 = vadd.f32 %v1805, %v2546
  %v2699 = vadd.f32 %v1808, %v2549
  %v2700 = vadd.f32 %v1813, %v2554
  %v2701 = vadd.f32 %v1816, %v2557
  %v2702 = vadd.f32 %v1821, %v2562
  %v2703 = vadd.f32 %v1824, %v2565
  %v2704 = vadd.f32 %v1829, %v2570
  %v2705 = vadd.f32 %v1832, %v2573
  %v2706 = vadd.f32 %v1837, %v2578
  %v2707 = vadd.f32 %v1840, %v2581
  %v2708 = vadd.f32 %v1845, %v2586
  %v2709 = vadd.f32 %v1848, %v2589
  %v2710 = vadd.f32 %v1853, %v2594
  %v2711 = vadd.f32 %v1856, %v2597
  %v2712 = vadd.f32 %v1861, %v2602
  %v2713 = vadd.f32 %v1864, %v2605
  %v2714 = vadd.f32 %v1869, %v2610
  %v2715 = vadd.f32 %v1872, %v2613
  %v2716 = vadd.f32 %v1877, %v2618
  %v2717 = vadd.f32 %v1880, %v2621
  %v2718 = vadd.f32 %v1885, %v2626
  %v2719 = vadd.f32 %v1888, %v2629
  %v2720 = vadd.f32 %v1893, %v2634
  %v2721 = vadd.f32 %v1896, %v2637
  %v2722 = vadd.f32 %v1901, %v2642
  %v2723 = vadd.f32 %v1904, %v2645
  %v2724 = vadd.f32 %v1909, %v2650
  %v2725 = vadd.f32 %v1912, %v2653
  %v2726 = vadd.f32 %v1917, %v2658
  %v2727 = vadd.f32 %v1920, %v2661
  %s2728 = scalar_lea.vmem %s1, 192
  %v2729 = vld [vmem:[%s2728] sm:$0xf]
  %v2730 = vld [vmem:[%s2728 + $0x4] sm:$0xf]
  %v2731 = vld [vmem:[%s2728 + $0x8] sm:$0xf]
  %v2732 = vld [vmem:[%s2728 + $0xc] sm:$0xf]
  %v2733 = vld [vmem:[%s2728 + $0x10] sm:$0xf]
  %v2734 = vld [vmem:[%s2728 + $0x14] sm:$0xf]
  %v2735 = vld [vmem:[%s2728 + $0x18] sm:$0xf]
  %v2736 = vld [vmem:[%s2728 + $0x1c] sm:$0xf]
  %v2737 = vld [vmem:[%s2728 + $0x20] sm:$0xf]
  %v2738 = vld [vmem:[%s2728 + $0x24] sm:$0xf]
  %v2739 = vld [vmem:[%s2728 + $0x28] sm:$0xf]
  %v2740 = vld [vmem:[%s2728 + $0x2c] sm:$0xf]
  %v2741 = vld [vmem:[%s2728 + $0x30] sm:$0xf]
  %v2742 = vld [vmem:[%s2728 + $0x34] sm:$0xf]
  %v2743 = vld [vmem:[%s2728 + $0x38] sm:$0xf]
  %v2744 = vld [vmem:[%s2728 + $0x3c] sm:$0xf]
  %v2749 = vunpack.c.l.b16 %v65
  %v2750 = vunpack.c.l.b16 %v66
  %v2751 = vunpack.c.l.b16 %v119
  %v2752 = vunpack.c.l.b16 %v120
  %v2753 = vpack.c.b16 %v2750, %v2749
  %v2754 = vpack.c.b16 %v2752, %v2751
  %v2773 = vunpack.c.l.b16 %v2729
  %v2774 = vunpack.c.l.b16 %v2730
  %v2775 = vunpack.c.l.b16 %v2731
  %v2776 = vunpack.c.l.b16 %v2732
  %v2777 = vunpack.c.l.b16 %v2733
  %v2778 = vunpack.c.l.b16 %v2734
  %v2779 = vunpack.c.l.b16 %v2735
  %v2780 = vunpack.c.l.b16 %v2736
  %v2781 = vunpack.c.l.b16 %v2737
  %v2782 = vunpack.c.l.b16 %v2738
  %v2783 = vunpack.c.l.b16 %v2739
  %v2784 = vunpack.c.l.b16 %v2740
  %v2785 = vunpack.c.l.b16 %v2741
  %v2786 = vunpack.c.l.b16 %v2742
  %v2787 = vunpack.c.l.b16 %v2743
  %v2788 = vunpack.c.l.b16 %v2744
  %v2789 = vpack.c.b16 %v2774, %v2773
  %v2790 = vpack.c.b16 %v2776, %v2775
  %v2791 = vpack.c.b16 %v2778, %v2777
  %v2792 = vpack.c.b16 %v2780, %v2779
  %v2793 = vpack.c.b16 %v2782, %v2781
  %v2794 = vpack.c.b16 %v2784, %v2783
  %v2795 = vpack.c.b16 %v2786, %v2785
  %v2796 = vpack.c.b16 %v2788, %v2787
  %2805 = vmatprep.subr.bf16.mxu0 0
  %2806 = vmatpush1.bf16.msra.mxu0 %v2789
  %2807 = vmatprep.subr.bf16.mxu0 0
  %2808 = vmatpush1.bf16.msra.mxu0 %v2790
  %2809 = vmatprep.subr.bf16.mxu0 0
  %2810 = vmatpush1.bf16.msra.mxu0 %v2791
  %2811 = vmatprep.subr.bf16.mxu0 0
  %2812 = vmatpush1.bf16.msra.mxu0 %v2792
  %2813 = vmatprep.subr.bf16.mxu0 0
  %2814 = vmatpush1.bf16.msra.mxu0 %v2793
  %2815 = vmatprep.subr.bf16.mxu0 0
  %2816 = vmatpush1.bf16.msra.mxu0 %v2794
  %2817 = vmatprep.subr.bf16.mxu0 0
  %2818 = vmatpush1.bf16.msra.mxu0 %v2795
  %2819 = vmatprep.subr.bf16.mxu0 0
  %2820 = vmatpush1.bf16.msra.mxu0 %v2796
  %2821 = vmatprep.subr.bf16.mxu0 0
  %2822 = vmatpush1.bf16.msra.mxu0 0
  %2823 = vmatprep.subr.bf16.mxu0 0
  %2824 = vmatpush1.bf16.msra.mxu0 0
  %2825 = vmatprep.subr.bf16.mxu0 0
  %2826 = vmatpush1.bf16.msra.mxu0 0
  %2827 = vmatprep.subr.bf16.mxu0 0
  %2828 = vmatpush1.bf16.msra.mxu0 0
  %2829 = vmatprep.subr.bf16.mxu0 0
  %2830 = vmatpush1.bf16.msra.mxu0 0
  %2831 = vmatprep.subr.bf16.mxu0 0
  %2832 = vmatpush1.bf16.msra.mxu0 0
  %2833 = vmatprep.subr.bf16.mxu0 0
  %2834 = vmatpush1.bf16.msra.mxu0 0
  %2835 = vmatprep.subr.bf16.mxu0 0
  %2836 = vmatpush1.bf16.msra.mxu0 0
  %2837 = vmatprep.mubr.bf16.mxu0 0
  %2838 = vmatmul.mubr.bf16.gmra.mrb[0].mxu0 %v1523
  %v2839 = vpop.f32.mrb[0].mxu0
  %v2840 = vadd.f32 0.0, %v2839
  %v2841 = vpop.f32.mrb[0].mxu0
  %v2842 = vpop.f32.mrb[0].mxu0
  %v2843 = vadd.f32 0.0, %v2842
  %v2844 = vpop.f32.mrb[0].mxu0
  %2845 = vmatprep.mubr.bf16.mxu0 0
  %2846 = vmatmul.mubr.bf16.gmra.mrb[0].mxu0 %v1524
  %v2847 = vpop.f32.mrb[0].mxu0
  %v2848 = vadd.f32 0.0, %v2847
  %v2849 = vpop.f32.mrb[0].mxu0
  %v2850 = vpop.f32.mrb[0].mxu0
  %v2851 = vadd.f32 0.0, %v2850
  %v2852 = vpop.f32.mrb[0].mxu0
  %2853 = vmatprep.mubr.bf16.mxu0 0
  %2854 = vmatmul.mubr.bf16.gmra.mrb[0].mxu0 %v1525
  %v2855 = vpop.f32.mrb[0].mxu0
  %v2856 = vadd.f32 0.0, %v2855
  %v2857 = vpop.f32.mrb[0].mxu0
  %v2858 = vpop.f32.mrb[0].mxu0
  %v2859 = vadd.f32 0.0, %v2858
  %v2860 = vpop.f32.mrb[0].mxu0
  %2861 = vmatprep.mubr.bf16.mxu0 0
  %2862 = vmatmul.mubr.bf16.gmra.mrb[0].mxu0 %v1526
  %v2863 = vpop.f32.mrb[0].mxu0
  %v2864 = vadd.f32 0.0, %v2863
  %v2865 = vpop.f32.mrb[0].mxu0
  %v2866 = vpop.f32.mrb[0].mxu0
  %v2867 = vadd.f32 0.0, %v2866
  %v2868 = vpop.f32.mrb[0].mxu0
  %2869 = vmatprep.mubr.bf16.mxu0 0
  %2870 = vmatmul.mubr.bf16.gmra.mrb[0].mxu0 %v1527
  %v2871 = vpop.f32.mrb[0].mxu0
  %v2872 = vadd.f32 0.0, %v2871
  %v2873 = vpop.f32.mrb[0].mxu0
  %v2874 = vpop.f32.mrb[0].mxu0
  %v2875 = vadd.f32 0.0, %v2874
  %v2876 = vpop.f32.mrb[0].mxu0
  %2877 = vmatprep.mubr.bf16.mxu0 0
  %2878 = vmatmul.mubr.bf16.gmra.mrb[0].mxu0 %v1528
  %v2879 = vpop.f32.mrb[0].mxu0
  %v2880 = vadd.f32 0.0, %v2879
  %v2881 = vpop.f32.mrb[0].mxu0
  %v2882 = vpop.f32.mrb[0].mxu0
  %v2883 = vadd.f32 0.0, %v2882
  %v2884 = vpop.f32.mrb[0].mxu0
  %2885 = vmatprep.mubr.bf16.mxu0 0
  %2886 = vmatmul.mubr.bf16.gmra.mrb[0].mxu0 %v1529
  %v2887 = vpop.f32.mrb[0].mxu0
  %v2888 = vadd.f32 0.0, %v2887
  %v2889 = vpop.f32.mrb[0].mxu0
  %v2890 = vpop.f32.mrb[0].mxu0
  %v2891 = vadd.f32 0.0, %v2890
  %v2892 = vpop.f32.mrb[0].mxu0
  %2893 = vmatprep.mubr.bf16.mxu0 0
  %2894 = vmatmul.mubr.bf16.gmra.mrb[0].mxu0 %v1530
  %v2895 = vpop.f32.mrb[0].mxu0
  %v2896 = vadd.f32 0.0, %v2895
  %v2897 = vpop.f32.mrb[0].mxu0
  %v2898 = vpop.f32.mrb[0].mxu0
  %v2899 = vadd.f32 0.0, %v2898
  %v2900 = vpop.f32.mrb[0].mxu0
  %2901 = vmatprep.mubr.bf16.mxu0 0
  %2902 = vmatmul.mubr.bf16.gmra.mrb[0].mxu0 %v1531
  %v2903 = vpop.f32.mrb[0].mxu0
  %v2904 = vadd.f32 0.0, %v2903
  %v2905 = vpop.f32.mrb[0].mxu0
  %v2906 = vpop.f32.mrb[0].mxu0
  %v2907 = vadd.f32 0.0, %v2906
  %v2908 = vpop.f32.mrb[0].mxu0
  %2909 = vmatprep.mubr.bf16.mxu0 0
  %2910 = vmatmul.mubr.bf16.gmra.mrb[0].mxu0 %v1532
  %v2911 = vpop.f32.mrb[0].mxu0
  %v2912 = vadd.f32 0.0, %v2911
  %v2913 = vpop.f32.mrb[0].mxu0
  %v2914 = vpop.f32.mrb[0].mxu0
  %v2915 = vadd.f32 0.0, %v2914
  %v2916 = vpop.f32.mrb[0].mxu0
  %2917 = vmatprep.mubr.bf16.mxu0 0
  %2918 = vmatmul.mubr.bf16.gmra.mrb[0].mxu0 %v1533
  %v2919 = vpop.f32.mrb[0].mxu0
  %v2920 = vadd.f32 0.0, %v2919
  %v2921 = vpop.f32.mrb[0].mxu0
  %v2922 = vpop.f32.mrb[0].mxu0
  %v2923 = vadd.f32 0.0, %v2922
  %v2924 = vpop.f32.mrb[0].mxu0
  %2925 = vmatprep.mubr.bf16.mxu0 0
  %2926 = vmatmul.mubr.bf16.gmra.mrb[0].mxu0 %v1534
  %v2927 = vpop.f32.mrb[0].mxu0
  %v2928 = vadd.f32 0.0, %v2927
  %v2929 = vpop.f32.mrb[0].mxu0
  %v2930 = vpop.f32.mrb[0].mxu0
  %v2931 = vadd.f32 0.0, %v2930
  %v2932 = vpop.f32.mrb[0].mxu0
  %2933 = vmatprep.mubr.bf16.mxu0 0
  %2934 = vmatmul.mubr.bf16.gmra.mrb[0].mxu0 %v1535
  %v2935 = vpop.f32.mrb[0].mxu0
  %v2936 = vadd.f32 0.0, %v2935
  %v2937 = vpop.f32.mrb[0].mxu0
  %v2938 = vpop.f32.mrb[0].mxu0
  %v2939 = vadd.f32 0.0, %v2938
  %v2940 = vpop.f32.mrb[0].mxu0
  %2941 = vmatprep.mubr.bf16.mxu0 0
  %2942 = vmatmul.mubr.bf16.gmra.mrb[0].mxu0 %v1536
  %v2943 = vpop.f32.mrb[0].mxu0
  %v2944 = vadd.f32 0.0, %v2943
  %v2945 = vpop.f32.mrb[0].mxu0
  %v2946 = vpop.f32.mrb[0].mxu0
  %v2947 = vadd.f32 0.0, %v2946
  %v2948 = vpop.f32.mrb[0].mxu0
  %2949 = vmatprep.mubr.bf16.mxu0 0
  %2950 = vmatmul.mubr.bf16.gmra.mrb[0].mxu0 %v1537
  %v2951 = vpop.f32.mrb[0].mxu0
  %v2952 = vadd.f32 0.0, %v2951
  %v2953 = vpop.f32.mrb[0].mxu0
  %v2954 = vpop.f32.mrb[0].mxu0
  %v2955 = vadd.f32 0.0, %v2954
  %v2956 = vpop.f32.mrb[0].mxu0
  %2957 = vmatprep.mubr.bf16.mxu0 0
  %2958 = vmatmul.mubr.bf16.gmra.mrb[0].mxu0 %v2753
  %v2959 = vpop.f32.mrb[0].mxu0
  %v2960 = vadd.f32 0.0, %v2959
  %v2961 = vpop.f32.mrb[0].mxu0
  %v2962 = vpop.f32.mrb[0].mxu0
  %v2963 = vadd.f32 0.0, %v2962
  %v2964 = vpop.f32.mrb[0].mxu0
  %2965 = vmatprep.mubr.bf16.mxu0 0
  %2966 = vmatmul.mubr.bf16.gmra.mrb[0].mxu0 %v1539
  %v2967 = vpop.f32.mrb[0].mxu0
  %v2968 = vadd.f32 0.0, %v2967
  %v2969 = vpop.f32.mrb[0].mxu0
  %v2970 = vpop.f32.mrb[0].mxu0
  %v2971 = vadd.f32 0.0, %v2970
  %v2972 = vpop.f32.mrb[0].mxu0
  %2973 = vmatprep.mubr.bf16.mxu0 0
  %2974 = vmatmul.mubr.bf16.gmra.mrb[0].mxu0 %v1540
  %v2975 = vpop.f32.mrb[0].mxu0
  %v2976 = vadd.f32 0.0, %v2975
  %v2977 = vpop.f32.mrb[0].mxu0
  %v2978 = vpop.f32.mrb[0].mxu0
  %v2979 = vadd.f32 0.0, %v2978
  %v2980 = vpop.f32.mrb[0].mxu0
  %2981 = vmatprep.mubr.bf16.mxu0 0
  %2982 = vmatmul.mubr.bf16.gmra.mrb[0].mxu0 %v1541
  %v2983 = vpop.f32.mrb[0].mxu0
  %v2984 = vadd.f32 0.0, %v2983
  %v2985 = vpop.f32.mrb[0].mxu0
  %v2986 = vpop.f32.mrb[0].mxu0
  %v2987 = vadd.f32 0.0, %v2986
  %v2988 = vpop.f32.mrb[0].mxu0
  %2989 = vmatprep.mubr.bf16.mxu0 0
  %2990 = vmatmul.mubr.bf16.gmra.mrb[0].mxu0 %v1542
  %v2991 = vpop.f32.mrb[0].mxu0
  %v2992 = vadd.f32 0.0, %v2991
  %v2993 = vpop.f32.mrb[0].mxu0
  %v2994 = vpop.f32.mrb[0].mxu0
  %v2995 = vadd.f32 0.0, %v2994
  %v2996 = vpop.f32.mrb[0].mxu0
  %2997 = vmatprep.mubr.bf16.mxu0 0
  %2998 = vmatmul.mubr.bf16.gmra.mrb[0].mxu0 %v1543
  %v2999 = vpop.f32.mrb[0].mxu0
  %v3000 = vadd.f32 0.0, %v2999
  %v3001 = vpop.f32.mrb[0].mxu0
  %v3002 = vpop.f32.mrb[0].mxu0
  %v3003 = vadd.f32 0.0, %v3002
  %v3004 = vpop.f32.mrb[0].mxu0
  %3005 = vmatprep.mubr.bf16.mxu0 0
  %3006 = vmatmul.mubr.bf16.gmra.mrb[0].mxu0 %v1544
  %v3007 = vpop.f32.mrb[0].mxu0
  %v3008 = vadd.f32 0.0, %v3007
  %v3009 = vpop.f32.mrb[0].mxu0
  %v3010 = vpop.f32.mrb[0].mxu0
  %v3011 = vadd.f32 0.0, %v3010
  %v3012 = vpop.f32.mrb[0].mxu0
  %3013 = vmatprep.mubr.bf16.mxu0 0
  %3014 = vmatmul.mubr.bf16.gmra.mrb[0].mxu0 %v1545
  %v3015 = vpop.f32.mrb[0].mxu0
  %v3016 = vadd.f32 0.0, %v3015
  %v3017 = vpop.f32.mrb[0].mxu0
  %v3018 = vpop.f32.mrb[0].mxu0
  %v3019 = vadd.f32 0.0, %v3018
  %v3020 = vpop.f32.mrb[0].mxu0
  %3021 = vmatprep.mubr.bf16.mxu0 0
  %3022 = vmatmul.mubr.bf16.gmra.mrb[0].mxu0 %v1546
  %v3023 = vpop.f32.mrb[0].mxu0
  %v3024 = vadd.f32 0.0, %v3023
  %v3025 = vpop.f32.mrb[0].mxu0
  %v3026 = vpop.f32.mrb[0].mxu0
  %v3027 = vadd.f32 0.0, %v3026
  %v3028 = vpop.f32.mrb[0].mxu0
  %3029 = vmatprep.mubr.bf16.mxu0 0
  %3030 = vmatmul.mubr.bf16.gmra.mrb[0].mxu0 %v1547
  %v3031 = vpop.f32.mrb[0].mxu0
  %v3032 = vadd.f32 0.0, %v3031
  %v3033 = vpop.f32.mrb[0].mxu0
  %v3034 = vpop.f32.mrb[0].mxu0
  %v3035 = vadd.f32 0.0, %v3034
  %v3036 = vpop.f32.mrb[0].mxu0
  %3037 = vmatprep.mubr.bf16.mxu0 0
  %3038 = vmatmul.mubr.bf16.gmra.mrb[0].mxu0 %v1548
  %v3039 = vpop.f32.mrb[0].mxu0
  %v3040 = vadd.f32 0.0, %v3039
  %v3041 = vpop.f32.mrb[0].mxu0
  %v3042 = vpop.f32.mrb[0].mxu0
  %v3043 = vadd.f32 0.0, %v3042
  %v3044 = vpop.f32.mrb[0].mxu0
  %3045 = vmatprep.mubr.bf16.mxu0 0
  %3046 = vmatmul.mubr.bf16.gmra.mrb[0].mxu0 %v1549
  %v3047 = vpop.f32.mrb[0].mxu0
  %v3048 = vadd.f32 0.0, %v3047
  %v3049 = vpop.f32.mrb[0].mxu0
  %v3050 = vpop.f32.mrb[0].mxu0
  %v3051 = vadd.f32 0.0, %v3050
  %v3052 = vpop.f32.mrb[0].mxu0
  %3053 = vmatprep.mubr.bf16.mxu0 0
  %3054 = vmatmul.mubr.bf16.gmra.mrb[0].mxu0 %v1550
  %v3055 = vpop.f32.mrb[0].mxu0
  %v3056 = vadd.f32 0.0, %v3055
  %v3057 = vpop.f32.mrb[0].mxu0
  %v3058 = vpop.f32.mrb[0].mxu0
  %v3059 = vadd.f32 0.0, %v3058
  %v3060 = vpop.f32.mrb[0].mxu0
  %3061 = vmatprep.mubr.bf16.mxu0 0
  %3062 = vmatmul.mubr.bf16.gmra.mrb[0].mxu0 %v1551
  %v3063 = vpop.f32.mrb[0].mxu0
  %v3064 = vadd.f32 0.0, %v3063
  %v3065 = vpop.f32.mrb[0].mxu0
  %v3066 = vpop.f32.mrb[0].mxu0
  %v3067 = vadd.f32 0.0, %v3066
  %v3068 = vpop.f32.mrb[0].mxu0
  %3069 = vmatprep.mubr.bf16.mxu0 0
  %3070 = vmatmul.mubr.bf16.gmra.mrb[0].mxu0 %v1552
  %v3071 = vpop.f32.mrb[0].mxu0
  %v3072 = vadd.f32 0.0, %v3071
  %v3073 = vpop.f32.mrb[0].mxu0
  %v3074 = vpop.f32.mrb[0].mxu0
  %v3075 = vadd.f32 0.0, %v3074
  %v3076 = vpop.f32.mrb[0].mxu0
  %3077 = vmatprep.mubr.bf16.mxu0 0
  %3078 = vmatmul.mubr.bf16.gmra.mrb[0].mxu0 %v1553
  %v3079 = vpop.f32.mrb[0].mxu0
  %v3080 = vadd.f32 0.0, %v3079
  %v3081 = vpop.f32.mrb[0].mxu0
  %v3082 = vpop.f32.mrb[0].mxu0
  %v3083 = vadd.f32 0.0, %v3082
  %v3084 = vpop.f32.mrb[0].mxu0
  %3085 = vmatprep.mubr.bf16.mxu0 0
  %3086 = vmatmul.mubr.bf16.gmra.mrb[0].mxu0 %v2754
  %v3087 = vpop.f32.mrb[0].mxu0
  %v3088 = vadd.f32 0.0, %v3087
  %v3089 = vpop.f32.mrb[0].mxu0
  %v3090 = vpop.f32.mrb[0].mxu0
  %v3091 = vadd.f32 0.0, %v3090
  %v3092 = vpop.f32.mrb[0].mxu0
  %3093 = vdwg.mxu0
  %v3094 = vadd.f32 %v2664, %v2840
  %v3095 = vadd.f32 %v2665, %v2843
  %v3096 = vadd.f32 %v2666, %v2848
  %v3097 = vadd.f32 %v2667, %v2851
  %v3098 = vadd.f32 %v2668, %v2856
  %v3099 = vadd.f32 %v2669, %v2859
  %v3100 = vadd.f32 %v2670, %v2864
  %v3101 = vadd.f32 %v2671, %v2867
  %v3102 = vadd.f32 %v2672, %v2872
  %v3103 = vadd.f32 %v2673, %v2875
  %v3104 = vadd.f32 %v2674, %v2880
  %v3105 = vadd.f32 %v2675, %v2883
  %v3106 = vadd.f32 %v2676, %v2888
  %v3107 = vadd.f32 %v2677, %v2891
  %v3108 = vadd.f32 %v2678, %v2896
  %v3109 = vadd.f32 %v2679, %v2899
  %v3110 = vadd.f32 %v2680, %v2904
  %v3111 = vadd.f32 %v2681, %v2907
  %v3112 = vadd.f32 %v2682, %v2912
  %v3113 = vadd.f32 %v2683, %v2915
  %v3114 = vadd.f32 %v2684, %v2920
  %v3115 = vadd.f32 %v2685, %v2923
  %v3116 = vadd.f32 %v2686, %v2928
  %v3117 = vadd.f32 %v2687, %v2931
  %v3118 = vadd.f32 %v2688, %v2936
  %v3119 = vadd.f32 %v2689, %v2939
  %v3120 = vadd.f32 %v2690, %v2944
  %v3121 = vadd.f32 %v2691, %v2947
  %v3122 = vadd.f32 %v2692, %v2952
  %v3123 = vadd.f32 %v2693, %v2955
  %v3124 = vadd.f32 %v2694, %v2960
  %v3125 = vadd.f32 %v2695, %v2963
  %v3126 = vadd.f32 %v2696, %v2968
  %v3127 = vadd.f32 %v2697, %v2971
  %v3128 = vadd.f32 %v2698, %v2976
  %v3129 = vadd.f32 %v2699, %v2979
  %v3130 = vadd.f32 %v2700, %v2984
  %v3131 = vadd.f32 %v2701, %v2987
  %v3132 = vadd.f32 %v2702, %v2992
  %v3133 = vadd.f32 %v2703, %v2995
  %v3134 = vadd.f32 %v2704, %v3000
  %v3135 = vadd.f32 %v2705, %v3003
  %v3136 = vadd.f32 %v2706, %v3008
  %v3137 = vadd.f32 %v2707, %v3011
  %v3138 = vadd.f32 %v2708, %v3016
  %v3139 = vadd.f32 %v2709, %v3019
  %v3140 = vadd.f32 %v2710, %v3024
  %v3141 = vadd.f32 %v2711, %v3027
  %v3142 = vadd.f32 %v2712, %v3032
  %v3143 = vadd.f32 %v2713, %v3035
  %v3144 = vadd.f32 %v2714, %v3040
  %v3145 = vadd.f32 %v2715, %v3043
  %v3146 = vadd.f32 %v2716, %v3048
  %v3147 = vadd.f32 %v2717, %v3051
  %v3148 = vadd.f32 %v2718, %v3056
  %v3149 = vadd.f32 %v2719, %v3059
  %v3150 = vadd.f32 %v2720, %v3064
  %v3151 = vadd.f32 %v2721, %v3067
  %v3152 = vadd.f32 %v2722, %v3072
  %v3153 = vadd.f32 %v2723, %v3075
  %v3154 = vadd.f32 %v2724, %v3080
  %v3155 = vadd.f32 %v2725, %v3083
  %v3156 = vadd.f32 %v2726, %v3088
  %v3157 = vadd.f32 %v2727, %v3091
  %v3159 = vshrl.u32 %v65, 16
  %v3161 = vrot.slane %v3159, 4
  %v3162 = vshll.u32 %v65, 16
  %v3164 = vrot.slane %v3162, 5
  %v3165 = vor.u32 %v3161, %v3164
  %v3166 = vrot.slane %v3165, 4
  %v3168 = vshll.u32 %v66, 16
  %v3170 = vrot.slane %v3168, 5
  %v3171 = vsel %vm143, %v3166, %v3170
  %v3172 = vshrl.u32 %v66, 16
  %v3174 = vrot.slane %v3172, 4
  %v3175 = vor.u32 %v3174, %v3170
  %v3176 = vrot.slane %v3175, 4
  %v3178 = vshll.u32 %v67, 16
  %v3180 = vrot.slane %v3178, 5
  %v3181 = vsel %vm143, %v3176, %v3180
  %v3183 = vshrl.u32 %v119, 16
  %v3185 = vrot.slane %v3183, 4
  %v3186 = vshll.u32 %v119, 16
  %v3188 = vrot.slane %v3186, 5
  %v3189 = vor.u32 %v3185, %v3188
  %v3190 = vrot.slane %v3189, 4
  %v3192 = vshll.u32 %v120, 16
  %v3194 = vrot.slane %v3192, 5
  %v3195 = vsel %vm143, %v3190, %v3194
  %v3196 = vshrl.u32 %v120, 16
  %v3198 = vrot.slane %v3196, 4
  %v3199 = vor.u32 %v3198, %v3194
  %v3200 = vrot.slane %v3199, 4
  %v3202 = vshll.u32 %v121, 16
  %v3204 = vrot.slane %v3202, 5
  %v3205 = vsel %vm143, %v3200, %v3204
  %s3206 = scalar_lea.vmem %s1, 256
  %v3207 = vld [vmem:[%s3206] sm:$0xf]
  %v3208 = vld [vmem:[%s3206 + $0x4] sm:$0xf]
  %v3209 = vld [vmem:[%s3206 + $0x8] sm:$0xf]
  %v3210 = vld [vmem:[%s3206 + $0xc] sm:$0xf]
  %v3211 = vld [vmem:[%s3206 + $0x10] sm:$0xf]
  %v3212 = vld [vmem:[%s3206 + $0x14] sm:$0xf]
  %v3213 = vld [vmem:[%s3206 + $0x18] sm:$0xf]
  %v3214 = vld [vmem:[%s3206 + $0x1c] sm:$0xf]
  %v3215 = vld [vmem:[%s3206 + $0x20] sm:$0xf]
  %v3216 = vld [vmem:[%s3206 + $0x24] sm:$0xf]
  %v3217 = vld [vmem:[%s3206 + $0x28] sm:$0xf]
  %v3218 = vld [vmem:[%s3206 + $0x2c] sm:$0xf]
  %v3219 = vld [vmem:[%s3206 + $0x30] sm:$0xf]
  %v3220 = vld [vmem:[%s3206 + $0x34] sm:$0xf]
  %v3221 = vld [vmem:[%s3206 + $0x38] sm:$0xf]
  %v3222 = vld [vmem:[%s3206 + $0x3c] sm:$0xf]
  %v3223 = vunpack.c.l.b16 %v3171
  %v3224 = vunpack.c.l.b16 %v3181
  %v3225 = vunpack.c.l.b16 %v3195
  %v3226 = vunpack.c.l.b16 %v3205
  %v3227 = vpack.c.b16 %v3224, %v3223
  %v3228 = vpack.c.b16 %v3226, %v3225
  %v3247 = vunpack.c.l.b16 %v3207
  %v3248 = vunpack.c.l.b16 %v3208
  %v3249 = vunpack.c.l.b16 %v3209
  %v3250 = vunpack.c.l.b16 %v3210
  %v3251 = vunpack.c.l.b16 %v3211
  %v3252 = vunpack.c.l.b16 %v3212
  %v3253 = vunpack.c.l.b16 %v3213
  %v3254 = vunpack.c.l.b16 %v3214
  %v3255 = vunpack.c.l.b16 %v3215
  %v3256 = vunpack.c.l.b16 %v3216
  %v3257 = vunpack.c.l.b16 %v3217
  %v3258 = vunpack.c.l.b16 %v3218
  %v3259 = vunpack.c.l.b16 %v3219
  %v3260 = vunpack.c.l.b16 %v3220
  %v3261 = vunpack.c.l.b16 %v3221
  %v3262 = vunpack.c.l.b16 %v3222
  %v3263 = vpack.c.b16 %v3248, %v3247
  %v3264 = vpack.c.b16 %v3250, %v3249
  %v3265 = vpack.c.b16 %v3252, %v3251
  %v3266 = vpack.c.b16 %v3254, %v3253
  %v3267 = vpack.c.b16 %v3256, %v3255
  %v3268 = vpack.c.b16 %v3258, %v3257
  %v3269 = vpack.c.b16 %v3260, %v3259
  %v3270 = vpack.c.b16 %v3262, %v3261
  %3279 = vmatprep.subr.bf16.mxu0 0
  %3280 = vmatpush1.bf16.msra.mxu0 %v3263
  %3281 = vmatprep.subr.bf16.mxu0 0
  %3282 = vmatpush1.bf16.msra.mxu0 %v3264
  %3283 = vmatprep.subr.bf16.mxu0 0
  %3284 = vmatpush1.bf16.msra.mxu0 %v3265
  %3285 = vmatprep.subr.bf16.mxu0 0
  %3286 = vmatpush1.bf16.msra.mxu0 %v3266
  %3287 = vmatprep.subr.bf16.mxu0 0
  %3288 = vmatpush1.bf16.msra.mxu0 %v3267
  %3289 = vmatprep.subr.bf16.mxu0 0
  %3290 = vmatpush1.bf16.msra.mxu0 %v3268
  %3291 = vmatprep.subr.bf16.mxu0 0
  %3292 = vmatpush1.bf16.msra.mxu0 %v3269
  %3293 = vmatprep.subr.bf16.mxu0 0
  %3294 = vmatpush1.bf16.msra.mxu0 %v3270
  %3295 = vmatprep.subr.bf16.mxu0 0
  %3296 = vmatpush1.bf16.msra.mxu0 0
  %3297 = vmatprep.subr.bf16.mxu0 0
  %3298 = vmatpush1.bf16.msra.mxu0 0
  %3299 = vmatprep.subr.bf16.mxu0 0
  %3300 = vmatpush1.bf16.msra.mxu0 0
  %3301 = vmatprep.subr.bf16.mxu0 0
  %3302 = vmatpush1.bf16.msra.mxu0 0
  %3303 = vmatprep.subr.bf16.mxu0 0
  %3304 = vmatpush1.bf16.msra.mxu0 0
  %3305 = vmatprep.subr.bf16.mxu0 0
  %3306 = vmatpush1.bf16.msra.mxu0 0
  %3307 = vmatprep.subr.bf16.mxu0 0
  %3308 = vmatpush1.bf16.msra.mxu0 0
  %3309 = vmatprep.subr.bf16.mxu0 0
  %3310 = vmatpush1.bf16.msra.mxu0 0
  %3311 = vmatprep.mubr.bf16.mxu0 0
  %3312 = vmatmul.mubr.bf16.gmra.mrb[0].mxu0 %v994
  %v3313 = vpop.f32.mrb[0].mxu0
  %v3314 = vadd.f32 0.0, %v3313
  %v3315 = vpop.f32.mrb[0].mxu0
  %v3316 = vpop.f32.mrb[0].mxu0
  %v3317 = vadd.f32 0.0, %v3316
  %v3318 = vpop.f32.mrb[0].mxu0
  %3319 = vmatprep.mubr.bf16.mxu0 0
  %3320 = vmatmul.mubr.bf16.gmra.mrb[0].mxu0 %v995
  %v3321 = vpop.f32.mrb[0].mxu0
  %v3322 = vadd.f32 0.0, %v3321
  %v3323 = vpop.f32.mrb[0].mxu0
  %v3324 = vpop.f32.mrb[0].mxu0
  %v3325 = vadd.f32 0.0, %v3324
  %v3326 = vpop.f32.mrb[0].mxu0
  %3327 = vmatprep.mubr.bf16.mxu0 0
  %3328 = vmatmul.mubr.bf16.gmra.mrb[0].mxu0 %v996
  %v3329 = vpop.f32.mrb[0].mxu0
  %v3330 = vadd.f32 0.0, %v3329
  %v3331 = vpop.f32.mrb[0].mxu0
  %v3332 = vpop.f32.mrb[0].mxu0
  %v3333 = vadd.f32 0.0, %v3332
  %v3334 = vpop.f32.mrb[0].mxu0
  %3335 = vmatprep.mubr.bf16.mxu0 0
  %3336 = vmatmul.mubr.bf16.gmra.mrb[0].mxu0 %v997
  %v3337 = vpop.f32.mrb[0].mxu0
  %v3338 = vadd.f32 0.0, %v3337
  %v3339 = vpop.f32.mrb[0].mxu0
  %v3340 = vpop.f32.mrb[0].mxu0
  %v3341 = vadd.f32 0.0, %v3340
  %v3342 = vpop.f32.mrb[0].mxu0
  %3343 = vmatprep.mubr.bf16.mxu0 0
  %3344 = vmatmul.mubr.bf16.gmra.mrb[0].mxu0 %v998
  %v3345 = vpop.f32.mrb[0].mxu0
  %v3346 = vadd.f32 0.0, %v3345
  %v3347 = vpop.f32.mrb[0].mxu0
  %v3348 = vpop.f32.mrb[0].mxu0
  %v3349 = vadd.f32 0.0, %v3348
  %v3350 = vpop.f32.mrb[0].mxu0
  %3351 = vmatprep.mubr.bf16.mxu0 0
  %3352 = vmatmul.mubr.bf16.gmra.mrb[0].mxu0 %v999
  %v3353 = vpop.f32.mrb[0].mxu0
  %v3354 = vadd.f32 0.0, %v3353
  %v3355 = vpop.f32.mrb[0].mxu0
  %v3356 = vpop.f32.mrb[0].mxu0
  %v3357 = vadd.f32 0.0, %v3356
  %v3358 = vpop.f32.mrb[0].mxu0
  %3359 = vmatprep.mubr.bf16.mxu0 0
  %3360 = vmatmul.mubr.bf16.gmra.mrb[0].mxu0 %v1000
  %v3361 = vpop.f32.mrb[0].mxu0
  %v3362 = vadd.f32 0.0, %v3361
  %v3363 = vpop.f32.mrb[0].mxu0
  %v3364 = vpop.f32.mrb[0].mxu0
  %v3365 = vadd.f32 0.0, %v3364
  %v3366 = vpop.f32.mrb[0].mxu0
  %3367 = vmatprep.mubr.bf16.mxu0 0
  %3368 = vmatmul.mubr.bf16.gmra.mrb[0].mxu0 %v1001
  %v3369 = vpop.f32.mrb[0].mxu0
  %v3370 = vadd.f32 0.0, %v3369
  %v3371 = vpop.f32.mrb[0].mxu0
  %v3372 = vpop.f32.mrb[0].mxu0
  %v3373 = vadd.f32 0.0, %v3372
  %v3374 = vpop.f32.mrb[0].mxu0
  %3375 = vmatprep.mubr.bf16.mxu0 0
  %3376 = vmatmul.mubr.bf16.gmra.mrb[0].mxu0 %v1002
  %v3377 = vpop.f32.mrb[0].mxu0
  %v3378 = vadd.f32 0.0, %v3377
  %v3379 = vpop.f32.mrb[0].mxu0
  %v3380 = vpop.f32.mrb[0].mxu0
  %v3381 = vadd.f32 0.0, %v3380
  %v3382 = vpop.f32.mrb[0].mxu0
  %3383 = vmatprep.mubr.bf16.mxu0 0
  %3384 = vmatmul.mubr.bf16.gmra.mrb[0].mxu0 %v1003
  %v3385 = vpop.f32.mrb[0].mxu0
  %v3386 = vadd.f32 0.0, %v3385
  %v3387 = vpop.f32.mrb[0].mxu0
  %v3388 = vpop.f32.mrb[0].mxu0
  %v3389 = vadd.f32 0.0, %v3388
  %v3390 = vpop.f32.mrb[0].mxu0
  %3391 = vmatprep.mubr.bf16.mxu0 0
  %3392 = vmatmul.mubr.bf16.gmra.mrb[0].mxu0 %v1004
  %v3393 = vpop.f32.mrb[0].mxu0
  %v3394 = vadd.f32 0.0, %v3393
  %v3395 = vpop.f32.mrb[0].mxu0
  %v3396 = vpop.f32.mrb[0].mxu0
  %v3397 = vadd.f32 0.0, %v3396
  %v3398 = vpop.f32.mrb[0].mxu0
  %3399 = vmatprep.mubr.bf16.mxu0 0
  %3400 = vmatmul.mubr.bf16.gmra.mrb[0].mxu0 %v1005
  %v3401 = vpop.f32.mrb[0].mxu0
  %v3402 = vadd.f32 0.0, %v3401
  %v3403 = vpop.f32.mrb[0].mxu0
  %v3404 = vpop.f32.mrb[0].mxu0
  %v3405 = vadd.f32 0.0, %v3404
  %v3406 = vpop.f32.mrb[0].mxu0
  %3407 = vmatprep.mubr.bf16.mxu0 0
  %3408 = vmatmul.mubr.bf16.gmra.mrb[0].mxu0 %v1006
  %v3409 = vpop.f32.mrb[0].mxu0
  %v3410 = vadd.f32 0.0, %v3409
  %v3411 = vpop.f32.mrb[0].mxu0
  %v3412 = vpop.f32.mrb[0].mxu0
  %v3413 = vadd.f32 0.0, %v3412
  %v3414 = vpop.f32.mrb[0].mxu0
  %3415 = vmatprep.mubr.bf16.mxu0 0
  %3416 = vmatmul.mubr.bf16.gmra.mrb[0].mxu0 %v1007
  %v3417 = vpop.f32.mrb[0].mxu0
  %v3418 = vadd.f32 0.0, %v3417
  %v3419 = vpop.f32.mrb[0].mxu0
  %v3420 = vpop.f32.mrb[0].mxu0
  %v3421 = vadd.f32 0.0, %v3420
  %v3422 = vpop.f32.mrb[0].mxu0
  %3423 = vmatprep.mubr.bf16.mxu0 0
  %3424 = vmatmul.mubr.bf16.gmra.mrb[0].mxu0 %v1008
  %v3425 = vpop.f32.mrb[0].mxu0
  %v3426 = vadd.f32 0.0, %v3425
  %v3427 = vpop.f32.mrb[0].mxu0
  %v3428 = vpop.f32.mrb[0].mxu0
  %v3429 = vadd.f32 0.0, %v3428
  %v3430 = vpop.f32.mrb[0].mxu0
  %3431 = vmatprep.mubr.bf16.mxu0 0
  %3432 = vmatmul.mubr.bf16.gmra.mrb[0].mxu0 %v3227
  %v3433 = vpop.f32.mrb[0].mxu0
  %v3434 = vadd.f32 0.0, %v3433
  %v3435 = vpop.f32.mrb[0].mxu0
  %v3436 = vpop.f32.mrb[0].mxu0
  %v3437 = vadd.f32 0.0, %v3436
  %v3438 = vpop.f32.mrb[0].mxu0
  %3439 = vmatprep.mubr.bf16.mxu0 0
  %3440 = vmatmul.mubr.bf16.gmra.mrb[0].mxu0 %v1010
  %v3441 = vpop.f32.mrb[0].mxu0
  %v3442 = vadd.f32 0.0, %v3441
  %v3443 = vpop.f32.mrb[0].mxu0
  %v3444 = vpop.f32.mrb[0].mxu0
  %v3445 = vadd.f32 0.0, %v3444
  %v3446 = vpop.f32.mrb[0].mxu0
  %3447 = vmatprep.mubr.bf16.mxu0 0
  %3448 = vmatmul.mubr.bf16.gmra.mrb[0].mxu0 %v1011
  %v3449 = vpop.f32.mrb[0].mxu0
  %v3450 = vadd.f32 0.0, %v3449
  %v3451 = vpop.f32.mrb[0].mxu0
  %v3452 = vpop.f32.mrb[0].mxu0
  %v3453 = vadd.f32 0.0, %v3452
  %v3454 = vpop.f32.mrb[0].mxu0
  %3455 = vmatprep.mubr.bf16.mxu0 0
  %3456 = vmatmul.mubr.bf16.gmra.mrb[0].mxu0 %v1012
  %v3457 = vpop.f32.mrb[0].mxu0
  %v3458 = vadd.f32 0.0, %v3457
  %v3459 = vpop.f32.mrb[0].mxu0
  %v3460 = vpop.f32.mrb[0].mxu0
  %v3461 = vadd.f32 0.0, %v3460
  %v3462 = vpop.f32.mrb[0].mxu0
  %3463 = vmatprep.mubr.bf16.mxu0 0
  %3464 = vmatmul.mubr.bf16.gmra.mrb[0].mxu0 %v1013
  %v3465 = vpop.f32.mrb[0].mxu0
  %v3466 = vadd.f32 0.0, %v3465
  %v3467 = vpop.f32.mrb[0].mxu0
  %v3468 = vpop.f32.mrb[0].mxu0
  %v3469 = vadd.f32 0.0, %v3468
  %v3470 = vpop.f32.mrb[0].mxu0
  %3471 = vmatprep.mubr.bf16.mxu0 0
  %3472 = vmatmul.mubr.bf16.gmra.mrb[0].mxu0 %v1014
  %v3473 = vpop.f32.mrb[0].mxu0
  %v3474 = vadd.f32 0.0, %v3473
  %v3475 = vpop.f32.mrb[0].mxu0
  %v3476 = vpop.f32.mrb[0].mxu0
  %v3477 = vadd.f32 0.0, %v3476
  %v3478 = vpop.f32.mrb[0].mxu0
  %3479 = vmatprep.mubr.bf16.mxu0 0
  %3480 = vmatmul.mubr.bf16.gmra.mrb[0].mxu0 %v1015
  %v3481 = vpop.f32.mrb[0].mxu0
  %v3482 = vadd.f32 0.0, %v3481
  %v3483 = vpop.f32.mrb[0].mxu0
  %v3484 = vpop.f32.mrb[0].mxu0
  %v3485 = vadd.f32 0.0, %v3484
  %v3486 = vpop.f32.mrb[0].mxu0
  %3487 = vmatprep.mubr.bf16.mxu0 0
  %3488 = vmatmul.mubr.bf16.gmra.mrb[0].mxu0 %v1016
  %v3489 = vpop.f32.mrb[0].mxu0
  %v3490 = vadd.f32 0.0, %v3489
  %v3491 = vpop.f32.mrb[0].mxu0
  %v3492 = vpop.f32.mrb[0].mxu0
  %v3493 = vadd.f32 0.0, %v3492
  %v3494 = vpop.f32.mrb[0].mxu0
  %3495 = vmatprep.mubr.bf16.mxu0 0
  %3496 = vmatmul.mubr.bf16.gmra.mrb[0].mxu0 %v1017
  %v3497 = vpop.f32.mrb[0].mxu0
  %v3498 = vadd.f32 0.0, %v3497
  %v3499 = vpop.f32.mrb[0].mxu0
  %v3500 = vpop.f32.mrb[0].mxu0
  %v3501 = vadd.f32 0.0, %v3500
  %v3502 = vpop.f32.mrb[0].mxu0
  %3503 = vmatprep.mubr.bf16.mxu0 0
  %3504 = vmatmul.mubr.bf16.gmra.mrb[0].mxu0 %v1018
  %v3505 = vpop.f32.mrb[0].mxu0
  %v3506 = vadd.f32 0.0, %v3505
  %v3507 = vpop.f32.mrb[0].mxu0
  %v3508 = vpop.f32.mrb[0].mxu0
  %v3509 = vadd.f32 0.0, %v3508
  %v3510 = vpop.f32.mrb[0].mxu0
  %3511 = vmatprep.mubr.bf16.mxu0 0
  %3512 = vmatmul.mubr.bf16.gmra.mrb[0].mxu0 %v1019
  %v3513 = vpop.f32.mrb[0].mxu0
  %v3514 = vadd.f32 0.0, %v3513
  %v3515 = vpop.f32.mrb[0].mxu0
  %v3516 = vpop.f32.mrb[0].mxu0
  %v3517 = vadd.f32 0.0, %v3516
  %v3518 = vpop.f32.mrb[0].mxu0
  %3519 = vmatprep.mubr.bf16.mxu0 0
  %3520 = vmatmul.mubr.bf16.gmra.mrb[0].mxu0 %v1020
  %v3521 = vpop.f32.mrb[0].mxu0
  %v3522 = vadd.f32 0.0, %v3521
  %v3523 = vpop.f32.mrb[0].mxu0
  %v3524 = vpop.f32.mrb[0].mxu0
  %v3525 = vadd.f32 0.0, %v3524
  %v3526 = vpop.f32.mrb[0].mxu0
  %3527 = vmatprep.mubr.bf16.mxu0 0
  %3528 = vmatmul.mubr.bf16.gmra.mrb[0].mxu0 %v1021
  %v3529 = vpop.f32.mrb[0].mxu0
  %v3530 = vadd.f32 0.0, %v3529
  %v3531 = vpop.f32.mrb[0].mxu0
  %v3532 = vpop.f32.mrb[0].mxu0
  %v3533 = vadd.f32 0.0, %v3532
  %v3534 = vpop.f32.mrb[0].mxu0
  %3535 = vmatprep.mubr.bf16.mxu0 0
  %3536 = vmatmul.mubr.bf16.gmra.mrb[0].mxu0 %v1022
  %v3537 = vpop.f32.mrb[0].mxu0
  %v3538 = vadd.f32 0.0, %v3537
  %v3539 = vpop.f32.mrb[0].mxu0
  %v3540 = vpop.f32.mrb[0].mxu0
  %v3541 = vadd.f32 0.0, %v3540
  %v3542 = vpop.f32.mrb[0].mxu0
  %3543 = vmatprep.mubr.bf16.mxu0 0
  %3544 = vmatmul.mubr.bf16.gmra.mrb[0].mxu0 %v1023
  %v3545 = vpop.f32.mrb[0].mxu0
  %v3546 = vadd.f32 0.0, %v3545
  %v3547 = vpop.f32.mrb[0].mxu0
  %v3548 = vpop.f32.mrb[0].mxu0
  %v3549 = vadd.f32 0.0, %v3548
  %v3550 = vpop.f32.mrb[0].mxu0
  %3551 = vmatprep.mubr.bf16.mxu0 0
  %3552 = vmatmul.mubr.bf16.gmra.mrb[0].mxu0 %v1024
  %v3553 = vpop.f32.mrb[0].mxu0
  %v3554 = vadd.f32 0.0, %v3553
  %v3555 = vpop.f32.mrb[0].mxu0
  %v3556 = vpop.f32.mrb[0].mxu0
  %v3557 = vadd.f32 0.0, %v3556
  %v3558 = vpop.f32.mrb[0].mxu0
  %3559 = vmatprep.mubr.bf16.mxu0 0
  %3560 = vmatmul.mubr.bf16.gmra.mrb[0].mxu0 %v3228
  %v3561 = vpop.f32.mrb[0].mxu0
  %v3562 = vadd.f32 0.0, %v3561
  %v3563 = vpop.f32.mrb[0].mxu0
  %v3564 = vpop.f32.mrb[0].mxu0
  %v3565 = vadd.f32 0.0, %v3564
  %v3566 = vpop.f32.mrb[0].mxu0
  %3567 = vdwg.mxu0
  %v3568 = vadd.f32 %v3094, %v3314
  %v3569 = vadd.f32 %v3095, %v3317
  %v3570 = vadd.f32 %v3096, %v3322
  %v3571 = vadd.f32 %v3097, %v3325
  %v3572 = vadd.f32 %v3098, %v3330
  %v3573 = vadd.f32 %v3099, %v3333
  %v3574 = vadd.f32 %v3100, %v3338
  %v3575 = vadd.f32 %v3101, %v3341
  %v3576 = vadd.f32 %v3102, %v3346
  %v3577 = vadd.f32 %v3103, %v3349
  %v3578 = vadd.f32 %v3104, %v3354
  %v3579 = vadd.f32 %v3105, %v3357
  %v3580 = vadd.f32 %v3106, %v3362
  %v3581 = vadd.f32 %v3107, %v3365
  %v3582 = vadd.f32 %v3108, %v3370
  %v3583 = vadd.f32 %v3109, %v3373
  %v3584 = vadd.f32 %v3110, %v3378
  %v3585 = vadd.f32 %v3111, %v3381
  %v3586 = vadd.f32 %v3112, %v3386
  %v3587 = vadd.f32 %v3113, %v3389
  %v3588 = vadd.f32 %v3114, %v3394
  %v3589 = vadd.f32 %v3115, %v3397
  %v3590 = vadd.f32 %v3116, %v3402
  %v3591 = vadd.f32 %v3117, %v3405
  %v3592 = vadd.f32 %v3118, %v3410
  %v3593 = vadd.f32 %v3119, %v3413
  %v3594 = vadd.f32 %v3120, %v3418
  %v3595 = vadd.f32 %v3121, %v3421
  %v3596 = vadd.f32 %v3122, %v3426
  %v3597 = vadd.f32 %v3123, %v3429
  %v3598 = vadd.f32 %v3124, %v3434
  %v3599 = vadd.f32 %v3125, %v3437
  %v3600 = vadd.f32 %v3126, %v3442
  %v3601 = vadd.f32 %v3127, %v3445
  %v3602 = vadd.f32 %v3128, %v3450
  %v3603 = vadd.f32 %v3129, %v3453
  %v3604 = vadd.f32 %v3130, %v3458
  %v3605 = vadd.f32 %v3131, %v3461
  %v3606 = vadd.f32 %v3132, %v3466
  %v3607 = vadd.f32 %v3133, %v3469
  %v3608 = vadd.f32 %v3134, %v3474
  %v3609 = vadd.f32 %v3135, %v3477
  %v3610 = vadd.f32 %v3136, %v3482
  %v3611 = vadd.f32 %v3137, %v3485
  %v3612 = vadd.f32 %v3138, %v3490
  %v3613 = vadd.f32 %v3139, %v3493
  %v3614 = vadd.f32 %v3140, %v3498
  %v3615 = vadd.f32 %v3141, %v3501
  %v3616 = vadd.f32 %v3142, %v3506
  %v3617 = vadd.f32 %v3143, %v3509
  %v3618 = vadd.f32 %v3144, %v3514
  %v3619 = vadd.f32 %v3145, %v3517
  %v3620 = vadd.f32 %v3146, %v3522
  %v3621 = vadd.f32 %v3147, %v3525
  %v3622 = vadd.f32 %v3148, %v3530
  %v3623 = vadd.f32 %v3149, %v3533
  %v3624 = vadd.f32 %v3150, %v3538
  %v3625 = vadd.f32 %v3151, %v3541
  %v3626 = vadd.f32 %v3152, %v3546
  %v3627 = vadd.f32 %v3153, %v3549
  %v3628 = vadd.f32 %v3154, %v3554
  %v3629 = vadd.f32 %v3155, %v3557
  %v3630 = vadd.f32 %v3156, %v3562
  %v3631 = vadd.f32 %v3157, %v3565
  %v3634 = vrot.slane %v65, 5
  %v3635 = vrot.slane %v3634, 4
  %v3636 = vrot.slane %v66, 5
  %v3637 = vsel %vm1957, %v3635, %v3636
  %v3638 = vrot.slane %v3636, 4
  %v3639 = vrot.slane %v67, 5
  %v3640 = vsel %vm1957, %v3638, %v3639
  %v3641 = vrot.slane %v119, 5
  %v3642 = vrot.slane %v3641, 4
  %v3643 = vrot.slane %v120, 5
  %v3644 = vsel %vm1957, %v3642, %v3643
  %v3645 = vrot.slane %v3643, 4
  %v3646 = vrot.slane %v121, 5
  %v3647 = vsel %vm1957, %v3645, %v3646
  %s3648 = scalar_lea.vmem %s1, 320
  %v3649 = vld [vmem:[%s3648] sm:$0xf]
  %v3650 = vld [vmem:[%s3648 + $0x4] sm:$0xf]
  %v3651 = vld [vmem:[%s3648 + $0x8] sm:$0xf]
  %v3652 = vld [vmem:[%s3648 + $0xc] sm:$0xf]
  %v3653 = vld [vmem:[%s3648 + $0x10] sm:$0xf]
  %v3654 = vld [vmem:[%s3648 + $0x14] sm:$0xf]
  %v3655 = vld [vmem:[%s3648 + $0x18] sm:$0xf]
  %v3656 = vld [vmem:[%s3648 + $0x1c] sm:$0xf]
  %v3657 = vld [vmem:[%s3648 + $0x20] sm:$0xf]
  %v3658 = vld [vmem:[%s3648 + $0x24] sm:$0xf]
  %v3659 = vld [vmem:[%s3648 + $0x28] sm:$0xf]
  %v3660 = vld [vmem:[%s3648 + $0x2c] sm:$0xf]
  %v3661 = vld [vmem:[%s3648 + $0x30] sm:$0xf]
  %v3662 = vld [vmem:[%s3648 + $0x34] sm:$0xf]
  %v3663 = vld [vmem:[%s3648 + $0x38] sm:$0xf]
  %v3664 = vld [vmem:[%s3648 + $0x3c] sm:$0xf]
  %v3665 = vunpack.c.l.b16 %v3637
  %v3666 = vunpack.c.l.b16 %v3640
  %v3667 = vunpack.c.l.b16 %v3644
  %v3668 = vunpack.c.l.b16 %v3647
  %v3669 = vpack.c.b16 %v3666, %v3665
  %v3670 = vpack.c.b16 %v3668, %v3667
  %v3689 = vunpack.c.l.b16 %v3649
  %v3690 = vunpack.c.l.b16 %v3650
  %v3691 = vunpack.c.l.b16 %v3651
  %v3692 = vunpack.c.l.b16 %v3652
  %v3693 = vunpack.c.l.b16 %v3653
  %v3694 = vunpack.c.l.b16 %v3654
  %v3695 = vunpack.c.l.b16 %v3655
  %v3696 = vunpack.c.l.b16 %v3656
  %v3697 = vunpack.c.l.b16 %v3657
  %v3698 = vunpack.c.l.b16 %v3658
  %v3699 = vunpack.c.l.b16 %v3659
  %v3700 = vunpack.c.l.b16 %v3660
  %v3701 = vunpack.c.l.b16 %v3661
  %v3702 = vunpack.c.l.b16 %v3662
  %v3703 = vunpack.c.l.b16 %v3663
  %v3704 = vunpack.c.l.b16 %v3664
  %v3705 = vpack.c.b16 %v3690, %v3689
  %v3706 = vpack.c.b16 %v3692, %v3691
  %v3707 = vpack.c.b16 %v3694, %v3693
  %v3708 = vpack.c.b16 %v3696, %v3695
  %v3709 = vpack.c.b16 %v3698, %v3697
  %v3710 = vpack.c.b16 %v3700, %v3699
  %v3711 = vpack.c.b16 %v3702, %v3701
  %v3712 = vpack.c.b16 %v3704, %v3703
  %3721 = vmatprep.subr.bf16.mxu0 0
  %3722 = vmatpush1.bf16.msra.mxu0 %v3705
  %3723 = vmatprep.subr.bf16.mxu0 0
  %3724 = vmatpush1.bf16.msra.mxu0 %v3706
  %3725 = vmatprep.subr.bf16.mxu0 0
  %3726 = vmatpush1.bf16.msra.mxu0 %v3707
  %3727 = vmatprep.subr.bf16.mxu0 0
  %3728 = vmatpush1.bf16.msra.mxu0 %v3708
  %3729 = vmatprep.subr.bf16.mxu0 0
  %3730 = vmatpush1.bf16.msra.mxu0 %v3709
  %3731 = vmatprep.subr.bf16.mxu0 0
  %3732 = vmatpush1.bf16.msra.mxu0 %v3710
  %3733 = vmatprep.subr.bf16.mxu0 0
  %3734 = vmatpush1.bf16.msra.mxu0 %v3711
  %3735 = vmatprep.subr.bf16.mxu0 0
  %3736 = vmatpush1.bf16.msra.mxu0 %v3712
  %3737 = vmatprep.subr.bf16.mxu0 0
  %3738 = vmatpush1.bf16.msra.mxu0 0
  %3739 = vmatprep.subr.bf16.mxu0 0
  %3740 = vmatpush1.bf16.msra.mxu0 0
  %3741 = vmatprep.subr.bf16.mxu0 0
  %3742 = vmatpush1.bf16.msra.mxu0 0
  %3743 = vmatprep.subr.bf16.mxu0 0
  %3744 = vmatpush1.bf16.msra.mxu0 0
  %3745 = vmatprep.subr.bf16.mxu0 0
  %3746 = vmatpush1.bf16.msra.mxu0 0
  %3747 = vmatprep.subr.bf16.mxu0 0
  %3748 = vmatpush1.bf16.msra.mxu0 0
  %3749 = vmatprep.subr.bf16.mxu0 0
  %3750 = vmatpush1.bf16.msra.mxu0 0
  %3751 = vmatprep.subr.bf16.mxu0 0
  %3752 = vmatpush1.bf16.msra.mxu0 0
  %3753 = vmatprep.mubr.bf16.mxu0 0
  %3754 = vmatmul.mubr.bf16.gmra.mrb[0].mxu0 %v2264
  %v3755 = vpop.f32.mrb[0].mxu0
  %v3756 = vadd.f32 0.0, %v3755
  %v3757 = vpop.f32.mrb[0].mxu0
  %v3758 = vpop.f32.mrb[0].mxu0
  %v3759 = vadd.f32 0.0, %v3758
  %v3760 = vpop.f32.mrb[0].mxu0
  %3761 = vmatprep.mubr.bf16.mxu0 0
  %3762 = vmatmul.mubr.bf16.gmra.mrb[0].mxu0 %v2265
  %v3763 = vpop.f32.mrb[0].mxu0
  %v3764 = vadd.f32 0.0, %v3763
  %v3765 = vpop.f32.mrb[0].mxu0
  %v3766 = vpop.f32.mrb[0].mxu0
  %v3767 = vadd.f32 0.0, %v3766
  %v3768 = vpop.f32.mrb[0].mxu0
  %3769 = vmatprep.mubr.bf16.mxu0 0
  %3770 = vmatmul.mubr.bf16.gmra.mrb[0].mxu0 %v2266
  %v3771 = vpop.f32.mrb[0].mxu0
  %v3772 = vadd.f32 0.0, %v3771
  %v3773 = vpop.f32.mrb[0].mxu0
  %v3774 = vpop.f32.mrb[0].mxu0
  %v3775 = vadd.f32 0.0, %v3774
  %v3776 = vpop.f32.mrb[0].mxu0
  %3777 = vmatprep.mubr.bf16.mxu0 0
  %3778 = vmatmul.mubr.bf16.gmra.mrb[0].mxu0 %v2267
  %v3779 = vpop.f32.mrb[0].mxu0
  %v3780 = vadd.f32 0.0, %v3779
  %v3781 = vpop.f32.mrb[0].mxu0
  %v3782 = vpop.f32.mrb[0].mxu0
  %v3783 = vadd.f32 0.0, %v3782
  %v3784 = vpop.f32.mrb[0].mxu0
  %3785 = vmatprep.mubr.bf16.mxu0 0
  %3786 = vmatmul.mubr.bf16.gmra.mrb[0].mxu0 %v2268
  %v3787 = vpop.f32.mrb[0].mxu0
  %v3788 = vadd.f32 0.0, %v3787
  %v3789 = vpop.f32.mrb[0].mxu0
  %v3790 = vpop.f32.mrb[0].mxu0
  %v3791 = vadd.f32 0.0, %v3790
  %v3792 = vpop.f32.mrb[0].mxu0
  %3793 = vmatprep.mubr.bf16.mxu0 0
  %3794 = vmatmul.mubr.bf16.gmra.mrb[0].mxu0 %v2269
  %v3795 = vpop.f32.mrb[0].mxu0
  %v3796 = vadd.f32 0.0, %v3795
  %v3797 = vpop.f32.mrb[0].mxu0
  %v3798 = vpop.f32.mrb[0].mxu0
  %v3799 = vadd.f32 0.0, %v3798
  %v3800 = vpop.f32.mrb[0].mxu0
  %3801 = vmatprep.mubr.bf16.mxu0 0
  %3802 = vmatmul.mubr.bf16.gmra.mrb[0].mxu0 %v2270
  %v3803 = vpop.f32.mrb[0].mxu0
  %v3804 = vadd.f32 0.0, %v3803
  %v3805 = vpop.f32.mrb[0].mxu0
  %v3806 = vpop.f32.mrb[0].mxu0
  %v3807 = vadd.f32 0.0, %v3806
  %v3808 = vpop.f32.mrb[0].mxu0
  %3809 = vmatprep.mubr.bf16.mxu0 0
  %3810 = vmatmul.mubr.bf16.gmra.mrb[0].mxu0 %v2271
  %v3811 = vpop.f32.mrb[0].mxu0
  %v3812 = vadd.f32 0.0, %v3811
  %v3813 = vpop.f32.mrb[0].mxu0
  %v3814 = vpop.f32.mrb[0].mxu0
  %v3815 = vadd.f32 0.0, %v3814
  %v3816 = vpop.f32.mrb[0].mxu0
  %3817 = vmatprep.mubr.bf16.mxu0 0
  %3818 = vmatmul.mubr.bf16.gmra.mrb[0].mxu0 %v2272
  %v3819 = vpop.f32.mrb[0].mxu0
  %v3820 = vadd.f32 0.0, %v3819
  %v3821 = vpop.f32.mrb[0].mxu0
  %v3822 = vpop.f32.mrb[0].mxu0
  %v3823 = vadd.f32 0.0, %v3822
  %v3824 = vpop.f32.mrb[0].mxu0
  %3825 = vmatprep.mubr.bf16.mxu0 0
  %3826 = vmatmul.mubr.bf16.gmra.mrb[0].mxu0 %v2273
  %v3827 = vpop.f32.mrb[0].mxu0
  %v3828 = vadd.f32 0.0, %v3827
  %v3829 = vpop.f32.mrb[0].mxu0
  %v3830 = vpop.f32.mrb[0].mxu0
  %v3831 = vadd.f32 0.0, %v3830
  %v3832 = vpop.f32.mrb[0].mxu0
  %3833 = vmatprep.mubr.bf16.mxu0 0
  %3834 = vmatmul.mubr.bf16.gmra.mrb[0].mxu0 %v2274
  %v3835 = vpop.f32.mrb[0].mxu0
  %v3836 = vadd.f32 0.0, %v3835
  %v3837 = vpop.f32.mrb[0].mxu0
  %v3838 = vpop.f32.mrb[0].mxu0
  %v3839 = vadd.f32 0.0, %v3838
  %v3840 = vpop.f32.mrb[0].mxu0
  %3841 = vmatprep.mubr.bf16.mxu0 0
  %3842 = vmatmul.mubr.bf16.gmra.mrb[0].mxu0 %v2275
  %v3843 = vpop.f32.mrb[0].mxu0
  %v3844 = vadd.f32 0.0, %v3843
  %v3845 = vpop.f32.mrb[0].mxu0
  %v3846 = vpop.f32.mrb[0].mxu0
  %v3847 = vadd.f32 0.0, %v3846
  %v3848 = vpop.f32.mrb[0].mxu0
  %3849 = vmatprep.mubr.bf16.mxu0 0
  %3850 = vmatmul.mubr.bf16.gmra.mrb[0].mxu0 %v2276
  %v3851 = vpop.f32.mrb[0].mxu0
  %v3852 = vadd.f32 0.0, %v3851
  %v3853 = vpop.f32.mrb[0].mxu0
  %v3854 = vpop.f32.mrb[0].mxu0
  %v3855 = vadd.f32 0.0, %v3854
  %v3856 = vpop.f32.mrb[0].mxu0
  %3857 = vmatprep.mubr.bf16.mxu0 0
  %3858 = vmatmul.mubr.bf16.gmra.mrb[0].mxu0 %v2277
  %v3859 = vpop.f32.mrb[0].mxu0
  %v3860 = vadd.f32 0.0, %v3859
  %v3861 = vpop.f32.mrb[0].mxu0
  %v3862 = vpop.f32.mrb[0].mxu0
  %v3863 = vadd.f32 0.0, %v3862
  %v3864 = vpop.f32.mrb[0].mxu0
  %3865 = vmatprep.mubr.bf16.mxu0 0
  %3866 = vmatmul.mubr.bf16.gmra.mrb[0].mxu0 %v2278
  %v3867 = vpop.f32.mrb[0].mxu0
  %v3868 = vadd.f32 0.0, %v3867
  %v3869 = vpop.f32.mrb[0].mxu0
  %v3870 = vpop.f32.mrb[0].mxu0
  %v3871 = vadd.f32 0.0, %v3870
  %v3872 = vpop.f32.mrb[0].mxu0
  %3873 = vmatprep.mubr.bf16.mxu0 0
  %3874 = vmatmul.mubr.bf16.gmra.mrb[0].mxu0 %v3669
  %v3875 = vpop.f32.mrb[0].mxu0
  %v3876 = vadd.f32 0.0, %v3875
  %v3877 = vpop.f32.mrb[0].mxu0
  %v3878 = vpop.f32.mrb[0].mxu0
  %v3879 = vadd.f32 0.0, %v3878
  %v3880 = vpop.f32.mrb[0].mxu0
  %3881 = vmatprep.mubr.bf16.mxu0 0
  %3882 = vmatmul.mubr.bf16.gmra.mrb[0].mxu0 %v2280
  %v3883 = vpop.f32.mrb[0].mxu0
  %v3884 = vadd.f32 0.0, %v3883
  %v3885 = vpop.f32.mrb[0].mxu0
  %v3886 = vpop.f32.mrb[0].mxu0
  %v3887 = vadd.f32 0.0, %v3886
  %v3888 = vpop.f32.mrb[0].mxu0
  %3889 = vmatprep.mubr.bf16.mxu0 0
  %3890 = vmatmul.mubr.bf16.gmra.mrb[0].mxu0 %v2281
  %v3891 = vpop.f32.mrb[0].mxu0
  %v3892 = vadd.f32 0.0, %v3891
  %v3893 = vpop.f32.mrb[0].mxu0
  %v3894 = vpop.f32.mrb[0].mxu0
  %v3895 = vadd.f32 0.0, %v3894
  %v3896 = vpop.f32.mrb[0].mxu0
  %3897 = vmatprep.mubr.bf16.mxu0 0
  %3898 = vmatmul.mubr.bf16.gmra.mrb[0].mxu0 %v2282
  %v3899 = vpop.f32.mrb[0].mxu0
  %v3900 = vadd.f32 0.0, %v3899
  %v3901 = vpop.f32.mrb[0].mxu0
  %v3902 = vpop.f32.mrb[0].mxu0
  %v3903 = vadd.f32 0.0, %v3902
  %v3904 = vpop.f32.mrb[0].mxu0
  %3905 = vmatprep.mubr.bf16.mxu0 0
  %3906 = vmatmul.mubr.bf16.gmra.mrb[0].mxu0 %v2283
  %v3907 = vpop.f32.mrb[0].mxu0
  %v3908 = vadd.f32 0.0, %v3907
  %v3909 = vpop.f32.mrb[0].mxu0
  %v3910 = vpop.f32.mrb[0].mxu0
  %v3911 = vadd.f32 0.0, %v3910
  %v3912 = vpop.f32.mrb[0].mxu0
  %3913 = vmatprep.mubr.bf16.mxu0 0
  %3914 = vmatmul.mubr.bf16.gmra.mrb[0].mxu0 %v2284
  %v3915 = vpop.f32.mrb[0].mxu0
  %v3916 = vadd.f32 0.0, %v3915
  %v3917 = vpop.f32.mrb[0].mxu0
  %v3918 = vpop.f32.mrb[0].mxu0
  %v3919 = vadd.f32 0.0, %v3918
  %v3920 = vpop.f32.mrb[0].mxu0
  %3921 = vmatprep.mubr.bf16.mxu0 0
  %3922 = vmatmul.mubr.bf16.gmra.mrb[0].mxu0 %v2285
  %v3923 = vpop.f32.mrb[0].mxu0
  %v3924 = vadd.f32 0.0, %v3923
  %v3925 = vpop.f32.mrb[0].mxu0
  %v3926 = vpop.f32.mrb[0].mxu0
  %v3927 = vadd.f32 0.0, %v3926
  %v3928 = vpop.f32.mrb[0].mxu0
  %3929 = vmatprep.mubr.bf16.mxu0 0
  %3930 = vmatmul.mubr.bf16.gmra.mrb[0].mxu0 %v2286
  %v3931 = vpop.f32.mrb[0].mxu0
  %v3932 = vadd.f32 0.0, %v3931
  %v3933 = vpop.f32.mrb[0].mxu0
  %v3934 = vpop.f32.mrb[0].mxu0
  %v3935 = vadd.f32 0.0, %v3934
  %v3936 = vpop.f32.mrb[0].mxu0
  %3937 = vmatprep.mubr.bf16.mxu0 0
  %3938 = vmatmul.mubr.bf16.gmra.mrb[0].mxu0 %v2287
  %v3939 = vpop.f32.mrb[0].mxu0
  %v3940 = vadd.f32 0.0, %v3939
  %v3941 = vpop.f32.mrb[0].mxu0
  %v3942 = vpop.f32.mrb[0].mxu0
  %v3943 = vadd.f32 0.0, %v3942
  %v3944 = vpop.f32.mrb[0].mxu0
  %3945 = vmatprep.mubr.bf16.mxu0 0
  %3946 = vmatmul.mubr.bf16.gmra.mrb[0].mxu0 %v2288
  %v3947 = vpop.f32.mrb[0].mxu0
  %v3948 = vadd.f32 0.0, %v3947
  %v3949 = vpop.f32.mrb[0].mxu0
  %v3950 = vpop.f32.mrb[0].mxu0
  %v3951 = vadd.f32 0.0, %v3950
  %v3952 = vpop.f32.mrb[0].mxu0
  %3953 = vmatprep.mubr.bf16.mxu0 0
  %3954 = vmatmul.mubr.bf16.gmra.mrb[0].mxu0 %v2289
  %v3955 = vpop.f32.mrb[0].mxu0
  %v3956 = vadd.f32 0.0, %v3955
  %v3957 = vpop.f32.mrb[0].mxu0
  %v3958 = vpop.f32.mrb[0].mxu0
  %v3959 = vadd.f32 0.0, %v3958
  %v3960 = vpop.f32.mrb[0].mxu0
  %3961 = vmatprep.mubr.bf16.mxu0 0
  %3962 = vmatmul.mubr.bf16.gmra.mrb[0].mxu0 %v2290
  %v3963 = vpop.f32.mrb[0].mxu0
  %v3964 = vadd.f32 0.0, %v3963
  %v3965 = vpop.f32.mrb[0].mxu0
  %v3966 = vpop.f32.mrb[0].mxu0
  %v3967 = vadd.f32 0.0, %v3966
  %v3968 = vpop.f32.mrb[0].mxu0
  %3969 = vmatprep.mubr.bf16.mxu0 0
  %3970 = vmatmul.mubr.bf16.gmra.mrb[0].mxu0 %v2291
  %v3971 = vpop.f32.mrb[0].mxu0
  %v3972 = vadd.f32 0.0, %v3971
  %v3973 = vpop.f32.mrb[0].mxu0
  %v3974 = vpop.f32.mrb[0].mxu0
  %v3975 = vadd.f32 0.0, %v3974
  %v3976 = vpop.f32.mrb[0].mxu0
  %3977 = vmatprep.mubr.bf16.mxu0 0
  %3978 = vmatmul.mubr.bf16.gmra.mrb[0].mxu0 %v2292
  %v3979 = vpop.f32.mrb[0].mxu0
  %v3980 = vadd.f32 0.0, %v3979
  %v3981 = vpop.f32.mrb[0].mxu0
  %v3982 = vpop.f32.mrb[0].mxu0
  %v3983 = vadd.f32 0.0, %v3982
  %v3984 = vpop.f32.mrb[0].mxu0
  %3985 = vmatprep.mubr.bf16.mxu0 0
  %3986 = vmatmul.mubr.bf16.gmra.mrb[0].mxu0 %v2293
  %v3987 = vpop.f32.mrb[0].mxu0
  %v3988 = vadd.f32 0.0, %v3987
  %v3989 = vpop.f32.mrb[0].mxu0
  %v3990 = vpop.f32.mrb[0].mxu0
  %v3991 = vadd.f32 0.0, %v3990
  %v3992 = vpop.f32.mrb[0].mxu0
  %3993 = vmatprep.mubr.bf16.mxu0 0
  %3994 = vmatmul.mubr.bf16.gmra.mrb[0].mxu0 %v2294
  %v3995 = vpop.f32.mrb[0].mxu0
  %v3996 = vadd.f32 0.0, %v3995
  %v3997 = vpop.f32.mrb[0].mxu0
  %v3998 = vpop.f32.mrb[0].mxu0
  %v3999 = vadd.f32 0.0, %v3998
  %v4000 = vpop.f32.mrb[0].mxu0
  %4001 = vmatprep.mubr.bf16.mxu0 0
  %4002 = vmatmul.mubr.bf16.gmra.mrb[0].mxu0 %v3670
  %v4003 = vpop.f32.mrb[0].mxu0
  %v4004 = vadd.f32 0.0, %v4003
  %v4005 = vpop.f32.mrb[0].mxu0
  %v4006 = vpop.f32.mrb[0].mxu0
  %v4007 = vadd.f32 0.0, %v4006
  %v4008 = vpop.f32.mrb[0].mxu0
  %4009 = vdwg.mxu0
  %v4010 = vadd.f32 %v3568, %v3756
  %v4011 = vadd.f32 %v3569, %v3759
  %v4012 = vadd.f32 %v3570, %v3764
  %v4013 = vadd.f32 %v3571, %v3767
  %v4014 = vadd.f32 %v3572, %v3772
  %v4015 = vadd.f32 %v3573, %v3775
  %v4016 = vadd.f32 %v3574, %v3780
  %v4017 = vadd.f32 %v3575, %v3783
  %v4018 = vadd.f32 %v3576, %v3788
  %v4019 = vadd.f32 %v3577, %v3791
  %v4020 = vadd.f32 %v3578, %v3796
  %v4021 = vadd.f32 %v3579, %v3799
  %v4022 = vadd.f32 %v3580, %v3804
  %v4023 = vadd.f32 %v3581, %v3807
  %v4024 = vadd.f32 %v3582, %v3812
  %v4025 = vadd.f32 %v3583, %v3815
  %v4026 = vadd.f32 %v3584, %v3820
  %v4027 = vadd.f32 %v3585, %v3823
  %v4028 = vadd.f32 %v3586, %v3828
  %v4029 = vadd.f32 %v3587, %v3831
  %v4030 = vadd.f32 %v3588, %v3836
  %v4031 = vadd.f32 %v3589, %v3839
  %v4032 = vadd.f32 %v3590, %v3844
  %v4033 = vadd.f32 %v3591, %v3847
  %v4034 = vadd.f32 %v3592, %v3852
  %v4035 = vadd.f32 %v3593, %v3855
  %v4036 = vadd.f32 %v3594, %v3860
  %v4037 = vadd.f32 %v3595, %v3863
  %v4038 = vadd.f32 %v3596, %v3868
  %v4039 = vadd.f32 %v3597, %v3871
  %v4040 = vadd.f32 %v3598, %v3876
  %v4041 = vadd.f32 %v3599, %v3879
  %v4042 = vadd.f32 %v3600, %v3884
  %v4043 = vadd.f32 %v3601, %v3887
  %v4044 = vadd.f32 %v3602, %v3892
  %v4045 = vadd.f32 %v3603, %v3895
  %v4046 = vadd.f32 %v3604, %v3900
  %v4047 = vadd.f32 %v3605, %v3903
  %v4048 = vadd.f32 %v3606, %v3908
  %v4049 = vadd.f32 %v3607, %v3911
  %v4050 = vadd.f32 %v3608, %v3916
  %v4051 = vadd.f32 %v3609, %v3919
  %v4052 = vadd.f32 %v3610, %v3924
  %v4053 = vadd.f32 %v3611, %v3927
  %v4054 = vadd.f32 %v3612, %v3932
  %v4055 = vadd.f32 %v3613, %v3935
  %v4056 = vadd.f32 %v3614, %v3940
  %v4057 = vadd.f32 %v3615, %v3943
  %v4058 = vadd.f32 %v3616, %v3948
  %v4059 = vadd.f32 %v3617, %v3951
  %v4060 = vadd.f32 %v3618, %v3956
  %v4061 = vadd.f32 %v3619, %v3959
  %v4062 = vadd.f32 %v3620, %v3964
  %v4063 = vadd.f32 %v3621, %v3967
  %v4064 = vadd.f32 %v3622, %v3972
  %v4065 = vadd.f32 %v3623, %v3975
  %v4066 = vadd.f32 %v3624, %v3980
  %v4067 = vadd.f32 %v3625, %v3983
  %v4068 = vadd.f32 %v3626, %v3988
  %v4069 = vadd.f32 %v3627, %v3991
  %v4070 = vadd.f32 %v3628, %v3996
  %v4071 = vadd.f32 %v3629, %v3999
  %v4072 = vadd.f32 %v3630, %v4004
  %v4073 = vadd.f32 %v3631, %v4007
  %s4074 = scalar_lea.vmem %s1, 384
  %v4075 = vld [vmem:[%s4074] sm:$0xf]
  %v4076 = vld [vmem:[%s4074 + $0x4] sm:$0xf]
  %v4077 = vld [vmem:[%s4074 + $0x8] sm:$0xf]
  %v4078 = vld [vmem:[%s4074 + $0xc] sm:$0xf]
  %v4079 = vld [vmem:[%s4074 + $0x10] sm:$0xf]
  %v4080 = vld [vmem:[%s4074 + $0x14] sm:$0xf]
  %v4081 = vld [vmem:[%s4074 + $0x18] sm:$0xf]
  %v4082 = vld [vmem:[%s4074 + $0x1c] sm:$0xf]
  %v4083 = vld [vmem:[%s4074 + $0x20] sm:$0xf]
  %v4084 = vld [vmem:[%s4074 + $0x24] sm:$0xf]
  %v4085 = vld [vmem:[%s4074 + $0x28] sm:$0xf]
  %v4086 = vld [vmem:[%s4074 + $0x2c] sm:$0xf]
  %v4087 = vld [vmem:[%s4074 + $0x30] sm:$0xf]
  %v4088 = vld [vmem:[%s4074 + $0x34] sm:$0xf]
  %v4089 = vld [vmem:[%s4074 + $0x38] sm:$0xf]
  %v4090 = vld [vmem:[%s4074 + $0x3c] sm:$0xf]
  %v4095 = vunpack.c.l.b16 %v68
  %v4096 = vunpack.c.l.b16 %v69
  %v4097 = vunpack.c.l.b16 %v122
  %v4098 = vunpack.c.l.b16 %v123
  %v4099 = vpack.c.b16 %v4096, %v4095
  %v4100 = vpack.c.b16 %v4098, %v4097
  %v4119 = vunpack.c.l.b16 %v4075
  %v4120 = vunpack.c.l.b16 %v4076
  %v4121 = vunpack.c.l.b16 %v4077
  %v4122 = vunpack.c.l.b16 %v4078
  %v4123 = vunpack.c.l.b16 %v4079
  %v4124 = vunpack.c.l.b16 %v4080
  %v4125 = vunpack.c.l.b16 %v4081
  %v4126 = vunpack.c.l.b16 %v4082
  %v4127 = vunpack.c.l.b16 %v4083
  %v4128 = vunpack.c.l.b16 %v4084
  %v4129 = vunpack.c.l.b16 %v4085
  %v4130 = vunpack.c.l.b16 %v4086
  %v4131 = vunpack.c.l.b16 %v4087
  %v4132 = vunpack.c.l.b16 %v4088
  %v4133 = vunpack.c.l.b16 %v4089
  %v4134 = vunpack.c.l.b16 %v4090
  %v4135 = vpack.c.b16 %v4120, %v4119
  %v4136 = vpack.c.b16 %v4122, %v4121
  %v4137 = vpack.c.b16 %v4124, %v4123
  %v4138 = vpack.c.b16 %v4126, %v4125
  %v4139 = vpack.c.b16 %v4128, %v4127
  %v4140 = vpack.c.b16 %v4130, %v4129
  %v4141 = vpack.c.b16 %v4132, %v4131
  %v4142 = vpack.c.b16 %v4134, %v4133
  %4151 = vmatprep.subr.bf16.mxu0 0
  %4152 = vmatpush1.bf16.msra.mxu0 %v4135
  %4153 = vmatprep.subr.bf16.mxu0 0
  %4154 = vmatpush1.bf16.msra.mxu0 %v4136
  %4155 = vmatprep.subr.bf16.mxu0 0
  %4156 = vmatpush1.bf16.msra.mxu0 %v4137
  %4157 = vmatprep.subr.bf16.mxu0 0
  %4158 = vmatpush1.bf16.msra.mxu0 %v4138
  %4159 = vmatprep.subr.bf16.mxu0 0
  %4160 = vmatpush1.bf16.msra.mxu0 %v4139
  %4161 = vmatprep.subr.bf16.mxu0 0
  %4162 = vmatpush1.bf16.msra.mxu0 %v4140
  %4163 = vmatprep.subr.bf16.mxu0 0
  %4164 = vmatpush1.bf16.msra.mxu0 %v4141
  %4165 = vmatprep.subr.bf16.mxu0 0
  %4166 = vmatpush1.bf16.msra.mxu0 %v4142
  %4167 = vmatprep.subr.bf16.mxu0 0
  %4168 = vmatpush1.bf16.msra.mxu0 0
  %4169 = vmatprep.subr.bf16.mxu0 0
  %4170 = vmatpush1.bf16.msra.mxu0 0
  %4171 = vmatprep.subr.bf16.mxu0 0
  %4172 = vmatpush1.bf16.msra.mxu0 0
  %4173 = vmatprep.subr.bf16.mxu0 0
  %4174 = vmatpush1.bf16.msra.mxu0 0
  %4175 = vmatprep.subr.bf16.mxu0 0
  %4176 = vmatpush1.bf16.msra.mxu0 0
  %4177 = vmatprep.subr.bf16.mxu0 0
  %4178 = vmatpush1.bf16.msra.mxu0 0
  %4179 = vmatprep.subr.bf16.mxu0 0
  %4180 = vmatpush1.bf16.msra.mxu0 0
  %4181 = vmatprep.subr.bf16.mxu0 0
  %4182 = vmatpush1.bf16.msra.mxu0 0
  %4183 = vmatprep.mubr.bf16.mxu0 0
  %4184 = vmatmul.mubr.bf16.gmra.mrb[0].mxu0 %v1524
  %v4185 = vpop.f32.mrb[0].mxu0
  %v4186 = vadd.f32 0.0, %v4185
  %v4187 = vpop.f32.mrb[0].mxu0
  %v4188 = vpop.f32.mrb[0].mxu0
  %v4189 = vadd.f32 0.0, %v4188
  %v4190 = vpop.f32.mrb[0].mxu0
  %4191 = vmatprep.mubr.bf16.mxu0 0
  %4192 = vmatmul.mubr.bf16.gmra.mrb[0].mxu0 %v1525
  %v4193 = vpop.f32.mrb[0].mxu0
  %v4194 = vadd.f32 0.0, %v4193
  %v4195 = vpop.f32.mrb[0].mxu0
  %v4196 = vpop.f32.mrb[0].mxu0
  %v4197 = vadd.f32 0.0, %v4196
  %v4198 = vpop.f32.mrb[0].mxu0
  %4199 = vmatprep.mubr.bf16.mxu0 0
  %4200 = vmatmul.mubr.bf16.gmra.mrb[0].mxu0 %v1526
  %v4201 = vpop.f32.mrb[0].mxu0
  %v4202 = vadd.f32 0.0, %v4201
  %v4203 = vpop.f32.mrb[0].mxu0
  %v4204 = vpop.f32.mrb[0].mxu0
  %v4205 = vadd.f32 0.0, %v4204
  %v4206 = vpop.f32.mrb[0].mxu0
  %4207 = vmatprep.mubr.bf16.mxu0 0
  %4208 = vmatmul.mubr.bf16.gmra.mrb[0].mxu0 %v1527
  %v4209 = vpop.f32.mrb[0].mxu0
  %v4210 = vadd.f32 0.0, %v4209
  %v4211 = vpop.f32.mrb[0].mxu0
  %v4212 = vpop.f32.mrb[0].mxu0
  %v4213 = vadd.f32 0.0, %v4212
  %v4214 = vpop.f32.mrb[0].mxu0
  %4215 = vmatprep.mubr.bf16.mxu0 0
  %4216 = vmatmul.mubr.bf16.gmra.mrb[0].mxu0 %v1528
  %v4217 = vpop.f32.mrb[0].mxu0
  %v4218 = vadd.f32 0.0, %v4217
  %v4219 = vpop.f32.mrb[0].mxu0
  %v4220 = vpop.f32.mrb[0].mxu0
  %v4221 = vadd.f32 0.0, %v4220
  %v4222 = vpop.f32.mrb[0].mxu0
  %4223 = vmatprep.mubr.bf16.mxu0 0
  %4224 = vmatmul.mubr.bf16.gmra.mrb[0].mxu0 %v1529
  %v4225 = vpop.f32.mrb[0].mxu0
  %v4226 = vadd.f32 0.0, %v4225
  %v4227 = vpop.f32.mrb[0].mxu0
  %v4228 = vpop.f32.mrb[0].mxu0
  %v4229 = vadd.f32 0.0, %v4228
  %v4230 = vpop.f32.mrb[0].mxu0
  %4231 = vmatprep.mubr.bf16.mxu0 0
  %4232 = vmatmul.mubr.bf16.gmra.mrb[0].mxu0 %v1530
  %v4233 = vpop.f32.mrb[0].mxu0
  %v4234 = vadd.f32 0.0, %v4233
  %v4235 = vpop.f32.mrb[0].mxu0
  %v4236 = vpop.f32.mrb[0].mxu0
  %v4237 = vadd.f32 0.0, %v4236
  %v4238 = vpop.f32.mrb[0].mxu0
  %4239 = vmatprep.mubr.bf16.mxu0 0
  %4240 = vmatmul.mubr.bf16.gmra.mrb[0].mxu0 %v1531
  %v4241 = vpop.f32.mrb[0].mxu0
  %v4242 = vadd.f32 0.0, %v4241
  %v4243 = vpop.f32.mrb[0].mxu0
  %v4244 = vpop.f32.mrb[0].mxu0
  %v4245 = vadd.f32 0.0, %v4244
  %v4246 = vpop.f32.mrb[0].mxu0
  %4247 = vmatprep.mubr.bf16.mxu0 0
  %4248 = vmatmul.mubr.bf16.gmra.mrb[0].mxu0 %v1532
  %v4249 = vpop.f32.mrb[0].mxu0
  %v4250 = vadd.f32 0.0, %v4249
  %v4251 = vpop.f32.mrb[0].mxu0
  %v4252 = vpop.f32.mrb[0].mxu0
  %v4253 = vadd.f32 0.0, %v4252
  %v4254 = vpop.f32.mrb[0].mxu0
  %4255 = vmatprep.mubr.bf16.mxu0 0
  %4256 = vmatmul.mubr.bf16.gmra.mrb[0].mxu0 %v1533
  %v4257 = vpop.f32.mrb[0].mxu0
  %v4258 = vadd.f32 0.0, %v4257
  %v4259 = vpop.f32.mrb[0].mxu0
  %v4260 = vpop.f32.mrb[0].mxu0
  %v4261 = vadd.f32 0.0, %v4260
  %v4262 = vpop.f32.mrb[0].mxu0
  %4263 = vmatprep.mubr.bf16.mxu0 0
  %4264 = vmatmul.mubr.bf16.gmra.mrb[0].mxu0 %v1534
  %v4265 = vpop.f32.mrb[0].mxu0
  %v4266 = vadd.f32 0.0, %v4265
  %v4267 = vpop.f32.mrb[0].mxu0
  %v4268 = vpop.f32.mrb[0].mxu0
  %v4269 = vadd.f32 0.0, %v4268
  %v4270 = vpop.f32.mrb[0].mxu0
  %4271 = vmatprep.mubr.bf16.mxu0 0
  %4272 = vmatmul.mubr.bf16.gmra.mrb[0].mxu0 %v1535
  %v4273 = vpop.f32.mrb[0].mxu0
  %v4274 = vadd.f32 0.0, %v4273
  %v4275 = vpop.f32.mrb[0].mxu0
  %v4276 = vpop.f32.mrb[0].mxu0
  %v4277 = vadd.f32 0.0, %v4276
  %v4278 = vpop.f32.mrb[0].mxu0
  %4279 = vmatprep.mubr.bf16.mxu0 0
  %4280 = vmatmul.mubr.bf16.gmra.mrb[0].mxu0 %v1536
  %v4281 = vpop.f32.mrb[0].mxu0
  %v4282 = vadd.f32 0.0, %v4281
  %v4283 = vpop.f32.mrb[0].mxu0
  %v4284 = vpop.f32.mrb[0].mxu0
  %v4285 = vadd.f32 0.0, %v4284
  %v4286 = vpop.f32.mrb[0].mxu0
  %4287 = vmatprep.mubr.bf16.mxu0 0
  %4288 = vmatmul.mubr.bf16.gmra.mrb[0].mxu0 %v1537
  %v4289 = vpop.f32.mrb[0].mxu0
  %v4290 = vadd.f32 0.0, %v4289
  %v4291 = vpop.f32.mrb[0].mxu0
  %v4292 = vpop.f32.mrb[0].mxu0
  %v4293 = vadd.f32 0.0, %v4292
  %v4294 = vpop.f32.mrb[0].mxu0
  %4295 = vmatprep.mubr.bf16.mxu0 0
  %4296 = vmatmul.mubr.bf16.gmra.mrb[0].mxu0 %v2753
  %v4297 = vpop.f32.mrb[0].mxu0
  %v4298 = vadd.f32 0.0, %v4297
  %v4299 = vpop.f32.mrb[0].mxu0
  %v4300 = vpop.f32.mrb[0].mxu0
  %v4301 = vadd.f32 0.0, %v4300
  %v4302 = vpop.f32.mrb[0].mxu0
  %4303 = vmatprep.mubr.bf16.mxu0 0
  %4304 = vmatmul.mubr.bf16.gmra.mrb[0].mxu0 %v4099
  %v4305 = vpop.f32.mrb[0].mxu0
  %v4306 = vadd.f32 0.0, %v4305
  %v4307 = vpop.f32.mrb[0].mxu0
  %v4308 = vpop.f32.mrb[0].mxu0
  %v4309 = vadd.f32 0.0, %v4308
  %v4310 = vpop.f32.mrb[0].mxu0
  %4311 = vmatprep.mubr.bf16.mxu0 0
  %4312 = vmatmul.mubr.bf16.gmra.mrb[0].mxu0 %v1540
  %v4313 = vpop.f32.mrb[0].mxu0
  %v4314 = vadd.f32 0.0, %v4313
  %v4315 = vpop.f32.mrb[0].mxu0
  %v4316 = vpop.f32.mrb[0].mxu0
  %v4317 = vadd.f32 0.0, %v4316
  %v4318 = vpop.f32.mrb[0].mxu0
  %4319 = vmatprep.mubr.bf16.mxu0 0
  %4320 = vmatmul.mubr.bf16.gmra.mrb[0].mxu0 %v1541
  %v4321 = vpop.f32.mrb[0].mxu0
  %v4322 = vadd.f32 0.0, %v4321
  %v4323 = vpop.f32.mrb[0].mxu0
  %v4324 = vpop.f32.mrb[0].mxu0
  %v4325 = vadd.f32 0.0, %v4324
  %v4326 = vpop.f32.mrb[0].mxu0
  %4327 = vmatprep.mubr.bf16.mxu0 0
  %4328 = vmatmul.mubr.bf16.gmra.mrb[0].mxu0 %v1542
  %v4329 = vpop.f32.mrb[0].mxu0
  %v4330 = vadd.f32 0.0, %v4329
  %v4331 = vpop.f32.mrb[0].mxu0
  %v4332 = vpop.f32.mrb[0].mxu0
  %v4333 = vadd.f32 0.0, %v4332
  %v4334 = vpop.f32.mrb[0].mxu0
  %4335 = vmatprep.mubr.bf16.mxu0 0
  %4336 = vmatmul.mubr.bf16.gmra.mrb[0].mxu0 %v1543
  %v4337 = vpop.f32.mrb[0].mxu0
  %v4338 = vadd.f32 0.0, %v4337
  %v4339 = vpop.f32.mrb[0].mxu0
  %v4340 = vpop.f32.mrb[0].mxu0
  %v4341 = vadd.f32 0.0, %v4340
  %v4342 = vpop.f32.mrb[0].mxu0
  %4343 = vmatprep.mubr.bf16.mxu0 0
  %4344 = vmatmul.mubr.bf16.gmra.mrb[0].mxu0 %v1544
  %v4345 = vpop.f32.mrb[0].mxu0
  %v4346 = vadd.f32 0.0, %v4345
  %v4347 = vpop.f32.mrb[0].mxu0
  %v4348 = vpop.f32.mrb[0].mxu0
  %v4349 = vadd.f32 0.0, %v4348
  %v4350 = vpop.f32.mrb[0].mxu0
  %4351 = vmatprep.mubr.bf16.mxu0 0
  %4352 = vmatmul.mubr.bf16.gmra.mrb[0].mxu0 %v1545
  %v4353 = vpop.f32.mrb[0].mxu0
  %v4354 = vadd.f32 0.0, %v4353
  %v4355 = vpop.f32.mrb[0].mxu0
  %v4356 = vpop.f32.mrb[0].mxu0
  %v4357 = vadd.f32 0.0, %v4356
  %v4358 = vpop.f32.mrb[0].mxu0
  %4359 = vmatprep.mubr.bf16.mxu0 0
  %4360 = vmatmul.mubr.bf16.gmra.mrb[0].mxu0 %v1546
  %v4361 = vpop.f32.mrb[0].mxu0
  %v4362 = vadd.f32 0.0, %v4361
  %v4363 = vpop.f32.mrb[0].mxu0
  %v4364 = vpop.f32.mrb[0].mxu0
  %v4365 = vadd.f32 0.0, %v4364
  %v4366 = vpop.f32.mrb[0].mxu0
  %4367 = vmatprep.mubr.bf16.mxu0 0
  %4368 = vmatmul.mubr.bf16.gmra.mrb[0].mxu0 %v1547
  %v4369 = vpop.f32.mrb[0].mxu0
  %v4370 = vadd.f32 0.0, %v4369
  %v4371 = vpop.f32.mrb[0].mxu0
  %v4372 = vpop.f32.mrb[0].mxu0
  %v4373 = vadd.f32 0.0, %v4372
  %v4374 = vpop.f32.mrb[0].mxu0
  %4375 = vmatprep.mubr.bf16.mxu0 0
  %4376 = vmatmul.mubr.bf16.gmra.mrb[0].mxu0 %v1548
  %v4377 = vpop.f32.mrb[0].mxu0
  %v4378 = vadd.f32 0.0, %v4377
  %v4379 = vpop.f32.mrb[0].mxu0
  %v4380 = vpop.f32.mrb[0].mxu0
  %v4381 = vadd.f32 0.0, %v4380
  %v4382 = vpop.f32.mrb[0].mxu0
  %4383 = vmatprep.mubr.bf16.mxu0 0
  %4384 = vmatmul.mubr.bf16.gmra.mrb[0].mxu0 %v1549
  %v4385 = vpop.f32.mrb[0].mxu0
  %v4386 = vadd.f32 0.0, %v4385
  %v4387 = vpop.f32.mrb[0].mxu0
  %v4388 = vpop.f32.mrb[0].mxu0
  %v4389 = vadd.f32 0.0, %v4388
  %v4390 = vpop.f32.mrb[0].mxu0
  %4391 = vmatprep.mubr.bf16.mxu0 0
  %4392 = vmatmul.mubr.bf16.gmra.mrb[0].mxu0 %v1550
  %v4393 = vpop.f32.mrb[0].mxu0
  %v4394 = vadd.f32 0.0, %v4393
  %v4395 = vpop.f32.mrb[0].mxu0
  %v4396 = vpop.f32.mrb[0].mxu0
  %v4397 = vadd.f32 0.0, %v4396
  %v4398 = vpop.f32.mrb[0].mxu0
  %4399 = vmatprep.mubr.bf16.mxu0 0
  %4400 = vmatmul.mubr.bf16.gmra.mrb[0].mxu0 %v1551
  %v4401 = vpop.f32.mrb[0].mxu0
  %v4402 = vadd.f32 0.0, %v4401
  %v4403 = vpop.f32.mrb[0].mxu0
  %v4404 = vpop.f32.mrb[0].mxu0
  %v4405 = vadd.f32 0.0, %v4404
  %v4406 = vpop.f32.mrb[0].mxu0
  %4407 = vmatprep.mubr.bf16.mxu0 0
  %4408 = vmatmul.mubr.bf16.gmra.mrb[0].mxu0 %v1552
  %v4409 = vpop.f32.mrb[0].mxu0
  %v4410 = vadd.f32 0.0, %v4409
  %v4411 = vpop.f32.mrb[0].mxu0
  %v4412 = vpop.f32.mrb[0].mxu0
  %v4413 = vadd.f32 0.0, %v4412
  %v4414 = vpop.f32.mrb[0].mxu0
  %4415 = vmatprep.mubr.bf16.mxu0 0
  %4416 = vmatmul.mubr.bf16.gmra.mrb[0].mxu0 %v1553
  %v4417 = vpop.f32.mrb[0].mxu0
  %v4418 = vadd.f32 0.0, %v4417
  %v4419 = vpop.f32.mrb[0].mxu0
  %v4420 = vpop.f32.mrb[0].mxu0
  %v4421 = vadd.f32 0.0, %v4420
  %v4422 = vpop.f32.mrb[0].mxu0
  %4423 = vmatprep.mubr.bf16.mxu0 0
  %4424 = vmatmul.mubr.bf16.gmra.mrb[0].mxu0 %v2754
  %v4425 = vpop.f32.mrb[0].mxu0
  %v4426 = vadd.f32 0.0, %v4425
  %v4427 = vpop.f32.mrb[0].mxu0
  %v4428 = vpop.f32.mrb[0].mxu0
  %v4429 = vadd.f32 0.0, %v4428
  %v4430 = vpop.f32.mrb[0].mxu0
  %4431 = vmatprep.mubr.bf16.mxu0 0
  %4432 = vmatmul.mubr.bf16.gmra.mrb[0].mxu0 %v4100
  %v4433 = vpop.f32.mrb[0].mxu0
  %v4434 = vadd.f32 0.0, %v4433
  %v4435 = vpop.f32.mrb[0].mxu0
  %v4436 = vpop.f32.mrb[0].mxu0
  %v4437 = vadd.f32 0.0, %v4436
  %v4438 = vpop.f32.mrb[0].mxu0
  %4439 = vdwg.mxu0
  %v4440 = vadd.f32 %v4010, %v4186
  %v4441 = vadd.f32 %v4011, %v4189
  %v4442 = vadd.f32 %v4012, %v4194
  %v4443 = vadd.f32 %v4013, %v4197
  %v4444 = vadd.f32 %v4014, %v4202
  %v4445 = vadd.f32 %v4015, %v4205
  %v4446 = vadd.f32 %v4016, %v4210
  %v4447 = vadd.f32 %v4017, %v4213
  %v4448 = vadd.f32 %v4018, %v4218
  %v4449 = vadd.f32 %v4019, %v4221
  %v4450 = vadd.f32 %v4020, %v4226
  %v4451 = vadd.f32 %v4021, %v4229
  %v4452 = vadd.f32 %v4022, %v4234
  %v4453 = vadd.f32 %v4023, %v4237
  %v4454 = vadd.f32 %v4024, %v4242
  %v4455 = vadd.f32 %v4025, %v4245
  %v4456 = vadd.f32 %v4026, %v4250
  %v4457 = vadd.f32 %v4027, %v4253
  %v4458 = vadd.f32 %v4028, %v4258
  %v4459 = vadd.f32 %v4029, %v4261
  %v4460 = vadd.f32 %v4030, %v4266
  %v4461 = vadd.f32 %v4031, %v4269
  %v4462 = vadd.f32 %v4032, %v4274
  %v4463 = vadd.f32 %v4033, %v4277
  %v4464 = vadd.f32 %v4034, %v4282
  %v4465 = vadd.f32 %v4035, %v4285
  %v4466 = vadd.f32 %v4036, %v4290
  %v4467 = vadd.f32 %v4037, %v4293
  %v4468 = vadd.f32 %v4038, %v4298
  %v4469 = vadd.f32 %v4039, %v4301
  %v4470 = vadd.f32 %v4040, %v4306
  %v4471 = vadd.f32 %v4041, %v4309
  %v4472 = vadd.f32 %v4042, %v4314
  %v4473 = vadd.f32 %v4043, %v4317
  %v4474 = vadd.f32 %v4044, %v4322
  %v4475 = vadd.f32 %v4045, %v4325
  %v4476 = vadd.f32 %v4046, %v4330
  %v4477 = vadd.f32 %v4047, %v4333
  %v4478 = vadd.f32 %v4048, %v4338
  %v4479 = vadd.f32 %v4049, %v4341
  %v4480 = vadd.f32 %v4050, %v4346
  %v4481 = vadd.f32 %v4051, %v4349
  %v4482 = vadd.f32 %v4052, %v4354
  %v4483 = vadd.f32 %v4053, %v4357
  %v4484 = vadd.f32 %v4054, %v4362
  %v4485 = vadd.f32 %v4055, %v4365
  %v4486 = vadd.f32 %v4056, %v4370
  %v4487 = vadd.f32 %v4057, %v4373
  %v4488 = vadd.f32 %v4058, %v4378
  %v4489 = vadd.f32 %v4059, %v4381
  %v4490 = vadd.f32 %v4060, %v4386
  %v4491 = vadd.f32 %v4061, %v4389
  %v4492 = vadd.f32 %v4062, %v4394
  %v4493 = vadd.f32 %v4063, %v4397
  %v4494 = vadd.f32 %v4064, %v4402
  %v4495 = vadd.f32 %v4065, %v4405
  %v4496 = vadd.f32 %v4066, %v4410
  %v4497 = vadd.f32 %v4067, %v4413
  %v4498 = vadd.f32 %v4068, %v4418
  %v4499 = vadd.f32 %v4069, %v4421
  %v4500 = vadd.f32 %v4070, %v4426
  %v4501 = vadd.f32 %v4071, %v4429
  %v4502 = vadd.f32 %v4072, %v4434
  %v4503 = vadd.f32 %v4073, %v4437
  %v4505 = vshrl.u32 %v68, 16
  %v4507 = vrot.slane %v4505, 4
  %v4508 = vshll.u32 %v68, 16
  %v4510 = vrot.slane %v4508, 5
  %v4511 = vor.u32 %v4507, %v4510
  %v4512 = vrot.slane %v4511, 4
  %v4514 = vshll.u32 %v69, 16
  %v4516 = vrot.slane %v4514, 5
  %v4517 = vsel %vm143, %v4512, %v4516
  %v4518 = vshrl.u32 %v69, 16
  %v4520 = vrot.slane %v4518, 4
  %v4521 = vor.u32 %v4520, %v4516
  %v4522 = vrot.slane %v4521, 4
  %v4524 = vshll.u32 %v70, 16
  %v4526 = vrot.slane %v4524, 5
  %v4527 = vsel %vm143, %v4522, %v4526
  %v4529 = vshrl.u32 %v122, 16
  %v4531 = vrot.slane %v4529, 4
  %v4532 = vshll.u32 %v122, 16
  %v4534 = vrot.slane %v4532, 5
  %v4535 = vor.u32 %v4531, %v4534
  %v4536 = vrot.slane %v4535, 4
  %v4538 = vshll.u32 %v123, 16
  %v4540 = vrot.slane %v4538, 5
  %v4541 = vsel %vm143, %v4536, %v4540
  %v4542 = vshrl.u32 %v123, 16
  %v4544 = vrot.slane %v4542, 4
  %v4545 = vor.u32 %v4544, %v4540
  %v4546 = vrot.slane %v4545, 4
  %v4548 = vshll.u32 %v124, 16
  %v4550 = vrot.slane %v4548, 5
  %v4551 = vsel %vm143, %v4546, %v4550
  %s4552 = scalar_lea.vmem %s1, 448
  %v4553 = vld [vmem:[%s4552] sm:$0xf]
  %v4554 = vld [vmem:[%s4552 + $0x4] sm:$0xf]
  %v4555 = vld [vmem:[%s4552 + $0x8] sm:$0xf]
  %v4556 = vld [vmem:[%s4552 + $0xc] sm:$0xf]
  %v4557 = vld [vmem:[%s4552 + $0x10] sm:$0xf]
  %v4558 = vld [vmem:[%s4552 + $0x14] sm:$0xf]
  %v4559 = vld [vmem:[%s4552 + $0x18] sm:$0xf]
  %v4560 = vld [vmem:[%s4552 + $0x1c] sm:$0xf]
  %v4561 = vld [vmem:[%s4552 + $0x20] sm:$0xf]
  %v4562 = vld [vmem:[%s4552 + $0x24] sm:$0xf]
  %v4563 = vld [vmem:[%s4552 + $0x28] sm:$0xf]
  %v4564 = vld [vmem:[%s4552 + $0x2c] sm:$0xf]
  %v4565 = vld [vmem:[%s4552 + $0x30] sm:$0xf]
  %v4566 = vld [vmem:[%s4552 + $0x34] sm:$0xf]
  %v4567 = vld [vmem:[%s4552 + $0x38] sm:$0xf]
  %v4568 = vld [vmem:[%s4552 + $0x3c] sm:$0xf]
  %v4569 = vunpack.c.l.b16 %v4517
  %v4570 = vunpack.c.l.b16 %v4527
  %v4571 = vunpack.c.l.b16 %v4541
  %v4572 = vunpack.c.l.b16 %v4551
  %v4573 = vpack.c.b16 %v4570, %v4569
  %v4574 = vpack.c.b16 %v4572, %v4571
  %v4593 = vunpack.c.l.b16 %v4553
  %v4594 = vunpack.c.l.b16 %v4554
  %v4595 = vunpack.c.l.b16 %v4555
  %v4596 = vunpack.c.l.b16 %v4556
  %v4597 = vunpack.c.l.b16 %v4557
  %v4598 = vunpack.c.l.b16 %v4558
  %v4599 = vunpack.c.l.b16 %v4559
  %v4600 = vunpack.c.l.b16 %v4560
  %v4601 = vunpack.c.l.b16 %v4561
  %v4602 = vunpack.c.l.b16 %v4562
  %v4603 = vunpack.c.l.b16 %v4563
  %v4604 = vunpack.c.l.b16 %v4564
  %v4605 = vunpack.c.l.b16 %v4565
  %v4606 = vunpack.c.l.b16 %v4566
  %v4607 = vunpack.c.l.b16 %v4567
  %v4608 = vunpack.c.l.b16 %v4568
  %v4609 = vpack.c.b16 %v4594, %v4593
  %v4610 = vpack.c.b16 %v4596, %v4595
  %v4611 = vpack.c.b16 %v4598, %v4597
  %v4612 = vpack.c.b16 %v4600, %v4599
  %v4613 = vpack.c.b16 %v4602, %v4601
  %v4614 = vpack.c.b16 %v4604, %v4603
  %v4615 = vpack.c.b16 %v4606, %v4605
  %v4616 = vpack.c.b16 %v4608, %v4607
  %4625 = vmatprep.subr.bf16.mxu0 0
  %4626 = vmatpush1.bf16.msra.mxu0 %v4609
  %4627 = vmatprep.subr.bf16.mxu0 0
  %4628 = vmatpush1.bf16.msra.mxu0 %v4610
  %4629 = vmatprep.subr.bf16.mxu0 0
  %4630 = vmatpush1.bf16.msra.mxu0 %v4611
  %4631 = vmatprep.subr.bf16.mxu0 0
  %4632 = vmatpush1.bf16.msra.mxu0 %v4612
  %4633 = vmatprep.subr.bf16.mxu0 0
  %4634 = vmatpush1.bf16.msra.mxu0 %v4613
  %4635 = vmatprep.subr.bf16.mxu0 0
  %4636 = vmatpush1.bf16.msra.mxu0 %v4614
  %4637 = vmatprep.subr.bf16.mxu0 0
  %4638 = vmatpush1.bf16.msra.mxu0 %v4615
  %4639 = vmatprep.subr.bf16.mxu0 0
  %4640 = vmatpush1.bf16.msra.mxu0 %v4616
  %4641 = vmatprep.subr.bf16.mxu0 0
  %4642 = vmatpush1.bf16.msra.mxu0 0
  %4643 = vmatprep.subr.bf16.mxu0 0
  %4644 = vmatpush1.bf16.msra.mxu0 0
  %4645 = vmatprep.subr.bf16.mxu0 0
  %4646 = vmatpush1.bf16.msra.mxu0 0
  %4647 = vmatprep.subr.bf16.mxu0 0
  %4648 = vmatpush1.bf16.msra.mxu0 0
  %4649 = vmatprep.subr.bf16.mxu0 0
  %4650 = vmatpush1.bf16.msra.mxu0 0
  %4651 = vmatprep.subr.bf16.mxu0 0
  %4652 = vmatpush1.bf16.msra.mxu0 0
  %4653 = vmatprep.subr.bf16.mxu0 0
  %4654 = vmatpush1.bf16.msra.mxu0 0
  %4655 = vmatprep.subr.bf16.mxu0 0
  %4656 = vmatpush1.bf16.msra.mxu0 0
  %4657 = vmatprep.mubr.bf16.mxu0 0
  %4658 = vmatmul.mubr.bf16.gmra.mrb[0].mxu0 %v995
  %v4659 = vpop.f32.mrb[0].mxu0
  %v4660 = vadd.f32 0.0, %v4659
  %v4661 = vpop.f32.mrb[0].mxu0
  %v4662 = vpop.f32.mrb[0].mxu0
  %v4663 = vadd.f32 0.0, %v4662
  %v4664 = vpop.f32.mrb[0].mxu0
  %4665 = vmatprep.mubr.bf16.mxu0 0
  %4666 = vmatmul.mubr.bf16.gmra.mrb[0].mxu0 %v996
  %v4667 = vpop.f32.mrb[0].mxu0
  %v4668 = vadd.f32 0.0, %v4667
  %v4669 = vpop.f32.mrb[0].mxu0
  %v4670 = vpop.f32.mrb[0].mxu0
  %v4671 = vadd.f32 0.0, %v4670
  %v4672 = vpop.f32.mrb[0].mxu0
  %4673 = vmatprep.mubr.bf16.mxu0 0
  %4674 = vmatmul.mubr.bf16.gmra.mrb[0].mxu0 %v997
  %v4675 = vpop.f32.mrb[0].mxu0
  %v4676 = vadd.f32 0.0, %v4675
  %v4677 = vpop.f32.mrb[0].mxu0
  %v4678 = vpop.f32.mrb[0].mxu0
  %v4679 = vadd.f32 0.0, %v4678
  %v4680 = vpop.f32.mrb[0].mxu0
  %4681 = vmatprep.mubr.bf16.mxu0 0
  %4682 = vmatmul.mubr.bf16.gmra.mrb[0].mxu0 %v998
  %v4683 = vpop.f32.mrb[0].mxu0
  %v4684 = vadd.f32 0.0, %v4683
  %v4685 = vpop.f32.mrb[0].mxu0
  %v4686 = vpop.f32.mrb[0].mxu0
  %v4687 = vadd.f32 0.0, %v4686
  %v4688 = vpop.f32.mrb[0].mxu0
  %4689 = vmatprep.mubr.bf16.mxu0 0
  %4690 = vmatmul.mubr.bf16.gmra.mrb[0].mxu0 %v999
  %v4691 = vpop.f32.mrb[0].mxu0
  %v4692 = vadd.f32 0.0, %v4691
  %v4693 = vpop.f32.mrb[0].mxu0
  %v4694 = vpop.f32.mrb[0].mxu0
  %v4695 = vadd.f32 0.0, %v4694
  %v4696 = vpop.f32.mrb[0].mxu0
  %4697 = vmatprep.mubr.bf16.mxu0 0
  %4698 = vmatmul.mubr.bf16.gmra.mrb[0].mxu0 %v1000
  %v4699 = vpop.f32.mrb[0].mxu0
  %v4700 = vadd.f32 0.0, %v4699
  %v4701 = vpop.f32.mrb[0].mxu0
  %v4702 = vpop.f32.mrb[0].mxu0
  %v4703 = vadd.f32 0.0, %v4702
  %v4704 = vpop.f32.mrb[0].mxu0
  %4705 = vmatprep.mubr.bf16.mxu0 0
  %4706 = vmatmul.mubr.bf16.gmra.mrb[0].mxu0 %v1001
  %v4707 = vpop.f32.mrb[0].mxu0
  %v4708 = vadd.f32 0.0, %v4707
  %v4709 = vpop.f32.mrb[0].mxu0
  %v4710 = vpop.f32.mrb[0].mxu0
  %v4711 = vadd.f32 0.0, %v4710
  %v4712 = vpop.f32.mrb[0].mxu0
  %4713 = vmatprep.mubr.bf16.mxu0 0
  %4714 = vmatmul.mubr.bf16.gmra.mrb[0].mxu0 %v1002
  %v4715 = vpop.f32.mrb[0].mxu0
  %v4716 = vadd.f32 0.0, %v4715
  %v4717 = vpop.f32.mrb[0].mxu0
  %v4718 = vpop.f32.mrb[0].mxu0
  %v4719 = vadd.f32 0.0, %v4718
  %v4720 = vpop.f32.mrb[0].mxu0
  %4721 = vmatprep.mubr.bf16.mxu0 0
  %4722 = vmatmul.mubr.bf16.gmra.mrb[0].mxu0 %v1003
  %v4723 = vpop.f32.mrb[0].mxu0
  %v4724 = vadd.f32 0.0, %v4723
  %v4725 = vpop.f32.mrb[0].mxu0
  %v4726 = vpop.f32.mrb[0].mxu0
  %v4727 = vadd.f32 0.0, %v4726
  %v4728 = vpop.f32.mrb[0].mxu0
  %4729 = vmatprep.mubr.bf16.mxu0 0
  %4730 = vmatmul.mubr.bf16.gmra.mrb[0].mxu0 %v1004
  %v4731 = vpop.f32.mrb[0].mxu0
  %v4732 = vadd.f32 0.0, %v4731
  %v4733 = vpop.f32.mrb[0].mxu0
  %v4734 = vpop.f32.mrb[0].mxu0
  %v4735 = vadd.f32 0.0, %v4734
  %v4736 = vpop.f32.mrb[0].mxu0
  %4737 = vmatprep.mubr.bf16.mxu0 0
  %4738 = vmatmul.mubr.bf16.gmra.mrb[0].mxu0 %v1005
  %v4739 = vpop.f32.mrb[0].mxu0
  %v4740 = vadd.f32 0.0, %v4739
  %v4741 = vpop.f32.mrb[0].mxu0
  %v4742 = vpop.f32.mrb[0].mxu0
  %v4743 = vadd.f32 0.0, %v4742
  %v4744 = vpop.f32.mrb[0].mxu0
  %4745 = vmatprep.mubr.bf16.mxu0 0
  %4746 = vmatmul.mubr.bf16.gmra.mrb[0].mxu0 %v1006
  %v4747 = vpop.f32.mrb[0].mxu0
  %v4748 = vadd.f32 0.0, %v4747
  %v4749 = vpop.f32.mrb[0].mxu0
  %v4750 = vpop.f32.mrb[0].mxu0
  %v4751 = vadd.f32 0.0, %v4750
  %v4752 = vpop.f32.mrb[0].mxu0
  %4753 = vmatprep.mubr.bf16.mxu0 0
  %4754 = vmatmul.mubr.bf16.gmra.mrb[0].mxu0 %v1007
  %v4755 = vpop.f32.mrb[0].mxu0
  %v4756 = vadd.f32 0.0, %v4755
  %v4757 = vpop.f32.mrb[0].mxu0
  %v4758 = vpop.f32.mrb[0].mxu0
  %v4759 = vadd.f32 0.0, %v4758
  %v4760 = vpop.f32.mrb[0].mxu0
  %4761 = vmatprep.mubr.bf16.mxu0 0
  %4762 = vmatmul.mubr.bf16.gmra.mrb[0].mxu0 %v1008
  %v4763 = vpop.f32.mrb[0].mxu0
  %v4764 = vadd.f32 0.0, %v4763
  %v4765 = vpop.f32.mrb[0].mxu0
  %v4766 = vpop.f32.mrb[0].mxu0
  %v4767 = vadd.f32 0.0, %v4766
  %v4768 = vpop.f32.mrb[0].mxu0
  %4769 = vmatprep.mubr.bf16.mxu0 0
  %4770 = vmatmul.mubr.bf16.gmra.mrb[0].mxu0 %v3227
  %v4771 = vpop.f32.mrb[0].mxu0
  %v4772 = vadd.f32 0.0, %v4771
  %v4773 = vpop.f32.mrb[0].mxu0
  %v4774 = vpop.f32.mrb[0].mxu0
  %v4775 = vadd.f32 0.0, %v4774
  %v4776 = vpop.f32.mrb[0].mxu0
  %4777 = vmatprep.mubr.bf16.mxu0 0
  %4778 = vmatmul.mubr.bf16.gmra.mrb[0].mxu0 %v4573
  %v4779 = vpop.f32.mrb[0].mxu0
  %v4780 = vadd.f32 0.0, %v4779
  %v4781 = vpop.f32.mrb[0].mxu0
  %v4782 = vpop.f32.mrb[0].mxu0
  %v4783 = vadd.f32 0.0, %v4782
  %v4784 = vpop.f32.mrb[0].mxu0
  %4785 = vmatprep.mubr.bf16.mxu0 0
  %4786 = vmatmul.mubr.bf16.gmra.mrb[0].mxu0 %v1011
  %v4787 = vpop.f32.mrb[0].mxu0
  %v4788 = vadd.f32 0.0, %v4787
  %v4789 = vpop.f32.mrb[0].mxu0
  %v4790 = vpop.f32.mrb[0].mxu0
  %v4791 = vadd.f32 0.0, %v4790
  %v4792 = vpop.f32.mrb[0].mxu0
  %4793 = vmatprep.mubr.bf16.mxu0 0
  %4794 = vmatmul.mubr.bf16.gmra.mrb[0].mxu0 %v1012
  %v4795 = vpop.f32.mrb[0].mxu0
  %v4796 = vadd.f32 0.0, %v4795
  %v4797 = vpop.f32.mrb[0].mxu0
  %v4798 = vpop.f32.mrb[0].mxu0
  %v4799 = vadd.f32 0.0, %v4798
  %v4800 = vpop.f32.mrb[0].mxu0
  %4801 = vmatprep.mubr.bf16.mxu0 0
  %4802 = vmatmul.mubr.bf16.gmra.mrb[0].mxu0 %v1013
  %v4803 = vpop.f32.mrb[0].mxu0
  %v4804 = vadd.f32 0.0, %v4803
  %v4805 = vpop.f32.mrb[0].mxu0
  %v4806 = vpop.f32.mrb[0].mxu0
  %v4807 = vadd.f32 0.0, %v4806
  %v4808 = vpop.f32.mrb[0].mxu0
  %4809 = vmatprep.mubr.bf16.mxu0 0
  %4810 = vmatmul.mubr.bf16.gmra.mrb[0].mxu0 %v1014
  %v4811 = vpop.f32.mrb[0].mxu0
  %v4812 = vadd.f32 0.0, %v4811
  %v4813 = vpop.f32.mrb[0].mxu0
  %v4814 = vpop.f32.mrb[0].mxu0
  %v4815 = vadd.f32 0.0, %v4814
  %v4816 = vpop.f32.mrb[0].mxu0
  %4817 = vmatprep.mubr.bf16.mxu0 0
  %4818 = vmatmul.mubr.bf16.gmra.mrb[0].mxu0 %v1015
  %v4819 = vpop.f32.mrb[0].mxu0
  %v4820 = vadd.f32 0.0, %v4819
  %v4821 = vpop.f32.mrb[0].mxu0
  %v4822 = vpop.f32.mrb[0].mxu0
  %v4823 = vadd.f32 0.0, %v4822
  %v4824 = vpop.f32.mrb[0].mxu0
  %4825 = vmatprep.mubr.bf16.mxu0 0
  %4826 = vmatmul.mubr.bf16.gmra.mrb[0].mxu0 %v1016
  %v4827 = vpop.f32.mrb[0].mxu0
  %v4828 = vadd.f32 0.0, %v4827
  %v4829 = vpop.f32.mrb[0].mxu0
  %v4830 = vpop.f32.mrb[0].mxu0
  %v4831 = vadd.f32 0.0, %v4830
  %v4832 = vpop.f32.mrb[0].mxu0
  %4833 = vmatprep.mubr.bf16.mxu0 0
  %4834 = vmatmul.mubr.bf16.gmra.mrb[0].mxu0 %v1017
  %v4835 = vpop.f32.mrb[0].mxu0
  %v4836 = vadd.f32 0.0, %v4835
  %v4837 = vpop.f32.mrb[0].mxu0
  %v4838 = vpop.f32.mrb[0].mxu0
  %v4839 = vadd.f32 0.0, %v4838
  %v4840 = vpop.f32.mrb[0].mxu0
  %4841 = vmatprep.mubr.bf16.mxu0 0
  %4842 = vmatmul.mubr.bf16.gmra.mrb[0].mxu0 %v1018
  %v4843 = vpop.f32.mrb[0].mxu0
  %v4844 = vadd.f32 0.0, %v4843
  %v4845 = vpop.f32.mrb[0].mxu0
  %v4846 = vpop.f32.mrb[0].mxu0
  %v4847 = vadd.f32 0.0, %v4846
  %v4848 = vpop.f32.mrb[0].mxu0
  %4849 = vmatprep.mubr.bf16.mxu0 0
  %4850 = vmatmul.mubr.bf16.gmra.mrb[0].mxu0 %v1019
  %v4851 = vpop.f32.mrb[0].mxu0
  %v4852 = vadd.f32 0.0, %v4851
  %v4853 = vpop.f32.mrb[0].mxu0
  %v4854 = vpop.f32.mrb[0].mxu0
  %v4855 = vadd.f32 0.0, %v4854
  %v4856 = vpop.f32.mrb[0].mxu0
  %4857 = vmatprep.mubr.bf16.mxu0 0
  %4858 = vmatmul.mubr.bf16.gmra.mrb[0].mxu0 %v1020
  %v4859 = vpop.f32.mrb[0].mxu0
  %v4860 = vadd.f32 0.0, %v4859
  %v4861 = vpop.f32.mrb[0].mxu0
  %v4862 = vpop.f32.mrb[0].mxu0
  %v4863 = vadd.f32 0.0, %v4862
  %v4864 = vpop.f32.mrb[0].mxu0
  %4865 = vmatprep.mubr.bf16.mxu0 0
  %4866 = vmatmul.mubr.bf16.gmra.mrb[0].mxu0 %v1021
  %v4867 = vpop.f32.mrb[0].mxu0
  %v4868 = vadd.f32 0.0, %v4867
  %v4869 = vpop.f32.mrb[0].mxu0
  %v4870 = vpop.f32.mrb[0].mxu0
  %v4871 = vadd.f32 0.0, %v4870
  %v4872 = vpop.f32.mrb[0].mxu0
  %4873 = vmatprep.mubr.bf16.mxu0 0
  %4874 = vmatmul.mubr.bf16.gmra.mrb[0].mxu0 %v1022
  %v4875 = vpop.f32.mrb[0].mxu0
  %v4876 = vadd.f32 0.0, %v4875
  %v4877 = vpop.f32.mrb[0].mxu0
  %v4878 = vpop.f32.mrb[0].mxu0
  %v4879 = vadd.f32 0.0, %v4878
  %v4880 = vpop.f32.mrb[0].mxu0
  %4881 = vmatprep.mubr.bf16.mxu0 0
  %4882 = vmatmul.mubr.bf16.gmra.mrb[0].mxu0 %v1023
  %v4883 = vpop.f32.mrb[0].mxu0
  %v4884 = vadd.f32 0.0, %v4883
  %v4885 = vpop.f32.mrb[0].mxu0
  %v4886 = vpop.f32.mrb[0].mxu0
  %v4887 = vadd.f32 0.0, %v4886
  %v4888 = vpop.f32.mrb[0].mxu0
  %4889 = vmatprep.mubr.bf16.mxu0 0
  %4890 = vmatmul.mubr.bf16.gmra.mrb[0].mxu0 %v1024
  %v4891 = vpop.f32.mrb[0].mxu0
  %v4892 = vadd.f32 0.0, %v4891
  %v4893 = vpop.f32.mrb[0].mxu0
  %v4894 = vpop.f32.mrb[0].mxu0
  %v4895 = vadd.f32 0.0, %v4894
  %v4896 = vpop.f32.mrb[0].mxu0
  %4897 = vmatprep.mubr.bf16.mxu0 0
  %4898 = vmatmul.mubr.bf16.gmra.mrb[0].mxu0 %v3228
  %v4899 = vpop.f32.mrb[0].mxu0
  %v4900 = vadd.f32 0.0, %v4899
  %v4901 = vpop.f32.mrb[0].mxu0
  %v4902 = vpop.f32.mrb[0].mxu0
  %v4903 = vadd.f32 0.0, %v4902
  %v4904 = vpop.f32.mrb[0].mxu0
  %4905 = vmatprep.mubr.bf16.mxu0 0
  %4906 = vmatmul.mubr.bf16.gmra.mrb[0].mxu0 %v4574
  %v4907 = vpop.f32.mrb[0].mxu0
  %v4908 = vadd.f32 0.0, %v4907
  %v4909 = vpop.f32.mrb[0].mxu0
  %v4910 = vpop.f32.mrb[0].mxu0
  %v4911 = vadd.f32 0.0, %v4910
  %v4912 = vpop.f32.mrb[0].mxu0
  %4913 = vdwg.mxu0
  %v4914 = vadd.f32 %v4440, %v4660
  %v4915 = vadd.f32 %v4441, %v4663
  %v4916 = vadd.f32 %v4442, %v4668
  %v4917 = vadd.f32 %v4443, %v4671
  %v4918 = vadd.f32 %v4444, %v4676
  %v4919 = vadd.f32 %v4445, %v4679
  %v4920 = vadd.f32 %v4446, %v4684
  %v4921 = vadd.f32 %v4447, %v4687
  %v4922 = vadd.f32 %v4448, %v4692
  %v4923 = vadd.f32 %v4449, %v4695
  %v4924 = vadd.f32 %v4450, %v4700
  %v4925 = vadd.f32 %v4451, %v4703
  %v4926 = vadd.f32 %v4452, %v4708
  %v4927 = vadd.f32 %v4453, %v4711
  %v4928 = vadd.f32 %v4454, %v4716
  %v4929 = vadd.f32 %v4455, %v4719
  %v4930 = vadd.f32 %v4456, %v4724
  %v4931 = vadd.f32 %v4457, %v4727
  %v4932 = vadd.f32 %v4458, %v4732
  %v4933 = vadd.f32 %v4459, %v4735
  %v4934 = vadd.f32 %v4460, %v4740
  %v4935 = vadd.f32 %v4461, %v4743
  %v4936 = vadd.f32 %v4462, %v4748
  %v4937 = vadd.f32 %v4463, %v4751
  %v4938 = vadd.f32 %v4464, %v4756
  %v4939 = vadd.f32 %v4465, %v4759
  %v4940 = vadd.f32 %v4466, %v4764
  %v4941 = vadd.f32 %v4467, %v4767
  %v4942 = vadd.f32 %v4468, %v4772
  %v4943 = vadd.f32 %v4469, %v4775
  %v4944 = vadd.f32 %v4470, %v4780
  %v4945 = vadd.f32 %v4471, %v4783
  %v4946 = vadd.f32 %v4472, %v4788
  %v4947 = vadd.f32 %v4473, %v4791
  %v4948 = vadd.f32 %v4474, %v4796
  %v4949 = vadd.f32 %v4475, %v4799
  %v4950 = vadd.f32 %v4476, %v4804
  %v4951 = vadd.f32 %v4477, %v4807
  %v4952 = vadd.f32 %v4478, %v4812
  %v4953 = vadd.f32 %v4479, %v4815
  %v4954 = vadd.f32 %v4480, %v4820
  %v4955 = vadd.f32 %v4481, %v4823
  %v4956 = vadd.f32 %v4482, %v4828
  %v4957 = vadd.f32 %v4483, %v4831
  %v4958 = vadd.f32 %v4484, %v4836
  %v4959 = vadd.f32 %v4485, %v4839
  %v4960 = vadd.f32 %v4486, %v4844
  %v4961 = vadd.f32 %v4487, %v4847
  %v4962 = vadd.f32 %v4488, %v4852
  %v4963 = vadd.f32 %v4489, %v4855
  %v4964 = vadd.f32 %v4490, %v4860
  %v4965 = vadd.f32 %v4491, %v4863
  %v4966 = vadd.f32 %v4492, %v4868
  %v4967 = vadd.f32 %v4493, %v4871
  %v4968 = vadd.f32 %v4494, %v4876
  %v4969 = vadd.f32 %v4495, %v4879
  %v4970 = vadd.f32 %v4496, %v4884
  %v4971 = vadd.f32 %v4497, %v4887
  %v4972 = vadd.f32 %v4498, %v4892
  %v4973 = vadd.f32 %v4499, %v4895
  %v4974 = vadd.f32 %v4500, %v4900
  %v4975 = vadd.f32 %v4501, %v4903
  %v4976 = vadd.f32 %v4502, %v4908
  %v4977 = vadd.f32 %v4503, %v4911
  %v4980 = vrot.slane %v68, 5
  %v4981 = vrot.slane %v4980, 4
  %v4982 = vrot.slane %v69, 5
  %v4983 = vsel %vm1957, %v4981, %v4982
  %v4984 = vrot.slane %v4982, 4
  %v4985 = vrot.slane %v70, 5
  %v4986 = vsel %vm1957, %v4984, %v4985
  %v4987 = vrot.slane %v122, 5
  %v4988 = vrot.slane %v4987, 4
  %v4989 = vrot.slane %v123, 5
  %v4990 = vsel %vm1957, %v4988, %v4989
  %v4991 = vrot.slane %v4989, 4
  %v4992 = vrot.slane %v124, 5
  %v4993 = vsel %vm1957, %v4991, %v4992
  %s4994 = scalar_lea.vmem %s1, 512
  %v4995 = vld [vmem:[%s4994] sm:$0xf]
  %v4996 = vld [vmem:[%s4994 + $0x4] sm:$0xf]
  %v4997 = vld [vmem:[%s4994 + $0x8] sm:$0xf]
  %v4998 = vld [vmem:[%s4994 + $0xc] sm:$0xf]
  %v4999 = vld [vmem:[%s4994 + $0x10] sm:$0xf]
  %v5000 = vld [vmem:[%s4994 + $0x14] sm:$0xf]
  %v5001 = vld [vmem:[%s4994 + $0x18] sm:$0xf]
  %v5002 = vld [vmem:[%s4994 + $0x1c] sm:$0xf]
  %v5003 = vld [vmem:[%s4994 + $0x20] sm:$0xf]
  %v5004 = vld [vmem:[%s4994 + $0x24] sm:$0xf]
  %v5005 = vld [vmem:[%s4994 + $0x28] sm:$0xf]
  %v5006 = vld [vmem:[%s4994 + $0x2c] sm:$0xf]
  %v5007 = vld [vmem:[%s4994 + $0x30] sm:$0xf]
  %v5008 = vld [vmem:[%s4994 + $0x34] sm:$0xf]
  %v5009 = vld [vmem:[%s4994 + $0x38] sm:$0xf]
  %v5010 = vld [vmem:[%s4994 + $0x3c] sm:$0xf]
  %v5011 = vunpack.c.l.b16 %v4983
  %v5012 = vunpack.c.l.b16 %v4986
  %v5013 = vunpack.c.l.b16 %v4990
  %v5014 = vunpack.c.l.b16 %v4993
  %v5015 = vpack.c.b16 %v5012, %v5011
  %v5016 = vpack.c.b16 %v5014, %v5013
  %v5035 = vunpack.c.l.b16 %v4995
  %v5036 = vunpack.c.l.b16 %v4996
  %v5037 = vunpack.c.l.b16 %v4997
  %v5038 = vunpack.c.l.b16 %v4998
  %v5039 = vunpack.c.l.b16 %v4999
  %v5040 = vunpack.c.l.b16 %v5000
  %v5041 = vunpack.c.l.b16 %v5001
  %v5042 = vunpack.c.l.b16 %v5002
  %v5043 = vunpack.c.l.b16 %v5003
  %v5044 = vunpack.c.l.b16 %v5004
  %v5045 = vunpack.c.l.b16 %v5005
  %v5046 = vunpack.c.l.b16 %v5006
  %v5047 = vunpack.c.l.b16 %v5007
  %v5048 = vunpack.c.l.b16 %v5008
  %v5049 = vunpack.c.l.b16 %v5009
  %v5050 = vunpack.c.l.b16 %v5010
  %v5051 = vpack.c.b16 %v5036, %v5035
  %v5052 = vpack.c.b16 %v5038, %v5037
  %v5053 = vpack.c.b16 %v5040, %v5039
  %v5054 = vpack.c.b16 %v5042, %v5041
  %v5055 = vpack.c.b16 %v5044, %v5043
  %v5056 = vpack.c.b16 %v5046, %v5045
  %v5057 = vpack.c.b16 %v5048, %v5047
  %v5058 = vpack.c.b16 %v5050, %v5049
  %5067 = vmatprep.subr.bf16.mxu0 0
  %5068 = vmatpush1.bf16.msra.mxu0 %v5051
  %5069 = vmatprep.subr.bf16.mxu0 0
  %5070 = vmatpush1.bf16.msra.mxu0 %v5052
  %5071 = vmatprep.subr.bf16.mxu0 0
  %5072 = vmatpush1.bf16.msra.mxu0 %v5053
  %5073 = vmatprep.subr.bf16.mxu0 0
  %5074 = vmatpush1.bf16.msra.mxu0 %v5054
  %5075 = vmatprep.subr.bf16.mxu0 0
  %5076 = vmatpush1.bf16.msra.mxu0 %v5055
  %5077 = vmatprep.subr.bf16.mxu0 0
  %5078 = vmatpush1.bf16.msra.mxu0 %v5056
  %5079 = vmatprep.subr.bf16.mxu0 0
  %5080 = vmatpush1.bf16.msra.mxu0 %v5057
  %5081 = vmatprep.subr.bf16.mxu0 0
  %5082 = vmatpush1.bf16.msra.mxu0 %v5058
  %5083 = vmatprep.subr.bf16.mxu0 0
  %5084 = vmatpush1.bf16.msra.mxu0 0
  %5085 = vmatprep.subr.bf16.mxu0 0
  %5086 = vmatpush1.bf16.msra.mxu0 0
  %5087 = vmatprep.subr.bf16.mxu0 0
  %5088 = vmatpush1.bf16.msra.mxu0 0
  %5089 = vmatprep.subr.bf16.mxu0 0
  %5090 = vmatpush1.bf16.msra.mxu0 0
  %5091 = vmatprep.subr.bf16.mxu0 0
  %5092 = vmatpush1.bf16.msra.mxu0 0
  %5093 = vmatprep.subr.bf16.mxu0 0
  %5094 = vmatpush1.bf16.msra.mxu0 0
  %5095 = vmatprep.subr.bf16.mxu0 0
  %5096 = vmatpush1.bf16.msra.mxu0 0
  %5097 = vmatprep.subr.bf16.mxu0 0
  %5098 = vmatpush1.bf16.msra.mxu0 0
  %5099 = vmatprep.mubr.bf16.mxu0 0
  %5100 = vmatmul.mubr.bf16.gmra.mrb[0].mxu0 %v2265
  %v5101 = vpop.f32.mrb[0].mxu0
  %v5102 = vadd.f32 0.0, %v5101
  %v5103 = vpop.f32.mrb[0].mxu0
  %v5104 = vpop.f32.mrb[0].mxu0
  %v5105 = vadd.f32 0.0, %v5104
  %v5106 = vpop.f32.mrb[0].mxu0
  %5107 = vmatprep.mubr.bf16.mxu0 0
  %5108 = vmatmul.mubr.bf16.gmra.mrb[0].mxu0 %v2266
  %v5109 = vpop.f32.mrb[0].mxu0
  %v5110 = vadd.f32 0.0, %v5109
  %v5111 = vpop.f32.mrb[0].mxu0
  %v5112 = vpop.f32.mrb[0].mxu0
  %v5113 = vadd.f32 0.0, %v5112
  %v5114 = vpop.f32.mrb[0].mxu0
  %5115 = vmatprep.mubr.bf16.mxu0 0
  %5116 = vmatmul.mubr.bf16.gmra.mrb[0].mxu0 %v2267
  %v5117 = vpop.f32.mrb[0].mxu0
  %v5118 = vadd.f32 0.0, %v5117
  %v5119 = vpop.f32.mrb[0].mxu0
  %v5120 = vpop.f32.mrb[0].mxu0
  %v5121 = vadd.f32 0.0, %v5120
  %v5122 = vpop.f32.mrb[0].mxu0
  %5123 = vmatprep.mubr.bf16.mxu0 0
  %5124 = vmatmul.mubr.bf16.gmra.mrb[0].mxu0 %v2268
  %v5125 = vpop.f32.mrb[0].mxu0
  %v5126 = vadd.f32 0.0, %v5125
  %v5127 = vpop.f32.mrb[0].mxu0
  %v5128 = vpop.f32.mrb[0].mxu0
  %v5129 = vadd.f32 0.0, %v5128
  %v5130 = vpop.f32.mrb[0].mxu0
  %5131 = vmatprep.mubr.bf16.mxu0 0
  %5132 = vmatmul.mubr.bf16.gmra.mrb[0].mxu0 %v2269
  %v5133 = vpop.f32.mrb[0].mxu0
  %v5134 = vadd.f32 0.0, %v5133
  %v5135 = vpop.f32.mrb[0].mxu0
  %v5136 = vpop.f32.mrb[0].mxu0
  %v5137 = vadd.f32 0.0, %v5136
  %v5138 = vpop.f32.mrb[0].mxu0
  %5139 = vmatprep.mubr.bf16.mxu0 0
  %5140 = vmatmul.mubr.bf16.gmra.mrb[0].mxu0 %v2270
  %v5141 = vpop.f32.mrb[0].mxu0
  %v5142 = vadd.f32 0.0, %v5141
  %v5143 = vpop.f32.mrb[0].mxu0
  %v5144 = vpop.f32.mrb[0].mxu0
  %v5145 = vadd.f32 0.0, %v5144
  %v5146 = vpop.f32.mrb[0].mxu0
  %5147 = vmatprep.mubr.bf16.mxu0 0
  %5148 = vmatmul.mubr.bf16.gmra.mrb[0].mxu0 %v2271
  %v5149 = vpop.f32.mrb[0].mxu0
  %v5150 = vadd.f32 0.0, %v5149
  %v5151 = vpop.f32.mrb[0].mxu0
  %v5152 = vpop.f32.mrb[0].mxu0
  %v5153 = vadd.f32 0.0, %v5152
  %v5154 = vpop.f32.mrb[0].mxu0
  %5155 = vmatprep.mubr.bf16.mxu0 0
  %5156 = vmatmul.mubr.bf16.gmra.mrb[0].mxu0 %v2272
  %v5157 = vpop.f32.mrb[0].mxu0
  %v5158 = vadd.f32 0.0, %v5157
  %v5159 = vpop.f32.mrb[0].mxu0
  %v5160 = vpop.f32.mrb[0].mxu0
  %v5161 = vadd.f32 0.0, %v5160
  %v5162 = vpop.f32.mrb[0].mxu0
  %5163 = vmatprep.mubr.bf16.mxu0 0
  %5164 = vmatmul.mubr.bf16.gmra.mrb[0].mxu0 %v2273
  %v5165 = vpop.f32.mrb[0].mxu0
  %v5166 = vadd.f32 0.0, %v5165
  %v5167 = vpop.f32.mrb[0].mxu0
  %v5168 = vpop.f32.mrb[0].mxu0
  %v5169 = vadd.f32 0.0, %v5168
  %v5170 = vpop.f32.mrb[0].mxu0
  %5171 = vmatprep.mubr.bf16.mxu0 0
  %5172 = vmatmul.mubr.bf16.gmra.mrb[0].mxu0 %v2274
  %v5173 = vpop.f32.mrb[0].mxu0
  %v5174 = vadd.f32 0.0, %v5173
  %v5175 = vpop.f32.mrb[0].mxu0
  %v5176 = vpop.f32.mrb[0].mxu0
  %v5177 = vadd.f32 0.0, %v5176
  %v5178 = vpop.f32.mrb[0].mxu0
  %5179 = vmatprep.mubr.bf16.mxu0 0
  %5180 = vmatmul.mubr.bf16.gmra.mrb[0].mxu0 %v2275
  %v5181 = vpop.f32.mrb[0].mxu0
  %v5182 = vadd.f32 0.0, %v5181
  %v5183 = vpop.f32.mrb[0].mxu0
  %v5184 = vpop.f32.mrb[0].mxu0
  %v5185 = vadd.f32 0.0, %v5184
  %v5186 = vpop.f32.mrb[0].mxu0
  %5187 = vmatprep.mubr.bf16.mxu0 0
  %5188 = vmatmul.mubr.bf16.gmra.mrb[0].mxu0 %v2276
  %v5189 = vpop.f32.mrb[0].mxu0
  %v5190 = vadd.f32 0.0, %v5189
  %v5191 = vpop.f32.mrb[0].mxu0
  %v5192 = vpop.f32.mrb[0].mxu0
  %v5193 = vadd.f32 0.0, %v5192
  %v5194 = vpop.f32.mrb[0].mxu0
  %5195 = vmatprep.mubr.bf16.mxu0 0
  %5196 = vmatmul.mubr.bf16.gmra.mrb[0].mxu0 %v2277
  %v5197 = vpop.f32.mrb[0].mxu0
  %v5198 = vadd.f32 0.0, %v5197
  %v5199 = vpop.f32.mrb[0].mxu0
  %v5200 = vpop.f32.mrb[0].mxu0
  %v5201 = vadd.f32 0.0, %v5200
  %v5202 = vpop.f32.mrb[0].mxu0
  %5203 = vmatprep.mubr.bf16.mxu0 0
  %5204 = vmatmul.mubr.bf16.gmra.mrb[0].mxu0 %v2278
  %v5205 = vpop.f32.mrb[0].mxu0
  %v5206 = vadd.f32 0.0, %v5205
  %v5207 = vpop.f32.mrb[0].mxu0
  %v5208 = vpop.f32.mrb[0].mxu0
  %v5209 = vadd.f32 0.0, %v5208
  %v5210 = vpop.f32.mrb[0].mxu0
  %5211 = vmatprep.mubr.bf16.mxu0 0
  %5212 = vmatmul.mubr.bf16.gmra.mrb[0].mxu0 %v3669
  %v5213 = vpop.f32.mrb[0].mxu0
  %v5214 = vadd.f32 0.0, %v5213
  %v5215 = vpop.f32.mrb[0].mxu0
  %v5216 = vpop.f32.mrb[0].mxu0
  %v5217 = vadd.f32 0.0, %v5216
  %v5218 = vpop.f32.mrb[0].mxu0
  %5219 = vmatprep.mubr.bf16.mxu0 0
  %5220 = vmatmul.mubr.bf16.gmra.mrb[0].mxu0 %v5015
  %v5221 = vpop.f32.mrb[0].mxu0
  %v5222 = vadd.f32 0.0, %v5221
  %v5223 = vpop.f32.mrb[0].mxu0
  %v5224 = vpop.f32.mrb[0].mxu0
  %v5225 = vadd.f32 0.0, %v5224
  %v5226 = vpop.f32.mrb[0].mxu0
  %5227 = vmatprep.mubr.bf16.mxu0 0
  %5228 = vmatmul.mubr.bf16.gmra.mrb[0].mxu0 %v2281
  %v5229 = vpop.f32.mrb[0].mxu0
  %v5230 = vadd.f32 0.0, %v5229
  %v5231 = vpop.f32.mrb[0].mxu0
  %v5232 = vpop.f32.mrb[0].mxu0
  %v5233 = vadd.f32 0.0, %v5232
  %v5234 = vpop.f32.mrb[0].mxu0
  %5235 = vmatprep.mubr.bf16.mxu0 0
  %5236 = vmatmul.mubr.bf16.gmra.mrb[0].mxu0 %v2282
  %v5237 = vpop.f32.mrb[0].mxu0
  %v5238 = vadd.f32 0.0, %v5237
  %v5239 = vpop.f32.mrb[0].mxu0
  %v5240 = vpop.f32.mrb[0].mxu0
  %v5241 = vadd.f32 0.0, %v5240
  %v5242 = vpop.f32.mrb[0].mxu0
  %5243 = vmatprep.mubr.bf16.mxu0 0
  %5244 = vmatmul.mubr.bf16.gmra.mrb[0].mxu0 %v2283
  %v5245 = vpop.f32.mrb[0].mxu0
  %v5246 = vadd.f32 0.0, %v5245
  %v5247 = vpop.f32.mrb[0].mxu0
  %v5248 = vpop.f32.mrb[0].mxu0
  %v5249 = vadd.f32 0.0, %v5248
  %v5250 = vpop.f32.mrb[0].mxu0
  %5251 = vmatprep.mubr.bf16.mxu0 0
  %5252 = vmatmul.mubr.bf16.gmra.mrb[0].mxu0 %v2284
  %v5253 = vpop.f32.mrb[0].mxu0
  %v5254 = vadd.f32 0.0, %v5253
  %v5255 = vpop.f32.mrb[0].mxu0
  %v5256 = vpop.f32.mrb[0].mxu0
  %v5257 = vadd.f32 0.0, %v5256
  %v5258 = vpop.f32.mrb[0].mxu0
  %5259 = vmatprep.mubr.bf16.mxu0 0
  %5260 = vmatmul.mubr.bf16.gmra.mrb[0].mxu0 %v2285
  %v5261 = vpop.f32.mrb[0].mxu0
  %v5262 = vadd.f32 0.0, %v5261
  %v5263 = vpop.f32.mrb[0].mxu0
  %v5264 = vpop.f32.mrb[0].mxu0
  %v5265 = vadd.f32 0.0, %v5264
  %v5266 = vpop.f32.mrb[0].mxu0
  %5267 = vmatprep.mubr.bf16.mxu0 0
  %5268 = vmatmul.mubr.bf16.gmra.mrb[0].mxu0 %v2286
  %v5269 = vpop.f32.mrb[0].mxu0
  %v5270 = vadd.f32 0.0, %v5269
  %v5271 = vpop.f32.mrb[0].mxu0
  %v5272 = vpop.f32.mrb[0].mxu0
  %v5273 = vadd.f32 0.0, %v5272
  %v5274 = vpop.f32.mrb[0].mxu0
  %5275 = vmatprep.mubr.bf16.mxu0 0
  %5276 = vmatmul.mubr.bf16.gmra.mrb[0].mxu0 %v2287
  %v5277 = vpop.f32.mrb[0].mxu0
  %v5278 = vadd.f32 0.0, %v5277
  %v5279 = vpop.f32.mrb[0].mxu0
  %v5280 = vpop.f32.mrb[0].mxu0
  %v5281 = vadd.f32 0.0, %v5280
  %v5282 = vpop.f32.mrb[0].mxu0
  %5283 = vmatprep.mubr.bf16.mxu0 0
  %5284 = vmatmul.mubr.bf16.gmra.mrb[0].mxu0 %v2288
  %v5285 = vpop.f32.mrb[0].mxu0
  %v5286 = vadd.f32 0.0, %v5285
  %v5287 = vpop.f32.mrb[0].mxu0
  %v5288 = vpop.f32.mrb[0].mxu0
  %v5289 = vadd.f32 0.0, %v5288
  %v5290 = vpop.f32.mrb[0].mxu0
  %5291 = vmatprep.mubr.bf16.mxu0 0
  %5292 = vmatmul.mubr.bf16.gmra.mrb[0].mxu0 %v2289
  %v5293 = vpop.f32.mrb[0].mxu0
  %v5294 = vadd.f32 0.0, %v5293
  %v5295 = vpop.f32.mrb[0].mxu0
  %v5296 = vpop.f32.mrb[0].mxu0
  %v5297 = vadd.f32 0.0, %v5296
  %v5298 = vpop.f32.mrb[0].mxu0
  %5299 = vmatprep.mubr.bf16.mxu0 0
  %5300 = vmatmul.mubr.bf16.gmra.mrb[0].mxu0 %v2290
  %v5301 = vpop.f32.mrb[0].mxu0
  %v5302 = vadd.f32 0.0, %v5301
  %v5303 = vpop.f32.mrb[0].mxu0
  %v5304 = vpop.f32.mrb[0].mxu0
  %v5305 = vadd.f32 0.0, %v5304
  %v5306 = vpop.f32.mrb[0].mxu0
  %5307 = vmatprep.mubr.bf16.mxu0 0
  %5308 = vmatmul.mubr.bf16.gmra.mrb[0].mxu0 %v2291
  %v5309 = vpop.f32.mrb[0].mxu0
  %v5310 = vadd.f32 0.0, %v5309
  %v5311 = vpop.f32.mrb[0].mxu0
  %v5312 = vpop.f32.mrb[0].mxu0
  %v5313 = vadd.f32 0.0, %v5312
  %v5314 = vpop.f32.mrb[0].mxu0
  %5315 = vmatprep.mubr.bf16.mxu0 0
  %5316 = vmatmul.mubr.bf16.gmra.mrb[0].mxu0 %v2292
  %v5317 = vpop.f32.mrb[0].mxu0
  %v5318 = vadd.f32 0.0, %v5317
  %v5319 = vpop.f32.mrb[0].mxu0
  %v5320 = vpop.f32.mrb[0].mxu0
  %v5321 = vadd.f32 0.0, %v5320
  %v5322 = vpop.f32.mrb[0].mxu0
  %5323 = vmatprep.mubr.bf16.mxu0 0
  %5324 = vmatmul.mubr.bf16.gmra.mrb[0].mxu0 %v2293
  %v5325 = vpop.f32.mrb[0].mxu0
  %v5326 = vadd.f32 0.0, %v5325
  %v5327 = vpop.f32.mrb[0].mxu0
  %v5328 = vpop.f32.mrb[0].mxu0
  %v5329 = vadd.f32 0.0, %v5328
  %v5330 = vpop.f32.mrb[0].mxu0
  %5331 = vmatprep.mubr.bf16.mxu0 0
  %5332 = vmatmul.mubr.bf16.gmra.mrb[0].mxu0 %v2294
  %v5333 = vpop.f32.mrb[0].mxu0
  %v5334 = vadd.f32 0.0, %v5333
  %v5335 = vpop.f32.mrb[0].mxu0
  %v5336 = vpop.f32.mrb[0].mxu0
  %v5337 = vadd.f32 0.0, %v5336
  %v5338 = vpop.f32.mrb[0].mxu0
  %5339 = vmatprep.mubr.bf16.mxu0 0
  %5340 = vmatmul.mubr.bf16.gmra.mrb[0].mxu0 %v3670
  %v5341 = vpop.f32.mrb[0].mxu0
  %v5342 = vadd.f32 0.0, %v5341
  %v5343 = vpop.f32.mrb[0].mxu0
  %v5344 = vpop.f32.mrb[0].mxu0
  %v5345 = vadd.f32 0.0, %v5344
  %v5346 = vpop.f32.mrb[0].mxu0
  %5347 = vmatprep.mubr.bf16.mxu0 0
  %5348 = vmatmul.mubr.bf16.gmra.mrb[0].mxu0 %v5016
  %v5349 = vpop.f32.mrb[0].mxu0
  %v5350 = vadd.f32 0.0, %v5349
  %v5351 = vpop.f32.mrb[0].mxu0
  %v5352 = vpop.f32.mrb[0].mxu0
  %v5353 = vadd.f32 0.0, %v5352
  %v5354 = vpop.f32.mrb[0].mxu0
  %5355 = vdwg.mxu0
  %v5356 = vadd.f32 %v4914, %v5102
  %v5357 = vadd.f32 %v4915, %v5105
  %v5358 = vadd.f32 %v4916, %v5110
  %v5359 = vadd.f32 %v4917, %v5113
  %v5360 = vadd.f32 %v4918, %v5118
  %v5361 = vadd.f32 %v4919, %v5121
  %v5362 = vadd.f32 %v4920, %v5126
  %v5363 = vadd.f32 %v4921, %v5129
  %v5364 = vadd.f32 %v4922, %v5134
  %v5365 = vadd.f32 %v4923, %v5137
  %v5366 = vadd.f32 %v4924, %v5142
  %v5367 = vadd.f32 %v4925, %v5145
  %v5368 = vadd.f32 %v4926, %v5150
  %v5369 = vadd.f32 %v4927, %v5153
  %v5370 = vadd.f32 %v4928, %v5158
  %v5371 = vadd.f32 %v4929, %v5161
  %v5372 = vadd.f32 %v4930, %v5166
  %v5373 = vadd.f32 %v4931, %v5169
  %v5374 = vadd.f32 %v4932, %v5174
  %v5375 = vadd.f32 %v4933, %v5177
  %v5376 = vadd.f32 %v4934, %v5182
  %v5377 = vadd.f32 %v4935, %v5185
  %v5378 = vadd.f32 %v4936, %v5190
  %v5379 = vadd.f32 %v4937, %v5193
  %v5380 = vadd.f32 %v4938, %v5198
  %v5381 = vadd.f32 %v4939, %v5201
  %v5382 = vadd.f32 %v4940, %v5206
  %v5383 = vadd.f32 %v4941, %v5209
  %v5384 = vadd.f32 %v4942, %v5214
  %v5385 = vadd.f32 %v4943, %v5217
  %v5386 = vadd.f32 %v4944, %v5222
  %v5387 = vadd.f32 %v4945, %v5225
  %v5388 = vadd.f32 %v4946, %v5230
  %v5389 = vadd.f32 %v4947, %v5233
  %v5390 = vadd.f32 %v4948, %v5238
  %v5391 = vadd.f32 %v4949, %v5241
  %v5392 = vadd.f32 %v4950, %v5246
  %v5393 = vadd.f32 %v4951, %v5249
  %v5394 = vadd.f32 %v4952, %v5254
  %v5395 = vadd.f32 %v4953, %v5257
  %v5396 = vadd.f32 %v4954, %v5262
  %v5397 = vadd.f32 %v4955, %v5265
  %v5398 = vadd.f32 %v4956, %v5270
  %v5399 = vadd.f32 %v4957, %v5273
  %v5400 = vadd.f32 %v4958, %v5278
  %v5401 = vadd.f32 %v4959, %v5281
  %v5402 = vadd.f32 %v4960, %v5286
  %v5403 = vadd.f32 %v4961, %v5289
  %v5404 = vadd.f32 %v4962, %v5294
  %v5405 = vadd.f32 %v4963, %v5297
  %v5406 = vadd.f32 %v4964, %v5302
  %v5407 = vadd.f32 %v4965, %v5305
  %v5408 = vadd.f32 %v4966, %v5310
  %v5409 = vadd.f32 %v4967, %v5313
  %v5410 = vadd.f32 %v4968, %v5318
  %v5411 = vadd.f32 %v4969, %v5321
  %v5412 = vadd.f32 %v4970, %v5326
  %v5413 = vadd.f32 %v4971, %v5329
  %v5414 = vadd.f32 %v4972, %v5334
  %v5415 = vadd.f32 %v4973, %v5337
  %v5416 = vadd.f32 %v4974, %v5342
  %v5417 = vadd.f32 %v4975, %v5345
  %v5418 = vadd.f32 %v4976, %v5350
  %v5419 = vadd.f32 %v4977, %v5353
  %v5420 = vld [vmem:[%s2] sm:$0x1]
  %v5422 = vlaneseq
  %v5423 = vshrl.u32 %v5422, 7
  %v5424 = vsub.s32 0, %v5423
  %v5425 = vrot.slane %v5420, %v5424
  %v5427 = vadd.f32 %v5356, %v5425
  %v5428 = vadd.f32 %v5357, %v5425
  %v5429 = vadd.f32 %v5358, %v5425
  %v5430 = vadd.f32 %v5359, %v5425
  %v5431 = vadd.f32 %v5360, %v5425
  %v5432 = vadd.f32 %v5361, %v5425
  %v5433 = vadd.f32 %v5362, %v5425
  %v5434 = vadd.f32 %v5363, %v5425
  %v5435 = vadd.f32 %v5364, %v5425
  %v5436 = vadd.f32 %v5365, %v5425
  %v5437 = vadd.f32 %v5366, %v5425
  %v5438 = vadd.f32 %v5367, %v5425
  %v5439 = vadd.f32 %v5368, %v5425
  %v5440 = vadd.f32 %v5369, %v5425
  %v5441 = vadd.f32 %v5370, %v5425
  %v5442 = vadd.f32 %v5371, %v5425
  %v5443 = vadd.f32 %v5372, %v5425
  %v5444 = vadd.f32 %v5373, %v5425
  %v5445 = vadd.f32 %v5374, %v5425
  %v5446 = vadd.f32 %v5375, %v5425
  %v5447 = vadd.f32 %v5376, %v5425
  %v5448 = vadd.f32 %v5377, %v5425
  %v5449 = vadd.f32 %v5378, %v5425
  %v5450 = vadd.f32 %v5379, %v5425
  %v5451 = vadd.f32 %v5380, %v5425
  %v5452 = vadd.f32 %v5381, %v5425
  %v5453 = vadd.f32 %v5382, %v5425
  %v5454 = vadd.f32 %v5383, %v5425
  %v5455 = vadd.f32 %v5384, %v5425
  %v5456 = vadd.f32 %v5385, %v5425
  %v5457 = vadd.f32 %v5386, %v5425
  %v5458 = vadd.f32 %v5387, %v5425
  %v5459 = vadd.f32 %v5388, %v5425
  %v5460 = vadd.f32 %v5389, %v5425
  %v5461 = vadd.f32 %v5390, %v5425
  %v5462 = vadd.f32 %v5391, %v5425
  %v5463 = vadd.f32 %v5392, %v5425
  %v5464 = vadd.f32 %v5393, %v5425
  %v5465 = vadd.f32 %v5394, %v5425
  %v5466 = vadd.f32 %v5395, %v5425
  %v5467 = vadd.f32 %v5396, %v5425
  %v5468 = vadd.f32 %v5397, %v5425
  %v5469 = vadd.f32 %v5398, %v5425
  %v5470 = vadd.f32 %v5399, %v5425
  %v5471 = vadd.f32 %v5400, %v5425
  %v5472 = vadd.f32 %v5401, %v5425
  %v5473 = vadd.f32 %v5402, %v5425
  %v5474 = vadd.f32 %v5403, %v5425
  %v5475 = vadd.f32 %v5404, %v5425
  %v5476 = vadd.f32 %v5405, %v5425
  %v5477 = vadd.f32 %v5406, %v5425
  %v5478 = vadd.f32 %v5407, %v5425
  %v5479 = vadd.f32 %v5408, %v5425
  %v5480 = vadd.f32 %v5409, %v5425
  %v5481 = vadd.f32 %v5410, %v5425
  %v5482 = vadd.f32 %v5411, %v5425
  %v5483 = vadd.f32 %v5412, %v5425
  %v5484 = vadd.f32 %v5413, %v5425
  %v5485 = vadd.f32 %v5414, %v5425
  %v5486 = vadd.f32 %v5415, %v5425
  %v5487 = vadd.f32 %v5416, %v5425
  %v5488 = vadd.f32 %v5417, %v5425
  %v5489 = vadd.f32 %v5418, %v5425
  %v5490 = vadd.f32 %v5419, %v5425
  %v5491 = vadd.f32 %v5427, %v5428
  %v5492 = vadd.f32 %v5491, %v5429
  %v5493 = vadd.f32 %v5492, %v5430
  %v5494 = vadd.f32 %v5493, %v5431
  %v5495 = vadd.f32 %v5494, %v5432
  %v5496 = vadd.f32 %v5495, %v5433
  %v5497 = vadd.f32 %v5496, %v5434
  %v5498 = vadd.f32 %v5497, %v5435
  %v5499 = vadd.f32 %v5498, %v5436
  %v5500 = vadd.f32 %v5499, %v5437
  %v5501 = vadd.f32 %v5500, %v5438
  %v5502 = vadd.f32 %v5501, %v5439
  %v5503 = vadd.f32 %v5502, %v5440
  %v5504 = vadd.f32 %v5503, %v5441
  %v5505 = vadd.f32 %v5504, %v5442
  %v5506 = vadd.f32 %v5505, %v5443
  %v5507 = vadd.f32 %v5506, %v5444
  %v5508 = vadd.f32 %v5507, %v5445
  %v5509 = vadd.f32 %v5508, %v5446
  %v5510 = vadd.f32 %v5509, %v5447
  %v5511 = vadd.f32 %v5510, %v5448
  %v5512 = vadd.f32 %v5511, %v5449
  %v5513 = vadd.f32 %v5512, %v5450
  %v5514 = vadd.f32 %v5513, %v5451
  %v5515 = vadd.f32 %v5514, %v5452
  %v5516 = vadd.f32 %v5515, %v5453
  %v5517 = vadd.f32 %v5516, %v5454
  %v5518 = vadd.f32 %v5517, %v5455
  %v5519 = vadd.f32 %v5518, %v5456
  %v5520 = vadd.f32 %v5519, %v5457
  %v5521 = vadd.f32 %v5520, %v5458
  %v5522 = vadd.f32 %v5521, %v5459
  %v5523 = vadd.f32 %v5522, %v5460
  %v5524 = vadd.f32 %v5523, %v5461
  %v5525 = vadd.f32 %v5524, %v5462
  %v5526 = vadd.f32 %v5525, %v5463
  %v5527 = vadd.f32 %v5526, %v5464
  %v5528 = vadd.f32 %v5527, %v5465
  %v5529 = vadd.f32 %v5528, %v5466
  %v5530 = vadd.f32 %v5529, %v5467
  %v5531 = vadd.f32 %v5530, %v5468
  %v5532 = vadd.f32 %v5531, %v5469
  %v5533 = vadd.f32 %v5532, %v5470
  %v5534 = vadd.f32 %v5533, %v5471
  %v5535 = vadd.f32 %v5534, %v5472
  %v5536 = vadd.f32 %v5535, %v5473
  %v5537 = vadd.f32 %v5536, %v5474
  %v5538 = vadd.f32 %v5537, %v5475
  %v5539 = vadd.f32 %v5538, %v5476
  %v5540 = vadd.f32 %v5539, %v5477
  %v5541 = vadd.f32 %v5540, %v5478
  %v5542 = vadd.f32 %v5541, %v5479
  %v5543 = vadd.f32 %v5542, %v5480
  %v5544 = vadd.f32 %v5543, %v5481
  %v5545 = vadd.f32 %v5544, %v5482
  %v5546 = vadd.f32 %v5545, %v5483
  %v5547 = vadd.f32 %v5546, %v5484
  %v5548 = vadd.f32 %v5547, %v5485
  %v5549 = vadd.f32 %v5548, %v5486
  %v5550 = vadd.f32 %v5549, %v5487
  %v5551 = vadd.f32 %v5550, %v5488
  %v5552 = vadd.f32 %v5551, %v5489
  %v5553 = vadd.f32 %v5552, %v5490
  %v5554 = vrot.slane %v5553, 4
  %v5555 = vadd.f32 %v5553, %v5554
  %v5556 = vrot.slane %v5555, 2
  %v5557 = vadd.f32 %v5555, %v5556
  %v5558 = vrot.slane %v5557, 1
  %v5559 = vadd.f32 %v5557, %v5558
  %v5560 = vmul.f32 %v5427, %v5427
  %v5561 = vmul.f32 %v5428, %v5428
  %v5562 = vmul.f32 %v5429, %v5429
  %v5563 = vmul.f32 %v5430, %v5430
  %v5564 = vmul.f32 %v5431, %v5431
  %v5565 = vmul.f32 %v5432, %v5432
  %v5566 = vmul.f32 %v5433, %v5433
  %v5567 = vmul.f32 %v5434, %v5434
  %v5568 = vmul.f32 %v5435, %v5435
  %v5569 = vmul.f32 %v5436, %v5436
  %v5570 = vmul.f32 %v5437, %v5437
  %v5571 = vmul.f32 %v5438, %v5438
  %v5572 = vmul.f32 %v5439, %v5439
  %v5573 = vmul.f32 %v5440, %v5440
  %v5574 = vmul.f32 %v5441, %v5441
  %v5575 = vmul.f32 %v5442, %v5442
  %v5576 = vmul.f32 %v5443, %v5443
  %v5577 = vmul.f32 %v5444, %v5444
  %v5578 = vmul.f32 %v5445, %v5445
  %v5579 = vmul.f32 %v5446, %v5446
  %v5580 = vmul.f32 %v5447, %v5447
  %v5581 = vmul.f32 %v5448, %v5448
  %v5582 = vmul.f32 %v5449, %v5449
  %v5583 = vmul.f32 %v5450, %v5450
  %v5584 = vmul.f32 %v5451, %v5451
  %v5585 = vmul.f32 %v5452, %v5452
  %v5586 = vmul.f32 %v5453, %v5453
  %v5587 = vmul.f32 %v5454, %v5454
  %v5588 = vmul.f32 %v5455, %v5455
  %v5589 = vmul.f32 %v5456, %v5456
  %v5590 = vmul.f32 %v5457, %v5457
  %v5591 = vmul.f32 %v5458, %v5458
  %v5592 = vmul.f32 %v5459, %v5459
  %v5593 = vmul.f32 %v5460, %v5460
  %v5594 = vmul.f32 %v5461, %v5461
  %v5595 = vmul.f32 %v5462, %v5462
  %v5596 = vmul.f32 %v5463, %v5463
  %v5597 = vmul.f32 %v5464, %v5464
  %v5598 = vmul.f32 %v5465, %v5465
  %v5599 = vmul.f32 %v5466, %v5466
  %v5600 = vmul.f32 %v5467, %v5467
  %v5601 = vmul.f32 %v5468, %v5468
  %v5602 = vmul.f32 %v5469, %v5469
  %v5603 = vmul.f32 %v5470, %v5470
  %v5604 = vmul.f32 %v5471, %v5471
  %v5605 = vmul.f32 %v5472, %v5472
  %v5606 = vmul.f32 %v5473, %v5473
  %v5607 = vmul.f32 %v5474, %v5474
  %v5608 = vmul.f32 %v5475, %v5475
  %v5609 = vmul.f32 %v5476, %v5476
  %v5610 = vmul.f32 %v5477, %v5477
  %v5611 = vmul.f32 %v5478, %v5478
  %v5612 = vmul.f32 %v5479, %v5479
  %v5613 = vmul.f32 %v5480, %v5480
  %v5614 = vmul.f32 %v5481, %v5481
  %v5615 = vmul.f32 %v5482, %v5482
  %v5616 = vmul.f32 %v5483, %v5483
  %v5617 = vmul.f32 %v5484, %v5484
  %v5618 = vmul.f32 %v5485, %v5485
  %v5619 = vmul.f32 %v5486, %v5486
  %v5620 = vmul.f32 %v5487, %v5487
  %v5621 = vmul.f32 %v5488, %v5488
  %v5622 = vmul.f32 %v5489, %v5489
  %v5623 = vmul.f32 %v5490, %v5490
  %v5624 = vadd.f32 %v5560, %v5561
  %v5625 = vadd.f32 %v5624, %v5562
  %v5626 = vadd.f32 %v5625, %v5563
  %v5627 = vadd.f32 %v5626, %v5564
  %v5628 = vadd.f32 %v5627, %v5565
  %v5629 = vadd.f32 %v5628, %v5566
  %v5630 = vadd.f32 %v5629, %v5567
  %v5631 = vadd.f32 %v5630, %v5568
  %v5632 = vadd.f32 %v5631, %v5569
  %v5633 = vadd.f32 %v5632, %v5570
  %v5634 = vadd.f32 %v5633, %v5571
  %v5635 = vadd.f32 %v5634, %v5572
  %v5636 = vadd.f32 %v5635, %v5573
  %v5637 = vadd.f32 %v5636, %v5574
  %v5638 = vadd.f32 %v5637, %v5575
  %v5639 = vadd.f32 %v5638, %v5576
  %v5640 = vadd.f32 %v5639, %v5577
  %v5641 = vadd.f32 %v5640, %v5578
  %v5642 = vadd.f32 %v5641, %v5579
  %v5643 = vadd.f32 %v5642, %v5580
  %v5644 = vadd.f32 %v5643, %v5581
  %v5645 = vadd.f32 %v5644, %v5582
  %v5646 = vadd.f32 %v5645, %v5583
  %v5647 = vadd.f32 %v5646, %v5584
  %v5648 = vadd.f32 %v5647, %v5585
  %v5649 = vadd.f32 %v5648, %v5586
  %v5650 = vadd.f32 %v5649, %v5587
  %v5651 = vadd.f32 %v5650, %v5588
  %v5652 = vadd.f32 %v5651, %v5589
  %v5653 = vadd.f32 %v5652, %v5590
  %v5654 = vadd.f32 %v5653, %v5591
  %v5655 = vadd.f32 %v5654, %v5592
  %v5656 = vadd.f32 %v5655, %v5593
  %v5657 = vadd.f32 %v5656, %v5594
  %v5658 = vadd.f32 %v5657, %v5595
  %v5659 = vadd.f32 %v5658, %v5596
  %v5660 = vadd.f32 %v5659, %v5597
  %v5661 = vadd.f32 %v5660, %v5598
  %v5662 = vadd.f32 %v5661, %v5599
  %v5663 = vadd.f32 %v5662, %v5600
  %v5664 = vadd.f32 %v5663, %v5601
  %v5665 = vadd.f32 %v5664, %v5602
  %v5666 = vadd.f32 %v5665, %v5603
  %v5667 = vadd.f32 %v5666, %v5604
  %v5668 = vadd.f32 %v5667, %v5605
  %v5669 = vadd.f32 %v5668, %v5606
  %v5670 = vadd.f32 %v5669, %v5607
  %v5671 = vadd.f32 %v5670, %v5608
  %v5672 = vadd.f32 %v5671, %v5609
  %v5673 = vadd.f32 %v5672, %v5610
  %v5674 = vadd.f32 %v5673, %v5611
  %v5675 = vadd.f32 %v5674, %v5612
  %v5676 = vadd.f32 %v5675, %v5613
  %v5677 = vadd.f32 %v5676, %v5614
  %v5678 = vadd.f32 %v5677, %v5615
  %v5679 = vadd.f32 %v5678, %v5616
  %v5680 = vadd.f32 %v5679, %v5617
  %v5681 = vadd.f32 %v5680, %v5618
  %v5682 = vadd.f32 %v5681, %v5619
  %v5683 = vadd.f32 %v5682, %v5620
  %v5684 = vadd.f32 %v5683, %v5621
  %v5685 = vadd.f32 %v5684, %v5622
  %v5686 = vadd.f32 %v5685, %v5623
  %v5687 = vrot.slane %v5686, 4
  %v5688 = vadd.f32 %v5686, %v5687
  %v5689 = vrot.slane %v5688, 2
  %v5690 = vadd.f32 %v5688, %v5689
  %v5691 = vrot.slane %v5690, 1
  %v5692 = vadd.f32 %v5690, %v5691
  %vm5693 = vcmask 1040384
  %v5694 = vsel %vm5693, %v5559, %v5692
  %5695 = vst [vmem:[%s4] sm:$0x3] %v5694
  %v5696 = vpack.c.bf16 %v5428, %v5427
  %v5697 = vpack.c.bf16 %v5430, %v5429
  %v5698 = vpack.c.bf16 %v5432, %v5431
  %v5699 = vpack.c.bf16 %v5434, %v5433
  %v5700 = vpack.c.bf16 %v5436, %v5435
  %v5701 = vpack.c.bf16 %v5438, %v5437
  %v5702 = vpack.c.bf16 %v5440, %v5439
  %v5703 = vpack.c.bf16 %v5442, %v5441
  %v5704 = vpack.c.bf16 %v5444, %v5443
  %v5705 = vpack.c.bf16 %v5446, %v5445
  %v5706 = vpack.c.bf16 %v5448, %v5447
  %v5707 = vpack.c.bf16 %v5450, %v5449
  %v5708 = vpack.c.bf16 %v5452, %v5451
  %v5709 = vpack.c.bf16 %v5454, %v5453
  %v5710 = vpack.c.bf16 %v5456, %v5455
  %v5711 = vpack.c.bf16 %v5458, %v5457
  %v5712 = vpack.c.bf16 %v5460, %v5459
  %v5713 = vpack.c.bf16 %v5462, %v5461
  %v5714 = vpack.c.bf16 %v5464, %v5463
  %v5715 = vpack.c.bf16 %v5466, %v5465
  %v5716 = vpack.c.bf16 %v5468, %v5467
  %v5717 = vpack.c.bf16 %v5470, %v5469
  %v5718 = vpack.c.bf16 %v5472, %v5471
  %v5719 = vpack.c.bf16 %v5474, %v5473
  %v5720 = vpack.c.bf16 %v5476, %v5475
  %v5721 = vpack.c.bf16 %v5478, %v5477
  %v5722 = vpack.c.bf16 %v5480, %v5479
  %v5723 = vpack.c.bf16 %v5482, %v5481
  %v5724 = vpack.c.bf16 %v5484, %v5483
  %v5725 = vpack.c.bf16 %v5486, %v5485
  %v5726 = vpack.c.bf16 %v5488, %v5487
  %v5727 = vpack.c.bf16 %v5490, %v5489
  %5728 = vst [vmem:[%s3] sm:$0xf] 0
  %5729 = vst [vmem:[%s3 + $0x4] sm:$0xf] 0
  %5730 = vst [vmem:[%s3 + $0x8] sm:$0x1] 0
  %5731 = vst [vmem:[%s3 + $0xd8] sm:$0xf] 0
  %5732 = vst [vmem:[%s3 + $0xdc] sm:$0xf] 0
  %5733 = vst [vmem:[%s3 + $0xe0] sm:$0x1] 0
  %s5734 = scalar_lea.vmem %s3, 204
  %5735 = vst [vmem:[%s5734] sm:$0xf] 0
  %5736 = vst [vmem:[%s5734 + $0x4] sm:$0xf] 0
  %5737 = vst [vmem:[%s5734 + $0x8] sm:$0x1] 0
  %5738 = vst [vmem:[%s5734 + $0xd8] sm:$0xf] 0
  %5739 = vst [vmem:[%s5734 + $0xdc] sm:$0xf] 0
  %5740 = vst [vmem:[%s5734 + $0xe0] sm:$0x1] 0
  %s5741 = scalar_lea.vmem %s3, 12
  %vm5742 = vcmask 1040384
  %vm5743 = vsmask.f32 256
  %vm5744 = vmand %vm5742, %vm5743
  %v5745 = vld [vmem:[%s5741] sm:$0x1]
  %v5746 = vsel %vm5744, 0, %v5745
  %5747 = vst [vmem:[%s5741] sm:$0x1] %v5746
  %v5748 = vld [vmem:[%s5741 + $0xc] sm:$0x1]
  %v5749 = vsel %vm5744, 0, %v5748
  %5750 = vst [vmem:[%s5741 + $0xc] sm:$0x1] %v5749
  %v5751 = vld [vmem:[%s5741 + $0x18] sm:$0x1]
  %v5752 = vsel %vm5744, 0, %v5751
  %5753 = vst [vmem:[%s5741 + $0x18] sm:$0x1] %v5752
  %v5754 = vld [vmem:[%s5741 + $0x24] sm:$0x1]
  %v5755 = vsel %vm5744, 0, %v5754
  %5756 = vst [vmem:[%s5741 + $0x24] sm:$0x1] %v5755
  %v5757 = vld [vmem:[%s5741 + $0x30] sm:$0x1]
  %v5758 = vsel %vm5744, 0, %v5757
  %5759 = vst [vmem:[%s5741 + $0x30] sm:$0x1] %v5758
  %v5760 = vld [vmem:[%s5741 + $0x3c] sm:$0x1]
  %v5761 = vsel %vm5744, 0, %v5760
  %5762 = vst [vmem:[%s5741 + $0x3c] sm:$0x1] %v5761
  %v5763 = vld [vmem:[%s5741 + $0x48] sm:$0x1]
  %v5764 = vsel %vm5744, 0, %v5763
  %5765 = vst [vmem:[%s5741 + $0x48] sm:$0x1] %v5764
  %v5766 = vld [vmem:[%s5741 + $0x54] sm:$0x1]
  %v5767 = vsel %vm5744, 0, %v5766
  %5768 = vst [vmem:[%s5741 + $0x54] sm:$0x1] %v5767
  %v5769 = vld [vmem:[%s5741 + $0x60] sm:$0x1]
  %v5770 = vsel %vm5744, 0, %v5769
  %5771 = vst [vmem:[%s5741 + $0x60] sm:$0x1] %v5770
  %v5772 = vld [vmem:[%s5741 + $0x6c] sm:$0x1]
  %v5773 = vsel %vm5744, 0, %v5772
  %5774 = vst [vmem:[%s5741 + $0x6c] sm:$0x1] %v5773
  %v5775 = vld [vmem:[%s5741 + $0x78] sm:$0x1]
  %v5776 = vsel %vm5744, 0, %v5775
  %5777 = vst [vmem:[%s5741 + $0x78] sm:$0x1] %v5776
  %v5778 = vld [vmem:[%s5741 + $0x84] sm:$0x1]
  %v5779 = vsel %vm5744, 0, %v5778
  %5780 = vst [vmem:[%s5741 + $0x84] sm:$0x1] %v5779
  %v5781 = vld [vmem:[%s5741 + $0x90] sm:$0x1]
  %v5782 = vsel %vm5744, 0, %v5781
  %5783 = vst [vmem:[%s5741 + $0x90] sm:$0x1] %v5782
  %v5784 = vld [vmem:[%s5741 + $0x9c] sm:$0x1]
  %v5785 = vsel %vm5744, 0, %v5784
  %5786 = vst [vmem:[%s5741 + $0x9c] sm:$0x1] %v5785
  %v5787 = vld [vmem:[%s5741 + $0xa8] sm:$0x1]
  %v5788 = vsel %vm5744, 0, %v5787
  %5789 = vst [vmem:[%s5741 + $0xa8] sm:$0x1] %v5788
  %v5790 = vld [vmem:[%s5741 + $0xb4] sm:$0x1]
  %v5791 = vsel %vm5744, 0, %v5790
  %5792 = vst [vmem:[%s5741 + $0xb4] sm:$0x1] %v5791
  %v5793 = vld [vmem:[%s5741 + $0xd8] sm:$0x1]
  %v5794 = vsel %vm5744, 0, %v5793
  %5795 = vst [vmem:[%s5741 + $0xd8] sm:$0x1] %v5794
  %v5796 = vld [vmem:[%s5741 + $0xe4] sm:$0x1]
  %v5797 = vsel %vm5744, 0, %v5796
  %5798 = vst [vmem:[%s5741 + $0xe4] sm:$0x1] %v5797
  %v5799 = vld [vmem:[%s5741 + $0xf0] sm:$0x1]
  %v5800 = vsel %vm5744, 0, %v5799
  %5801 = vst [vmem:[%s5741 + $0xf0] sm:$0x1] %v5800
  %v5802 = vld [vmem:[%s5741 + $0xfc] sm:$0x1]
  %v5803 = vsel %vm5744, 0, %v5802
  %5804 = vst [vmem:[%s5741 + $0xfc] sm:$0x1] %v5803
  %v5805 = vld [vmem:[%s5741 + $0x108] sm:$0x1]
  %v5806 = vsel %vm5744, 0, %v5805
  %5807 = vst [vmem:[%s5741 + $0x108] sm:$0x1] %v5806
  %v5808 = vld [vmem:[%s5741 + $0x114] sm:$0x1]
  %v5809 = vsel %vm5744, 0, %v5808
  %5810 = vst [vmem:[%s5741 + $0x114] sm:$0x1] %v5809
  %v5811 = vld [vmem:[%s5741 + $0x120] sm:$0x1]
  %v5812 = vsel %vm5744, 0, %v5811
  %5813 = vst [vmem:[%s5741 + $0x120] sm:$0x1] %v5812
  %v5814 = vld [vmem:[%s5741 + $0x12c] sm:$0x1]
  %v5815 = vsel %vm5744, 0, %v5814
  %5816 = vst [vmem:[%s5741 + $0x12c] sm:$0x1] %v5815
  %v5817 = vld [vmem:[%s5741 + $0x138] sm:$0x1]
  %v5818 = vsel %vm5744, 0, %v5817
  %5819 = vst [vmem:[%s5741 + $0x138] sm:$0x1] %v5818
  %v5820 = vld [vmem:[%s5741 + $0x144] sm:$0x1]
  %v5821 = vsel %vm5744, 0, %v5820
  %5822 = vst [vmem:[%s5741 + $0x144] sm:$0x1] %v5821
  %v5823 = vld [vmem:[%s5741 + $0x150] sm:$0x1]
  %v5824 = vsel %vm5744, 0, %v5823
  %5825 = vst [vmem:[%s5741 + $0x150] sm:$0x1] %v5824
  %v5826 = vld [vmem:[%s5741 + $0x15c] sm:$0x1]
  %v5827 = vsel %vm5744, 0, %v5826
  %5828 = vst [vmem:[%s5741 + $0x15c] sm:$0x1] %v5827
  %v5829 = vld [vmem:[%s5741 + $0x168] sm:$0x1]
  %v5830 = vsel %vm5744, 0, %v5829
  %5831 = vst [vmem:[%s5741 + $0x168] sm:$0x1] %v5830
  %v5832 = vld [vmem:[%s5741 + $0x174] sm:$0x1]
  %v5833 = vsel %vm5744, 0, %v5832
  %5834 = vst [vmem:[%s5741 + $0x174] sm:$0x1] %v5833
  %v5835 = vld [vmem:[%s5741 + $0x180] sm:$0x1]
  %v5836 = vsel %vm5744, 0, %v5835
  %5837 = vst [vmem:[%s5741 + $0x180] sm:$0x1] %v5836
  %v5838 = vld [vmem:[%s5741 + $0x18c] sm:$0x1]
  %v5839 = vsel %vm5744, 0, %v5838
  %5840 = vst [vmem:[%s5741 + $0x18c] sm:$0x1] %v5839
  %vm5841 = vsmask.f32 7938
  %vm5842 = vmand %vm5742, %vm5841
  %v5843 = vld [vmem:[%s5741 + $0x8] sm:$0x1]
  %v5844 = vsel %vm5842, 0, %v5843
  %5845 = vst [vmem:[%s5741 + $0x8] sm:$0x1] %v5844
  %v5846 = vld [vmem:[%s5741 + $0x14] sm:$0x1]
  %v5847 = vsel %vm5842, 0, %v5846
  %5848 = vst [vmem:[%s5741 + $0x14] sm:$0x1] %v5847
  %v5849 = vld [vmem:[%s5741 + $0x20] sm:$0x1]
  %v5850 = vsel %vm5842, 0, %v5849
  %5851 = vst [vmem:[%s5741 + $0x20] sm:$0x1] %v5850
  %v5852 = vld [vmem:[%s5741 + $0x2c] sm:$0x1]
  %v5853 = vsel %vm5842, 0, %v5852
  %5854 = vst [vmem:[%s5741 + $0x2c] sm:$0x1] %v5853
  %v5855 = vld [vmem:[%s5741 + $0x38] sm:$0x1]
  %v5856 = vsel %vm5842, 0, %v5855
  %5857 = vst [vmem:[%s5741 + $0x38] sm:$0x1] %v5856
  %v5858 = vld [vmem:[%s5741 + $0x44] sm:$0x1]
  %v5859 = vsel %vm5842, 0, %v5858
  %5860 = vst [vmem:[%s5741 + $0x44] sm:$0x1] %v5859
  %v5861 = vld [vmem:[%s5741 + $0x50] sm:$0x1]
  %v5862 = vsel %vm5842, 0, %v5861
  %5863 = vst [vmem:[%s5741 + $0x50] sm:$0x1] %v5862
  %v5864 = vld [vmem:[%s5741 + $0x5c] sm:$0x1]
  %v5865 = vsel %vm5842, 0, %v5864
  %5866 = vst [vmem:[%s5741 + $0x5c] sm:$0x1] %v5865
  %v5867 = vld [vmem:[%s5741 + $0x68] sm:$0x1]
  %v5868 = vsel %vm5842, 0, %v5867
  %5869 = vst [vmem:[%s5741 + $0x68] sm:$0x1] %v5868
  %v5870 = vld [vmem:[%s5741 + $0x74] sm:$0x1]
  %v5871 = vsel %vm5842, 0, %v5870
  %5872 = vst [vmem:[%s5741 + $0x74] sm:$0x1] %v5871
  %v5873 = vld [vmem:[%s5741 + $0x80] sm:$0x1]
  %v5874 = vsel %vm5842, 0, %v5873
  %5875 = vst [vmem:[%s5741 + $0x80] sm:$0x1] %v5874
  %v5876 = vld [vmem:[%s5741 + $0x8c] sm:$0x1]
  %v5877 = vsel %vm5842, 0, %v5876
  %5878 = vst [vmem:[%s5741 + $0x8c] sm:$0x1] %v5877
  %v5879 = vld [vmem:[%s5741 + $0x98] sm:$0x1]
  %v5880 = vsel %vm5842, 0, %v5879
  %5881 = vst [vmem:[%s5741 + $0x98] sm:$0x1] %v5880
  %v5882 = vld [vmem:[%s5741 + $0xa4] sm:$0x1]
  %v5883 = vsel %vm5842, 0, %v5882
  %5884 = vst [vmem:[%s5741 + $0xa4] sm:$0x1] %v5883
  %v5885 = vld [vmem:[%s5741 + $0xb0] sm:$0x1]
  %v5886 = vsel %vm5842, 0, %v5885
  %5887 = vst [vmem:[%s5741 + $0xb0] sm:$0x1] %v5886
  %v5888 = vld [vmem:[%s5741 + $0xbc] sm:$0x1]
  %v5889 = vsel %vm5842, 0, %v5888
  %5890 = vst [vmem:[%s5741 + $0xbc] sm:$0x1] %v5889
  %v5891 = vld [vmem:[%s5741 + $0xe0] sm:$0x1]
  %v5892 = vsel %vm5842, 0, %v5891
  %5893 = vst [vmem:[%s5741 + $0xe0] sm:$0x1] %v5892
  %v5894 = vld [vmem:[%s5741 + $0xec] sm:$0x1]
  %v5895 = vsel %vm5842, 0, %v5894
  %5896 = vst [vmem:[%s5741 + $0xec] sm:$0x1] %v5895
  %v5897 = vld [vmem:[%s5741 + $0xf8] sm:$0x1]
  %v5898 = vsel %vm5842, 0, %v5897
  %5899 = vst [vmem:[%s5741 + $0xf8] sm:$0x1] %v5898
  %v5900 = vld [vmem:[%s5741 + $0x104] sm:$0x1]
  %v5901 = vsel %vm5842, 0, %v5900
  %5902 = vst [vmem:[%s5741 + $0x104] sm:$0x1] %v5901
  %v5903 = vld [vmem:[%s5741 + $0x110] sm:$0x1]
  %v5904 = vsel %vm5842, 0, %v5903
  %5905 = vst [vmem:[%s5741 + $0x110] sm:$0x1] %v5904
  %v5906 = vld [vmem:[%s5741 + $0x11c] sm:$0x1]
  %v5907 = vsel %vm5842, 0, %v5906
  %5908 = vst [vmem:[%s5741 + $0x11c] sm:$0x1] %v5907
  %v5909 = vld [vmem:[%s5741 + $0x128] sm:$0x1]
  %v5910 = vsel %vm5842, 0, %v5909
  %5911 = vst [vmem:[%s5741 + $0x128] sm:$0x1] %v5910
  %v5912 = vld [vmem:[%s5741 + $0x134] sm:$0x1]
  %v5913 = vsel %vm5842, 0, %v5912
  %5914 = vst [vmem:[%s5741 + $0x134] sm:$0x1] %v5913
  %v5915 = vld [vmem:[%s5741 + $0x140] sm:$0x1]
  %v5916 = vsel %vm5842, 0, %v5915
  %5917 = vst [vmem:[%s5741 + $0x140] sm:$0x1] %v5916
  %v5918 = vld [vmem:[%s5741 + $0x14c] sm:$0x1]
  %v5919 = vsel %vm5842, 0, %v5918
  %5920 = vst [vmem:[%s5741 + $0x14c] sm:$0x1] %v5919
  %v5921 = vld [vmem:[%s5741 + $0x158] sm:$0x1]
  %v5922 = vsel %vm5842, 0, %v5921
  %5923 = vst [vmem:[%s5741 + $0x158] sm:$0x1] %v5922
  %v5924 = vld [vmem:[%s5741 + $0x164] sm:$0x1]
  %v5925 = vsel %vm5842, 0, %v5924
  %5926 = vst [vmem:[%s5741 + $0x164] sm:$0x1] %v5925
  %v5927 = vld [vmem:[%s5741 + $0x170] sm:$0x1]
  %v5928 = vsel %vm5842, 0, %v5927
  %5929 = vst [vmem:[%s5741 + $0x170] sm:$0x1] %v5928
  %v5930 = vld [vmem:[%s5741 + $0x17c] sm:$0x1]
  %v5931 = vsel %vm5842, 0, %v5930
  %5932 = vst [vmem:[%s5741 + $0x17c] sm:$0x1] %v5931
  %v5933 = vld [vmem:[%s5741 + $0x188] sm:$0x1]
  %v5934 = vsel %vm5842, 0, %v5933
  %5935 = vst [vmem:[%s5741 + $0x188] sm:$0x1] %v5934
  %v5936 = vld [vmem:[%s5741 + $0x194] sm:$0x1]
  %v5937 = vsel %vm5842, 0, %v5936
  %5938 = vst [vmem:[%s5741 + $0x194] sm:$0x1] %v5937
  %v5971 = vunpack.c.l.b16 %v5696
  %v5972 = vunpack.c.h.b16 %v5696
  %v5973 = vunpack.c.l.b16 %v5697
  %v5974 = vunpack.c.h.b16 %v5697
  %v5975 = vunpack.c.l.b16 %v5698
  %v5976 = vunpack.c.h.b16 %v5698
  %v5977 = vunpack.c.l.b16 %v5699
  %v5978 = vunpack.c.h.b16 %v5699
  %v5979 = vunpack.c.l.b16 %v5700
  %v5980 = vunpack.c.h.b16 %v5700
  %v5981 = vunpack.c.l.b16 %v5701
  %v5982 = vunpack.c.h.b16 %v5701
  %v5983 = vunpack.c.l.b16 %v5702
  %v5984 = vunpack.c.h.b16 %v5702
  %v5985 = vunpack.c.l.b16 %v5703
  %v5986 = vunpack.c.h.b16 %v5703
  %v5987 = vunpack.c.l.b16 %v5704
  %v5988 = vunpack.c.h.b16 %v5704
  %v5989 = vunpack.c.l.b16 %v5705
  %v5990 = vunpack.c.h.b16 %v5705
  %v5991 = vunpack.c.l.b16 %v5706
  %v5992 = vunpack.c.h.b16 %v5706
  %v5993 = vunpack.c.l.b16 %v5707
  %v5994 = vunpack.c.h.b16 %v5707
  %v5995 = vunpack.c.l.b16 %v5708
  %v5996 = vunpack.c.h.b16 %v5708
  %v5997 = vunpack.c.l.b16 %v5709
  %v5998 = vunpack.c.h.b16 %v5709
  %v5999 = vunpack.c.l.b16 %v5710
  %v6000 = vunpack.c.h.b16 %v5710
  %v6001 = vunpack.c.l.b16 %v5711
  %v6002 = vunpack.c.h.b16 %v5711
  %v6003 = vunpack.c.l.b16 %v5712
  %v6004 = vunpack.c.h.b16 %v5712
  %v6005 = vunpack.c.l.b16 %v5713
  %v6006 = vunpack.c.h.b16 %v5713
  %v6007 = vunpack.c.l.b16 %v5714
  %v6008 = vunpack.c.h.b16 %v5714
  %v6009 = vunpack.c.l.b16 %v5715
  %v6010 = vunpack.c.h.b16 %v5715
  %v6011 = vunpack.c.l.b16 %v5716
  %v6012 = vunpack.c.h.b16 %v5716
  %v6013 = vunpack.c.l.b16 %v5717
  %v6014 = vunpack.c.h.b16 %v5717
  %v6015 = vunpack.c.l.b16 %v5718
  %v6016 = vunpack.c.h.b16 %v5718
  %v6017 = vunpack.c.l.b16 %v5719
  %v6018 = vunpack.c.h.b16 %v5719
  %v6019 = vunpack.c.l.b16 %v5720
  %v6020 = vunpack.c.h.b16 %v5720
  %v6021 = vunpack.c.l.b16 %v5721
  %v6022 = vunpack.c.h.b16 %v5721
  %v6023 = vunpack.c.l.b16 %v5722
  %v6024 = vunpack.c.h.b16 %v5722
  %v6025 = vunpack.c.l.b16 %v5723
  %v6026 = vunpack.c.h.b16 %v5723
  %v6027 = vunpack.c.l.b16 %v5724
  %v6028 = vunpack.c.h.b16 %v5724
  %v6029 = vunpack.c.l.b16 %v5725
  %v6030 = vunpack.c.h.b16 %v5725
  %v6031 = vunpack.c.l.b16 %v5726
  %v6032 = vunpack.c.h.b16 %v5726
  %v6033 = vunpack.c.l.b16 %v5727
  %v6034 = vunpack.c.h.b16 %v5727
  %v6035 = vpack.c.b16 %v5971, %v5971
  %v6036 = vpack.c.b16 %v5972, %v5972
  %v6037 = vpack.c.b16 %v5973, %v5973
  %v6038 = vpack.c.b16 %v5974, %v5974
  %v6039 = vpack.c.b16 %v5975, %v5975
  %v6040 = vpack.c.b16 %v5976, %v5976
  %v6041 = vpack.c.b16 %v5977, %v5977
  %v6042 = vpack.c.b16 %v5978, %v5978
  %v6043 = vpack.c.b16 %v5979, %v5979
  %v6044 = vpack.c.b16 %v5980, %v5980
  %v6045 = vpack.c.b16 %v5981, %v5981
  %v6046 = vpack.c.b16 %v5982, %v5982
  %v6047 = vpack.c.b16 %v5983, %v5983
  %v6048 = vpack.c.b16 %v5984, %v5984
  %v6049 = vpack.c.b16 %v5985, %v5985
  %v6050 = vpack.c.b16 %v5986, %v5986
  %v6051 = vpack.c.b16 %v5987, %v5987
  %v6052 = vpack.c.b16 %v5988, %v5988
  %v6053 = vpack.c.b16 %v5989, %v5989
  %v6054 = vpack.c.b16 %v5990, %v5990
  %v6055 = vpack.c.b16 %v5991, %v5991
  %v6056 = vpack.c.b16 %v5992, %v5992
  %v6057 = vpack.c.b16 %v5993, %v5993
  %v6058 = vpack.c.b16 %v5994, %v5994
  %v6059 = vpack.c.b16 %v5995, %v5995
  %v6060 = vpack.c.b16 %v5996, %v5996
  %v6061 = vpack.c.b16 %v5997, %v5997
  %v6062 = vpack.c.b16 %v5998, %v5998
  %v6063 = vpack.c.b16 %v5999, %v5999
  %v6064 = vpack.c.b16 %v6000, %v6000
  %v6065 = vpack.c.b16 %v6001, %v6001
  %v6066 = vpack.c.b16 %v6002, %v6002
  %v6067 = vpack.c.b16 %v6003, %v6003
  %v6068 = vpack.c.b16 %v6004, %v6004
  %v6069 = vpack.c.b16 %v6005, %v6005
  %v6070 = vpack.c.b16 %v6006, %v6006
  %v6071 = vpack.c.b16 %v6007, %v6007
  %v6072 = vpack.c.b16 %v6008, %v6008
  %v6073 = vpack.c.b16 %v6009, %v6009
  %v6074 = vpack.c.b16 %v6010, %v6010
  %v6075 = vpack.c.b16 %v6011, %v6011
  %v6076 = vpack.c.b16 %v6012, %v6012
  %v6077 = vpack.c.b16 %v6013, %v6013
  %v6078 = vpack.c.b16 %v6014, %v6014
  %v6079 = vpack.c.b16 %v6015, %v6015
  %v6080 = vpack.c.b16 %v6016, %v6016
  %v6081 = vpack.c.b16 %v6017, %v6017
  %v6082 = vpack.c.b16 %v6018, %v6018
  %v6083 = vpack.c.b16 %v6019, %v6019
  %v6084 = vpack.c.b16 %v6020, %v6020
  %v6085 = vpack.c.b16 %v6021, %v6021
  %v6086 = vpack.c.b16 %v6022, %v6022
  %v6087 = vpack.c.b16 %v6023, %v6023
  %v6088 = vpack.c.b16 %v6024, %v6024
  %v6089 = vpack.c.b16 %v6025, %v6025
  %v6090 = vpack.c.b16 %v6026, %v6026
  %v6091 = vpack.c.b16 %v6027, %v6027
  %v6092 = vpack.c.b16 %v6028, %v6028
  %v6093 = vpack.c.b16 %v6029, %v6029
  %v6094 = vpack.c.b16 %v6030, %v6030
  %v6095 = vpack.c.b16 %v6031, %v6031
  %v6096 = vpack.c.b16 %v6032, %v6032
  %v6097 = vpack.c.b16 %v6033, %v6033
  %v6098 = vpack.c.b16 %v6034, %v6034
  %vm6099 = vsmask.f32 4368
  %vm6100 = vmor %vm5743, %vm6099
  %v6102 = vshrl.u32 %v6035, 16
  %v6104 = vrot.slane %v6102, 7
  %v6105 = vshll.u32 %v6035, 16
  %v6107 = vor.u32 %v6104, %v6105
  %v6108 = vrot.slane %v6104, 4
  %v6110 = vshrl.u32 %v6036, 16
  %v6112 = vrot.slane %v6110, 7
  %v6113 = vshll.u32 %v6036, 16
  %v6115 = vor.u32 %v6112, %v6113
  %v6116 = vsel %vm6100, %v6108, %v6115
  %v6117 = vrot.slane %v6112, 4
  %v6119 = vshrl.u32 %v6037, 16
  %v6121 = vrot.slane %v6119, 7
  %v6122 = vshll.u32 %v6037, 16
  %v6124 = vor.u32 %v6121, %v6122
  %v6125 = vrot.slane %v6121, 4
  %v6127 = vshrl.u32 %v6038, 16
  %v6129 = vrot.slane %v6127, 7
  %v6130 = vshll.u32 %v6038, 16
  %v6132 = vor.u32 %v6129, %v6130
  %v6133 = vsel %vm6100, %v6125, %v6132
  %v6134 = vrot.slane %v6129, 4
  %v6136 = vshrl.u32 %v6039, 16
  %v6138 = vrot.slane %v6136, 7
  %v6139 = vshll.u32 %v6039, 16
  %v6141 = vor.u32 %v6138, %v6139
  %v6142 = vrot.slane %v6138, 4
  %v6144 = vshrl.u32 %v6040, 16
  %v6146 = vrot.slane %v6144, 7
  %v6147 = vshll.u32 %v6040, 16
  %v6149 = vor.u32 %v6146, %v6147
  %v6150 = vsel %vm6100, %v6142, %v6149
  %v6151 = vrot.slane %v6146, 4
  %v6153 = vshrl.u32 %v6041, 16
  %v6155 = vrot.slane %v6153, 7
  %v6156 = vshll.u32 %v6041, 16
  %v6158 = vor.u32 %v6155, %v6156
  %v6159 = vrot.slane %v6155, 4
  %v6161 = vshrl.u32 %v6042, 16
  %v6163 = vrot.slane %v6161, 7
  %v6164 = vshll.u32 %v6042, 16
  %v6166 = vor.u32 %v6163, %v6164
  %v6167 = vsel %vm6100, %v6159, %v6166
  %v6168 = vrot.slane %v6163, 4
  %v6170 = vshrl.u32 %v6043, 16
  %v6172 = vrot.slane %v6170, 7
  %v6173 = vshll.u32 %v6043, 16
  %v6175 = vor.u32 %v6172, %v6173
  %v6176 = vrot.slane %v6172, 4
  %v6178 = vshrl.u32 %v6044, 16
  %v6180 = vrot.slane %v6178, 7
  %v6181 = vshll.u32 %v6044, 16
  %v6183 = vor.u32 %v6180, %v6181
  %v6184 = vsel %vm6100, %v6176, %v6183
  %v6185 = vrot.slane %v6180, 4
  %v6187 = vshrl.u32 %v6045, 16
  %v6189 = vrot.slane %v6187, 7
  %v6190 = vshll.u32 %v6045, 16
  %v6192 = vor.u32 %v6189, %v6190
  %v6193 = vrot.slane %v6189, 4
  %v6195 = vshrl.u32 %v6046, 16
  %v6197 = vrot.slane %v6195, 7
  %v6198 = vshll.u32 %v6046, 16
  %v6200 = vor.u32 %v6197, %v6198
  %v6201 = vsel %vm6100, %v6193, %v6200
  %v6202 = vrot.slane %v6197, 4
  %v6204 = vshrl.u32 %v6047, 16
  %v6206 = vrot.slane %v6204, 7
  %v6207 = vshll.u32 %v6047, 16
  %v6209 = vor.u32 %v6206, %v6207
  %v6210 = vrot.slane %v6206, 4
  %v6212 = vshrl.u32 %v6048, 16
  %v6214 = vrot.slane %v6212, 7
  %v6215 = vshll.u32 %v6048, 16
  %v6217 = vor.u32 %v6214, %v6215
  %v6218 = vsel %vm6100, %v6210, %v6217
  %v6219 = vrot.slane %v6214, 4
  %v6221 = vshrl.u32 %v6049, 16
  %v6223 = vrot.slane %v6221, 7
  %v6224 = vshll.u32 %v6049, 16
  %v6226 = vor.u32 %v6223, %v6224
  %v6227 = vrot.slane %v6223, 4
  %v6229 = vshrl.u32 %v6050, 16
  %v6231 = vrot.slane %v6229, 7
  %v6232 = vshll.u32 %v6050, 16
  %v6234 = vor.u32 %v6231, %v6232
  %v6235 = vsel %vm6100, %v6227, %v6234
  %v6236 = vrot.slane %v6231, 4
  %v6238 = vshrl.u32 %v6051, 16
  %v6240 = vrot.slane %v6238, 7
  %v6241 = vshll.u32 %v6051, 16
  %v6243 = vor.u32 %v6240, %v6241
  %v6244 = vrot.slane %v6240, 4
  %v6246 = vshrl.u32 %v6052, 16
  %v6248 = vrot.slane %v6246, 7
  %v6249 = vshll.u32 %v6052, 16
  %v6251 = vor.u32 %v6248, %v6249
  %v6252 = vsel %vm6100, %v6244, %v6251
  %v6253 = vrot.slane %v6248, 4
  %v6255 = vshrl.u32 %v6053, 16
  %v6257 = vrot.slane %v6255, 7
  %v6258 = vshll.u32 %v6053, 16
  %v6260 = vor.u32 %v6257, %v6258
  %v6261 = vrot.slane %v6257, 4
  %v6263 = vshrl.u32 %v6054, 16
  %v6265 = vrot.slane %v6263, 7
  %v6266 = vshll.u32 %v6054, 16
  %v6268 = vor.u32 %v6265, %v6266
  %v6269 = vsel %vm6100, %v6261, %v6268
  %v6270 = vrot.slane %v6265, 4
  %v6272 = vshrl.u32 %v6055, 16
  %v6274 = vrot.slane %v6272, 7
  %v6275 = vshll.u32 %v6055, 16
  %v6277 = vor.u32 %v6274, %v6275
  %v6278 = vrot.slane %v6274, 4
  %v6280 = vshrl.u32 %v6056, 16
  %v6282 = vrot.slane %v6280, 7
  %v6283 = vshll.u32 %v6056, 16
  %v6285 = vor.u32 %v6282, %v6283
  %v6286 = vsel %vm6100, %v6278, %v6285
  %v6287 = vrot.slane %v6282, 4
  %v6289 = vshrl.u32 %v6057, 16
  %v6291 = vrot.slane %v6289, 7
  %v6292 = vshll.u32 %v6057, 16
  %v6294 = vor.u32 %v6291, %v6292
  %v6295 = vrot.slane %v6291, 4
  %v6297 = vshrl.u32 %v6058, 16
  %v6299 = vrot.slane %v6297, 7
  %v6300 = vshll.u32 %v6058, 16
  %v6302 = vor.u32 %v6299, %v6300
  %v6303 = vsel %vm6100, %v6295, %v6302
  %v6304 = vrot.slane %v6299, 4
  %v6306 = vshrl.u32 %v6059, 16
  %v6308 = vrot.slane %v6306, 7
  %v6309 = vshll.u32 %v6059, 16
  %v6311 = vor.u32 %v6308, %v6309
  %v6312 = vrot.slane %v6308, 4
  %v6314 = vshrl.u32 %v6060, 16
  %v6316 = vrot.slane %v6314, 7
  %v6317 = vshll.u32 %v6060, 16
  %v6319 = vor.u32 %v6316, %v6317
  %v6320 = vsel %vm6100, %v6312, %v6319
  %v6321 = vrot.slane %v6316, 4
  %v6323 = vshrl.u32 %v6061, 16
  %v6325 = vrot.slane %v6323, 7
  %v6326 = vshll.u32 %v6061, 16
  %v6328 = vor.u32 %v6325, %v6326
  %v6329 = vrot.slane %v6325, 4
  %v6331 = vshrl.u32 %v6062, 16
  %v6333 = vrot.slane %v6331, 7
  %v6334 = vshll.u32 %v6062, 16
  %v6336 = vor.u32 %v6333, %v6334
  %v6337 = vsel %vm6100, %v6329, %v6336
  %v6338 = vrot.slane %v6333, 4
  %v6340 = vshrl.u32 %v6063, 16
  %v6342 = vrot.slane %v6340, 7
  %v6343 = vshll.u32 %v6063, 16
  %v6345 = vor.u32 %v6342, %v6343
  %v6346 = vrot.slane %v6342, 4
  %v6348 = vshrl.u32 %v6064, 16
  %v6350 = vrot.slane %v6348, 7
  %v6351 = vshll.u32 %v6064, 16
  %v6353 = vor.u32 %v6350, %v6351
  %v6354 = vsel %vm6100, %v6346, %v6353
  %v6355 = vrot.slane %v6350, 4
  %v6357 = vshrl.u32 %v6065, 16
  %v6359 = vrot.slane %v6357, 7
  %v6360 = vshll.u32 %v6065, 16
  %v6362 = vor.u32 %v6359, %v6360
  %v6363 = vrot.slane %v6359, 4
  %v6365 = vshrl.u32 %v6066, 16
  %v6367 = vrot.slane %v6365, 7
  %v6368 = vshll.u32 %v6066, 16
  %v6370 = vor.u32 %v6367, %v6368
  %v6371 = vsel %vm6100, %v6363, %v6370
  %v6372 = vrot.slane %v6367, 4
  %v6374 = vshrl.u32 %v6067, 16
  %v6376 = vrot.slane %v6374, 7
  %v6377 = vshll.u32 %v6067, 16
  %v6379 = vor.u32 %v6376, %v6377
  %v6380 = vrot.slane %v6376, 4
  %v6382 = vshrl.u32 %v6068, 16
  %v6384 = vrot.slane %v6382, 7
  %v6385 = vshll.u32 %v6068, 16
  %v6387 = vor.u32 %v6384, %v6385
  %v6388 = vsel %vm6100, %v6380, %v6387
  %v6389 = vrot.slane %v6384, 4
  %v6391 = vshrl.u32 %v6069, 16
  %v6393 = vrot.slane %v6391, 7
  %v6394 = vshll.u32 %v6069, 16
  %v6396 = vor.u32 %v6393, %v6394
  %v6397 = vrot.slane %v6393, 4
  %v6399 = vshrl.u32 %v6070, 16
  %v6401 = vrot.slane %v6399, 7
  %v6402 = vshll.u32 %v6070, 16
  %v6404 = vor.u32 %v6401, %v6402
  %v6405 = vsel %vm6100, %v6397, %v6404
  %v6406 = vrot.slane %v6401, 4
  %v6408 = vshrl.u32 %v6071, 16
  %v6410 = vrot.slane %v6408, 7
  %v6411 = vshll.u32 %v6071, 16
  %v6413 = vor.u32 %v6410, %v6411
  %v6414 = vrot.slane %v6410, 4
  %v6416 = vshrl.u32 %v6072, 16
  %v6418 = vrot.slane %v6416, 7
  %v6419 = vshll.u32 %v6072, 16
  %v6421 = vor.u32 %v6418, %v6419
  %v6422 = vsel %vm6100, %v6414, %v6421
  %v6423 = vrot.slane %v6418, 4
  %v6425 = vshrl.u32 %v6073, 16
  %v6427 = vrot.slane %v6425, 7
  %v6428 = vshll.u32 %v6073, 16
  %v6430 = vor.u32 %v6427, %v6428
  %v6431 = vrot.slane %v6427, 4
  %v6433 = vshrl.u32 %v6074, 16
  %v6435 = vrot.slane %v6433, 7
  %v6436 = vshll.u32 %v6074, 16
  %v6438 = vor.u32 %v6435, %v6436
  %v6439 = vsel %vm6100, %v6431, %v6438
  %v6440 = vrot.slane %v6435, 4
  %v6442 = vshrl.u32 %v6075, 16
  %v6444 = vrot.slane %v6442, 7
  %v6445 = vshll.u32 %v6075, 16
  %v6447 = vor.u32 %v6444, %v6445
  %v6448 = vrot.slane %v6444, 4
  %v6450 = vshrl.u32 %v6076, 16
  %v6452 = vrot.slane %v6450, 7
  %v6453 = vshll.u32 %v6076, 16
  %v6455 = vor.u32 %v6452, %v6453
  %v6456 = vsel %vm6100, %v6448, %v6455
  %v6457 = vrot.slane %v6452, 4
  %v6459 = vshrl.u32 %v6077, 16
  %v6461 = vrot.slane %v6459, 7
  %v6462 = vshll.u32 %v6077, 16
  %v6464 = vor.u32 %v6461, %v6462
  %v6465 = vrot.slane %v6461, 4
  %v6467 = vshrl.u32 %v6078, 16
  %v6469 = vrot.slane %v6467, 7
  %v6470 = vshll.u32 %v6078, 16
  %v6472 = vor.u32 %v6469, %v6470
  %v6473 = vsel %vm6100, %v6465, %v6472
  %v6474 = vrot.slane %v6469, 4
  %v6476 = vshrl.u32 %v6079, 16
  %v6478 = vrot.slane %v6476, 7
  %v6479 = vshll.u32 %v6079, 16
  %v6481 = vor.u32 %v6478, %v6479
  %v6482 = vrot.slane %v6478, 4
  %v6484 = vshrl.u32 %v6080, 16
  %v6486 = vrot.slane %v6484, 7
  %v6487 = vshll.u32 %v6080, 16
  %v6489 = vor.u32 %v6486, %v6487
  %v6490 = vsel %vm6100, %v6482, %v6489
  %v6491 = vrot.slane %v6486, 4
  %v6493 = vshrl.u32 %v6081, 16
  %v6495 = vrot.slane %v6493, 7
  %v6496 = vshll.u32 %v6081, 16
  %v6498 = vor.u32 %v6495, %v6496
  %v6499 = vrot.slane %v6495, 4
  %v6501 = vshrl.u32 %v6082, 16
  %v6503 = vrot.slane %v6501, 7
  %v6504 = vshll.u32 %v6082, 16
  %v6506 = vor.u32 %v6503, %v6504
  %v6507 = vsel %vm6100, %v6499, %v6506
  %v6508 = vrot.slane %v6503, 4
  %v6510 = vshrl.u32 %v6083, 16
  %v6512 = vrot.slane %v6510, 7
  %v6513 = vshll.u32 %v6083, 16
  %v6515 = vor.u32 %v6512, %v6513
  %v6516 = vrot.slane %v6512, 4
  %v6518 = vshrl.u32 %v6084, 16
  %v6520 = vrot.slane %v6518, 7
  %v6521 = vshll.u32 %v6084, 16
  %v6523 = vor.u32 %v6520, %v6521
  %v6524 = vsel %vm6100, %v6516, %v6523
  %v6525 = vrot.slane %v6520, 4
  %v6527 = vshrl.u32 %v6085, 16
  %v6529 = vrot.slane %v6527, 7
  %v6530 = vshll.u32 %v6085, 16
  %v6532 = vor.u32 %v6529, %v6530
  %v6533 = vrot.slane %v6529, 4
  %v6535 = vshrl.u32 %v6086, 16
  %v6537 = vrot.slane %v6535, 7
  %v6538 = vshll.u32 %v6086, 16
  %v6540 = vor.u32 %v6537, %v6538
  %v6541 = vsel %vm6100, %v6533, %v6540
  %v6542 = vrot.slane %v6537, 4
  %v6544 = vshrl.u32 %v6087, 16
  %v6546 = vrot.slane %v6544, 7
  %v6547 = vshll.u32 %v6087, 16
  %v6549 = vor.u32 %v6546, %v6547
  %v6550 = vrot.slane %v6546, 4
  %v6552 = vshrl.u32 %v6088, 16
  %v6554 = vrot.slane %v6552, 7
  %v6555 = vshll.u32 %v6088, 16
  %v6557 = vor.u32 %v6554, %v6555
  %v6558 = vsel %vm6100, %v6550, %v6557
  %v6559 = vrot.slane %v6554, 4
  %v6561 = vshrl.u32 %v6089, 16
  %v6563 = vrot.slane %v6561, 7
  %v6564 = vshll.u32 %v6089, 16
  %v6566 = vor.u32 %v6563, %v6564
  %v6567 = vrot.slane %v6563, 4
  %v6569 = vshrl.u32 %v6090, 16
  %v6571 = vrot.slane %v6569, 7
  %v6572 = vshll.u32 %v6090, 16
  %v6574 = vor.u32 %v6571, %v6572
  %v6575 = vsel %vm6100, %v6567, %v6574
  %v6576 = vrot.slane %v6571, 4
  %v6578 = vshrl.u32 %v6091, 16
  %v6580 = vrot.slane %v6578, 7
  %v6581 = vshll.u32 %v6091, 16
  %v6583 = vor.u32 %v6580, %v6581
  %v6584 = vrot.slane %v6580, 4
  %v6586 = vshrl.u32 %v6092, 16
  %v6588 = vrot.slane %v6586, 7
  %v6589 = vshll.u32 %v6092, 16
  %v6591 = vor.u32 %v6588, %v6589
  %v6592 = vsel %vm6100, %v6584, %v6591
  %v6593 = vrot.slane %v6588, 4
  %v6595 = vshrl.u32 %v6093, 16
  %v6597 = vrot.slane %v6595, 7
  %v6598 = vshll.u32 %v6093, 16
  %v6600 = vor.u32 %v6597, %v6598
  %v6601 = vrot.slane %v6597, 4
  %v6603 = vshrl.u32 %v6094, 16
  %v6605 = vrot.slane %v6603, 7
  %v6606 = vshll.u32 %v6094, 16
  %v6608 = vor.u32 %v6605, %v6606
  %v6609 = vsel %vm6100, %v6601, %v6608
  %v6610 = vrot.slane %v6605, 4
  %v6612 = vshrl.u32 %v6095, 16
  %v6614 = vrot.slane %v6612, 7
  %v6615 = vshll.u32 %v6095, 16
  %v6617 = vor.u32 %v6614, %v6615
  %v6618 = vrot.slane %v6614, 4
  %v6620 = vshrl.u32 %v6096, 16
  %v6622 = vrot.slane %v6620, 7
  %v6623 = vshll.u32 %v6096, 16
  %v6625 = vor.u32 %v6622, %v6623
  %v6626 = vsel %vm6100, %v6618, %v6625
  %v6627 = vrot.slane %v6622, 4
  %v6629 = vshrl.u32 %v6097, 16
  %v6631 = vrot.slane %v6629, 7
  %v6632 = vshll.u32 %v6097, 16
  %v6634 = vor.u32 %v6631, %v6632
  %v6635 = vrot.slane %v6631, 4
  %v6637 = vshrl.u32 %v6098, 16
  %v6639 = vrot.slane %v6637, 7
  %v6640 = vshll.u32 %v6098, 16
  %v6642 = vor.u32 %v6639, %v6640
  %v6643 = vsel %vm6100, %v6635, %v6642
  %v6644 = vrot.slane %v6639, 4
  %vm6741 = vcmask 1043456
  %vm6742 = vmand %vm6741, %vm5841
  %v6743 = vld [vmem:[%s5741] sm:$0xf]
  %v6744 = vsel %vm6742, %v6107, %v6743
  %6745 = vst [vmem:[%s5741] sm:$0xf] %v6744
  %6746 = vst [vmem:[%s5741 + $0x4] sm:$0xf] %v6116
  %v6747 = vld [vmem:[%s5741 + $0x8] sm:$0x1]
  %v6748 = vsel %vm5744, %v6117, %v6747
  %6749 = vst [vmem:[%s5741 + $0x8] sm:$0x1] %v6748
  %v6750 = vld [vmem:[%s5741 + $0xc] sm:$0xf]
  %v6751 = vsel %vm6742, %v6124, %v6750
  %6752 = vst [vmem:[%s5741 + $0xc] sm:$0xf] %v6751
  %6753 = vst [vmem:[%s5741 + $0x10] sm:$0xf] %v6133
  %v6754 = vld [vmem:[%s5741 + $0x14] sm:$0x1]
  %v6755 = vsel %vm5744, %v6134, %v6754
  %6756 = vst [vmem:[%s5741 + $0x14] sm:$0x1] %v6755
  %v6757 = vld [vmem:[%s5741 + $0x18] sm:$0xf]
  %v6758 = vsel %vm6742, %v6141, %v6757
  %6759 = vst [vmem:[%s5741 + $0x18] sm:$0xf] %v6758
  %6760 = vst [vmem:[%s5741 + $0x1c] sm:$0xf] %v6150
  %v6761 = vld [vmem:[%s5741 + $0x20] sm:$0x1]
  %v6762 = vsel %vm5744, %v6151, %v6761
  %6763 = vst [vmem:[%s5741 + $0x20] sm:$0x1] %v6762
  %v6764 = vld [vmem:[%s5741 + $0x24] sm:$0xf]
  %v6765 = vsel %vm6742, %v6158, %v6764
  %6766 = vst [vmem:[%s5741 + $0x24] sm:$0xf] %v6765
  %6767 = vst [vmem:[%s5741 + $0x28] sm:$0xf] %v6167
  %v6768 = vld [vmem:[%s5741 + $0x2c] sm:$0x1]
  %v6769 = vsel %vm5744, %v6168, %v6768
  %6770 = vst [vmem:[%s5741 + $0x2c] sm:$0x1] %v6769
  %v6771 = vld [vmem:[%s5741 + $0x30] sm:$0xf]
  %v6772 = vsel %vm6742, %v6175, %v6771
  %6773 = vst [vmem:[%s5741 + $0x30] sm:$0xf] %v6772
  %6774 = vst [vmem:[%s5741 + $0x34] sm:$0xf] %v6184
  %v6775 = vld [vmem:[%s5741 + $0x38] sm:$0x1]
  %v6776 = vsel %vm5744, %v6185, %v6775
  %6777 = vst [vmem:[%s5741 + $0x38] sm:$0x1] %v6776
  %v6778 = vld [vmem:[%s5741 + $0x3c] sm:$0xf]
  %v6779 = vsel %vm6742, %v6192, %v6778
  %6780 = vst [vmem:[%s5741 + $0x3c] sm:$0xf] %v6779
  %6781 = vst [vmem:[%s5741 + $0x40] sm:$0xf] %v6201
  %v6782 = vld [vmem:[%s5741 + $0x44] sm:$0x1]
  %v6783 = vsel %vm5744, %v6202, %v6782
  %6784 = vst [vmem:[%s5741 + $0x44] sm:$0x1] %v6783
  %v6785 = vld [vmem:[%s5741 + $0x48] sm:$0xf]
  %v6786 = vsel %vm6742, %v6209, %v6785
  %6787 = vst [vmem:[%s5741 + $0x48] sm:$0xf] %v6786
  %6788 = vst [vmem:[%s5741 + $0x4c] sm:$0xf] %v6218
  %v6789 = vld [vmem:[%s5741 + $0x50] sm:$0x1]
  %v6790 = vsel %vm5744, %v6219, %v6789
  %6791 = vst [vmem:[%s5741 + $0x50] sm:$0x1] %v6790
  %v6792 = vld [vmem:[%s5741 + $0x54] sm:$0xf]
  %v6793 = vsel %vm6742, %v6226, %v6792
  %6794 = vst [vmem:[%s5741 + $0x54] sm:$0xf] %v6793
  %6795 = vst [vmem:[%s5741 + $0x58] sm:$0xf] %v6235
  %v6796 = vld [vmem:[%s5741 + $0x5c] sm:$0x1]
  %v6797 = vsel %vm5744, %v6236, %v6796
  %6798 = vst [vmem:[%s5741 + $0x5c] sm:$0x1] %v6797
  %v6799 = vld [vmem:[%s5741 + $0x60] sm:$0xf]
  %v6800 = vsel %vm6742, %v6243, %v6799
  %6801 = vst [vmem:[%s5741 + $0x60] sm:$0xf] %v6800
  %6802 = vst [vmem:[%s5741 + $0x64] sm:$0xf] %v6252
  %v6803 = vld [vmem:[%s5741 + $0x68] sm:$0x1]
  %v6804 = vsel %vm5744, %v6253, %v6803
  %6805 = vst [vmem:[%s5741 + $0x68] sm:$0x1] %v6804
  %v6806 = vld [vmem:[%s5741 + $0x6c] sm:$0xf]
  %v6807 = vsel %vm6742, %v6260, %v6806
  %6808 = vst [vmem:[%s5741 + $0x6c] sm:$0xf] %v6807
  %6809 = vst [vmem:[%s5741 + $0x70] sm:$0xf] %v6269
  %v6810 = vld [vmem:[%s5741 + $0x74] sm:$0x1]
  %v6811 = vsel %vm5744, %v6270, %v6810
  %6812 = vst [vmem:[%s5741 + $0x74] sm:$0x1] %v6811
  %v6813 = vld [vmem:[%s5741 + $0x78] sm:$0xf]
  %v6814 = vsel %vm6742, %v6277, %v6813
  %6815 = vst [vmem:[%s5741 + $0x78] sm:$0xf] %v6814
  %6816 = vst [vmem:[%s5741 + $0x7c] sm:$0xf] %v6286
  %v6817 = vld [vmem:[%s5741 + $0x80] sm:$0x1]
  %v6818 = vsel %vm5744, %v6287, %v6817
  %6819 = vst [vmem:[%s5741 + $0x80] sm:$0x1] %v6818
  %v6820 = vld [vmem:[%s5741 + $0x84] sm:$0xf]
  %v6821 = vsel %vm6742, %v6294, %v6820
  %6822 = vst [vmem:[%s5741 + $0x84] sm:$0xf] %v6821
  %6823 = vst [vmem:[%s5741 + $0x88] sm:$0xf] %v6303
  %v6824 = vld [vmem:[%s5741 + $0x8c] sm:$0x1]
  %v6825 = vsel %vm5744, %v6304, %v6824
  %6826 = vst [vmem:[%s5741 + $0x8c] sm:$0x1] %v6825
  %v6827 = vld [vmem:[%s5741 + $0x90] sm:$0xf]
  %v6828 = vsel %vm6742, %v6311, %v6827
  %6829 = vst [vmem:[%s5741 + $0x90] sm:$0xf] %v6828
  %6830 = vst [vmem:[%s5741 + $0x94] sm:$0xf] %v6320
  %v6831 = vld [vmem:[%s5741 + $0x98] sm:$0x1]
  %v6832 = vsel %vm5744, %v6321, %v6831
  %6833 = vst [vmem:[%s5741 + $0x98] sm:$0x1] %v6832
  %v6834 = vld [vmem:[%s5741 + $0x9c] sm:$0xf]
  %v6835 = vsel %vm6742, %v6328, %v6834
  %6836 = vst [vmem:[%s5741 + $0x9c] sm:$0xf] %v6835
  %6837 = vst [vmem:[%s5741 + $0xa0] sm:$0xf] %v6337
  %v6838 = vld [vmem:[%s5741 + $0xa4] sm:$0x1]
  %v6839 = vsel %vm5744, %v6338, %v6838
  %6840 = vst [vmem:[%s5741 + $0xa4] sm:$0x1] %v6839
  %v6841 = vld [vmem:[%s5741 + $0xa8] sm:$0xf]
  %v6842 = vsel %vm6742, %v6345, %v6841
  %6843 = vst [vmem:[%s5741 + $0xa8] sm:$0xf] %v6842
  %6844 = vst [vmem:[%s5741 + $0xac] sm:$0xf] %v6354
  %v6845 = vld [vmem:[%s5741 + $0xb0] sm:$0x1]
  %v6846 = vsel %vm5744, %v6355, %v6845
  %6847 = vst [vmem:[%s5741 + $0xb0] sm:$0x1] %v6846
  %v6848 = vld [vmem:[%s5741 + $0xb4] sm:$0xf]
  %v6849 = vsel %vm6742, %v6362, %v6848
  %6850 = vst [vmem:[%s5741 + $0xb4] sm:$0xf] %v6849
  %6851 = vst [vmem:[%s5741 + $0xb8] sm:$0xf] %v6371
  %v6852 = vld [vmem:[%s5741 + $0xbc] sm:$0x1]
  %v6853 = vsel %vm5744, %v6372, %v6852
  %6854 = vst [vmem:[%s5741 + $0xbc] sm:$0x1] %v6853
  %v6855 = vld [vmem:[%s5741 + $0xd8] sm:$0xf]
  %v6856 = vsel %vm6742, %v6379, %v6855
  %6857 = vst [vmem:[%s5741 + $0xd8] sm:$0xf] %v6856
  %6858 = vst [vmem:[%s5741 + $0xdc] sm:$0xf] %v6388
  %v6859 = vld [vmem:[%s5741 + $0xe0] sm:$0x1]
  %v6860 = vsel %vm5744, %v6389, %v6859
  %6861 = vst [vmem:[%s5741 + $0xe0] sm:$0x1] %v6860
  %v6862 = vld [vmem:[%s5741 + $0xe4] sm:$0xf]
  %v6863 = vsel %vm6742, %v6396, %v6862
  %6864 = vst [vmem:[%s5741 + $0xe4] sm:$0xf] %v6863
  %6865 = vst [vmem:[%s5741 + $0xe8] sm:$0xf] %v6405
  %v6866 = vld [vmem:[%s5741 + $0xec] sm:$0x1]
  %v6867 = vsel %vm5744, %v6406, %v6866
  %6868 = vst [vmem:[%s5741 + $0xec] sm:$0x1] %v6867
  %v6869 = vld [vmem:[%s5741 + $0xf0] sm:$0xf]
  %v6870 = vsel %vm6742, %v6413, %v6869
  %6871 = vst [vmem:[%s5741 + $0xf0] sm:$0xf] %v6870
  %6872 = vst [vmem:[%s5741 + $0xf4] sm:$0xf] %v6422
  %v6873 = vld [vmem:[%s5741 + $0xf8] sm:$0x1]
  %v6874 = vsel %vm5744, %v6423, %v6873
  %6875 = vst [vmem:[%s5741 + $0xf8] sm:$0x1] %v6874
  %v6876 = vld [vmem:[%s5741 + $0xfc] sm:$0xf]
  %v6877 = vsel %vm6742, %v6430, %v6876
  %6878 = vst [vmem:[%s5741 + $0xfc] sm:$0xf] %v6877
  %6879 = vst [vmem:[%s5741 + $0x100] sm:$0xf] %v6439
  %v6880 = vld [vmem:[%s5741 + $0x104] sm:$0x1]
  %v6881 = vsel %vm5744, %v6440, %v6880
  %6882 = vst [vmem:[%s5741 + $0x104] sm:$0x1] %v6881
  %v6883 = vld [vmem:[%s5741 + $0x108] sm:$0xf]
  %v6884 = vsel %vm6742, %v6447, %v6883
  %6885 = vst [vmem:[%s5741 + $0x108] sm:$0xf] %v6884
  %6886 = vst [vmem:[%s5741 + $0x10c] sm:$0xf] %v6456
  %v6887 = vld [vmem:[%s5741 + $0x110] sm:$0x1]
  %v6888 = vsel %vm5744, %v6457, %v6887
  %6889 = vst [vmem:[%s5741 + $0x110] sm:$0x1] %v6888
  %v6890 = vld [vmem:[%s5741 + $0x114] sm:$0xf]
  %v6891 = vsel %vm6742, %v6464, %v6890
  %6892 = vst [vmem:[%s5741 + $0x114] sm:$0xf] %v6891
  %6893 = vst [vmem:[%s5741 + $0x118] sm:$0xf] %v6473
  %v6894 = vld [vmem:[%s5741 + $0x11c] sm:$0x1]
  %v6895 = vsel %vm5744, %v6474, %v6894
  %6896 = vst [vmem:[%s5741 + $0x11c] sm:$0x1] %v6895
  %v6897 = vld [vmem:[%s5741 + $0x120] sm:$0xf]
  %v6898 = vsel %vm6742, %v6481, %v6897
  %6899 = vst [vmem:[%s5741 + $0x120] sm:$0xf] %v6898
  %6900 = vst [vmem:[%s5741 + $0x124] sm:$0xf] %v6490
  %v6901 = vld [vmem:[%s5741 + $0x128] sm:$0x1]
  %v6902 = vsel %vm5744, %v6491, %v6901
  %6903 = vst [vmem:[%s5741 + $0x128] sm:$0x1] %v6902
  %v6904 = vld [vmem:[%s5741 + $0x12c] sm:$0xf]
  %v6905 = vsel %vm6742, %v6498, %v6904
  %6906 = vst [vmem:[%s5741 + $0x12c] sm:$0xf] %v6905
  %6907 = vst [vmem:[%s5741 + $0x130] sm:$0xf] %v6507
  %v6908 = vld [vmem:[%s5741 + $0x134] sm:$0x1]
  %v6909 = vsel %vm5744, %v6508, %v6908
  %6910 = vst [vmem:[%s5741 + $0x134] sm:$0x1] %v6909
  %v6911 = vld [vmem:[%s5741 + $0x138] sm:$0xf]
  %v6912 = vsel %vm6742, %v6515, %v6911
  %6913 = vst [vmem:[%s5741 + $0x138] sm:$0xf] %v6912
  %6914 = vst [vmem:[%s5741 + $0x13c] sm:$0xf] %v6524
  %v6915 = vld [vmem:[%s5741 + $0x140] sm:$0x1]
  %v6916 = vsel %vm5744, %v6525, %v6915
  %6917 = vst [vmem:[%s5741 + $0x140] sm:$0x1] %v6916
  %v6918 = vld [vmem:[%s5741 + $0x144] sm:$0xf]
  %v6919 = vsel %vm6742, %v6532, %v6918
  %6920 = vst [vmem:[%s5741 + $0x144] sm:$0xf] %v6919
  %6921 = vst [vmem:[%s5741 + $0x148] sm:$0xf] %v6541
  %v6922 = vld [vmem:[%s5741 + $0x14c] sm:$0x1]
  %v6923 = vsel %vm5744, %v6542, %v6922
  %6924 = vst [vmem:[%s5741 + $0x14c] sm:$0x1] %v6923
  %v6925 = vld [vmem:[%s5741 + $0x150] sm:$0xf]
  %v6926 = vsel %vm6742, %v6549, %v6925
  %6927 = vst [vmem:[%s5741 + $0x150] sm:$0xf] %v6926
  %6928 = vst [vmem:[%s5741 + $0x154] sm:$0xf] %v6558
  %v6929 = vld [vmem:[%s5741 + $0x158] sm:$0x1]
  %v6930 = vsel %vm5744, %v6559, %v6929
  %6931 = vst [vmem:[%s5741 + $0x158] sm:$0x1] %v6930
  %v6932 = vld [vmem:[%s5741 + $0x15c] sm:$0xf]
  %v6933 = vsel %vm6742, %v6566, %v6932
  %6934 = vst [vmem:[%s5741 + $0x15c] sm:$0xf] %v6933
  %6935 = vst [vmem:[%s5741 + $0x160] sm:$0xf] %v6575
  %v6936 = vld [vmem:[%s5741 + $0x164] sm:$0x1]
  %v6937 = vsel %vm5744, %v6576, %v6936
  %6938 = vst [vmem:[%s5741 + $0x164] sm:$0x1] %v6937
  %v6939 = vld [vmem:[%s5741 + $0x168] sm:$0xf]
  %v6940 = vsel %vm6742, %v6583, %v6939
  %6941 = vst [vmem:[%s5741 + $0x168] sm:$0xf] %v6940
  %6942 = vst [vmem:[%s5741 + $0x16c] sm:$0xf] %v6592
  %v6943 = vld [vmem:[%s5741 + $0x170] sm:$0x1]
  %v6944 = vsel %vm5744, %v6593, %v6943
  %6945 = vst [vmem:[%s5741 + $0x170] sm:$0x1] %v6944
  %v6946 = vld [vmem:[%s5741 + $0x174] sm:$0xf]
  %v6947 = vsel %vm6742, %v6600, %v6946
  %6948 = vst [vmem:[%s5741 + $0x174] sm:$0xf] %v6947
  %6949 = vst [vmem:[%s5741 + $0x178] sm:$0xf] %v6609
  %v6950 = vld [vmem:[%s5741 + $0x17c] sm:$0x1]
  %v6951 = vsel %vm5744, %v6610, %v6950
  %6952 = vst [vmem:[%s5741 + $0x17c] sm:$0x1] %v6951
  %v6953 = vld [vmem:[%s5741 + $0x180] sm:$0xf]
  %v6954 = vsel %vm6742, %v6617, %v6953
  %6955 = vst [vmem:[%s5741 + $0x180] sm:$0xf] %v6954
  %6956 = vst [vmem:[%s5741 + $0x184] sm:$0xf] %v6626
  %v6957 = vld [vmem:[%s5741 + $0x188] sm:$0x1]
  %v6958 = vsel %vm5744, %v6627, %v6957
  %6959 = vst [vmem:[%s5741 + $0x188] sm:$0x1] %v6958
  %v6960 = vld [vmem:[%s5741 + $0x18c] sm:$0xf]
  %v6961 = vsel %vm6742, %v6634, %v6960
  %6962 = vst [vmem:[%s5741 + $0x18c] sm:$0xf] %v6961
  %6963 = vst [vmem:[%s5741 + $0x190] sm:$0xf] %v6643
  %v6964 = vld [vmem:[%s5741 + $0x194] sm:$0x1]
  %v6965 = vsel %vm5744, %v6644, %v6964
  %6966 = vst [vmem:[%s5741 + $0x194] sm:$0x1] %v6965
  // Predicated region
  $region14: #{residual_block.3} parent=0 // pred_check
    _
  $region15: #{residual_block.3} parent=0 // pred_check_branch
    %6968 = sbr.rel (0) target = $region17
  $region16: #{residual_block.3} parent=0 // pred_region
    _
  $region17: #{residual_block.3} parent=0 // pred_fallthru
    _
  // Predicated region
  $region18: #{residual_block.3} parent=0 // pred_check
    _
  $region19: #{residual_block.3} parent=0 // pred_check_branch
    %6970 = sbr.rel (0) target = $region21
  $region20: #{residual_block.3} parent=0 // pred_region
    _
  $region21: #{residual_block.3} parent=0 // pred_fallthru
    _
  // Predicated region
  $region22: #{residual_block.3} parent=0 // pred_check
    _
  $region23: #{residual_block.3} parent=0 // pred_check_branch
    %6972 = sbr.rel (0) target = $region25
  $region24: #{residual_block.3} parent=0 // pred_region
    _
  $region25: #{residual_block.3} parent=0 // pred_fallthru
    _
  // Predicated region
  $region26: #{residual_block.3} parent=0 // pred_check
    _
  $region27: #{residual_block.3} parent=0 // pred_check_branch
    %6974 = sbr.rel (0) target = $region29
  $region28: #{residual_block.3} parent=0 // pred_region
    _
  $region29: #{residual_block.3} parent=0 // pred_fallthru
    _

</llo_original>
